<compile_context>
chip_gen: v6e
topology: v6e:2x2x1
jax: 0.10.0
libtpu: 0.0.40
codegen_flags: <defaults>
</compile_context>

<pallas_src>
import functools

import numpy as np
import jax
import jax.numpy as jnp
from jax import lax
from jax.experimental import pallas as pl
from jax.experimental.pallas import tpu as pltpu


# -----------------------------------------------------------------------------
# Fused Pallas kernel: one grid step == one DataConsisted block application on
# the full batch; the rows-form image state stays resident in the output block.
# -----------------------------------------------------------------------------
def _fused_model_kernel(
    blk_ref, rows0_ref, kf_ref, maskc_ref,
    bh_ref, bw_ref, biw_ref, bih_ref,
    w1_ref, b1_ref, w2_ref, b2_ref,
    state_ref, cols_buf,
    *, B, H, W, c_in, c_hid,
):
    f32 = jnp.float32
    BW = B * W
    step = pl.program_id(0)

    # ---- step 0: seed the resident rows-form state ([Xr ; Xi], batch in lanes)
    @pl.when(step == 0)
    def _init():
        state_ref[...] = rows0_ref[...]

    # ---- per-step block weights: SMEM scalars, hoisted out of every loop -----
    blk = blk_ref[step]
    W1_SZ = 9 * c_in * c_hid
    W2_SZ = 9 * c_hid * c_in
    w1_s = [w1_ref[blk * W1_SZ + i] for i in range(W1_SZ)]
    b1_s = [b1_ref[blk * c_hid + i] for i in range(c_hid)]
    w2_s = [w2_ref[blk * W2_SZ + i] for i in range(W2_SZ)]
    b2_s = [b2_ref[blk * c_in + i] for i in range(c_in)]

    # ---- edge masks for the batch-fused SAME conv (zero the circular wrap) ---
    col = lax.broadcasted_iota(jnp.int32, (H, BW), 1)
    row = lax.broadcasted_iota(jnp.int32, (H, BW), 0)
    valid_l = col != 0
    valid_r = col != (W - 1)
    for b in range(1, B):
        valid_l = jnp.logical_and(valid_l, col != b * W)
        valid_r = jnp.logical_and(valid_r, col != (b * W + W - 1))
    m_left = valid_l.astype(f32)    # tap reads x-1 : invalid at batch-left edge
    m_right = valid_r.astype(f32)   # tap reads x+1 : invalid at batch-right edge
    m_top = (row != 0).astype(f32)          # tap reads y-1
    m_bot = (row != (H - 1)).astype(f32)    # tap reads y+1

    def conv3x3(srcs, n_out, w_s, b_s, relu):
        """3x3 SAME conv on batch-fused (H, B*W) slabs via XLU rolls + masks."""
        n_in = len(srcs)
        acc = [None] * n_out
        for ci, src in enumerate(srcs):
            hvar = (pltpu.roll(src, 1, 1) * m_left,        # dw=0: reads x-1
                    src,                                    # dw=1
                    pltpu.roll(src, BW - 1, 1) * m_right)   # dw=2: reads x+1
            for dw in range(3):
                hv = hvar[dw]
                vvar = (pltpu.roll(hv, 1, 0) * m_top,       # dh=0: reads y-1
                        hv,                                  # dh=1
                        pltpu.roll(hv, H - 1, 0) * m_bot)    # dh=2: reads y+1
                for dh in range(3):
                    sv = vvar[dh]
                    base = ((dh * 3 + dw) * n_in + ci) * n_out
                    for co in range(n_out):
                        t = sv * w_s[base + co]
                        acc[co] = t if acc[co] is None else acc[co] + t
        outs = []
        for co in range(n_out):
            a = acc[co] + b_s[co]            # bias added once at the end
            if relu:
                a = jnp.maximum(a, 0.0)
            outs.append(a)
        return outs

    # ---- conv residual refinement (batch folded into the lane axis) ----------
    xr = state_ref[0:H, :]
    xi = state_ref[H:2 * H, :]
    hid = conv3x3([xr, xi], c_hid, w1_s, b1_s, relu=True)
    res = conv3x3(hid, c_in, w2_s, b2_s, relu=False)
    state_ref[0:H, :] = xr + res[0]
    state_ref[H:2 * H, :] = xi + res[1]

    # ---- k-space data consistency: block-complex DFT matmuls on the MXU ------
    def mm(a, b):
        return jnp.dot(a, b, preferred_element_type=jnp.float32)

    a_rows = mm(bh_ref[...], state_ref[...])                 # rows-form F_H @ X
    for b in range(B):                                       # rows -> cols (1/2)
        cols_buf[b * H:(b + 1) * H, 0:W] = a_rows[0:H, b * W:(b + 1) * W]
        cols_buf[b * H:(b + 1) * H, W:2 * W] = a_rows[H:2 * H, b * W:(b + 1) * W]
    k = mm(cols_buf[...], bw_ref[...])                       # cols-form k-space

    # binary sampling mask -> single vsel replaces m*kf + (1-m)*k
    k = jnp.where(maskc_ref[...] != 0.0, kf_ref[...], k)

    m_cols = mm(k, biw_ref[...])                             # K @ conj(F_W)/W
    for b in range(B):                                       # cols -> rows (2/2)
        state_ref[0:H, b * W:(b + 1) * W] = m_cols[b * H:(b + 1) * H, 0:W]
        state_ref[H:2 * H, b * W:(b + 1) * W] = m_cols[b * H:(b + 1) * H, W:2 * W]
    state_ref[...] = mm(bih_ref[...], state_ref[...])        # new rows-form state


# -----------------------------------------------------------------------------
# Block-complex DFT matrices (real 2x2-block representation of complex matmuls).
# -----------------------------------------------------------------------------
def _dft_block_matrices(H, W):
    def parts(n):
        idx = np.arange(n)
        ang = -2.0 * np.pi * np.outer(idx, idx) / n
        return np.cos(ang), np.sin(ang)

    fhr, fhi = parts(H)
    fwr, fwi = parts(W)
    # left-multiply blocks (act on row-stacked [Xr; Xi])
    bh = np.block([[fhr, -fhi], [fhi, fhr]]).astype(np.float32)
    bih = (np.block([[fhr, fhi], [-fhi, fhr]]) / H).astype(np.float32)   # conj/H
    # right-multiply blocks (act on column-stacked [Xr | Xi])
    bw = np.block([[fwr, fwi], [-fwi, fwr]]).astype(np.float32)
    biw = (np.block([[fwr, -fwi], [fwi, fwr]]) / W).astype(np.float32)   # conj/W
    return (jnp.asarray(bh), jnp.asarray(bih), jnp.asarray(bw), jnp.asarray(biw))


def _vmem_limit_bytes():
    # 128 MiB physical VMEM on v5e/v6e, 64 MiB per TC on v7x; leave headroom.
    try:
        cap = int(pltpu.get_tpu_info().vmem_capacity_bytes)
    except Exception:
        cap = 64 * 1024 * 1024
    return min((cap * 7) // 8, 100 * 1024 * 1024)


# -----------------------------------------------------------------------------
# pallas_call wrapper: ONE call for the whole unrolled/rolled iteration chain.
# -----------------------------------------------------------------------------
def fastmri_fused_pallas(image, known_freq, mask, blk_ids, weights, dft_blocks,
                         c_hid):
    B, C, H, W = image.shape
    assert C == 2
    w1, b1, w2, b2 = weights
    bh, bih, bw, biw = dft_blocks
    f32 = jnp.float32
    BW = B * W

    # One-time lane-dense layout conversions, done by XLA outside the kernel:
    #   rows-form state   : (2H, B*W) == [Xr ; Xi], batches side by side in lanes
    #   cols-form k-space : (B*H, 2W) == per batch [Kr | Ki]
    rows0 = jnp.transpose(image.astype(f32), (1, 2, 0, 3)).reshape(2 * H, BW)
    kf_cols = jnp.transpose(known_freq.astype(f32), (0, 2, 1, 3)).reshape(B * H, 2 * W)
    mask = mask.astype(f32)
    maskc = jnp.tile(jnp.concatenate([mask, mask], axis=1), (B, 1))

    num_steps = int(blk_ids.shape[0])
    kernel = functools.partial(
        _fused_model_kernel, B=B, H=H, W=W, c_in=2, c_hid=c_hid)

    smem = pl.BlockSpec(memory_space=pltpu.MemorySpace.SMEM)

    def const_spec(shape):
        # Constant-index resident block; the step axis is serial, so single
        # buffering is enough (halves input-side VMEM vs. the default of 2).
        return pl.BlockSpec(shape, lambda i: (0,) * len(shape),
                            pipeline_mode=pl.Buffered(1))

    grid_spec = pltpu.PrefetchScalarGridSpec(
        num_scalar_prefetch=0,
        grid=(num_steps,),
        in_specs=[
            smem,                            # blk_ids (per-step block selector)
            const_spec((2 * H, BW)),         # rows0  (seed state, read at step 0)
            const_spec((B * H, 2 * W)),      # known k-space, cols-form
            const_spec((B * H, 2 * W)),      # sampling mask,  cols-form
            const_spec((2 * H, 2 * H)),      # fwd DFT rows block
            const_spec((2 * W, 2 * W)),      # fwd DFT cols block
            const_spec((2 * W, 2 * W)),      # inv DFT cols block
            const_spec((2 * H, 2 * H)),      # inv DFT rows block
            smem, smem, smem, smem,          # w1 b1 w2 b2 (all blocks, flat)
        ],
        # Constant index across the serial step axis: the rows-form image state
        # lives in this output block (read+written every step, HBM write once).
        out_specs=pl.BlockSpec((2 * H, BW), lambda i: (0, 0)),
        scratch_shapes=[pltpu.VMEM((B * H, 2 * W), f32)],   # cols-form staging
    )
    rows_out = pl.pallas_call(
        kernel,
        out_shape=jax.ShapeDtypeStruct((2 * H, BW), f32),
        grid_spec=grid_spec,
        compiler_params=pltpu.CompilerParams(
            dimension_semantics=("arbitrary",),
            vmem_limit_bytes=_vmem_limit_bytes()),
    )(blk_ids, rows0, kf_cols, maskc, bh, bw, biw, bih, w1, b1, w2, b2)

    # rows-form -> NCHW once, outside the kernel.
    return rows_out.reshape(2, H, B, W).transpose(2, 0, 1, 3)


# -----------------------------------------------------------------------------
# Model class.
# -----------------------------------------------------------------------------
class FastMRIIterativeModel:
    """Pallas re-implementation of the PyTorch FastMRIIterativeModel."""

    def __init__(self, block_kwargs_list, block_name="DataConsistedStylishUNet",
                 iterative_type="unrolled", num_iterations=1, *, key=None):
        assert block_name == "DataConsistedStylishUNet"
        self.iterative_type = iterative_type
        self.num_iterations = num_iterations
        if key is None:
            key = jax.random.PRNGKey(0)

        self.block_params = []
        hidden = []
        for kwargs in block_kwargs_list:
            c_hid = int(kwargs.get("hidden_channels", 8))
            key, k1, k2, k3, k4 = jax.random.split(key, 5)
            w1 = (0.3 * jax.random.normal(k1, (3, 3, 2, c_hid))).astype(jnp.float32)
            b1 = (0.05 * jax.random.normal(k2, (c_hid,))).astype(jnp.float32)
            w2 = (0.3 * jax.random.normal(k3, (3, 3, c_hid, 2))).astype(jnp.float32)
            b2 = (0.05 * jax.random.normal(k4, (2,))).astype(jnp.float32)
            self.block_params.append((w1, b1, w2, b2))
            hidden.append(c_hid)

        self.nblocks = len(self.block_params)
        self.c_hid_max = max(hidden)

        # Stack per-block weights (zero-padded to c_hid_max) for SMEM selection.
        w1p, b1p, w2p, b2p = [], [], [], []
        for (w1, b1, w2, b2) in self.block_params:
            p = self.c_hid_max - w1.shape[3]
            w1p.append(jnp.pad(w1, ((0, 0), (0, 0), (0, 0), (0, p))).reshape(-1))
            b1p.append(jnp.pad(b1, ((0, p),)))
            w2p.append(jnp.pad(w2, ((0, 0), (0, 0), (0, p), (0, 0))).reshape(-1))
            b2p.append(b2)
        self.weights = (jnp.concatenate(w1p).astype(jnp.float32),
                        jnp.concatenate(b1p).astype(jnp.float32),
                        jnp.concatenate(w2p).astype(jnp.float32),
                        jnp.concatenate(b2p).astype(jnp.float32))

        self._dft_cache = {}

    def _dft(self, H, W):
        if (H, W) not in self._dft_cache:
            self._dft_cache[(H, W)] = _dft_block_matrices(H, W)
        return self._dft_cache[(H, W)]

    def __call__(self, image, known_freq, mask, texture=None, noise=None):
        # TODO(synk): texture/noise style-injection of the original block is not
        # public; the arguments are accepted and ignored.
        B, C, H, W = image.shape
        dft_blocks = self._dft(H, W)
        if self.iterative_type == "unrolled":
            blk_ids = np.tile(np.arange(self.nblocks, dtype=np.int32),
                              self.num_iterations)
        else:  # "rolled"
            blk_ids = np.zeros(self.num_iterations, dtype=np.int32)
        blk_ids = jnp.asarray(blk_ids, dtype=jnp.int32)
        return fastmri_fused_pallas(image, known_freq, mask, blk_ids,
                                    self.weights, dft_blocks, self.c_hid_max)


# -----------------------------------------------------------------------------
# Pure-JAX reference (FFT + lax.conv) for correctness checking.
# -----------------------------------------------------------------------------
def _block_reference(image, known_freq, mask, params):
    w1, b1, w2, b2 = params
    dn = ("NHWC", "HWIO", "NHWC")
    x = jnp.transpose(image, (0, 2, 3, 1))
    h = lax.conv_general_dilated(x, w1, (1, 1), "SAME", dimension_numbers=dn,
                                 precision=lax.Precision.HIGHEST) + b1
    h = jnp.maximum(h, 0.0)
    r = lax.conv_general_dilated(h, w2, (1, 1), "SAME", dimension_numbers=dn,
                                 precision=lax.Precision.HIGHEST) + b2
    x = x + r
    xc = x[..., 0] + 1j * x[..., 1]
    k = jnp.fft.fft2(xc)
    kf = known_freq[:, 0] + 1j * known_freq[:, 1]
    k = mask * kf + (1.0 - mask) * k
    y = jnp.fft.ifft2(k)
    return jnp.stack([jnp.real(y), jnp.imag(y)], axis=1).astype(jnp.float32)


if __name__ == "__main__":
    key = jax.random.PRNGKey(0)
    # B*W = 128 lanes and H % 8 == 0 keep the roll/matmul slabs tile-aligned.
    B, H, W = 2, 16, 64
    k_img, k_freq, k_mask, k_param = jax.random.split(key, 4)

    image = jax.random.normal(k_img, (B, 2, H, W), jnp.float32)
    known_freq = jax.random.normal(k_freq, (B, 2, H, W), jnp.float32)
    cols = jax.random.bernoulli(k_mask, 0.4, (W,))                    # column mask
    mask = jnp.broadcast_to(cols.astype(jnp.float32), (H, W))

    model = FastMRIIterativeModel(
        block_kwargs_list=[{"hidden_channels": 8}, {"hidden_channels": 8}],
        iterative_type="unrolled", num_iterations=2, key=k_param)

    out = jax.block_until_ready(model(image, known_freq, mask))

    ref = image
    for _ in range(model.num_iterations):
        for p in model.block_params:
            ref = _block_reference(ref, known_freq, mask, p)

    np.testing.assert_allclose(np.asarray(out), np.asarray(ref), atol=1e-2, rtol=1e-2)
    print("KERNEL_OK")
</pallas_src>

<mosaic_0001>
module attributes {stable_mosaic.version = 11 : i64} {
  func.func @_fused_model_kernel(%arg0: i32, %arg1: memref<4xi32, #tpu.memory_space<smem>>, %arg2: memref<32x128xf32, #tpu.memory_space<vmem>>, %arg3: memref<32x128xf32, #tpu.memory_space<vmem>>, %arg4: memref<32x128xf32, #tpu.memory_space<vmem>>, %arg5: memref<32x32xf32, #tpu.memory_space<vmem>>, %arg6: memref<128x128xf32, #tpu.memory_space<vmem>>, %arg7: memref<128x128xf32, #tpu.memory_space<vmem>>, %arg8: memref<32x32xf32, #tpu.memory_space<vmem>>, %arg9: memref<288xf32, #tpu.memory_space<smem>>, %arg10: memref<16xf32, #tpu.memory_space<smem>>, %arg11: memref<288xf32, #tpu.memory_space<smem>>, %arg12: memref<4xf32, #tpu.memory_space<smem>>, %arg13: memref<32x128xf32, #tpu.memory_space<vmem>>, %arg14: memref<32x128xf32, #tpu.memory_space<vmem>>) attributes {dimension_semantics = [#tpu.dimension_semantics<arbitrary>], iteration_bounds = array<i64: 4>, scalar_prefetch = 0 : i64, scratch_operands = 1 : i64, tpu.core_type = #tpu.core_type<tc>, window_params = [{transform_indices = @transform_0, window_bounds = array<i64: 4>}, {pipeline_mode = #tpu.pipeline_mode<synchronous>, transform_indices = @transform_1, window_bounds = array<i64: 32, 128>}, {pipeline_mode = #tpu.pipeline_mode<synchronous>, transform_indices = @transform_2, window_bounds = array<i64: 32, 128>}, {pipeline_mode = #tpu.pipeline_mode<synchronous>, transform_indices = @transform_3, window_bounds = array<i64: 32, 128>}, {pipeline_mode = #tpu.pipeline_mode<synchronous>, transform_indices = @transform_4, window_bounds = array<i64: 32, 32>}, {pipeline_mode = #tpu.pipeline_mode<synchronous>, transform_indices = @transform_5, window_bounds = array<i64: 128, 128>}, {pipeline_mode = #tpu.pipeline_mode<synchronous>, transform_indices = @transform_6, window_bounds = array<i64: 128, 128>}, {pipeline_mode = #tpu.pipeline_mode<synchronous>, transform_indices = @transform_7, window_bounds = array<i64: 32, 32>}, {transform_indices = @transform_8, window_bounds = array<i64: 288>}, {transform_indices = @transform_9, window_bounds = array<i64: 16>}, {transform_indices = @transform_10, window_bounds = array<i64: 288>}, {transform_indices = @transform_11, window_bounds = array<i64: 4>}, {pipeline_mode = #tpu.pipeline_mode<synchronous>, transform_indices = @transform_12, window_bounds = array<i64: 32, 128>}]} {
    %c0_i32 = arith.constant 0 : i32
    %0 = arith.cmpi eq, %arg0, %c0_i32 : i32
    %1 = arith.extui %0 : i1 to i32
    %c0_i32_0 = arith.constant 0 : i32
    %2 = arith.cmpi ne, %1, %c0_i32_0 : i32
    scf.if %2 {
      %c0_592 = arith.constant 0 : index
      %c0_593 = arith.constant 0 : index
      %2310 = vector.load %arg2[%c0_592, %c0_593] : memref<32x128xf32, #tpu.memory_space<vmem>>, vector<32x128xf32>
      %c0_594 = arith.constant 0 : index
      %c0_595 = arith.constant 0 : index
      %2311 = vector.load %arg13[%c0_594, %c0_595] : memref<32x128xf32, #tpu.memory_space<vmem>>, vector<32x128xf32>
      tpu.vector_store %arg13[%c0_594, %c0_595], %2310 {strides = array<i32>} : memref<32x128xf32, #tpu.memory_space<vmem>>, vector<32x128xf32>,
    } else {
    }
    %3 = arith.index_cast %arg0 : i32 to index
    %4 = memref.load %arg1[%3] : memref<4xi32, #tpu.memory_space<smem>>
    %c144_i32 = arith.constant 144 : i32
    %5 = arith.muli %4, %c144_i32 : i32
    %c0_i32_1 = arith.constant 0 : i32
    %6 = arith.addi %5, %c0_i32_1 : i32
    %7 = arith.index_cast %6 : i32 to index
    %8 = memref.load %arg9[%7] : memref<288xf32, #tpu.memory_space<smem>>
    %c144_i32_2 = arith.constant 144 : i32
    %9 = arith.muli %4, %c144_i32_2 : i32
    %c1_i32 = arith.constant 1 : i32
    %10 = arith.addi %9, %c1_i32 : i32
    %11 = arith.index_cast %10 : i32 to index
    %12 = memref.load %arg9[%11] : memref<288xf32, #tpu.memory_space<smem>>
    %c144_i32_3 = arith.constant 144 : i32
    %13 = arith.muli %4, %c144_i32_3 : i32
    %c2_i32 = arith.constant 2 : i32
    %14 = arith.addi %13, %c2_i32 : i32
    %15 = arith.index_cast %14 : i32 to index
    %16 = memref.load %arg9[%15] : memref<288xf32, #tpu.memory_space<smem>>
    %c144_i32_4 = arith.constant 144 : i32
    %17 = arith.muli %4, %c144_i32_4 : i32
    %c3_i32 = arith.constant 3 : i32
    %18 = arith.addi %17, %c3_i32 : i32
    %19 = arith.index_cast %18 : i32 to index
    %20 = memref.load %arg9[%19] : memref<288xf32, #tpu.memory_space<smem>>
    %c144_i32_5 = arith.constant 144 : i32
    %21 = arith.muli %4, %c144_i32_5 : i32
    %c4_i32 = arith.constant 4 : i32
    %22 = arith.addi %21, %c4_i32 : i32
    %23 = arith.index_cast %22 : i32 to index
    %24 = memref.load %arg9[%23] : memref<288xf32, #tpu.memory_space<smem>>
    %c144_i32_6 = arith.constant 144 : i32
    %25 = arith.muli %4, %c144_i32_6 : i32
    %c5_i32 = arith.constant 5 : i32
    %26 = arith.addi %25, %c5_i32 : i32
    %27 = arith.index_cast %26 : i32 to index
    %28 = memref.load %arg9[%27] : memref<288xf32, #tpu.memory_space<smem>>
    %c144_i32_7 = arith.constant 144 : i32
    %29 = arith.muli %4, %c144_i32_7 : i32
    %c6_i32 = arith.constant 6 : i32
    %30 = arith.addi %29, %c6_i32 : i32
    %31 = arith.index_cast %30 : i32 to index
    %32 = memref.load %arg9[%31] : memref<288xf32, #tpu.memory_space<smem>>
    %c144_i32_8 = arith.constant 144 : i32
    %33 = arith.muli %4, %c144_i32_8 : i32
    %c7_i32 = arith.constant 7 : i32
    %34 = arith.addi %33, %c7_i32 : i32
    %35 = arith.index_cast %34 : i32 to index
    %36 = memref.load %arg9[%35] : memref<288xf32, #tpu.memory_space<smem>>
    %c144_i32_9 = arith.constant 144 : i32
    %37 = arith.muli %4, %c144_i32_9 : i32
    %c8_i32 = arith.constant 8 : i32
    %38 = arith.addi %37, %c8_i32 : i32
    %39 = arith.index_cast %38 : i32 to index
    %40 = memref.load %arg9[%39] : memref<288xf32, #tpu.memory_space<smem>>
    %c144_i32_10 = arith.constant 144 : i32
    %41 = arith.muli %4, %c144_i32_10 : i32
    %c9_i32 = arith.constant 9 : i32
    %42 = arith.addi %41, %c9_i32 : i32
    %43 = arith.index_cast %42 : i32 to index
    %44 = memref.load %arg9[%43] : memref<288xf32, #tpu.memory_space<smem>>
    %c144_i32_11 = arith.constant 144 : i32
    %45 = arith.muli %4, %c144_i32_11 : i32
    %c10_i32 = arith.constant 10 : i32
    %46 = arith.addi %45, %c10_i32 : i32
    %47 = arith.index_cast %46 : i32 to index
    %48 = memref.load %arg9[%47] : memref<288xf32, #tpu.memory_space<smem>>
    %c144_i32_12 = arith.constant 144 : i32
    %49 = arith.muli %4, %c144_i32_12 : i32
    %c11_i32 = arith.constant 11 : i32
    %50 = arith.addi %49, %c11_i32 : i32
    %51 = arith.index_cast %50 : i32 to index
    %52 = memref.load %arg9[%51] : memref<288xf32, #tpu.memory_space<smem>>
    %c144_i32_13 = arith.constant 144 : i32
    %53 = arith.muli %4, %c144_i32_13 : i32
    %c12_i32 = arith.constant 12 : i32
    %54 = arith.addi %53, %c12_i32 : i32
    %55 = arith.index_cast %54 : i32 to index
    %56 = memref.load %arg9[%55] : memref<288xf32, #tpu.memory_space<smem>>
    %c144_i32_14 = arith.constant 144 : i32
    %57 = arith.muli %4, %c144_i32_14 : i32
    %c13_i32 = arith.constant 13 : i32
    %58 = arith.addi %57, %c13_i32 : i32
    %59 = arith.index_cast %58 : i32 to index
    %60 = memref.load %arg9[%59] : memref<288xf32, #tpu.memory_space<smem>>
    %c144_i32_15 = arith.constant 144 : i32
    %61 = arith.muli %4, %c144_i32_15 : i32
    %c14_i32 = arith.constant 14 : i32
    %62 = arith.addi %61, %c14_i32 : i32
    %63 = arith.index_cast %62 : i32 to index
    %64 = memref.load %arg9[%63] : memref<288xf32, #tpu.memory_space<smem>>
    %c144_i32_16 = arith.constant 144 : i32
    %65 = arith.muli %4, %c144_i32_16 : i32
    %c15_i32 = arith.constant 15 : i32
    %66 = arith.addi %65, %c15_i32 : i32
    %67 = arith.index_cast %66 : i32 to index
    %68 = memref.load %arg9[%67] : memref<288xf32, #tpu.memory_space<smem>>
    %c144_i32_17 = arith.constant 144 : i32
    %69 = arith.muli %4, %c144_i32_17 : i32
    %c16_i32 = arith.constant 16 : i32
    %70 = arith.addi %69, %c16_i32 : i32
    %71 = arith.index_cast %70 : i32 to index
    %72 = memref.load %arg9[%71] : memref<288xf32, #tpu.memory_space<smem>>
    %c144_i32_18 = arith.constant 144 : i32
    %73 = arith.muli %4, %c144_i32_18 : i32
    %c17_i32 = arith.constant 17 : i32
    %74 = arith.addi %73, %c17_i32 : i32
    %75 = arith.index_cast %74 : i32 to index
    %76 = memref.load %arg9[%75] : memref<288xf32, #tpu.memory_space<smem>>
    %c144_i32_19 = arith.constant 144 : i32
    %77 = arith.muli %4, %c144_i32_19 : i32
    %c18_i32 = arith.constant 18 : i32
    %78 = arith.addi %77, %c18_i32 : i32
    %79 = arith.index_cast %78 : i32 to index
    %80 = memref.load %arg9[%79] : memref<288xf32, #tpu.memory_space<smem>>
    %c144_i32_20 = arith.constant 144 : i32
    %81 = arith.muli %4, %c144_i32_20 : i32
    %c19_i32 = arith.constant 19 : i32
    %82 = arith.addi %81, %c19_i32 : i32
    %83 = arith.index_cast %82 : i32 to index
    %84 = memref.load %arg9[%83] : memref<288xf32, #tpu.memory_space<smem>>
    %c144_i32_21 = arith.constant 144 : i32
    %85 = arith.muli %4, %c144_i32_21 : i32
    %c20_i32 = arith.constant 20 : i32
    %86 = arith.addi %85, %c20_i32 : i32
    %87 = arith.index_cast %86 : i32 to index
    %88 = memref.load %arg9[%87] : memref<288xf32, #tpu.memory_space<smem>>
    %c144_i32_22 = arith.constant 144 : i32
    %89 = arith.muli %4, %c144_i32_22 : i32
    %c21_i32 = arith.constant 21 : i32
    %90 = arith.addi %89, %c21_i32 : i32
    %91 = arith.index_cast %90 : i32 to index
    %92 = memref.load %arg9[%91] : memref<288xf32, #tpu.memory_space<smem>>
    %c144_i32_23 = arith.constant 144 : i32
    %93 = arith.muli %4, %c144_i32_23 : i32
    %c22_i32 = arith.constant 22 : i32
    %94 = arith.addi %93, %c22_i32 : i32
    %95 = arith.index_cast %94 : i32 to index
    %96 = memref.load %arg9[%95] : memref<288xf32, #tpu.memory_space<smem>>
    %c144_i32_24 = arith.constant 144 : i32
    %97 = arith.muli %4, %c144_i32_24 : i32
    %c23_i32 = arith.constant 23 : i32
    %98 = arith.addi %97, %c23_i32 : i32
    %99 = arith.index_cast %98 : i32 to index
    %100 = memref.load %arg9[%99] : memref<288xf32, #tpu.memory_space<smem>>
    %c144_i32_25 = arith.constant 144 : i32
    %101 = arith.muli %4, %c144_i32_25 : i32
    %c24_i32 = arith.constant 24 : i32
    %102 = arith.addi %101, %c24_i32 : i32
    %103 = arith.index_cast %102 : i32 to index
    %104 = memref.load %arg9[%103] : memref<288xf32, #tpu.memory_space<smem>>
    %c144_i32_26 = arith.constant 144 : i32
    %105 = arith.muli %4, %c144_i32_26 : i32
    %c25_i32 = arith.constant 25 : i32
    %106 = arith.addi %105, %c25_i32 : i32
    %107 = arith.index_cast %106 : i32 to index
    %108 = memref.load %arg9[%107] : memref<288xf32, #tpu.memory_space<smem>>
    %c144_i32_27 = arith.constant 144 : i32
    %109 = arith.muli %4, %c144_i32_27 : i32
    %c26_i32 = arith.constant 26 : i32
    %110 = arith.addi %109, %c26_i32 : i32
    %111 = arith.index_cast %110 : i32 to index
    %112 = memref.load %arg9[%111] : memref<288xf32, #tpu.memory_space<smem>>
    %c144_i32_28 = arith.constant 144 : i32
    %113 = arith.muli %4, %c144_i32_28 : i32
    %c27_i32 = arith.constant 27 : i32
    %114 = arith.addi %113, %c27_i32 : i32
    %115 = arith.index_cast %114 : i32 to index
    %116 = memref.load %arg9[%115] : memref<288xf32, #tpu.memory_space<smem>>
    %c144_i32_29 = arith.constant 144 : i32
    %117 = arith.muli %4, %c144_i32_29 : i32
    %c28_i32 = arith.constant 28 : i32
    %118 = arith.addi %117, %c28_i32 : i32
    %119 = arith.index_cast %118 : i32 to index
    %120 = memref.load %arg9[%119] : memref<288xf32, #tpu.memory_space<smem>>
    %c144_i32_30 = arith.constant 144 : i32
    %121 = arith.muli %4, %c144_i32_30 : i32
    %c29_i32 = arith.constant 29 : i32
    %122 = arith.addi %121, %c29_i32 : i32
    %123 = arith.index_cast %122 : i32 to index
    %124 = memref.load %arg9[%123] : memref<288xf32, #tpu.memory_space<smem>>
    %c144_i32_31 = arith.constant 144 : i32
    %125 = arith.muli %4, %c144_i32_31 : i32
    %c30_i32 = arith.constant 30 : i32
    %126 = arith.addi %125, %c30_i32 : i32
    %127 = arith.index_cast %126 : i32 to index
    %128 = memref.load %arg9[%127] : memref<288xf32, #tpu.memory_space<smem>>
    %c144_i32_32 = arith.constant 144 : i32
    %129 = arith.muli %4, %c144_i32_32 : i32
    %c31_i32 = arith.constant 31 : i32
    %130 = arith.addi %129, %c31_i32 : i32
    %131 = arith.index_cast %130 : i32 to index
    %132 = memref.load %arg9[%131] : memref<288xf32, #tpu.memory_space<smem>>
    %c144_i32_33 = arith.constant 144 : i32
    %133 = arith.muli %4, %c144_i32_33 : i32
    %c32_i32 = arith.constant 32 : i32
    %134 = arith.addi %133, %c32_i32 : i32
    %135 = arith.index_cast %134 : i32 to index
    %136 = memref.load %arg9[%135] : memref<288xf32, #tpu.memory_space<smem>>
    %c144_i32_34 = arith.constant 144 : i32
    %137 = arith.muli %4, %c144_i32_34 : i32
    %c33_i32 = arith.constant 33 : i32
    %138 = arith.addi %137, %c33_i32 : i32
    %139 = arith.index_cast %138 : i32 to index
    %140 = memref.load %arg9[%139] : memref<288xf32, #tpu.memory_space<smem>>
    %c144_i32_35 = arith.constant 144 : i32
    %141 = arith.muli %4, %c144_i32_35 : i32
    %c34_i32 = arith.constant 34 : i32
    %142 = arith.addi %141, %c34_i32 : i32
    %143 = arith.index_cast %142 : i32 to index
    %144 = memref.load %arg9[%143] : memref<288xf32, #tpu.memory_space<smem>>
    %c144_i32_36 = arith.constant 144 : i32
    %145 = arith.muli %4, %c144_i32_36 : i32
    %c35_i32 = arith.constant 35 : i32
    %146 = arith.addi %145, %c35_i32 : i32
    %147 = arith.index_cast %146 : i32 to index
    %148 = memref.load %arg9[%147] : memref<288xf32, #tpu.memory_space<smem>>
    %c144_i32_37 = arith.constant 144 : i32
    %149 = arith.muli %4, %c144_i32_37 : i32
    %c36_i32 = arith.constant 36 : i32
    %150 = arith.addi %149, %c36_i32 : i32
    %151 = arith.index_cast %150 : i32 to index
    %152 = memref.load %arg9[%151] : memref<288xf32, #tpu.memory_space<smem>>
    %c144_i32_38 = arith.constant 144 : i32
    %153 = arith.muli %4, %c144_i32_38 : i32
    %c37_i32 = arith.constant 37 : i32
    %154 = arith.addi %153, %c37_i32 : i32
    %155 = arith.index_cast %154 : i32 to index
    %156 = memref.load %arg9[%155] : memref<288xf32, #tpu.memory_space<smem>>
    %c144_i32_39 = arith.constant 144 : i32
    %157 = arith.muli %4, %c144_i32_39 : i32
    %c38_i32 = arith.constant 38 : i32
    %158 = arith.addi %157, %c38_i32 : i32
    %159 = arith.index_cast %158 : i32 to index
    %160 = memref.load %arg9[%159] : memref<288xf32, #tpu.memory_space<smem>>
    %c144_i32_40 = arith.constant 144 : i32
    %161 = arith.muli %4, %c144_i32_40 : i32
    %c39_i32 = arith.constant 39 : i32
    %162 = arith.addi %161, %c39_i32 : i32
    %163 = arith.index_cast %162 : i32 to index
    %164 = memref.load %arg9[%163] : memref<288xf32, #tpu.memory_space<smem>>
    %c144_i32_41 = arith.constant 144 : i32
    %165 = arith.muli %4, %c144_i32_41 : i32
    %c40_i32 = arith.constant 40 : i32
    %166 = arith.addi %165, %c40_i32 : i32
    %167 = arith.index_cast %166 : i32 to index
    %168 = memref.load %arg9[%167] : memref<288xf32, #tpu.memory_space<smem>>
    %c144_i32_42 = arith.constant 144 : i32
    %169 = arith.muli %4, %c144_i32_42 : i32
    %c41_i32 = arith.constant 41 : i32
    %170 = arith.addi %169, %c41_i32 : i32
    %171 = arith.index_cast %170 : i32 to index
    %172 = memref.load %arg9[%171] : memref<288xf32, #tpu.memory_space<smem>>
    %c144_i32_43 = arith.constant 144 : i32
    %173 = arith.muli %4, %c144_i32_43 : i32
    %c42_i32 = arith.constant 42 : i32
    %174 = arith.addi %173, %c42_i32 : i32
    %175 = arith.index_cast %174 : i32 to index
    %176 = memref.load %arg9[%175] : memref<288xf32, #tpu.memory_space<smem>>
    %c144_i32_44 = arith.constant 144 : i32
    %177 = arith.muli %4, %c144_i32_44 : i32
    %c43_i32 = arith.constant 43 : i32
    %178 = arith.addi %177, %c43_i32 : i32
    %179 = arith.index_cast %178 : i32 to index
    %180 = memref.load %arg9[%179] : memref<288xf32, #tpu.memory_space<smem>>
    %c144_i32_45 = arith.constant 144 : i32
    %181 = arith.muli %4, %c144_i32_45 : i32
    %c44_i32 = arith.constant 44 : i32
    %182 = arith.addi %181, %c44_i32 : i32
    %183 = arith.index_cast %182 : i32 to index
    %184 = memref.load %arg9[%183] : memref<288xf32, #tpu.memory_space<smem>>
    %c144_i32_46 = arith.constant 144 : i32
    %185 = arith.muli %4, %c144_i32_46 : i32
    %c45_i32 = arith.constant 45 : i32
    %186 = arith.addi %185, %c45_i32 : i32
    %187 = arith.index_cast %186 : i32 to index
    %188 = memref.load %arg9[%187] : memref<288xf32, #tpu.memory_space<smem>>
    %c144_i32_47 = arith.constant 144 : i32
    %189 = arith.muli %4, %c144_i32_47 : i32
    %c46_i32 = arith.constant 46 : i32
    %190 = arith.addi %189, %c46_i32 : i32
    %191 = arith.index_cast %190 : i32 to index
    %192 = memref.load %arg9[%191] : memref<288xf32, #tpu.memory_space<smem>>
    %c144_i32_48 = arith.constant 144 : i32
    %193 = arith.muli %4, %c144_i32_48 : i32
    %c47_i32 = arith.constant 47 : i32
    %194 = arith.addi %193, %c47_i32 : i32
    %195 = arith.index_cast %194 : i32 to index
    %196 = memref.load %arg9[%195] : memref<288xf32, #tpu.memory_space<smem>>
    %c144_i32_49 = arith.constant 144 : i32
    %197 = arith.muli %4, %c144_i32_49 : i32
    %c48_i32 = arith.constant 48 : i32
    %198 = arith.addi %197, %c48_i32 : i32
    %199 = arith.index_cast %198 : i32 to index
    %200 = memref.load %arg9[%199] : memref<288xf32, #tpu.memory_space<smem>>
    %c144_i32_50 = arith.constant 144 : i32
    %201 = arith.muli %4, %c144_i32_50 : i32
    %c49_i32 = arith.constant 49 : i32
    %202 = arith.addi %201, %c49_i32 : i32
    %203 = arith.index_cast %202 : i32 to index
    %204 = memref.load %arg9[%203] : memref<288xf32, #tpu.memory_space<smem>>
    %c144_i32_51 = arith.constant 144 : i32
    %205 = arith.muli %4, %c144_i32_51 : i32
    %c50_i32 = arith.constant 50 : i32
    %206 = arith.addi %205, %c50_i32 : i32
    %207 = arith.index_cast %206 : i32 to index
    %208 = memref.load %arg9[%207] : memref<288xf32, #tpu.memory_space<smem>>
    %c144_i32_52 = arith.constant 144 : i32
    %209 = arith.muli %4, %c144_i32_52 : i32
    %c51_i32 = arith.constant 51 : i32
    %210 = arith.addi %209, %c51_i32 : i32
    %211 = arith.index_cast %210 : i32 to index
    %212 = memref.load %arg9[%211] : memref<288xf32, #tpu.memory_space<smem>>
    %c144_i32_53 = arith.constant 144 : i32
    %213 = arith.muli %4, %c144_i32_53 : i32
    %c52_i32 = arith.constant 52 : i32
    %214 = arith.addi %213, %c52_i32 : i32
    %215 = arith.index_cast %214 : i32 to index
    %216 = memref.load %arg9[%215] : memref<288xf32, #tpu.memory_space<smem>>
    %c144_i32_54 = arith.constant 144 : i32
    %217 = arith.muli %4, %c144_i32_54 : i32
    %c53_i32 = arith.constant 53 : i32
    %218 = arith.addi %217, %c53_i32 : i32
    %219 = arith.index_cast %218 : i32 to index
    %220 = memref.load %arg9[%219] : memref<288xf32, #tpu.memory_space<smem>>
    %c144_i32_55 = arith.constant 144 : i32
    %221 = arith.muli %4, %c144_i32_55 : i32
    %c54_i32 = arith.constant 54 : i32
    %222 = arith.addi %221, %c54_i32 : i32
    %223 = arith.index_cast %222 : i32 to index
    %224 = memref.load %arg9[%223] : memref<288xf32, #tpu.memory_space<smem>>
    %c144_i32_56 = arith.constant 144 : i32
    %225 = arith.muli %4, %c144_i32_56 : i32
    %c55_i32 = arith.constant 55 : i32
    %226 = arith.addi %225, %c55_i32 : i32
    %227 = arith.index_cast %226 : i32 to index
    %228 = memref.load %arg9[%227] : memref<288xf32, #tpu.memory_space<smem>>
    %c144_i32_57 = arith.constant 144 : i32
    %229 = arith.muli %4, %c144_i32_57 : i32
    %c56_i32 = arith.constant 56 : i32
    %230 = arith.addi %229, %c56_i32 : i32
    %231 = arith.index_cast %230 : i32 to index
    %232 = memref.load %arg9[%231] : memref<288xf32, #tpu.memory_space<smem>>
    %c144_i32_58 = arith.constant 144 : i32
    %233 = arith.muli %4, %c144_i32_58 : i32
    %c57_i32 = arith.constant 57 : i32
    %234 = arith.addi %233, %c57_i32 : i32
    %235 = arith.index_cast %234 : i32 to index
    %236 = memref.load %arg9[%235] : memref<288xf32, #tpu.memory_space<smem>>
    %c144_i32_59 = arith.constant 144 : i32
    %237 = arith.muli %4, %c144_i32_59 : i32
    %c58_i32 = arith.constant 58 : i32
    %238 = arith.addi %237, %c58_i32 : i32
    %239 = arith.index_cast %238 : i32 to index
    %240 = memref.load %arg9[%239] : memref<288xf32, #tpu.memory_space<smem>>
    %c144_i32_60 = arith.constant 144 : i32
    %241 = arith.muli %4, %c144_i32_60 : i32
    %c59_i32 = arith.constant 59 : i32
    %242 = arith.addi %241, %c59_i32 : i32
    %243 = arith.index_cast %242 : i32 to index
    %244 = memref.load %arg9[%243] : memref<288xf32, #tpu.memory_space<smem>>
    %c144_i32_61 = arith.constant 144 : i32
    %245 = arith.muli %4, %c144_i32_61 : i32
    %c60_i32 = arith.constant 60 : i32
    %246 = arith.addi %245, %c60_i32 : i32
    %247 = arith.index_cast %246 : i32 to index
    %248 = memref.load %arg9[%247] : memref<288xf32, #tpu.memory_space<smem>>
    %c144_i32_62 = arith.constant 144 : i32
    %249 = arith.muli %4, %c144_i32_62 : i32
    %c61_i32 = arith.constant 61 : i32
    %250 = arith.addi %249, %c61_i32 : i32
    %251 = arith.index_cast %250 : i32 to index
    %252 = memref.load %arg9[%251] : memref<288xf32, #tpu.memory_space<smem>>
    %c144_i32_63 = arith.constant 144 : i32
    %253 = arith.muli %4, %c144_i32_63 : i32
    %c62_i32 = arith.constant 62 : i32
    %254 = arith.addi %253, %c62_i32 : i32
    %255 = arith.index_cast %254 : i32 to index
    %256 = memref.load %arg9[%255] : memref<288xf32, #tpu.memory_space<smem>>
    %c144_i32_64 = arith.constant 144 : i32
    %257 = arith.muli %4, %c144_i32_64 : i32
    %c63_i32 = arith.constant 63 : i32
    %258 = arith.addi %257, %c63_i32 : i32
    %259 = arith.index_cast %258 : i32 to index
    %260 = memref.load %arg9[%259] : memref<288xf32, #tpu.memory_space<smem>>
    %c144_i32_65 = arith.constant 144 : i32
    %261 = arith.muli %4, %c144_i32_65 : i32
    %c64_i32 = arith.constant 64 : i32
    %262 = arith.addi %261, %c64_i32 : i32
    %263 = arith.index_cast %262 : i32 to index
    %264 = memref.load %arg9[%263] : memref<288xf32, #tpu.memory_space<smem>>
    %c144_i32_66 = arith.constant 144 : i32
    %265 = arith.muli %4, %c144_i32_66 : i32
    %c65_i32 = arith.constant 65 : i32
    %266 = arith.addi %265, %c65_i32 : i32
    %267 = arith.index_cast %266 : i32 to index
    %268 = memref.load %arg9[%267] : memref<288xf32, #tpu.memory_space<smem>>
    %c144_i32_67 = arith.constant 144 : i32
    %269 = arith.muli %4, %c144_i32_67 : i32
    %c66_i32 = arith.constant 66 : i32
    %270 = arith.addi %269, %c66_i32 : i32
    %271 = arith.index_cast %270 : i32 to index
    %272 = memref.load %arg9[%271] : memref<288xf32, #tpu.memory_space<smem>>
    %c144_i32_68 = arith.constant 144 : i32
    %273 = arith.muli %4, %c144_i32_68 : i32
    %c67_i32 = arith.constant 67 : i32
    %274 = arith.addi %273, %c67_i32 : i32
    %275 = arith.index_cast %274 : i32 to index
    %276 = memref.load %arg9[%275] : memref<288xf32, #tpu.memory_space<smem>>
    %c144_i32_69 = arith.constant 144 : i32
    %277 = arith.muli %4, %c144_i32_69 : i32
    %c68_i32 = arith.constant 68 : i32
    %278 = arith.addi %277, %c68_i32 : i32
    %279 = arith.index_cast %278 : i32 to index
    %280 = memref.load %arg9[%279] : memref<288xf32, #tpu.memory_space<smem>>
    %c144_i32_70 = arith.constant 144 : i32
    %281 = arith.muli %4, %c144_i32_70 : i32
    %c69_i32 = arith.constant 69 : i32
    %282 = arith.addi %281, %c69_i32 : i32
    %283 = arith.index_cast %282 : i32 to index
    %284 = memref.load %arg9[%283] : memref<288xf32, #tpu.memory_space<smem>>
    %c144_i32_71 = arith.constant 144 : i32
    %285 = arith.muli %4, %c144_i32_71 : i32
    %c70_i32 = arith.constant 70 : i32
    %286 = arith.addi %285, %c70_i32 : i32
    %287 = arith.index_cast %286 : i32 to index
    %288 = memref.load %arg9[%287] : memref<288xf32, #tpu.memory_space<smem>>
    %c144_i32_72 = arith.constant 144 : i32
    %289 = arith.muli %4, %c144_i32_72 : i32
    %c71_i32 = arith.constant 71 : i32
    %290 = arith.addi %289, %c71_i32 : i32
    %291 = arith.index_cast %290 : i32 to index
    %292 = memref.load %arg9[%291] : memref<288xf32, #tpu.memory_space<smem>>
    %c144_i32_73 = arith.constant 144 : i32
    %293 = arith.muli %4, %c144_i32_73 : i32
    %c72_i32 = arith.constant 72 : i32
    %294 = arith.addi %293, %c72_i32 : i32
    %295 = arith.index_cast %294 : i32 to index
    %296 = memref.load %arg9[%295] : memref<288xf32, #tpu.memory_space<smem>>
    %c144_i32_74 = arith.constant 144 : i32
    %297 = arith.muli %4, %c144_i32_74 : i32
    %c73_i32 = arith.constant 73 : i32
    %298 = arith.addi %297, %c73_i32 : i32
    %299 = arith.index_cast %298 : i32 to index
    %300 = memref.load %arg9[%299] : memref<288xf32, #tpu.memory_space<smem>>
    %c144_i32_75 = arith.constant 144 : i32
    %301 = arith.muli %4, %c144_i32_75 : i32
    %c74_i32 = arith.constant 74 : i32
    %302 = arith.addi %301, %c74_i32 : i32
    %303 = arith.index_cast %302 : i32 to index
    %304 = memref.load %arg9[%303] : memref<288xf32, #tpu.memory_space<smem>>
    %c144_i32_76 = arith.constant 144 : i32
    %305 = arith.muli %4, %c144_i32_76 : i32
    %c75_i32 = arith.constant 75 : i32
    %306 = arith.addi %305, %c75_i32 : i32
    %307 = arith.index_cast %306 : i32 to index
    %308 = memref.load %arg9[%307] : memref<288xf32, #tpu.memory_space<smem>>
    %c144_i32_77 = arith.constant 144 : i32
    %309 = arith.muli %4, %c144_i32_77 : i32
    %c76_i32 = arith.constant 76 : i32
    %310 = arith.addi %309, %c76_i32 : i32
    %311 = arith.index_cast %310 : i32 to index
    %312 = memref.load %arg9[%311] : memref<288xf32, #tpu.memory_space<smem>>
    %c144_i32_78 = arith.constant 144 : i32
    %313 = arith.muli %4, %c144_i32_78 : i32
    %c77_i32 = arith.constant 77 : i32
    %314 = arith.addi %313, %c77_i32 : i32
    %315 = arith.index_cast %314 : i32 to index
    %316 = memref.load %arg9[%315] : memref<288xf32, #tpu.memory_space<smem>>
    %c144_i32_79 = arith.constant 144 : i32
    %317 = arith.muli %4, %c144_i32_79 : i32
    %c78_i32 = arith.constant 78 : i32
    %318 = arith.addi %317, %c78_i32 : i32
    %319 = arith.index_cast %318 : i32 to index
    %320 = memref.load %arg9[%319] : memref<288xf32, #tpu.memory_space<smem>>
    %c144_i32_80 = arith.constant 144 : i32
    %321 = arith.muli %4, %c144_i32_80 : i32
    %c79_i32 = arith.constant 79 : i32
    %322 = arith.addi %321, %c79_i32 : i32
    %323 = arith.index_cast %322 : i32 to index
    %324 = memref.load %arg9[%323] : memref<288xf32, #tpu.memory_space<smem>>
    %c144_i32_81 = arith.constant 144 : i32
    %325 = arith.muli %4, %c144_i32_81 : i32
    %c80_i32 = arith.constant 80 : i32
    %326 = arith.addi %325, %c80_i32 : i32
    %327 = arith.index_cast %326 : i32 to index
    %328 = memref.load %arg9[%327] : memref<288xf32, #tpu.memory_space<smem>>
    %c144_i32_82 = arith.constant 144 : i32
    %329 = arith.muli %4, %c144_i32_82 : i32
    %c81_i32 = arith.constant 81 : i32
    %330 = arith.addi %329, %c81_i32 : i32
    %331 = arith.index_cast %330 : i32 to index
    %332 = memref.load %arg9[%331] : memref<288xf32, #tpu.memory_space<smem>>
    %c144_i32_83 = arith.constant 144 : i32
    %333 = arith.muli %4, %c144_i32_83 : i32
    %c82_i32 = arith.constant 82 : i32
    %334 = arith.addi %333, %c82_i32 : i32
    %335 = arith.index_cast %334 : i32 to index
    %336 = memref.load %arg9[%335] : memref<288xf32, #tpu.memory_space<smem>>
    %c144_i32_84 = arith.constant 144 : i32
    %337 = arith.muli %4, %c144_i32_84 : i32
    %c83_i32 = arith.constant 83 : i32
    %338 = arith.addi %337, %c83_i32 : i32
    %339 = arith.index_cast %338 : i32 to index
    %340 = memref.load %arg9[%339] : memref<288xf32, #tpu.memory_space<smem>>
    %c144_i32_85 = arith.constant 144 : i32
    %341 = arith.muli %4, %c144_i32_85 : i32
    %c84_i32 = arith.constant 84 : i32
    %342 = arith.addi %341, %c84_i32 : i32
    %343 = arith.index_cast %342 : i32 to index
    %344 = memref.load %arg9[%343] : memref<288xf32, #tpu.memory_space<smem>>
    %c144_i32_86 = arith.constant 144 : i32
    %345 = arith.muli %4, %c144_i32_86 : i32
    %c85_i32 = arith.constant 85 : i32
    %346 = arith.addi %345, %c85_i32 : i32
    %347 = arith.index_cast %346 : i32 to index
    %348 = memref.load %arg9[%347] : memref<288xf32, #tpu.memory_space<smem>>
    %c144_i32_87 = arith.constant 144 : i32
    %349 = arith.muli %4, %c144_i32_87 : i32
    %c86_i32 = arith.constant 86 : i32
    %350 = arith.addi %349, %c86_i32 : i32
    %351 = arith.index_cast %350 : i32 to index
    %352 = memref.load %arg9[%351] : memref<288xf32, #tpu.memory_space<smem>>
    %c144_i32_88 = arith.constant 144 : i32
    %353 = arith.muli %4, %c144_i32_88 : i32
    %c87_i32 = arith.constant 87 : i32
    %354 = arith.addi %353, %c87_i32 : i32
    %355 = arith.index_cast %354 : i32 to index
    %356 = memref.load %arg9[%355] : memref<288xf32, #tpu.memory_space<smem>>
    %c144_i32_89 = arith.constant 144 : i32
    %357 = arith.muli %4, %c144_i32_89 : i32
    %c88_i32 = arith.constant 88 : i32
    %358 = arith.addi %357, %c88_i32 : i32
    %359 = arith.index_cast %358 : i32 to index
    %360 = memref.load %arg9[%359] : memref<288xf32, #tpu.memory_space<smem>>
    %c144_i32_90 = arith.constant 144 : i32
    %361 = arith.muli %4, %c144_i32_90 : i32
    %c89_i32 = arith.constant 89 : i32
    %362 = arith.addi %361, %c89_i32 : i32
    %363 = arith.index_cast %362 : i32 to index
    %364 = memref.load %arg9[%363] : memref<288xf32, #tpu.memory_space<smem>>
    %c144_i32_91 = arith.constant 144 : i32
    %365 = arith.muli %4, %c144_i32_91 : i32
    %c90_i32 = arith.constant 90 : i32
    %366 = arith.addi %365, %c90_i32 : i32
    %367 = arith.index_cast %366 : i32 to index
    %368 = memref.load %arg9[%367] : memref<288xf32, #tpu.memory_space<smem>>
    %c144_i32_92 = arith.constant 144 : i32
    %369 = arith.muli %4, %c144_i32_92 : i32
    %c91_i32 = arith.constant 91 : i32
    %370 = arith.addi %369, %c91_i32 : i32
    %371 = arith.index_cast %370 : i32 to index
    %372 = memref.load %arg9[%371] : memref<288xf32, #tpu.memory_space<smem>>
    %c144_i32_93 = arith.constant 144 : i32
    %373 = arith.muli %4, %c144_i32_93 : i32
    %c92_i32 = arith.constant 92 : i32
    %374 = arith.addi %373, %c92_i32 : i32
    %375 = arith.index_cast %374 : i32 to index
    %376 = memref.load %arg9[%375] : memref<288xf32, #tpu.memory_space<smem>>
    %c144_i32_94 = arith.constant 144 : i32
    %377 = arith.muli %4, %c144_i32_94 : i32
    %c93_i32 = arith.constant 93 : i32
    %378 = arith.addi %377, %c93_i32 : i32
    %379 = arith.index_cast %378 : i32 to index
    %380 = memref.load %arg9[%379] : memref<288xf32, #tpu.memory_space<smem>>
    %c144_i32_95 = arith.constant 144 : i32
    %381 = arith.muli %4, %c144_i32_95 : i32
    %c94_i32 = arith.constant 94 : i32
    %382 = arith.addi %381, %c94_i32 : i32
    %383 = arith.index_cast %382 : i32 to index
    %384 = memref.load %arg9[%383] : memref<288xf32, #tpu.memory_space<smem>>
    %c144_i32_96 = arith.constant 144 : i32
    %385 = arith.muli %4, %c144_i32_96 : i32
    %c95_i32 = arith.constant 95 : i32
    %386 = arith.addi %385, %c95_i32 : i32
    %387 = arith.index_cast %386 : i32 to index
    %388 = memref.load %arg9[%387] : memref<288xf32, #tpu.memory_space<smem>>
    %c144_i32_97 = arith.constant 144 : i32
    %389 = arith.muli %4, %c144_i32_97 : i32
    %c96_i32 = arith.constant 96 : i32
    %390 = arith.addi %389, %c96_i32 : i32
    %391 = arith.index_cast %390 : i32 to index
    %392 = memref.load %arg9[%391] : memref<288xf32, #tpu.memory_space<smem>>
    %c144_i32_98 = arith.constant 144 : i32
    %393 = arith.muli %4, %c144_i32_98 : i32
    %c97_i32 = arith.constant 97 : i32
    %394 = arith.addi %393, %c97_i32 : i32
    %395 = arith.index_cast %394 : i32 to index
    %396 = memref.load %arg9[%395] : memref<288xf32, #tpu.memory_space<smem>>
    %c144_i32_99 = arith.constant 144 : i32
    %397 = arith.muli %4, %c144_i32_99 : i32
    %c98_i32 = arith.constant 98 : i32
    %398 = arith.addi %397, %c98_i32 : i32
    %399 = arith.index_cast %398 : i32 to index
    %400 = memref.load %arg9[%399] : memref<288xf32, #tpu.memory_space<smem>>
    %c144_i32_100 = arith.constant 144 : i32
    %401 = arith.muli %4, %c144_i32_100 : i32
    %c99_i32 = arith.constant 99 : i32
    %402 = arith.addi %401, %c99_i32 : i32
    %403 = arith.index_cast %402 : i32 to index
    %404 = memref.load %arg9[%403] : memref<288xf32, #tpu.memory_space<smem>>
    %c144_i32_101 = arith.constant 144 : i32
    %405 = arith.muli %4, %c144_i32_101 : i32
    %c100_i32 = arith.constant 100 : i32
    %406 = arith.addi %405, %c100_i32 : i32
    %407 = arith.index_cast %406 : i32 to index
    %408 = memref.load %arg9[%407] : memref<288xf32, #tpu.memory_space<smem>>
    %c144_i32_102 = arith.constant 144 : i32
    %409 = arith.muli %4, %c144_i32_102 : i32
    %c101_i32 = arith.constant 101 : i32
    %410 = arith.addi %409, %c101_i32 : i32
    %411 = arith.index_cast %410 : i32 to index
    %412 = memref.load %arg9[%411] : memref<288xf32, #tpu.memory_space<smem>>
    %c144_i32_103 = arith.constant 144 : i32
    %413 = arith.muli %4, %c144_i32_103 : i32
    %c102_i32 = arith.constant 102 : i32
    %414 = arith.addi %413, %c102_i32 : i32
    %415 = arith.index_cast %414 : i32 to index
    %416 = memref.load %arg9[%415] : memref<288xf32, #tpu.memory_space<smem>>
    %c144_i32_104 = arith.constant 144 : i32
    %417 = arith.muli %4, %c144_i32_104 : i32
    %c103_i32 = arith.constant 103 : i32
    %418 = arith.addi %417, %c103_i32 : i32
    %419 = arith.index_cast %418 : i32 to index
    %420 = memref.load %arg9[%419] : memref<288xf32, #tpu.memory_space<smem>>
    %c144_i32_105 = arith.constant 144 : i32
    %421 = arith.muli %4, %c144_i32_105 : i32
    %c104_i32 = arith.constant 104 : i32
    %422 = arith.addi %421, %c104_i32 : i32
    %423 = arith.index_cast %422 : i32 to index
    %424 = memref.load %arg9[%423] : memref<288xf32, #tpu.memory_space<smem>>
    %c144_i32_106 = arith.constant 144 : i32
    %425 = arith.muli %4, %c144_i32_106 : i32
    %c105_i32 = arith.constant 105 : i32
    %426 = arith.addi %425, %c105_i32 : i32
    %427 = arith.index_cast %426 : i32 to index
    %428 = memref.load %arg9[%427] : memref<288xf32, #tpu.memory_space<smem>>
    %c144_i32_107 = arith.constant 144 : i32
    %429 = arith.muli %4, %c144_i32_107 : i32
    %c106_i32 = arith.constant 106 : i32
    %430 = arith.addi %429, %c106_i32 : i32
    %431 = arith.index_cast %430 : i32 to index
    %432 = memref.load %arg9[%431] : memref<288xf32, #tpu.memory_space<smem>>
    %c144_i32_108 = arith.constant 144 : i32
    %433 = arith.muli %4, %c144_i32_108 : i32
    %c107_i32 = arith.constant 107 : i32
    %434 = arith.addi %433, %c107_i32 : i32
    %435 = arith.index_cast %434 : i32 to index
    %436 = memref.load %arg9[%435] : memref<288xf32, #tpu.memory_space<smem>>
    %c144_i32_109 = arith.constant 144 : i32
    %437 = arith.muli %4, %c144_i32_109 : i32
    %c108_i32 = arith.constant 108 : i32
    %438 = arith.addi %437, %c108_i32 : i32
    %439 = arith.index_cast %438 : i32 to index
    %440 = memref.load %arg9[%439] : memref<288xf32, #tpu.memory_space<smem>>
    %c144_i32_110 = arith.constant 144 : i32
    %441 = arith.muli %4, %c144_i32_110 : i32
    %c109_i32 = arith.constant 109 : i32
    %442 = arith.addi %441, %c109_i32 : i32
    %443 = arith.index_cast %442 : i32 to index
    %444 = memref.load %arg9[%443] : memref<288xf32, #tpu.memory_space<smem>>
    %c144_i32_111 = arith.constant 144 : i32
    %445 = arith.muli %4, %c144_i32_111 : i32
    %c110_i32 = arith.constant 110 : i32
    %446 = arith.addi %445, %c110_i32 : i32
    %447 = arith.index_cast %446 : i32 to index
    %448 = memref.load %arg9[%447] : memref<288xf32, #tpu.memory_space<smem>>
    %c144_i32_112 = arith.constant 144 : i32
    %449 = arith.muli %4, %c144_i32_112 : i32
    %c111_i32 = arith.constant 111 : i32
    %450 = arith.addi %449, %c111_i32 : i32
    %451 = arith.index_cast %450 : i32 to index
    %452 = memref.load %arg9[%451] : memref<288xf32, #tpu.memory_space<smem>>
    %c144_i32_113 = arith.constant 144 : i32
    %453 = arith.muli %4, %c144_i32_113 : i32
    %c112_i32 = arith.constant 112 : i32
    %454 = arith.addi %453, %c112_i32 : i32
    %455 = arith.index_cast %454 : i32 to index
    %456 = memref.load %arg9[%455] : memref<288xf32, #tpu.memory_space<smem>>
    %c144_i32_114 = arith.constant 144 : i32
    %457 = arith.muli %4, %c144_i32_114 : i32
    %c113_i32 = arith.constant 113 : i32
    %458 = arith.addi %457, %c113_i32 : i32
    %459 = arith.index_cast %458 : i32 to index
    %460 = memref.load %arg9[%459] : memref<288xf32, #tpu.memory_space<smem>>
    %c144_i32_115 = arith.constant 144 : i32
    %461 = arith.muli %4, %c144_i32_115 : i32
    %c114_i32 = arith.constant 114 : i32
    %462 = arith.addi %461, %c114_i32 : i32
    %463 = arith.index_cast %462 : i32 to index
    %464 = memref.load %arg9[%463] : memref<288xf32, #tpu.memory_space<smem>>
    %c144_i32_116 = arith.constant 144 : i32
    %465 = arith.muli %4, %c144_i32_116 : i32
    %c115_i32 = arith.constant 115 : i32
    %466 = arith.addi %465, %c115_i32 : i32
    %467 = arith.index_cast %466 : i32 to index
    %468 = memref.load %arg9[%467] : memref<288xf32, #tpu.memory_space<smem>>
    %c144_i32_117 = arith.constant 144 : i32
    %469 = arith.muli %4, %c144_i32_117 : i32
    %c116_i32 = arith.constant 116 : i32
    %470 = arith.addi %469, %c116_i32 : i32
    %471 = arith.index_cast %470 : i32 to index
    %472 = memref.load %arg9[%471] : memref<288xf32, #tpu.memory_space<smem>>
    %c144_i32_118 = arith.constant 144 : i32
    %473 = arith.muli %4, %c144_i32_118 : i32
    %c117_i32 = arith.constant 117 : i32
    %474 = arith.addi %473, %c117_i32 : i32
    %475 = arith.index_cast %474 : i32 to index
    %476 = memref.load %arg9[%475] : memref<288xf32, #tpu.memory_space<smem>>
    %c144_i32_119 = arith.constant 144 : i32
    %477 = arith.muli %4, %c144_i32_119 : i32
    %c118_i32 = arith.constant 118 : i32
    %478 = arith.addi %477, %c118_i32 : i32
    %479 = arith.index_cast %478 : i32 to index
    %480 = memref.load %arg9[%479] : memref<288xf32, #tpu.memory_space<smem>>
    %c144_i32_120 = arith.constant 144 : i32
    %481 = arith.muli %4, %c144_i32_120 : i32
    %c119_i32 = arith.constant 119 : i32
    %482 = arith.addi %481, %c119_i32 : i32
    %483 = arith.index_cast %482 : i32 to index
    %484 = memref.load %arg9[%483] : memref<288xf32, #tpu.memory_space<smem>>
    %c144_i32_121 = arith.constant 144 : i32
    %485 = arith.muli %4, %c144_i32_121 : i32
    %c120_i32 = arith.constant 120 : i32
    %486 = arith.addi %485, %c120_i32 : i32
    %487 = arith.index_cast %486 : i32 to index
    %488 = memref.load %arg9[%487] : memref<288xf32, #tpu.memory_space<smem>>
    %c144_i32_122 = arith.constant 144 : i32
    %489 = arith.muli %4, %c144_i32_122 : i32
    %c121_i32 = arith.constant 121 : i32
    %490 = arith.addi %489, %c121_i32 : i32
    %491 = arith.index_cast %490 : i32 to index
    %492 = memref.load %arg9[%491] : memref<288xf32, #tpu.memory_space<smem>>
    %c144_i32_123 = arith.constant 144 : i32
    %493 = arith.muli %4, %c144_i32_123 : i32
    %c122_i32 = arith.constant 122 : i32
    %494 = arith.addi %493, %c122_i32 : i32
    %495 = arith.index_cast %494 : i32 to index
    %496 = memref.load %arg9[%495] : memref<288xf32, #tpu.memory_space<smem>>
    %c144_i32_124 = arith.constant 144 : i32
    %497 = arith.muli %4, %c144_i32_124 : i32
    %c123_i32 = arith.constant 123 : i32
    %498 = arith.addi %497, %c123_i32 : i32
    %499 = arith.index_cast %498 : i32 to index
    %500 = memref.load %arg9[%499] : memref<288xf32, #tpu.memory_space<smem>>
    %c144_i32_125 = arith.constant 144 : i32
    %501 = arith.muli %4, %c144_i32_125 : i32
    %c124_i32 = arith.constant 124 : i32
    %502 = arith.addi %501, %c124_i32 : i32
    %503 = arith.index_cast %502 : i32 to index
    %504 = memref.load %arg9[%503] : memref<288xf32, #tpu.memory_space<smem>>
    %c144_i32_126 = arith.constant 144 : i32
    %505 = arith.muli %4, %c144_i32_126 : i32
    %c125_i32 = arith.constant 125 : i32
    %506 = arith.addi %505, %c125_i32 : i32
    %507 = arith.index_cast %506 : i32 to index
    %508 = memref.load %arg9[%507] : memref<288xf32, #tpu.memory_space<smem>>
    %c144_i32_127 = arith.constant 144 : i32
    %509 = arith.muli %4, %c144_i32_127 : i32
    %c126_i32 = arith.constant 126 : i32
    %510 = arith.addi %509, %c126_i32 : i32
    %511 = arith.index_cast %510 : i32 to index
    %512 = memref.load %arg9[%511] : memref<288xf32, #tpu.memory_space<smem>>
    %c144_i32_128 = arith.constant 144 : i32
    %513 = arith.muli %4, %c144_i32_128 : i32
    %c127_i32 = arith.constant 127 : i32
    %514 = arith.addi %513, %c127_i32 : i32
    %515 = arith.index_cast %514 : i32 to index
    %516 = memref.load %arg9[%515] : memref<288xf32, #tpu.memory_space<smem>>
    %c144_i32_129 = arith.constant 144 : i32
    %517 = arith.muli %4, %c144_i32_129 : i32
    %c128_i32 = arith.constant 128 : i32
    %518 = arith.addi %517, %c128_i32 : i32
    %519 = arith.index_cast %518 : i32 to index
    %520 = memref.load %arg9[%519] : memref<288xf32, #tpu.memory_space<smem>>
    %c144_i32_130 = arith.constant 144 : i32
    %521 = arith.muli %4, %c144_i32_130 : i32
    %c129_i32 = arith.constant 129 : i32
    %522 = arith.addi %521, %c129_i32 : i32
    %523 = arith.index_cast %522 : i32 to index
    %524 = memref.load %arg9[%523] : memref<288xf32, #tpu.memory_space<smem>>
    %c144_i32_131 = arith.constant 144 : i32
    %525 = arith.muli %4, %c144_i32_131 : i32
    %c130_i32 = arith.constant 130 : i32
    %526 = arith.addi %525, %c130_i32 : i32
    %527 = arith.index_cast %526 : i32 to index
    %528 = memref.load %arg9[%527] : memref<288xf32, #tpu.memory_space<smem>>
    %c144_i32_132 = arith.constant 144 : i32
    %529 = arith.muli %4, %c144_i32_132 : i32
    %c131_i32 = arith.constant 131 : i32
    %530 = arith.addi %529, %c131_i32 : i32
    %531 = arith.index_cast %530 : i32 to index
    %532 = memref.load %arg9[%531] : memref<288xf32, #tpu.memory_space<smem>>
    %c144_i32_133 = arith.constant 144 : i32
    %533 = arith.muli %4, %c144_i32_133 : i32
    %c132_i32 = arith.constant 132 : i32
    %534 = arith.addi %533, %c132_i32 : i32
    %535 = arith.index_cast %534 : i32 to index
    %536 = memref.load %arg9[%535] : memref<288xf32, #tpu.memory_space<smem>>
    %c144_i32_134 = arith.constant 144 : i32
    %537 = arith.muli %4, %c144_i32_134 : i32
    %c133_i32 = arith.constant 133 : i32
    %538 = arith.addi %537, %c133_i32 : i32
    %539 = arith.index_cast %538 : i32 to index
    %540 = memref.load %arg9[%539] : memref<288xf32, #tpu.memory_space<smem>>
    %c144_i32_135 = arith.constant 144 : i32
    %541 = arith.muli %4, %c144_i32_135 : i32
    %c134_i32 = arith.constant 134 : i32
    %542 = arith.addi %541, %c134_i32 : i32
    %543 = arith.index_cast %542 : i32 to index
    %544 = memref.load %arg9[%543] : memref<288xf32, #tpu.memory_space<smem>>
    %c144_i32_136 = arith.constant 144 : i32
    %545 = arith.muli %4, %c144_i32_136 : i32
    %c135_i32 = arith.constant 135 : i32
    %546 = arith.addi %545, %c135_i32 : i32
    %547 = arith.index_cast %546 : i32 to index
    %548 = memref.load %arg9[%547] : memref<288xf32, #tpu.memory_space<smem>>
    %c144_i32_137 = arith.constant 144 : i32
    %549 = arith.muli %4, %c144_i32_137 : i32
    %c136_i32 = arith.constant 136 : i32
    %550 = arith.addi %549, %c136_i32 : i32
    %551 = arith.index_cast %550 : i32 to index
    %552 = memref.load %arg9[%551] : memref<288xf32, #tpu.memory_space<smem>>
    %c144_i32_138 = arith.constant 144 : i32
    %553 = arith.muli %4, %c144_i32_138 : i32
    %c137_i32 = arith.constant 137 : i32
    %554 = arith.addi %553, %c137_i32 : i32
    %555 = arith.index_cast %554 : i32 to index
    %556 = memref.load %arg9[%555] : memref<288xf32, #tpu.memory_space<smem>>
    %c144_i32_139 = arith.constant 144 : i32
    %557 = arith.muli %4, %c144_i32_139 : i32
    %c138_i32 = arith.constant 138 : i32
    %558 = arith.addi %557, %c138_i32 : i32
    %559 = arith.index_cast %558 : i32 to index
    %560 = memref.load %arg9[%559] : memref<288xf32, #tpu.memory_space<smem>>
    %c144_i32_140 = arith.constant 144 : i32
    %561 = arith.muli %4, %c144_i32_140 : i32
    %c139_i32 = arith.constant 139 : i32
    %562 = arith.addi %561, %c139_i32 : i32
    %563 = arith.index_cast %562 : i32 to index
    %564 = memref.load %arg9[%563] : memref<288xf32, #tpu.memory_space<smem>>
    %c144_i32_141 = arith.constant 144 : i32
    %565 = arith.muli %4, %c144_i32_141 : i32
    %c140_i32 = arith.constant 140 : i32
    %566 = arith.addi %565, %c140_i32 : i32
    %567 = arith.index_cast %566 : i32 to index
    %568 = memref.load %arg9[%567] : memref<288xf32, #tpu.memory_space<smem>>
    %c144_i32_142 = arith.constant 144 : i32
    %569 = arith.muli %4, %c144_i32_142 : i32
    %c141_i32 = arith.constant 141 : i32
    %570 = arith.addi %569, %c141_i32 : i32
    %571 = arith.index_cast %570 : i32 to index
    %572 = memref.load %arg9[%571] : memref<288xf32, #tpu.memory_space<smem>>
    %c144_i32_143 = arith.constant 144 : i32
    %573 = arith.muli %4, %c144_i32_143 : i32
    %c142_i32 = arith.constant 142 : i32
    %574 = arith.addi %573, %c142_i32 : i32
    %575 = arith.index_cast %574 : i32 to index
    %576 = memref.load %arg9[%575] : memref<288xf32, #tpu.memory_space<smem>>
    %c144_i32_144 = arith.constant 144 : i32
    %577 = arith.muli %4, %c144_i32_144 : i32
    %c143_i32 = arith.constant 143 : i32
    %578 = arith.addi %577, %c143_i32 : i32
    %579 = arith.index_cast %578 : i32 to index
    %580 = memref.load %arg9[%579] : memref<288xf32, #tpu.memory_space<smem>>
    %c8_i32_145 = arith.constant 8 : i32
    %581 = arith.muli %4, %c8_i32_145 : i32
    %c0_i32_146 = arith.constant 0 : i32
    %582 = arith.addi %581, %c0_i32_146 : i32
    %583 = arith.index_cast %582 : i32 to index
    %584 = memref.load %arg10[%583] : memref<16xf32, #tpu.memory_space<smem>>
    %c8_i32_147 = arith.constant 8 : i32
    %585 = arith.muli %4, %c8_i32_147 : i32
    %c1_i32_148 = arith.constant 1 : i32
    %586 = arith.addi %585, %c1_i32_148 : i32
    %587 = arith.index_cast %586 : i32 to index
    %588 = memref.load %arg10[%587] : memref<16xf32, #tpu.memory_space<smem>>
    %c8_i32_149 = arith.constant 8 : i32
    %589 = arith.muli %4, %c8_i32_149 : i32
    %c2_i32_150 = arith.constant 2 : i32
    %590 = arith.addi %589, %c2_i32_150 : i32
    %591 = arith.index_cast %590 : i32 to index
    %592 = memref.load %arg10[%591] : memref<16xf32, #tpu.memory_space<smem>>
    %c8_i32_151 = arith.constant 8 : i32
    %593 = arith.muli %4, %c8_i32_151 : i32
    %c3_i32_152 = arith.constant 3 : i32
    %594 = arith.addi %593, %c3_i32_152 : i32
    %595 = arith.index_cast %594 : i32 to index
    %596 = memref.load %arg10[%595] : memref<16xf32, #tpu.memory_space<smem>>
    %c8_i32_153 = arith.constant 8 : i32
    %597 = arith.muli %4, %c8_i32_153 : i32
    %c4_i32_154 = arith.constant 4 : i32
    %598 = arith.addi %597, %c4_i32_154 : i32
    %599 = arith.index_cast %598 : i32 to index
    %600 = memref.load %arg10[%599] : memref<16xf32, #tpu.memory_space<smem>>
    %c8_i32_155 = arith.constant 8 : i32
    %601 = arith.muli %4, %c8_i32_155 : i32
    %c5_i32_156 = arith.constant 5 : i32
    %602 = arith.addi %601, %c5_i32_156 : i32
    %603 = arith.index_cast %602 : i32 to index
    %604 = memref.load %arg10[%603] : memref<16xf32, #tpu.memory_space<smem>>
    %c8_i32_157 = arith.constant 8 : i32
    %605 = arith.muli %4, %c8_i32_157 : i32
    %c6_i32_158 = arith.constant 6 : i32
    %606 = arith.addi %605, %c6_i32_158 : i32
    %607 = arith.index_cast %606 : i32 to index
    %608 = memref.load %arg10[%607] : memref<16xf32, #tpu.memory_space<smem>>
    %c8_i32_159 = arith.constant 8 : i32
    %609 = arith.muli %4, %c8_i32_159 : i32
    %c7_i32_160 = arith.constant 7 : i32
    %610 = arith.addi %609, %c7_i32_160 : i32
    %611 = arith.index_cast %610 : i32 to index
    %612 = memref.load %arg10[%611] : memref<16xf32, #tpu.memory_space<smem>>
    %c144_i32_161 = arith.constant 144 : i32
    %613 = arith.muli %4, %c144_i32_161 : i32
    %c0_i32_162 = arith.constant 0 : i32
    %614 = arith.addi %613, %c0_i32_162 : i32
    %615 = arith.index_cast %614 : i32 to index
    %616 = memref.load %arg11[%615] : memref<288xf32, #tpu.memory_space<smem>>
    %c144_i32_163 = arith.constant 144 : i32
    %617 = arith.muli %4, %c144_i32_163 : i32
    %c1_i32_164 = arith.constant 1 : i32
    %618 = arith.addi %617, %c1_i32_164 : i32
    %619 = arith.index_cast %618 : i32 to index
    %620 = memref.load %arg11[%619] : memref<288xf32, #tpu.memory_space<smem>>
    %c144_i32_165 = arith.constant 144 : i32
    %621 = arith.muli %4, %c144_i32_165 : i32
    %c2_i32_166 = arith.constant 2 : i32
    %622 = arith.addi %621, %c2_i32_166 : i32
    %623 = arith.index_cast %622 : i32 to index
    %624 = memref.load %arg11[%623] : memref<288xf32, #tpu.memory_space<smem>>
    %c144_i32_167 = arith.constant 144 : i32
    %625 = arith.muli %4, %c144_i32_167 : i32
    %c3_i32_168 = arith.constant 3 : i32
    %626 = arith.addi %625, %c3_i32_168 : i32
    %627 = arith.index_cast %626 : i32 to index
    %628 = memref.load %arg11[%627] : memref<288xf32, #tpu.memory_space<smem>>
    %c144_i32_169 = arith.constant 144 : i32
    %629 = arith.muli %4, %c144_i32_169 : i32
    %c4_i32_170 = arith.constant 4 : i32
    %630 = arith.addi %629, %c4_i32_170 : i32
    %631 = arith.index_cast %630 : i32 to index
    %632 = memref.load %arg11[%631] : memref<288xf32, #tpu.memory_space<smem>>
    %c144_i32_171 = arith.constant 144 : i32
    %633 = arith.muli %4, %c144_i32_171 : i32
    %c5_i32_172 = arith.constant 5 : i32
    %634 = arith.addi %633, %c5_i32_172 : i32
    %635 = arith.index_cast %634 : i32 to index
    %636 = memref.load %arg11[%635] : memref<288xf32, #tpu.memory_space<smem>>
    %c144_i32_173 = arith.constant 144 : i32
    %637 = arith.muli %4, %c144_i32_173 : i32
    %c6_i32_174 = arith.constant 6 : i32
    %638 = arith.addi %637, %c6_i32_174 : i32
    %639 = arith.index_cast %638 : i32 to index
    %640 = memref.load %arg11[%639] : memref<288xf32, #tpu.memory_space<smem>>
    %c144_i32_175 = arith.constant 144 : i32
    %641 = arith.muli %4, %c144_i32_175 : i32
    %c7_i32_176 = arith.constant 7 : i32
    %642 = arith.addi %641, %c7_i32_176 : i32
    %643 = arith.index_cast %642 : i32 to index
    %644 = memref.load %arg11[%643] : memref<288xf32, #tpu.memory_space<smem>>
    %c144_i32_177 = arith.constant 144 : i32
    %645 = arith.muli %4, %c144_i32_177 : i32
    %c8_i32_178 = arith.constant 8 : i32
    %646 = arith.addi %645, %c8_i32_178 : i32
    %647 = arith.index_cast %646 : i32 to index
    %648 = memref.load %arg11[%647] : memref<288xf32, #tpu.memory_space<smem>>
    %c144_i32_179 = arith.constant 144 : i32
    %649 = arith.muli %4, %c144_i32_179 : i32
    %c9_i32_180 = arith.constant 9 : i32
    %650 = arith.addi %649, %c9_i32_180 : i32
    %651 = arith.index_cast %650 : i32 to index
    %652 = memref.load %arg11[%651] : memref<288xf32, #tpu.memory_space<smem>>
    %c144_i32_181 = arith.constant 144 : i32
    %653 = arith.muli %4, %c144_i32_181 : i32
    %c10_i32_182 = arith.constant 10 : i32
    %654 = arith.addi %653, %c10_i32_182 : i32
    %655 = arith.index_cast %654 : i32 to index
    %656 = memref.load %arg11[%655] : memref<288xf32, #tpu.memory_space<smem>>
    %c144_i32_183 = arith.constant 144 : i32
    %657 = arith.muli %4, %c144_i32_183 : i32
    %c11_i32_184 = arith.constant 11 : i32
    %658 = arith.addi %657, %c11_i32_184 : i32
    %659 = arith.index_cast %658 : i32 to index
    %660 = memref.load %arg11[%659] : memref<288xf32, #tpu.memory_space<smem>>
    %c144_i32_185 = arith.constant 144 : i32
    %661 = arith.muli %4, %c144_i32_185 : i32
    %c12_i32_186 = arith.constant 12 : i32
    %662 = arith.addi %661, %c12_i32_186 : i32
    %663 = arith.index_cast %662 : i32 to index
    %664 = memref.load %arg11[%663] : memref<288xf32, #tpu.memory_space<smem>>
    %c144_i32_187 = arith.constant 144 : i32
    %665 = arith.muli %4, %c144_i32_187 : i32
    %c13_i32_188 = arith.constant 13 : i32
    %666 = arith.addi %665, %c13_i32_188 : i32
    %667 = arith.index_cast %666 : i32 to index
    %668 = memref.load %arg11[%667] : memref<288xf32, #tpu.memory_space<smem>>
    %c144_i32_189 = arith.constant 144 : i32
    %669 = arith.muli %4, %c144_i32_189 : i32
    %c14_i32_190 = arith.constant 14 : i32
    %670 = arith.addi %669, %c14_i32_190 : i32
    %671 = arith.index_cast %670 : i32 to index
    %672 = memref.load %arg11[%671] : memref<288xf32, #tpu.memory_space<smem>>
    %c144_i32_191 = arith.constant 144 : i32
    %673 = arith.muli %4, %c144_i32_191 : i32
    %c15_i32_192 = arith.constant 15 : i32
    %674 = arith.addi %673, %c15_i32_192 : i32
    %675 = arith.index_cast %674 : i32 to index
    %676 = memref.load %arg11[%675] : memref<288xf32, #tpu.memory_space<smem>>
    %c144_i32_193 = arith.constant 144 : i32
    %677 = arith.muli %4, %c144_i32_193 : i32
    %c16_i32_194 = arith.constant 16 : i32
    %678 = arith.addi %677, %c16_i32_194 : i32
    %679 = arith.index_cast %678 : i32 to index
    %680 = memref.load %arg11[%679] : memref<288xf32, #tpu.memory_space<smem>>
    %c144_i32_195 = arith.constant 144 : i32
    %681 = arith.muli %4, %c144_i32_195 : i32
    %c17_i32_196 = arith.constant 17 : i32
    %682 = arith.addi %681, %c17_i32_196 : i32
    %683 = arith.index_cast %682 : i32 to index
    %684 = memref.load %arg11[%683] : memref<288xf32, #tpu.memory_space<smem>>
    %c144_i32_197 = arith.constant 144 : i32
    %685 = arith.muli %4, %c144_i32_197 : i32
    %c18_i32_198 = arith.constant 18 : i32
    %686 = arith.addi %685, %c18_i32_198 : i32
    %687 = arith.index_cast %686 : i32 to index
    %688 = memref.load %arg11[%687] : memref<288xf32, #tpu.memory_space<smem>>
    %c144_i32_199 = arith.constant 144 : i32
    %689 = arith.muli %4, %c144_i32_199 : i32
    %c19_i32_200 = arith.constant 19 : i32
    %690 = arith.addi %689, %c19_i32_200 : i32
    %691 = arith.index_cast %690 : i32 to index
    %692 = memref.load %arg11[%691] : memref<288xf32, #tpu.memory_space<smem>>
    %c144_i32_201 = arith.constant 144 : i32
    %693 = arith.muli %4, %c144_i32_201 : i32
    %c20_i32_202 = arith.constant 20 : i32
    %694 = arith.addi %693, %c20_i32_202 : i32
    %695 = arith.index_cast %694 : i32 to index
    %696 = memref.load %arg11[%695] : memref<288xf32, #tpu.memory_space<smem>>
    %c144_i32_203 = arith.constant 144 : i32
    %697 = arith.muli %4, %c144_i32_203 : i32
    %c21_i32_204 = arith.constant 21 : i32
    %698 = arith.addi %697, %c21_i32_204 : i32
    %699 = arith.index_cast %698 : i32 to index
    %700 = memref.load %arg11[%699] : memref<288xf32, #tpu.memory_space<smem>>
    %c144_i32_205 = arith.constant 144 : i32
    %701 = arith.muli %4, %c144_i32_205 : i32
    %c22_i32_206 = arith.constant 22 : i32
    %702 = arith.addi %701, %c22_i32_206 : i32
    %703 = arith.index_cast %702 : i32 to index
    %704 = memref.load %arg11[%703] : memref<288xf32, #tpu.memory_space<smem>>
    %c144_i32_207 = arith.constant 144 : i32
    %705 = arith.muli %4, %c144_i32_207 : i32
    %c23_i32_208 = arith.constant 23 : i32
    %706 = arith.addi %705, %c23_i32_208 : i32
    %707 = arith.index_cast %706 : i32 to index
    %708 = memref.load %arg11[%707] : memref<288xf32, #tpu.memory_space<smem>>
    %c144_i32_209 = arith.constant 144 : i32
    %709 = arith.muli %4, %c144_i32_209 : i32
    %c24_i32_210 = arith.constant 24 : i32
    %710 = arith.addi %709, %c24_i32_210 : i32
    %711 = arith.index_cast %710 : i32 to index
    %712 = memref.load %arg11[%711] : memref<288xf32, #tpu.memory_space<smem>>
    %c144_i32_211 = arith.constant 144 : i32
    %713 = arith.muli %4, %c144_i32_211 : i32
    %c25_i32_212 = arith.constant 25 : i32
    %714 = arith.addi %713, %c25_i32_212 : i32
    %715 = arith.index_cast %714 : i32 to index
    %716 = memref.load %arg11[%715] : memref<288xf32, #tpu.memory_space<smem>>
    %c144_i32_213 = arith.constant 144 : i32
    %717 = arith.muli %4, %c144_i32_213 : i32
    %c26_i32_214 = arith.constant 26 : i32
    %718 = arith.addi %717, %c26_i32_214 : i32
    %719 = arith.index_cast %718 : i32 to index
    %720 = memref.load %arg11[%719] : memref<288xf32, #tpu.memory_space<smem>>
    %c144_i32_215 = arith.constant 144 : i32
    %721 = arith.muli %4, %c144_i32_215 : i32
    %c27_i32_216 = arith.constant 27 : i32
    %722 = arith.addi %721, %c27_i32_216 : i32
    %723 = arith.index_cast %722 : i32 to index
    %724 = memref.load %arg11[%723] : memref<288xf32, #tpu.memory_space<smem>>
    %c144_i32_217 = arith.constant 144 : i32
    %725 = arith.muli %4, %c144_i32_217 : i32
    %c28_i32_218 = arith.constant 28 : i32
    %726 = arith.addi %725, %c28_i32_218 : i32
    %727 = arith.index_cast %726 : i32 to index
    %728 = memref.load %arg11[%727] : memref<288xf32, #tpu.memory_space<smem>>
    %c144_i32_219 = arith.constant 144 : i32
    %729 = arith.muli %4, %c144_i32_219 : i32
    %c29_i32_220 = arith.constant 29 : i32
    %730 = arith.addi %729, %c29_i32_220 : i32
    %731 = arith.index_cast %730 : i32 to index
    %732 = memref.load %arg11[%731] : memref<288xf32, #tpu.memory_space<smem>>
    %c144_i32_221 = arith.constant 144 : i32
    %733 = arith.muli %4, %c144_i32_221 : i32
    %c30_i32_222 = arith.constant 30 : i32
    %734 = arith.addi %733, %c30_i32_222 : i32
    %735 = arith.index_cast %734 : i32 to index
    %736 = memref.load %arg11[%735] : memref<288xf32, #tpu.memory_space<smem>>
    %c144_i32_223 = arith.constant 144 : i32
    %737 = arith.muli %4, %c144_i32_223 : i32
    %c31_i32_224 = arith.constant 31 : i32
    %738 = arith.addi %737, %c31_i32_224 : i32
    %739 = arith.index_cast %738 : i32 to index
    %740 = memref.load %arg11[%739] : memref<288xf32, #tpu.memory_space<smem>>
    %c144_i32_225 = arith.constant 144 : i32
    %741 = arith.muli %4, %c144_i32_225 : i32
    %c32_i32_226 = arith.constant 32 : i32
    %742 = arith.addi %741, %c32_i32_226 : i32
    %743 = arith.index_cast %742 : i32 to index
    %744 = memref.load %arg11[%743] : memref<288xf32, #tpu.memory_space<smem>>
    %c144_i32_227 = arith.constant 144 : i32
    %745 = arith.muli %4, %c144_i32_227 : i32
    %c33_i32_228 = arith.constant 33 : i32
    %746 = arith.addi %745, %c33_i32_228 : i32
    %747 = arith.index_cast %746 : i32 to index
    %748 = memref.load %arg11[%747] : memref<288xf32, #tpu.memory_space<smem>>
    %c144_i32_229 = arith.constant 144 : i32
    %749 = arith.muli %4, %c144_i32_229 : i32
    %c34_i32_230 = arith.constant 34 : i32
    %750 = arith.addi %749, %c34_i32_230 : i32
    %751 = arith.index_cast %750 : i32 to index
    %752 = memref.load %arg11[%751] : memref<288xf32, #tpu.memory_space<smem>>
    %c144_i32_231 = arith.constant 144 : i32
    %753 = arith.muli %4, %c144_i32_231 : i32
    %c35_i32_232 = arith.constant 35 : i32
    %754 = arith.addi %753, %c35_i32_232 : i32
    %755 = arith.index_cast %754 : i32 to index
    %756 = memref.load %arg11[%755] : memref<288xf32, #tpu.memory_space<smem>>
    %c144_i32_233 = arith.constant 144 : i32
    %757 = arith.muli %4, %c144_i32_233 : i32
    %c36_i32_234 = arith.constant 36 : i32
    %758 = arith.addi %757, %c36_i32_234 : i32
    %759 = arith.index_cast %758 : i32 to index
    %760 = memref.load %arg11[%759] : memref<288xf32, #tpu.memory_space<smem>>
    %c144_i32_235 = arith.constant 144 : i32
    %761 = arith.muli %4, %c144_i32_235 : i32
    %c37_i32_236 = arith.constant 37 : i32
    %762 = arith.addi %761, %c37_i32_236 : i32
    %763 = arith.index_cast %762 : i32 to index
    %764 = memref.load %arg11[%763] : memref<288xf32, #tpu.memory_space<smem>>
    %c144_i32_237 = arith.constant 144 : i32
    %765 = arith.muli %4, %c144_i32_237 : i32
    %c38_i32_238 = arith.constant 38 : i32
    %766 = arith.addi %765, %c38_i32_238 : i32
    %767 = arith.index_cast %766 : i32 to index
    %768 = memref.load %arg11[%767] : memref<288xf32, #tpu.memory_space<smem>>
    %c144_i32_239 = arith.constant 144 : i32
    %769 = arith.muli %4, %c144_i32_239 : i32
    %c39_i32_240 = arith.constant 39 : i32
    %770 = arith.addi %769, %c39_i32_240 : i32
    %771 = arith.index_cast %770 : i32 to index
    %772 = memref.load %arg11[%771] : memref<288xf32, #tpu.memory_space<smem>>
    %c144_i32_241 = arith.constant 144 : i32
    %773 = arith.muli %4, %c144_i32_241 : i32
    %c40_i32_242 = arith.constant 40 : i32
    %774 = arith.addi %773, %c40_i32_242 : i32
    %775 = arith.index_cast %774 : i32 to index
    %776 = memref.load %arg11[%775] : memref<288xf32, #tpu.memory_space<smem>>
    %c144_i32_243 = arith.constant 144 : i32
    %777 = arith.muli %4, %c144_i32_243 : i32
    %c41_i32_244 = arith.constant 41 : i32
    %778 = arith.addi %777, %c41_i32_244 : i32
    %779 = arith.index_cast %778 : i32 to index
    %780 = memref.load %arg11[%779] : memref<288xf32, #tpu.memory_space<smem>>
    %c144_i32_245 = arith.constant 144 : i32
    %781 = arith.muli %4, %c144_i32_245 : i32
    %c42_i32_246 = arith.constant 42 : i32
    %782 = arith.addi %781, %c42_i32_246 : i32
    %783 = arith.index_cast %782 : i32 to index
    %784 = memref.load %arg11[%783] : memref<288xf32, #tpu.memory_space<smem>>
    %c144_i32_247 = arith.constant 144 : i32
    %785 = arith.muli %4, %c144_i32_247 : i32
    %c43_i32_248 = arith.constant 43 : i32
    %786 = arith.addi %785, %c43_i32_248 : i32
    %787 = arith.index_cast %786 : i32 to index
    %788 = memref.load %arg11[%787] : memref<288xf32, #tpu.memory_space<smem>>
    %c144_i32_249 = arith.constant 144 : i32
    %789 = arith.muli %4, %c144_i32_249 : i32
    %c44_i32_250 = arith.constant 44 : i32
    %790 = arith.addi %789, %c44_i32_250 : i32
    %791 = arith.index_cast %790 : i32 to index
    %792 = memref.load %arg11[%791] : memref<288xf32, #tpu.memory_space<smem>>
    %c144_i32_251 = arith.constant 144 : i32
    %793 = arith.muli %4, %c144_i32_251 : i32
    %c45_i32_252 = arith.constant 45 : i32
    %794 = arith.addi %793, %c45_i32_252 : i32
    %795 = arith.index_cast %794 : i32 to index
    %796 = memref.load %arg11[%795] : memref<288xf32, #tpu.memory_space<smem>>
    %c144_i32_253 = arith.constant 144 : i32
    %797 = arith.muli %4, %c144_i32_253 : i32
    %c46_i32_254 = arith.constant 46 : i32
    %798 = arith.addi %797, %c46_i32_254 : i32
    %799 = arith.index_cast %798 : i32 to index
    %800 = memref.load %arg11[%799] : memref<288xf32, #tpu.memory_space<smem>>
    %c144_i32_255 = arith.constant 144 : i32
    %801 = arith.muli %4, %c144_i32_255 : i32
    %c47_i32_256 = arith.constant 47 : i32
    %802 = arith.addi %801, %c47_i32_256 : i32
    %803 = arith.index_cast %802 : i32 to index
    %804 = memref.load %arg11[%803] : memref<288xf32, #tpu.memory_space<smem>>
    %c144_i32_257 = arith.constant 144 : i32
    %805 = arith.muli %4, %c144_i32_257 : i32
    %c48_i32_258 = arith.constant 48 : i32
    %806 = arith.addi %805, %c48_i32_258 : i32
    %807 = arith.index_cast %806 : i32 to index
    %808 = memref.load %arg11[%807] : memref<288xf32, #tpu.memory_space<smem>>
    %c144_i32_259 = arith.constant 144 : i32
    %809 = arith.muli %4, %c144_i32_259 : i32
    %c49_i32_260 = arith.constant 49 : i32
    %810 = arith.addi %809, %c49_i32_260 : i32
    %811 = arith.index_cast %810 : i32 to index
    %812 = memref.load %arg11[%811] : memref<288xf32, #tpu.memory_space<smem>>
    %c144_i32_261 = arith.constant 144 : i32
    %813 = arith.muli %4, %c144_i32_261 : i32
    %c50_i32_262 = arith.constant 50 : i32
    %814 = arith.addi %813, %c50_i32_262 : i32
    %815 = arith.index_cast %814 : i32 to index
    %816 = memref.load %arg11[%815] : memref<288xf32, #tpu.memory_space<smem>>
    %c144_i32_263 = arith.constant 144 : i32
    %817 = arith.muli %4, %c144_i32_263 : i32
    %c51_i32_264 = arith.constant 51 : i32
    %818 = arith.addi %817, %c51_i32_264 : i32
    %819 = arith.index_cast %818 : i32 to index
    %820 = memref.load %arg11[%819] : memref<288xf32, #tpu.memory_space<smem>>
    %c144_i32_265 = arith.constant 144 : i32
    %821 = arith.muli %4, %c144_i32_265 : i32
    %c52_i32_266 = arith.constant 52 : i32
    %822 = arith.addi %821, %c52_i32_266 : i32
    %823 = arith.index_cast %822 : i32 to index
    %824 = memref.load %arg11[%823] : memref<288xf32, #tpu.memory_space<smem>>
    %c144_i32_267 = arith.constant 144 : i32
    %825 = arith.muli %4, %c144_i32_267 : i32
    %c53_i32_268 = arith.constant 53 : i32
    %826 = arith.addi %825, %c53_i32_268 : i32
    %827 = arith.index_cast %826 : i32 to index
    %828 = memref.load %arg11[%827] : memref<288xf32, #tpu.memory_space<smem>>
    %c144_i32_269 = arith.constant 144 : i32
    %829 = arith.muli %4, %c144_i32_269 : i32
    %c54_i32_270 = arith.constant 54 : i32
    %830 = arith.addi %829, %c54_i32_270 : i32
    %831 = arith.index_cast %830 : i32 to index
    %832 = memref.load %arg11[%831] : memref<288xf32, #tpu.memory_space<smem>>
    %c144_i32_271 = arith.constant 144 : i32
    %833 = arith.muli %4, %c144_i32_271 : i32
    %c55_i32_272 = arith.constant 55 : i32
    %834 = arith.addi %833, %c55_i32_272 : i32
    %835 = arith.index_cast %834 : i32 to index
    %836 = memref.load %arg11[%835] : memref<288xf32, #tpu.memory_space<smem>>
    %c144_i32_273 = arith.constant 144 : i32
    %837 = arith.muli %4, %c144_i32_273 : i32
    %c56_i32_274 = arith.constant 56 : i32
    %838 = arith.addi %837, %c56_i32_274 : i32
    %839 = arith.index_cast %838 : i32 to index
    %840 = memref.load %arg11[%839] : memref<288xf32, #tpu.memory_space<smem>>
    %c144_i32_275 = arith.constant 144 : i32
    %841 = arith.muli %4, %c144_i32_275 : i32
    %c57_i32_276 = arith.constant 57 : i32
    %842 = arith.addi %841, %c57_i32_276 : i32
    %843 = arith.index_cast %842 : i32 to index
    %844 = memref.load %arg11[%843] : memref<288xf32, #tpu.memory_space<smem>>
    %c144_i32_277 = arith.constant 144 : i32
    %845 = arith.muli %4, %c144_i32_277 : i32
    %c58_i32_278 = arith.constant 58 : i32
    %846 = arith.addi %845, %c58_i32_278 : i32
    %847 = arith.index_cast %846 : i32 to index
    %848 = memref.load %arg11[%847] : memref<288xf32, #tpu.memory_space<smem>>
    %c144_i32_279 = arith.constant 144 : i32
    %849 = arith.muli %4, %c144_i32_279 : i32
    %c59_i32_280 = arith.constant 59 : i32
    %850 = arith.addi %849, %c59_i32_280 : i32
    %851 = arith.index_cast %850 : i32 to index
    %852 = memref.load %arg11[%851] : memref<288xf32, #tpu.memory_space<smem>>
    %c144_i32_281 = arith.constant 144 : i32
    %853 = arith.muli %4, %c144_i32_281 : i32
    %c60_i32_282 = arith.constant 60 : i32
    %854 = arith.addi %853, %c60_i32_282 : i32
    %855 = arith.index_cast %854 : i32 to index
    %856 = memref.load %arg11[%855] : memref<288xf32, #tpu.memory_space<smem>>
    %c144_i32_283 = arith.constant 144 : i32
    %857 = arith.muli %4, %c144_i32_283 : i32
    %c61_i32_284 = arith.constant 61 : i32
    %858 = arith.addi %857, %c61_i32_284 : i32
    %859 = arith.index_cast %858 : i32 to index
    %860 = memref.load %arg11[%859] : memref<288xf32, #tpu.memory_space<smem>>
    %c144_i32_285 = arith.constant 144 : i32
    %861 = arith.muli %4, %c144_i32_285 : i32
    %c62_i32_286 = arith.constant 62 : i32
    %862 = arith.addi %861, %c62_i32_286 : i32
    %863 = arith.index_cast %862 : i32 to index
    %864 = memref.load %arg11[%863] : memref<288xf32, #tpu.memory_space<smem>>
    %c144_i32_287 = arith.constant 144 : i32
    %865 = arith.muli %4, %c144_i32_287 : i32
    %c63_i32_288 = arith.constant 63 : i32
    %866 = arith.addi %865, %c63_i32_288 : i32
    %867 = arith.index_cast %866 : i32 to index
    %868 = memref.load %arg11[%867] : memref<288xf32, #tpu.memory_space<smem>>
    %c144_i32_289 = arith.constant 144 : i32
    %869 = arith.muli %4, %c144_i32_289 : i32
    %c64_i32_290 = arith.constant 64 : i32
    %870 = arith.addi %869, %c64_i32_290 : i32
    %871 = arith.index_cast %870 : i32 to index
    %872 = memref.load %arg11[%871] : memref<288xf32, #tpu.memory_space<smem>>
    %c144_i32_291 = arith.constant 144 : i32
    %873 = arith.muli %4, %c144_i32_291 : i32
    %c65_i32_292 = arith.constant 65 : i32
    %874 = arith.addi %873, %c65_i32_292 : i32
    %875 = arith.index_cast %874 : i32 to index
    %876 = memref.load %arg11[%875] : memref<288xf32, #tpu.memory_space<smem>>
    %c144_i32_293 = arith.constant 144 : i32
    %877 = arith.muli %4, %c144_i32_293 : i32
    %c66_i32_294 = arith.constant 66 : i32
    %878 = arith.addi %877, %c66_i32_294 : i32
    %879 = arith.index_cast %878 : i32 to index
    %880 = memref.load %arg11[%879] : memref<288xf32, #tpu.memory_space<smem>>
    %c144_i32_295 = arith.constant 144 : i32
    %881 = arith.muli %4, %c144_i32_295 : i32
    %c67_i32_296 = arith.constant 67 : i32
    %882 = arith.addi %881, %c67_i32_296 : i32
    %883 = arith.index_cast %882 : i32 to index
    %884 = memref.load %arg11[%883] : memref<288xf32, #tpu.memory_space<smem>>
    %c144_i32_297 = arith.constant 144 : i32
    %885 = arith.muli %4, %c144_i32_297 : i32
    %c68_i32_298 = arith.constant 68 : i32
    %886 = arith.addi %885, %c68_i32_298 : i32
    %887 = arith.index_cast %886 : i32 to index
    %888 = memref.load %arg11[%887] : memref<288xf32, #tpu.memory_space<smem>>
    %c144_i32_299 = arith.constant 144 : i32
    %889 = arith.muli %4, %c144_i32_299 : i32
    %c69_i32_300 = arith.constant 69 : i32
    %890 = arith.addi %889, %c69_i32_300 : i32
    %891 = arith.index_cast %890 : i32 to index
    %892 = memref.load %arg11[%891] : memref<288xf32, #tpu.memory_space<smem>>
    %c144_i32_301 = arith.constant 144 : i32
    %893 = arith.muli %4, %c144_i32_301 : i32
    %c70_i32_302 = arith.constant 70 : i32
    %894 = arith.addi %893, %c70_i32_302 : i32
    %895 = arith.index_cast %894 : i32 to index
    %896 = memref.load %arg11[%895] : memref<288xf32, #tpu.memory_space<smem>>
    %c144_i32_303 = arith.constant 144 : i32
    %897 = arith.muli %4, %c144_i32_303 : i32
    %c71_i32_304 = arith.constant 71 : i32
    %898 = arith.addi %897, %c71_i32_304 : i32
    %899 = arith.index_cast %898 : i32 to index
    %900 = memref.load %arg11[%899] : memref<288xf32, #tpu.memory_space<smem>>
    %c144_i32_305 = arith.constant 144 : i32
    %901 = arith.muli %4, %c144_i32_305 : i32
    %c72_i32_306 = arith.constant 72 : i32
    %902 = arith.addi %901, %c72_i32_306 : i32
    %903 = arith.index_cast %902 : i32 to index
    %904 = memref.load %arg11[%903] : memref<288xf32, #tpu.memory_space<smem>>
    %c144_i32_307 = arith.constant 144 : i32
    %905 = arith.muli %4, %c144_i32_307 : i32
    %c73_i32_308 = arith.constant 73 : i32
    %906 = arith.addi %905, %c73_i32_308 : i32
    %907 = arith.index_cast %906 : i32 to index
    %908 = memref.load %arg11[%907] : memref<288xf32, #tpu.memory_space<smem>>
    %c144_i32_309 = arith.constant 144 : i32
    %909 = arith.muli %4, %c144_i32_309 : i32
    %c74_i32_310 = arith.constant 74 : i32
    %910 = arith.addi %909, %c74_i32_310 : i32
    %911 = arith.index_cast %910 : i32 to index
    %912 = memref.load %arg11[%911] : memref<288xf32, #tpu.memory_space<smem>>
    %c144_i32_311 = arith.constant 144 : i32
    %913 = arith.muli %4, %c144_i32_311 : i32
    %c75_i32_312 = arith.constant 75 : i32
    %914 = arith.addi %913, %c75_i32_312 : i32
    %915 = arith.index_cast %914 : i32 to index
    %916 = memref.load %arg11[%915] : memref<288xf32, #tpu.memory_space<smem>>
    %c144_i32_313 = arith.constant 144 : i32
    %917 = arith.muli %4, %c144_i32_313 : i32
    %c76_i32_314 = arith.constant 76 : i32
    %918 = arith.addi %917, %c76_i32_314 : i32
    %919 = arith.index_cast %918 : i32 to index
    %920 = memref.load %arg11[%919] : memref<288xf32, #tpu.memory_space<smem>>
    %c144_i32_315 = arith.constant 144 : i32
    %921 = arith.muli %4, %c144_i32_315 : i32
    %c77_i32_316 = arith.constant 77 : i32
    %922 = arith.addi %921, %c77_i32_316 : i32
    %923 = arith.index_cast %922 : i32 to index
    %924 = memref.load %arg11[%923] : memref<288xf32, #tpu.memory_space<smem>>
    %c144_i32_317 = arith.constant 144 : i32
    %925 = arith.muli %4, %c144_i32_317 : i32
    %c78_i32_318 = arith.constant 78 : i32
    %926 = arith.addi %925, %c78_i32_318 : i32
    %927 = arith.index_cast %926 : i32 to index
    %928 = memref.load %arg11[%927] : memref<288xf32, #tpu.memory_space<smem>>
    %c144_i32_319 = arith.constant 144 : i32
    %929 = arith.muli %4, %c144_i32_319 : i32
    %c79_i32_320 = arith.constant 79 : i32
    %930 = arith.addi %929, %c79_i32_320 : i32
    %931 = arith.index_cast %930 : i32 to index
    %932 = memref.load %arg11[%931] : memref<288xf32, #tpu.memory_space<smem>>
    %c144_i32_321 = arith.constant 144 : i32
    %933 = arith.muli %4, %c144_i32_321 : i32
    %c80_i32_322 = arith.constant 80 : i32
    %934 = arith.addi %933, %c80_i32_322 : i32
    %935 = arith.index_cast %934 : i32 to index
    %936 = memref.load %arg11[%935] : memref<288xf32, #tpu.memory_space<smem>>
    %c144_i32_323 = arith.constant 144 : i32
    %937 = arith.muli %4, %c144_i32_323 : i32
    %c81_i32_324 = arith.constant 81 : i32
    %938 = arith.addi %937, %c81_i32_324 : i32
    %939 = arith.index_cast %938 : i32 to index
    %940 = memref.load %arg11[%939] : memref<288xf32, #tpu.memory_space<smem>>
    %c144_i32_325 = arith.constant 144 : i32
    %941 = arith.muli %4, %c144_i32_325 : i32
    %c82_i32_326 = arith.constant 82 : i32
    %942 = arith.addi %941, %c82_i32_326 : i32
    %943 = arith.index_cast %942 : i32 to index
    %944 = memref.load %arg11[%943] : memref<288xf32, #tpu.memory_space<smem>>
    %c144_i32_327 = arith.constant 144 : i32
    %945 = arith.muli %4, %c144_i32_327 : i32
    %c83_i32_328 = arith.constant 83 : i32
    %946 = arith.addi %945, %c83_i32_328 : i32
    %947 = arith.index_cast %946 : i32 to index
    %948 = memref.load %arg11[%947] : memref<288xf32, #tpu.memory_space<smem>>
    %c144_i32_329 = arith.constant 144 : i32
    %949 = arith.muli %4, %c144_i32_329 : i32
    %c84_i32_330 = arith.constant 84 : i32
    %950 = arith.addi %949, %c84_i32_330 : i32
    %951 = arith.index_cast %950 : i32 to index
    %952 = memref.load %arg11[%951] : memref<288xf32, #tpu.memory_space<smem>>
    %c144_i32_331 = arith.constant 144 : i32
    %953 = arith.muli %4, %c144_i32_331 : i32
    %c85_i32_332 = arith.constant 85 : i32
    %954 = arith.addi %953, %c85_i32_332 : i32
    %955 = arith.index_cast %954 : i32 to index
    %956 = memref.load %arg11[%955] : memref<288xf32, #tpu.memory_space<smem>>
    %c144_i32_333 = arith.constant 144 : i32
    %957 = arith.muli %4, %c144_i32_333 : i32
    %c86_i32_334 = arith.constant 86 : i32
    %958 = arith.addi %957, %c86_i32_334 : i32
    %959 = arith.index_cast %958 : i32 to index
    %960 = memref.load %arg11[%959] : memref<288xf32, #tpu.memory_space<smem>>
    %c144_i32_335 = arith.constant 144 : i32
    %961 = arith.muli %4, %c144_i32_335 : i32
    %c87_i32_336 = arith.constant 87 : i32
    %962 = arith.addi %961, %c87_i32_336 : i32
    %963 = arith.index_cast %962 : i32 to index
    %964 = memref.load %arg11[%963] : memref<288xf32, #tpu.memory_space<smem>>
    %c144_i32_337 = arith.constant 144 : i32
    %965 = arith.muli %4, %c144_i32_337 : i32
    %c88_i32_338 = arith.constant 88 : i32
    %966 = arith.addi %965, %c88_i32_338 : i32
    %967 = arith.index_cast %966 : i32 to index
    %968 = memref.load %arg11[%967] : memref<288xf32, #tpu.memory_space<smem>>
    %c144_i32_339 = arith.constant 144 : i32
    %969 = arith.muli %4, %c144_i32_339 : i32
    %c89_i32_340 = arith.constant 89 : i32
    %970 = arith.addi %969, %c89_i32_340 : i32
    %971 = arith.index_cast %970 : i32 to index
    %972 = memref.load %arg11[%971] : memref<288xf32, #tpu.memory_space<smem>>
    %c144_i32_341 = arith.constant 144 : i32
    %973 = arith.muli %4, %c144_i32_341 : i32
    %c90_i32_342 = arith.constant 90 : i32
    %974 = arith.addi %973, %c90_i32_342 : i32
    %975 = arith.index_cast %974 : i32 to index
    %976 = memref.load %arg11[%975] : memref<288xf32, #tpu.memory_space<smem>>
    %c144_i32_343 = arith.constant 144 : i32
    %977 = arith.muli %4, %c144_i32_343 : i32
    %c91_i32_344 = arith.constant 91 : i32
    %978 = arith.addi %977, %c91_i32_344 : i32
    %979 = arith.index_cast %978 : i32 to index
    %980 = memref.load %arg11[%979] : memref<288xf32, #tpu.memory_space<smem>>
    %c144_i32_345 = arith.constant 144 : i32
    %981 = arith.muli %4, %c144_i32_345 : i32
    %c92_i32_346 = arith.constant 92 : i32
    %982 = arith.addi %981, %c92_i32_346 : i32
    %983 = arith.index_cast %982 : i32 to index
    %984 = memref.load %arg11[%983] : memref<288xf32, #tpu.memory_space<smem>>
    %c144_i32_347 = arith.constant 144 : i32
    %985 = arith.muli %4, %c144_i32_347 : i32
    %c93_i32_348 = arith.constant 93 : i32
    %986 = arith.addi %985, %c93_i32_348 : i32
    %987 = arith.index_cast %986 : i32 to index
    %988 = memref.load %arg11[%987] : memref<288xf32, #tpu.memory_space<smem>>
    %c144_i32_349 = arith.constant 144 : i32
    %989 = arith.muli %4, %c144_i32_349 : i32
    %c94_i32_350 = arith.constant 94 : i32
    %990 = arith.addi %989, %c94_i32_350 : i32
    %991 = arith.index_cast %990 : i32 to index
    %992 = memref.load %arg11[%991] : memref<288xf32, #tpu.memory_space<smem>>
    %c144_i32_351 = arith.constant 144 : i32
    %993 = arith.muli %4, %c144_i32_351 : i32
    %c95_i32_352 = arith.constant 95 : i32
    %994 = arith.addi %993, %c95_i32_352 : i32
    %995 = arith.index_cast %994 : i32 to index
    %996 = memref.load %arg11[%995] : memref<288xf32, #tpu.memory_space<smem>>
    %c144_i32_353 = arith.constant 144 : i32
    %997 = arith.muli %4, %c144_i32_353 : i32
    %c96_i32_354 = arith.constant 96 : i32
    %998 = arith.addi %997, %c96_i32_354 : i32
    %999 = arith.index_cast %998 : i32 to index
    %1000 = memref.load %arg11[%999] : memref<288xf32, #tpu.memory_space<smem>>
    %c144_i32_355 = arith.constant 144 : i32
    %1001 = arith.muli %4, %c144_i32_355 : i32
    %c97_i32_356 = arith.constant 97 : i32
    %1002 = arith.addi %1001, %c97_i32_356 : i32
    %1003 = arith.index_cast %1002 : i32 to index
    %1004 = memref.load %arg11[%1003] : memref<288xf32, #tpu.memory_space<smem>>
    %c144_i32_357 = arith.constant 144 : i32
    %1005 = arith.muli %4, %c144_i32_357 : i32
    %c98_i32_358 = arith.constant 98 : i32
    %1006 = arith.addi %1005, %c98_i32_358 : i32
    %1007 = arith.index_cast %1006 : i32 to index
    %1008 = memref.load %arg11[%1007] : memref<288xf32, #tpu.memory_space<smem>>
    %c144_i32_359 = arith.constant 144 : i32
    %1009 = arith.muli %4, %c144_i32_359 : i32
    %c99_i32_360 = arith.constant 99 : i32
    %1010 = arith.addi %1009, %c99_i32_360 : i32
    %1011 = arith.index_cast %1010 : i32 to index
    %1012 = memref.load %arg11[%1011] : memref<288xf32, #tpu.memory_space<smem>>
    %c144_i32_361 = arith.constant 144 : i32
    %1013 = arith.muli %4, %c144_i32_361 : i32
    %c100_i32_362 = arith.constant 100 : i32
    %1014 = arith.addi %1013, %c100_i32_362 : i32
    %1015 = arith.index_cast %1014 : i32 to index
    %1016 = memref.load %arg11[%1015] : memref<288xf32, #tpu.memory_space<smem>>
    %c144_i32_363 = arith.constant 144 : i32
    %1017 = arith.muli %4, %c144_i32_363 : i32
    %c101_i32_364 = arith.constant 101 : i32
    %1018 = arith.addi %1017, %c101_i32_364 : i32
    %1019 = arith.index_cast %1018 : i32 to index
    %1020 = memref.load %arg11[%1019] : memref<288xf32, #tpu.memory_space<smem>>
    %c144_i32_365 = arith.constant 144 : i32
    %1021 = arith.muli %4, %c144_i32_365 : i32
    %c102_i32_366 = arith.constant 102 : i32
    %1022 = arith.addi %1021, %c102_i32_366 : i32
    %1023 = arith.index_cast %1022 : i32 to index
    %1024 = memref.load %arg11[%1023] : memref<288xf32, #tpu.memory_space<smem>>
    %c144_i32_367 = arith.constant 144 : i32
    %1025 = arith.muli %4, %c144_i32_367 : i32
    %c103_i32_368 = arith.constant 103 : i32
    %1026 = arith.addi %1025, %c103_i32_368 : i32
    %1027 = arith.index_cast %1026 : i32 to index
    %1028 = memref.load %arg11[%1027] : memref<288xf32, #tpu.memory_space<smem>>
    %c144_i32_369 = arith.constant 144 : i32
    %1029 = arith.muli %4, %c144_i32_369 : i32
    %c104_i32_370 = arith.constant 104 : i32
    %1030 = arith.addi %1029, %c104_i32_370 : i32
    %1031 = arith.index_cast %1030 : i32 to index
    %1032 = memref.load %arg11[%1031] : memref<288xf32, #tpu.memory_space<smem>>
    %c144_i32_371 = arith.constant 144 : i32
    %1033 = arith.muli %4, %c144_i32_371 : i32
    %c105_i32_372 = arith.constant 105 : i32
    %1034 = arith.addi %1033, %c105_i32_372 : i32
    %1035 = arith.index_cast %1034 : i32 to index
    %1036 = memref.load %arg11[%1035] : memref<288xf32, #tpu.memory_space<smem>>
    %c144_i32_373 = arith.constant 144 : i32
    %1037 = arith.muli %4, %c144_i32_373 : i32
    %c106_i32_374 = arith.constant 106 : i32
    %1038 = arith.addi %1037, %c106_i32_374 : i32
    %1039 = arith.index_cast %1038 : i32 to index
    %1040 = memref.load %arg11[%1039] : memref<288xf32, #tpu.memory_space<smem>>
    %c144_i32_375 = arith.constant 144 : i32
    %1041 = arith.muli %4, %c144_i32_375 : i32
    %c107_i32_376 = arith.constant 107 : i32
    %1042 = arith.addi %1041, %c107_i32_376 : i32
    %1043 = arith.index_cast %1042 : i32 to index
    %1044 = memref.load %arg11[%1043] : memref<288xf32, #tpu.memory_space<smem>>
    %c144_i32_377 = arith.constant 144 : i32
    %1045 = arith.muli %4, %c144_i32_377 : i32
    %c108_i32_378 = arith.constant 108 : i32
    %1046 = arith.addi %1045, %c108_i32_378 : i32
    %1047 = arith.index_cast %1046 : i32 to index
    %1048 = memref.load %arg11[%1047] : memref<288xf32, #tpu.memory_space<smem>>
    %c144_i32_379 = arith.constant 144 : i32
    %1049 = arith.muli %4, %c144_i32_379 : i32
    %c109_i32_380 = arith.constant 109 : i32
    %1050 = arith.addi %1049, %c109_i32_380 : i32
    %1051 = arith.index_cast %1050 : i32 to index
    %1052 = memref.load %arg11[%1051] : memref<288xf32, #tpu.memory_space<smem>>
    %c144_i32_381 = arith.constant 144 : i32
    %1053 = arith.muli %4, %c144_i32_381 : i32
    %c110_i32_382 = arith.constant 110 : i32
    %1054 = arith.addi %1053, %c110_i32_382 : i32
    %1055 = arith.index_cast %1054 : i32 to index
    %1056 = memref.load %arg11[%1055] : memref<288xf32, #tpu.memory_space<smem>>
    %c144_i32_383 = arith.constant 144 : i32
    %1057 = arith.muli %4, %c144_i32_383 : i32
    %c111_i32_384 = arith.constant 111 : i32
    %1058 = arith.addi %1057, %c111_i32_384 : i32
    %1059 = arith.index_cast %1058 : i32 to index
    %1060 = memref.load %arg11[%1059] : memref<288xf32, #tpu.memory_space<smem>>
    %c144_i32_385 = arith.constant 144 : i32
    %1061 = arith.muli %4, %c144_i32_385 : i32
    %c112_i32_386 = arith.constant 112 : i32
    %1062 = arith.addi %1061, %c112_i32_386 : i32
    %1063 = arith.index_cast %1062 : i32 to index
    %1064 = memref.load %arg11[%1063] : memref<288xf32, #tpu.memory_space<smem>>
    %c144_i32_387 = arith.constant 144 : i32
    %1065 = arith.muli %4, %c144_i32_387 : i32
    %c113_i32_388 = arith.constant 113 : i32
    %1066 = arith.addi %1065, %c113_i32_388 : i32
    %1067 = arith.index_cast %1066 : i32 to index
    %1068 = memref.load %arg11[%1067] : memref<288xf32, #tpu.memory_space<smem>>
    %c144_i32_389 = arith.constant 144 : i32
    %1069 = arith.muli %4, %c144_i32_389 : i32
    %c114_i32_390 = arith.constant 114 : i32
    %1070 = arith.addi %1069, %c114_i32_390 : i32
    %1071 = arith.index_cast %1070 : i32 to index
    %1072 = memref.load %arg11[%1071] : memref<288xf32, #tpu.memory_space<smem>>
    %c144_i32_391 = arith.constant 144 : i32
    %1073 = arith.muli %4, %c144_i32_391 : i32
    %c115_i32_392 = arith.constant 115 : i32
    %1074 = arith.addi %1073, %c115_i32_392 : i32
    %1075 = arith.index_cast %1074 : i32 to index
    %1076 = memref.load %arg11[%1075] : memref<288xf32, #tpu.memory_space<smem>>
    %c144_i32_393 = arith.constant 144 : i32
    %1077 = arith.muli %4, %c144_i32_393 : i32
    %c116_i32_394 = arith.constant 116 : i32
    %1078 = arith.addi %1077, %c116_i32_394 : i32
    %1079 = arith.index_cast %1078 : i32 to index
    %1080 = memref.load %arg11[%1079] : memref<288xf32, #tpu.memory_space<smem>>
    %c144_i32_395 = arith.constant 144 : i32
    %1081 = arith.muli %4, %c144_i32_395 : i32
    %c117_i32_396 = arith.constant 117 : i32
    %1082 = arith.addi %1081, %c117_i32_396 : i32
    %1083 = arith.index_cast %1082 : i32 to index
    %1084 = memref.load %arg11[%1083] : memref<288xf32, #tpu.memory_space<smem>>
    %c144_i32_397 = arith.constant 144 : i32
    %1085 = arith.muli %4, %c144_i32_397 : i32
    %c118_i32_398 = arith.constant 118 : i32
    %1086 = arith.addi %1085, %c118_i32_398 : i32
    %1087 = arith.index_cast %1086 : i32 to index
    %1088 = memref.load %arg11[%1087] : memref<288xf32, #tpu.memory_space<smem>>
    %c144_i32_399 = arith.constant 144 : i32
    %1089 = arith.muli %4, %c144_i32_399 : i32
    %c119_i32_400 = arith.constant 119 : i32
    %1090 = arith.addi %1089, %c119_i32_400 : i32
    %1091 = arith.index_cast %1090 : i32 to index
    %1092 = memref.load %arg11[%1091] : memref<288xf32, #tpu.memory_space<smem>>
    %c144_i32_401 = arith.constant 144 : i32
    %1093 = arith.muli %4, %c144_i32_401 : i32
    %c120_i32_402 = arith.constant 120 : i32
    %1094 = arith.addi %1093, %c120_i32_402 : i32
    %1095 = arith.index_cast %1094 : i32 to index
    %1096 = memref.load %arg11[%1095] : memref<288xf32, #tpu.memory_space<smem>>
    %c144_i32_403 = arith.constant 144 : i32
    %1097 = arith.muli %4, %c144_i32_403 : i32
    %c121_i32_404 = arith.constant 121 : i32
    %1098 = arith.addi %1097, %c121_i32_404 : i32
    %1099 = arith.index_cast %1098 : i32 to index
    %1100 = memref.load %arg11[%1099] : memref<288xf32, #tpu.memory_space<smem>>
    %c144_i32_405 = arith.constant 144 : i32
    %1101 = arith.muli %4, %c144_i32_405 : i32
    %c122_i32_406 = arith.constant 122 : i32
    %1102 = arith.addi %1101, %c122_i32_406 : i32
    %1103 = arith.index_cast %1102 : i32 to index
    %1104 = memref.load %arg11[%1103] : memref<288xf32, #tpu.memory_space<smem>>
    %c144_i32_407 = arith.constant 144 : i32
    %1105 = arith.muli %4, %c144_i32_407 : i32
    %c123_i32_408 = arith.constant 123 : i32
    %1106 = arith.addi %1105, %c123_i32_408 : i32
    %1107 = arith.index_cast %1106 : i32 to index
    %1108 = memref.load %arg11[%1107] : memref<288xf32, #tpu.memory_space<smem>>
    %c144_i32_409 = arith.constant 144 : i32
    %1109 = arith.muli %4, %c144_i32_409 : i32
    %c124_i32_410 = arith.constant 124 : i32
    %1110 = arith.addi %1109, %c124_i32_410 : i32
    %1111 = arith.index_cast %1110 : i32 to index
    %1112 = memref.load %arg11[%1111] : memref<288xf32, #tpu.memory_space<smem>>
    %c144_i32_411 = arith.constant 144 : i32
    %1113 = arith.muli %4, %c144_i32_411 : i32
    %c125_i32_412 = arith.constant 125 : i32
    %1114 = arith.addi %1113, %c125_i32_412 : i32
    %1115 = arith.index_cast %1114 : i32 to index
    %1116 = memref.load %arg11[%1115] : memref<288xf32, #tpu.memory_space<smem>>
    %c144_i32_413 = arith.constant 144 : i32
    %1117 = arith.muli %4, %c144_i32_413 : i32
    %c126_i32_414 = arith.constant 126 : i32
    %1118 = arith.addi %1117, %c126_i32_414 : i32
    %1119 = arith.index_cast %1118 : i32 to index
    %1120 = memref.load %arg11[%1119] : memref<288xf32, #tpu.memory_space<smem>>
    %c144_i32_415 = arith.constant 144 : i32
    %1121 = arith.muli %4, %c144_i32_415 : i32
    %c127_i32_416 = arith.constant 127 : i32
    %1122 = arith.addi %1121, %c127_i32_416 : i32
    %1123 = arith.index_cast %1122 : i32 to index
    %1124 = memref.load %arg11[%1123] : memref<288xf32, #tpu.memory_space<smem>>
    %c144_i32_417 = arith.constant 144 : i32
    %1125 = arith.muli %4, %c144_i32_417 : i32
    %c128_i32_418 = arith.constant 128 : i32
    %1126 = arith.addi %1125, %c128_i32_418 : i32
    %1127 = arith.index_cast %1126 : i32 to index
    %1128 = memref.load %arg11[%1127] : memref<288xf32, #tpu.memory_space<smem>>
    %c144_i32_419 = arith.constant 144 : i32
    %1129 = arith.muli %4, %c144_i32_419 : i32
    %c129_i32_420 = arith.constant 129 : i32
    %1130 = arith.addi %1129, %c129_i32_420 : i32
    %1131 = arith.index_cast %1130 : i32 to index
    %1132 = memref.load %arg11[%1131] : memref<288xf32, #tpu.memory_space<smem>>
    %c144_i32_421 = arith.constant 144 : i32
    %1133 = arith.muli %4, %c144_i32_421 : i32
    %c130_i32_422 = arith.constant 130 : i32
    %1134 = arith.addi %1133, %c130_i32_422 : i32
    %1135 = arith.index_cast %1134 : i32 to index
    %1136 = memref.load %arg11[%1135] : memref<288xf32, #tpu.memory_space<smem>>
    %c144_i32_423 = arith.constant 144 : i32
    %1137 = arith.muli %4, %c144_i32_423 : i32
    %c131_i32_424 = arith.constant 131 : i32
    %1138 = arith.addi %1137, %c131_i32_424 : i32
    %1139 = arith.index_cast %1138 : i32 to index
    %1140 = memref.load %arg11[%1139] : memref<288xf32, #tpu.memory_space<smem>>
    %c144_i32_425 = arith.constant 144 : i32
    %1141 = arith.muli %4, %c144_i32_425 : i32
    %c132_i32_426 = arith.constant 132 : i32
    %1142 = arith.addi %1141, %c132_i32_426 : i32
    %1143 = arith.index_cast %1142 : i32 to index
    %1144 = memref.load %arg11[%1143] : memref<288xf32, #tpu.memory_space<smem>>
    %c144_i32_427 = arith.constant 144 : i32
    %1145 = arith.muli %4, %c144_i32_427 : i32
    %c133_i32_428 = arith.constant 133 : i32
    %1146 = arith.addi %1145, %c133_i32_428 : i32
    %1147 = arith.index_cast %1146 : i32 to index
    %1148 = memref.load %arg11[%1147] : memref<288xf32, #tpu.memory_space<smem>>
    %c144_i32_429 = arith.constant 144 : i32
    %1149 = arith.muli %4, %c144_i32_429 : i32
    %c134_i32_430 = arith.constant 134 : i32
    %1150 = arith.addi %1149, %c134_i32_430 : i32
    %1151 = arith.index_cast %1150 : i32 to index
    %1152 = memref.load %arg11[%1151] : memref<288xf32, #tpu.memory_space<smem>>
    %c144_i32_431 = arith.constant 144 : i32
    %1153 = arith.muli %4, %c144_i32_431 : i32
    %c135_i32_432 = arith.constant 135 : i32
    %1154 = arith.addi %1153, %c135_i32_432 : i32
    %1155 = arith.index_cast %1154 : i32 to index
    %1156 = memref.load %arg11[%1155] : memref<288xf32, #tpu.memory_space<smem>>
    %c144_i32_433 = arith.constant 144 : i32
    %1157 = arith.muli %4, %c144_i32_433 : i32
    %c136_i32_434 = arith.constant 136 : i32
    %1158 = arith.addi %1157, %c136_i32_434 : i32
    %1159 = arith.index_cast %1158 : i32 to index
    %1160 = memref.load %arg11[%1159] : memref<288xf32, #tpu.memory_space<smem>>
    %c144_i32_435 = arith.constant 144 : i32
    %1161 = arith.muli %4, %c144_i32_435 : i32
    %c137_i32_436 = arith.constant 137 : i32
    %1162 = arith.addi %1161, %c137_i32_436 : i32
    %1163 = arith.index_cast %1162 : i32 to index
    %1164 = memref.load %arg11[%1163] : memref<288xf32, #tpu.memory_space<smem>>
    %c144_i32_437 = arith.constant 144 : i32
    %1165 = arith.muli %4, %c144_i32_437 : i32
    %c138_i32_438 = arith.constant 138 : i32
    %1166 = arith.addi %1165, %c138_i32_438 : i32
    %1167 = arith.index_cast %1166 : i32 to index
    %1168 = memref.load %arg11[%1167] : memref<288xf32, #tpu.memory_space<smem>>
    %c144_i32_439 = arith.constant 144 : i32
    %1169 = arith.muli %4, %c144_i32_439 : i32
    %c139_i32_440 = arith.constant 139 : i32
    %1170 = arith.addi %1169, %c139_i32_440 : i32
    %1171 = arith.index_cast %1170 : i32 to index
    %1172 = memref.load %arg11[%1171] : memref<288xf32, #tpu.memory_space<smem>>
    %c144_i32_441 = arith.constant 144 : i32
    %1173 = arith.muli %4, %c144_i32_441 : i32
    %c140_i32_442 = arith.constant 140 : i32
    %1174 = arith.addi %1173, %c140_i32_442 : i32
    %1175 = arith.index_cast %1174 : i32 to index
    %1176 = memref.load %arg11[%1175] : memref<288xf32, #tpu.memory_space<smem>>
    %c144_i32_443 = arith.constant 144 : i32
    %1177 = arith.muli %4, %c144_i32_443 : i32
    %c141_i32_444 = arith.constant 141 : i32
    %1178 = arith.addi %1177, %c141_i32_444 : i32
    %1179 = arith.index_cast %1178 : i32 to index
    %1180 = memref.load %arg11[%1179] : memref<288xf32, #tpu.memory_space<smem>>
    %c144_i32_445 = arith.constant 144 : i32
    %1181 = arith.muli %4, %c144_i32_445 : i32
    %c142_i32_446 = arith.constant 142 : i32
    %1182 = arith.addi %1181, %c142_i32_446 : i32
    %1183 = arith.index_cast %1182 : i32 to index
    %1184 = memref.load %arg11[%1183] : memref<288xf32, #tpu.memory_space<smem>>
    %c144_i32_447 = arith.constant 144 : i32
    %1185 = arith.muli %4, %c144_i32_447 : i32
    %c143_i32_448 = arith.constant 143 : i32
    %1186 = arith.addi %1185, %c143_i32_448 : i32
    %1187 = arith.index_cast %1186 : i32 to index
    %1188 = memref.load %arg11[%1187] : memref<288xf32, #tpu.memory_space<smem>>
    %c2_i32_449 = arith.constant 2 : i32
    %1189 = arith.muli %4, %c2_i32_449 : i32
    %c0_i32_450 = arith.constant 0 : i32
    %1190 = arith.addi %1189, %c0_i32_450 : i32
    %1191 = arith.index_cast %1190 : i32 to index
    %1192 = memref.load %arg12[%1191] : memref<4xf32, #tpu.memory_space<smem>>
    %c2_i32_451 = arith.constant 2 : i32
    %1193 = arith.muli %4, %c2_i32_451 : i32
    %c1_i32_452 = arith.constant 1 : i32
    %1194 = arith.addi %1193, %c1_i32_452 : i32
    %1195 = arith.index_cast %1194 : i32 to index
    %1196 = memref.load %arg12[%1195] : memref<4xf32, #tpu.memory_space<smem>>
    %1197 = tpu.iota {dimensions = array<i32: 1>} : vector<16x128xi32>
    %1198 = tpu.iota {dimensions = array<i32: 0>} : vector<16x128xi32>
    %c0_i32_453 = arith.constant 0 : i32
    %1199 = vector.broadcast %c0_i32_453 : i32 to vector<16x128xi32>
    %1200 = arith.cmpi ne, %1197, %1199 : vector<16x128xi32>
    %c63_i32_454 = arith.constant 63 : i32
    %1201 = vector.broadcast %c63_i32_454 : i32 to vector<16x128xi32>
    %1202 = arith.cmpi ne, %1197, %1201 : vector<16x128xi32>
    %c64_i32_455 = arith.constant 64 : i32
    %1203 = vector.broadcast %c64_i32_455 : i32 to vector<16x128xi32>
    %1204 = arith.cmpi ne, %1197, %1203 : vector<16x128xi32>
    %1205 = arith.andi %1200, %1204 : vector<16x128xi1>
    %c127_i32_456 = arith.constant 127 : i32
    %1206 = vector.broadcast %c127_i32_456 : i32 to vector<16x128xi32>
    %1207 = arith.cmpi ne, %1197, %1206 : vector<16x128xi32>
    %1208 = arith.andi %1202, %1207 : vector<16x128xi1>
    %1209 = arith.extui %1205 : vector<16x128xi1> to vector<16x128xi32>
    %1210 = arith.sitofp %1209 : vector<16x128xi32> to vector<16x128xf32>
    %1211 = arith.extui %1208 : vector<16x128xi1> to vector<16x128xi32>
    %1212 = arith.sitofp %1211 : vector<16x128xi32> to vector<16x128xf32>
    %c0_i32_457 = arith.constant 0 : i32
    %1213 = vector.broadcast %c0_i32_457 : i32 to vector<16x128xi32>
    %1214 = arith.cmpi ne, %1198, %1213 : vector<16x128xi32>
    %1215 = arith.extui %1214 : vector<16x128xi1> to vector<16x128xi32>
    %1216 = arith.sitofp %1215 : vector<16x128xi32> to vector<16x128xf32>
    %c15_i32_458 = arith.constant 15 : i32
    %1217 = vector.broadcast %c15_i32_458 : i32 to vector<16x128xi32>
    %1218 = arith.cmpi ne, %1198, %1217 : vector<16x128xi32>
    %1219 = arith.extui %1218 : vector<16x128xi1> to vector<16x128xi32>
    %1220 = arith.sitofp %1219 : vector<16x128xi32> to vector<16x128xf32>
    %c0 = arith.constant 0 : index
    %c0_459 = arith.constant 0 : index
    %1221 = vector.load %arg13[%c0, %c0_459] : memref<32x128xf32, #tpu.memory_space<vmem>>, vector<16x128xf32>
    %c16 = arith.constant 16 : index
    %c0_460 = arith.constant 0 : index
    %1222 = vector.load %arg13[%c16, %c0_460] : memref<32x128xf32, #tpu.memory_space<vmem>>, vector<16x128xf32>
    %c1_i32_461 = arith.constant 1 : i32
    %1223 = tpu.dynamic_rotate %1221 by %c1_i32_461 dim 1 : vector<16x128xf32>, i32 -> vector<16x128xf32>
    %1224 = arith.mulf %1223, %1210 : vector<16x128xf32>
    %c127_i32_462 = arith.constant 127 : i32
    %1225 = tpu.dynamic_rotate %1221 by %c127_i32_462 dim 1 : vector<16x128xf32>, i32 -> vector<16x128xf32>
    %1226 = arith.mulf %1225, %1212 : vector<16x128xf32>
    %c1_i32_463 = arith.constant 1 : i32
    %1227 = tpu.dynamic_rotate %1224 by %c1_i32_463 dim 0 : vector<16x128xf32>, i32 -> vector<16x128xf32>
    %1228 = arith.mulf %1227, %1216 : vector<16x128xf32>
    %c15_i32_464 = arith.constant 15 : i32
    %1229 = tpu.dynamic_rotate %1224 by %c15_i32_464 dim 0 : vector<16x128xf32>, i32 -> vector<16x128xf32>
    %1230 = arith.mulf %1229, %1220 : vector<16x128xf32>
    %1231 = vector.broadcast %8 : f32 to vector<16x128xf32>
    %1232 = arith.mulf %1228, %1231 : vector<16x128xf32>
    %1233 = vector.broadcast %12 : f32 to vector<16x128xf32>
    %1234 = arith.mulf %1228, %1233 : vector<16x128xf32>
    %1235 = vector.broadcast %16 : f32 to vector<16x128xf32>
    %1236 = arith.mulf %1228, %1235 : vector<16x128xf32>
    %1237 = vector.broadcast %20 : f32 to vector<16x128xf32>
    %1238 = arith.mulf %1228, %1237 : vector<16x128xf32>
    %1239 = vector.broadcast %24 : f32 to vector<16x128xf32>
    %1240 = arith.mulf %1228, %1239 : vector<16x128xf32>
    %1241 = vector.broadcast %28 : f32 to vector<16x128xf32>
    %1242 = arith.mulf %1228, %1241 : vector<16x128xf32>
    %1243 = vector.broadcast %32 : f32 to vector<16x128xf32>
    %1244 = arith.mulf %1228, %1243 : vector<16x128xf32>
    %1245 = vector.broadcast %36 : f32 to vector<16x128xf32>
    %1246 = arith.mulf %1228, %1245 : vector<16x128xf32>
    %1247 = vector.broadcast %200 : f32 to vector<16x128xf32>
    %1248 = arith.mulf %1224, %1247 : vector<16x128xf32>
    %1249 = arith.addf %1232, %1248 : vector<16x128xf32>
    %1250 = vector.broadcast %204 : f32 to vector<16x128xf32>
    %1251 = arith.mulf %1224, %1250 : vector<16x128xf32>
    %1252 = arith.addf %1234, %1251 : vector<16x128xf32>
    %1253 = vector.broadcast %208 : f32 to vector<16x128xf32>
    %1254 = arith.mulf %1224, %1253 : vector<16x128xf32>
    %1255 = arith.addf %1236, %1254 : vector<16x128xf32>
    %1256 = vector.broadcast %212 : f32 to vector<16x128xf32>
    %1257 = arith.mulf %1224, %1256 : vector<16x128xf32>
    %1258 = arith.addf %1238, %1257 : vector<16x128xf32>
    %1259 = vector.broadcast %216 : f32 to vector<16x128xf32>
    %1260 = arith.mulf %1224, %1259 : vector<16x128xf32>
    %1261 = arith.addf %1240, %1260 : vector<16x128xf32>
    %1262 = vector.broadcast %220 : f32 to vector<16x128xf32>
    %1263 = arith.mulf %1224, %1262 : vector<16x128xf32>
    %1264 = arith.addf %1242, %1263 : vector<16x128xf32>
    %1265 = vector.broadcast %224 : f32 to vector<16x128xf32>
    %1266 = arith.mulf %1224, %1265 : vector<16x128xf32>
    %1267 = arith.addf %1244, %1266 : vector<16x128xf32>
    %1268 = vector.broadcast %228 : f32 to vector<16x128xf32>
    %1269 = arith.mulf %1224, %1268 : vector<16x128xf32>
    %1270 = arith.addf %1246, %1269 : vector<16x128xf32>
    %1271 = vector.broadcast %392 : f32 to vector<16x128xf32>
    %1272 = arith.mulf %1230, %1271 : vector<16x128xf32>
    %1273 = arith.addf %1249, %1272 : vector<16x128xf32>
    %1274 = vector.broadcast %396 : f32 to vector<16x128xf32>
    %1275 = arith.mulf %1230, %1274 : vector<16x128xf32>
    %1276 = arith.addf %1252, %1275 : vector<16x128xf32>
    %1277 = vector.broadcast %400 : f32 to vector<16x128xf32>
    %1278 = arith.mulf %1230, %1277 : vector<16x128xf32>
    %1279 = arith.addf %1255, %1278 : vector<16x128xf32>
    %1280 = vector.broadcast %404 : f32 to vector<16x128xf32>
    %1281 = arith.mulf %1230, %1280 : vector<16x128xf32>
    %1282 = arith.addf %1258, %1281 : vector<16x128xf32>
    %1283 = vector.broadcast %408 : f32 to vector<16x128xf32>
    %1284 = arith.mulf %1230, %1283 : vector<16x128xf32>
    %1285 = arith.addf %1261, %1284 : vector<16x128xf32>
    %1286 = vector.broadcast %412 : f32 to vector<16x128xf32>
    %1287 = arith.mulf %1230, %1286 : vector<16x128xf32>
    %1288 = arith.addf %1264, %1287 : vector<16x128xf32>
    %1289 = vector.broadcast %416 : f32 to vector<16x128xf32>
    %1290 = arith.mulf %1230, %1289 : vector<16x128xf32>
    %1291 = arith.addf %1267, %1290 : vector<16x128xf32>
    %1292 = vector.broadcast %420 : f32 to vector<16x128xf32>
    %1293 = arith.mulf %1230, %1292 : vector<16x128xf32>
    %1294 = arith.addf %1270, %1293 : vector<16x128xf32>
    %c1_i32_465 = arith.constant 1 : i32
    %1295 = tpu.dynamic_rotate %1221 by %c1_i32_465 dim 0 : vector<16x128xf32>, i32 -> vector<16x128xf32>
    %1296 = arith.mulf %1295, %1216 : vector<16x128xf32>
    %c15_i32_466 = arith.constant 15 : i32
    %1297 = tpu.dynamic_rotate %1221 by %c15_i32_466 dim 0 : vector<16x128xf32>, i32 -> vector<16x128xf32>
    %1298 = arith.mulf %1297, %1220 : vector<16x128xf32>
    %1299 = vector.broadcast %72 : f32 to vector<16x128xf32>
    %1300 = arith.mulf %1296, %1299 : vector<16x128xf32>
    %1301 = arith.addf %1273, %1300 : vector<16x128xf32>
    %1302 = vector.broadcast %76 : f32 to vector<16x128xf32>
    %1303 = arith.mulf %1296, %1302 : vector<16x128xf32>
    %1304 = arith.addf %1276, %1303 : vector<16x128xf32>
    %1305 = vector.broadcast %80 : f32 to vector<16x128xf32>
    %1306 = arith.mulf %1296, %1305 : vector<16x128xf32>
    %1307 = arith.addf %1279, %1306 : vector<16x128xf32>
    %1308 = vector.broadcast %84 : f32 to vector<16x128xf32>
    %1309 = arith.mulf %1296, %1308 : vector<16x128xf32>
    %1310 = arith.addf %1282, %1309 : vector<16x128xf32>
    %1311 = vector.broadcast %88 : f32 to vector<16x128xf32>
    %1312 = arith.mulf %1296, %1311 : vector<16x128xf32>
    %1313 = arith.addf %1285, %1312 : vector<16x128xf32>
    %1314 = vector.broadcast %92 : f32 to vector<16x128xf32>
    %1315 = arith.mulf %1296, %1314 : vector<16x128xf32>
    %1316 = arith.addf %1288, %1315 : vector<16x128xf32>
    %1317 = vector.broadcast %96 : f32 to vector<16x128xf32>
    %1318 = arith.mulf %1296, %1317 : vector<16x128xf32>
    %1319 = arith.addf %1291, %1318 : vector<16x128xf32>
    %1320 = vector.broadcast %100 : f32 to vector<16x128xf32>
    %1321 = arith.mulf %1296, %1320 : vector<16x128xf32>
    %1322 = arith.addf %1294, %1321 : vector<16x128xf32>
    %1323 = vector.broadcast %264 : f32 to vector<16x128xf32>
    %1324 = arith.mulf %1221, %1323 : vector<16x128xf32>
    %1325 = arith.addf %1301, %1324 : vector<16x128xf32>
    %1326 = vector.broadcast %268 : f32 to vector<16x128xf32>
    %1327 = arith.mulf %1221, %1326 : vector<16x128xf32>
    %1328 = arith.addf %1304, %1327 : vector<16x128xf32>
    %1329 = vector.broadcast %272 : f32 to vector<16x128xf32>
    %1330 = arith.mulf %1221, %1329 : vector<16x128xf32>
    %1331 = arith.addf %1307, %1330 : vector<16x128xf32>
    %1332 = vector.broadcast %276 : f32 to vector<16x128xf32>
    %1333 = arith.mulf %1221, %1332 : vector<16x128xf32>
    %1334 = arith.addf %1310, %1333 : vector<16x128xf32>
    %1335 = vector.broadcast %280 : f32 to vector<16x128xf32>
    %1336 = arith.mulf %1221, %1335 : vector<16x128xf32>
    %1337 = arith.addf %1313, %1336 : vector<16x128xf32>
    %1338 = vector.broadcast %284 : f32 to vector<16x128xf32>
    %1339 = arith.mulf %1221, %1338 : vector<16x128xf32>
    %1340 = arith.addf %1316, %1339 : vector<16x128xf32>
    %1341 = vector.broadcast %288 : f32 to vector<16x128xf32>
    %1342 = arith.mulf %1221, %1341 : vector<16x128xf32>
    %1343 = arith.addf %1319, %1342 : vector<16x128xf32>
    %1344 = vector.broadcast %292 : f32 to vector<16x128xf32>
    %1345 = arith.mulf %1221, %1344 : vector<16x128xf32>
    %1346 = arith.addf %1322, %1345 : vector<16x128xf32>
    %1347 = vector.broadcast %456 : f32 to vector<16x128xf32>
    %1348 = arith.mulf %1298, %1347 : vector<16x128xf32>
    %1349 = arith.addf %1325, %1348 : vector<16x128xf32>
    %1350 = vector.broadcast %460 : f32 to vector<16x128xf32>
    %1351 = arith.mulf %1298, %1350 : vector<16x128xf32>
    %1352 = arith.addf %1328, %1351 : vector<16x128xf32>
    %1353 = vector.broadcast %464 : f32 to vector<16x128xf32>
    %1354 = arith.mulf %1298, %1353 : vector<16x128xf32>
    %1355 = arith.addf %1331, %1354 : vector<16x128xf32>
    %1356 = vector.broadcast %468 : f32 to vector<16x128xf32>
    %1357 = arith.mulf %1298, %1356 : vector<16x128xf32>
    %1358 = arith.addf %1334, %1357 : vector<16x128xf32>
    %1359 = vector.broadcast %472 : f32 to vector<16x128xf32>
    %1360 = arith.mulf %1298, %1359 : vector<16x128xf32>
    %1361 = arith.addf %1337, %1360 : vector<16x128xf32>
    %1362 = vector.broadcast %476 : f32 to vector<16x128xf32>
    %1363 = arith.mulf %1298, %1362 : vector<16x128xf32>
    %1364 = arith.addf %1340, %1363 : vector<16x128xf32>
    %1365 = vector.broadcast %480 : f32 to vector<16x128xf32>
    %1366 = arith.mulf %1298, %1365 : vector<16x128xf32>
    %1367 = arith.addf %1343, %1366 : vector<16x128xf32>
    %1368 = vector.broadcast %484 : f32 to vector<16x128xf32>
    %1369 = arith.mulf %1298, %1368 : vector<16x128xf32>
    %1370 = arith.addf %1346, %1369 : vector<16x128xf32>
    %c1_i32_467 = arith.constant 1 : i32
    %1371 = tpu.dynamic_rotate %1226 by %c1_i32_467 dim 0 : vector<16x128xf32>, i32 -> vector<16x128xf32>
    %1372 = arith.mulf %1371, %1216 : vector<16x128xf32>
    %c15_i32_468 = arith.constant 15 : i32
    %1373 = tpu.dynamic_rotate %1226 by %c15_i32_468 dim 0 : vector<16x128xf32>, i32 -> vector<16x128xf32>
    %1374 = arith.mulf %1373, %1220 : vector<16x128xf32>
    %1375 = vector.broadcast %136 : f32 to vector<16x128xf32>
    %1376 = arith.mulf %1372, %1375 : vector<16x128xf32>
    %1377 = arith.addf %1349, %1376 : vector<16x128xf32>
    %1378 = vector.broadcast %140 : f32 to vector<16x128xf32>
    %1379 = arith.mulf %1372, %1378 : vector<16x128xf32>
    %1380 = arith.addf %1352, %1379 : vector<16x128xf32>
    %1381 = vector.broadcast %144 : f32 to vector<16x128xf32>
    %1382 = arith.mulf %1372, %1381 : vector<16x128xf32>
    %1383 = arith.addf %1355, %1382 : vector<16x128xf32>
    %1384 = vector.broadcast %148 : f32 to vector<16x128xf32>
    %1385 = arith.mulf %1372, %1384 : vector<16x128xf32>
    %1386 = arith.addf %1358, %1385 : vector<16x128xf32>
    %1387 = vector.broadcast %152 : f32 to vector<16x128xf32>
    %1388 = arith.mulf %1372, %1387 : vector<16x128xf32>
    %1389 = arith.addf %1361, %1388 : vector<16x128xf32>
    %1390 = vector.broadcast %156 : f32 to vector<16x128xf32>
    %1391 = arith.mulf %1372, %1390 : vector<16x128xf32>
    %1392 = arith.addf %1364, %1391 : vector<16x128xf32>
    %1393 = vector.broadcast %160 : f32 to vector<16x128xf32>
    %1394 = arith.mulf %1372, %1393 : vector<16x128xf32>
    %1395 = arith.addf %1367, %1394 : vector<16x128xf32>
    %1396 = vector.broadcast %164 : f32 to vector<16x128xf32>
    %1397 = arith.mulf %1372, %1396 : vector<16x128xf32>
    %1398 = arith.addf %1370, %1397 : vector<16x128xf32>
    %1399 = vector.broadcast %328 : f32 to vector<16x128xf32>
    %1400 = arith.mulf %1226, %1399 : vector<16x128xf32>
    %1401 = arith.addf %1377, %1400 : vector<16x128xf32>
    %1402 = vector.broadcast %332 : f32 to vector<16x128xf32>
    %1403 = arith.mulf %1226, %1402 : vector<16x128xf32>
    %1404 = arith.addf %1380, %1403 : vector<16x128xf32>
    %1405 = vector.broadcast %336 : f32 to vector<16x128xf32>
    %1406 = arith.mulf %1226, %1405 : vector<16x128xf32>
    %1407 = arith.addf %1383, %1406 : vector<16x128xf32>
    %1408 = vector.broadcast %340 : f32 to vector<16x128xf32>
    %1409 = arith.mulf %1226, %1408 : vector<16x128xf32>
    %1410 = arith.addf %1386, %1409 : vector<16x128xf32>
    %1411 = vector.broadcast %344 : f32 to vector<16x128xf32>
    %1412 = arith.mulf %1226, %1411 : vector<16x128xf32>
    %1413 = arith.addf %1389, %1412 : vector<16x128xf32>
    %1414 = vector.broadcast %348 : f32 to vector<16x128xf32>
    %1415 = arith.mulf %1226, %1414 : vector<16x128xf32>
    %1416 = arith.addf %1392, %1415 : vector<16x128xf32>
    %1417 = vector.broadcast %352 : f32 to vector<16x128xf32>
    %1418 = arith.mulf %1226, %1417 : vector<16x128xf32>
    %1419 = arith.addf %1395, %1418 : vector<16x128xf32>
    %1420 = vector.broadcast %356 : f32 to vector<16x128xf32>
    %1421 = arith.mulf %1226, %1420 : vector<16x128xf32>
    %1422 = arith.addf %1398, %1421 : vector<16x128xf32>
    %1423 = vector.broadcast %520 : f32 to vector<16x128xf32>
    %1424 = arith.mulf %1374, %1423 : vector<16x128xf32>
    %1425 = arith.addf %1401, %1424 : vector<16x128xf32>
    %1426 = vector.broadcast %524 : f32 to vector<16x128xf32>
    %1427 = arith.mulf %1374, %1426 : vector<16x128xf32>
    %1428 = arith.addf %1404, %1427 : vector<16x128xf32>
    %1429 = vector.broadcast %528 : f32 to vector<16x128xf32>
    %1430 = arith.mulf %1374, %1429 : vector<16x128xf32>
    %1431 = arith.addf %1407, %1430 : vector<16x128xf32>
    %1432 = vector.broadcast %532 : f32 to vector<16x128xf32>
    %1433 = arith.mulf %1374, %1432 : vector<16x128xf32>
    %1434 = arith.addf %1410, %1433 : vector<16x128xf32>
    %1435 = vector.broadcast %536 : f32 to vector<16x128xf32>
    %1436 = arith.mulf %1374, %1435 : vector<16x128xf32>
    %1437 = arith.addf %1413, %1436 : vector<16x128xf32>
    %1438 = vector.broadcast %540 : f32 to vector<16x128xf32>
    %1439 = arith.mulf %1374, %1438 : vector<16x128xf32>
    %1440 = arith.addf %1416, %1439 : vector<16x128xf32>
    %1441 = vector.broadcast %544 : f32 to vector<16x128xf32>
    %1442 = arith.mulf %1374, %1441 : vector<16x128xf32>
    %1443 = arith.addf %1419, %1442 : vector<16x128xf32>
    %1444 = vector.broadcast %548 : f32 to vector<16x128xf32>
    %1445 = arith.mulf %1374, %1444 : vector<16x128xf32>
    %1446 = arith.addf %1422, %1445 : vector<16x128xf32>
    %c1_i32_469 = arith.constant 1 : i32
    %1447 = tpu.dynamic_rotate %1222 by %c1_i32_469 dim 1 : vector<16x128xf32>, i32 -> vector<16x128xf32>
    %1448 = arith.mulf %1447, %1210 : vector<16x128xf32>
    %c127_i32_470 = arith.constant 127 : i32
    %1449 = tpu.dynamic_rotate %1222 by %c127_i32_470 dim 1 : vector<16x128xf32>, i32 -> vector<16x128xf32>
    %1450 = arith.mulf %1449, %1212 : vector<16x128xf32>
    %c1_i32_471 = arith.constant 1 : i32
    %1451 = tpu.dynamic_rotate %1448 by %c1_i32_471 dim 0 : vector<16x128xf32>, i32 -> vector<16x128xf32>
    %1452 = arith.mulf %1451, %1216 : vector<16x128xf32>
    %c15_i32_472 = arith.constant 15 : i32
    %1453 = tpu.dynamic_rotate %1448 by %c15_i32_472 dim 0 : vector<16x128xf32>, i32 -> vector<16x128xf32>
    %1454 = arith.mulf %1453, %1220 : vector<16x128xf32>
    %1455 = vector.broadcast %40 : f32 to vector<16x128xf32>
    %1456 = arith.mulf %1452, %1455 : vector<16x128xf32>
    %1457 = arith.addf %1425, %1456 : vector<16x128xf32>
    %1458 = vector.broadcast %44 : f32 to vector<16x128xf32>
    %1459 = arith.mulf %1452, %1458 : vector<16x128xf32>
    %1460 = arith.addf %1428, %1459 : vector<16x128xf32>
    %1461 = vector.broadcast %48 : f32 to vector<16x128xf32>
    %1462 = arith.mulf %1452, %1461 : vector<16x128xf32>
    %1463 = arith.addf %1431, %1462 : vector<16x128xf32>
    %1464 = vector.broadcast %52 : f32 to vector<16x128xf32>
    %1465 = arith.mulf %1452, %1464 : vector<16x128xf32>
    %1466 = arith.addf %1434, %1465 : vector<16x128xf32>
    %1467 = vector.broadcast %56 : f32 to vector<16x128xf32>
    %1468 = arith.mulf %1452, %1467 : vector<16x128xf32>
    %1469 = arith.addf %1437, %1468 : vector<16x128xf32>
    %1470 = vector.broadcast %60 : f32 to vector<16x128xf32>
    %1471 = arith.mulf %1452, %1470 : vector<16x128xf32>
    %1472 = arith.addf %1440, %1471 : vector<16x128xf32>
    %1473 = vector.broadcast %64 : f32 to vector<16x128xf32>
    %1474 = arith.mulf %1452, %1473 : vector<16x128xf32>
    %1475 = arith.addf %1443, %1474 : vector<16x128xf32>
    %1476 = vector.broadcast %68 : f32 to vector<16x128xf32>
    %1477 = arith.mulf %1452, %1476 : vector<16x128xf32>
    %1478 = arith.addf %1446, %1477 : vector<16x128xf32>
    %1479 = vector.broadcast %232 : f32 to vector<16x128xf32>
    %1480 = arith.mulf %1448, %1479 : vector<16x128xf32>
    %1481 = arith.addf %1457, %1480 : vector<16x128xf32>
    %1482 = vector.broadcast %236 : f32 to vector<16x128xf32>
    %1483 = arith.mulf %1448, %1482 : vector<16x128xf32>
    %1484 = arith.addf %1460, %1483 : vector<16x128xf32>
    %1485 = vector.broadcast %240 : f32 to vector<16x128xf32>
    %1486 = arith.mulf %1448, %1485 : vector<16x128xf32>
    %1487 = arith.addf %1463, %1486 : vector<16x128xf32>
    %1488 = vector.broadcast %244 : f32 to vector<16x128xf32>
    %1489 = arith.mulf %1448, %1488 : vector<16x128xf32>
    %1490 = arith.addf %1466, %1489 : vector<16x128xf32>
    %1491 = vector.broadcast %248 : f32 to vector<16x128xf32>
    %1492 = arith.mulf %1448, %1491 : vector<16x128xf32>
    %1493 = arith.addf %1469, %1492 : vector<16x128xf32>
    %1494 = vector.broadcast %252 : f32 to vector<16x128xf32>
    %1495 = arith.mulf %1448, %1494 : vector<16x128xf32>
    %1496 = arith.addf %1472, %1495 : vector<16x128xf32>
    %1497 = vector.broadcast %256 : f32 to vector<16x128xf32>
    %1498 = arith.mulf %1448, %1497 : vector<16x128xf32>
    %1499 = arith.addf %1475, %1498 : vector<16x128xf32>
    %1500 = vector.broadcast %260 : f32 to vector<16x128xf32>
    %1501 = arith.mulf %1448, %1500 : vector<16x128xf32>
    %1502 = arith.addf %1478, %1501 : vector<16x128xf32>
    %1503 = vector.broadcast %424 : f32 to vector<16x128xf32>
    %1504 = arith.mulf %1454, %1503 : vector<16x128xf32>
    %1505 = arith.addf %1481, %1504 : vector<16x128xf32>
    %1506 = vector.broadcast %428 : f32 to vector<16x128xf32>
    %1507 = arith.mulf %1454, %1506 : vector<16x128xf32>
    %1508 = arith.addf %1484, %1507 : vector<16x128xf32>
    %1509 = vector.broadcast %432 : f32 to vector<16x128xf32>
    %1510 = arith.mulf %1454, %1509 : vector<16x128xf32>
    %1511 = arith.addf %1487, %1510 : vector<16x128xf32>
    %1512 = vector.broadcast %436 : f32 to vector<16x128xf32>
    %1513 = arith.mulf %1454, %1512 : vector<16x128xf32>
    %1514 = arith.addf %1490, %1513 : vector<16x128xf32>
    %1515 = vector.broadcast %440 : f32 to vector<16x128xf32>
    %1516 = arith.mulf %1454, %1515 : vector<16x128xf32>
    %1517 = arith.addf %1493, %1516 : vector<16x128xf32>
    %1518 = vector.broadcast %444 : f32 to vector<16x128xf32>
    %1519 = arith.mulf %1454, %1518 : vector<16x128xf32>
    %1520 = arith.addf %1496, %1519 : vector<16x128xf32>
    %1521 = vector.broadcast %448 : f32 to vector<16x128xf32>
    %1522 = arith.mulf %1454, %1521 : vector<16x128xf32>
    %1523 = arith.addf %1499, %1522 : vector<16x128xf32>
    %1524 = vector.broadcast %452 : f32 to vector<16x128xf32>
    %1525 = arith.mulf %1454, %1524 : vector<16x128xf32>
    %1526 = arith.addf %1502, %1525 : vector<16x128xf32>
    %c1_i32_473 = arith.constant 1 : i32
    %1527 = tpu.dynamic_rotate %1222 by %c1_i32_473 dim 0 : vector<16x128xf32>, i32 -> vector<16x128xf32>
    %1528 = arith.mulf %1527, %1216 : vector<16x128xf32>
    %c15_i32_474 = arith.constant 15 : i32
    %1529 = tpu.dynamic_rotate %1222 by %c15_i32_474 dim 0 : vector<16x128xf32>, i32 -> vector<16x128xf32>
    %1530 = arith.mulf %1529, %1220 : vector<16x128xf32>
    %1531 = vector.broadcast %104 : f32 to vector<16x128xf32>
    %1532 = arith.mulf %1528, %1531 : vector<16x128xf32>
    %1533 = arith.addf %1505, %1532 : vector<16x128xf32>
    %1534 = vector.broadcast %108 : f32 to vector<16x128xf32>
    %1535 = arith.mulf %1528, %1534 : vector<16x128xf32>
    %1536 = arith.addf %1508, %1535 : vector<16x128xf32>
    %1537 = vector.broadcast %112 : f32 to vector<16x128xf32>
    %1538 = arith.mulf %1528, %1537 : vector<16x128xf32>
    %1539 = arith.addf %1511, %1538 : vector<16x128xf32>
    %1540 = vector.broadcast %116 : f32 to vector<16x128xf32>
    %1541 = arith.mulf %1528, %1540 : vector<16x128xf32>
    %1542 = arith.addf %1514, %1541 : vector<16x128xf32>
    %1543 = vector.broadcast %120 : f32 to vector<16x128xf32>
    %1544 = arith.mulf %1528, %1543 : vector<16x128xf32>
    %1545 = arith.addf %1517, %1544 : vector<16x128xf32>
    %1546 = vector.broadcast %124 : f32 to vector<16x128xf32>
    %1547 = arith.mulf %1528, %1546 : vector<16x128xf32>
    %1548 = arith.addf %1520, %1547 : vector<16x128xf32>
    %1549 = vector.broadcast %128 : f32 to vector<16x128xf32>
    %1550 = arith.mulf %1528, %1549 : vector<16x128xf32>
    %1551 = arith.addf %1523, %1550 : vector<16x128xf32>
    %1552 = vector.broadcast %132 : f32 to vector<16x128xf32>
    %1553 = arith.mulf %1528, %1552 : vector<16x128xf32>
    %1554 = arith.addf %1526, %1553 : vector<16x128xf32>
    %1555 = vector.broadcast %296 : f32 to vector<16x128xf32>
    %1556 = arith.mulf %1222, %1555 : vector<16x128xf32>
    %1557 = arith.addf %1533, %1556 : vector<16x128xf32>
    %1558 = vector.broadcast %300 : f32 to vector<16x128xf32>
    %1559 = arith.mulf %1222, %1558 : vector<16x128xf32>
    %1560 = arith.addf %1536, %1559 : vector<16x128xf32>
    %1561 = vector.broadcast %304 : f32 to vector<16x128xf32>
    %1562 = arith.mulf %1222, %1561 : vector<16x128xf32>
    %1563 = arith.addf %1539, %1562 : vector<16x128xf32>
    %1564 = vector.broadcast %308 : f32 to vector<16x128xf32>
    %1565 = arith.mulf %1222, %1564 : vector<16x128xf32>
    %1566 = arith.addf %1542, %1565 : vector<16x128xf32>
    %1567 = vector.broadcast %312 : f32 to vector<16x128xf32>
    %1568 = arith.mulf %1222, %1567 : vector<16x128xf32>
    %1569 = arith.addf %1545, %1568 : vector<16x128xf32>
    %1570 = vector.broadcast %316 : f32 to vector<16x128xf32>
    %1571 = arith.mulf %1222, %1570 : vector<16x128xf32>
    %1572 = arith.addf %1548, %1571 : vector<16x128xf32>
    %1573 = vector.broadcast %320 : f32 to vector<16x128xf32>
    %1574 = arith.mulf %1222, %1573 : vector<16x128xf32>
    %1575 = arith.addf %1551, %1574 : vector<16x128xf32>
    %1576 = vector.broadcast %324 : f32 to vector<16x128xf32>
    %1577 = arith.mulf %1222, %1576 : vector<16x128xf32>
    %1578 = arith.addf %1554, %1577 : vector<16x128xf32>
    %1579 = vector.broadcast %488 : f32 to vector<16x128xf32>
    %1580 = arith.mulf %1530, %1579 : vector<16x128xf32>
    %1581 = arith.addf %1557, %1580 : vector<16x128xf32>
    %1582 = vector.broadcast %492 : f32 to vector<16x128xf32>
    %1583 = arith.mulf %1530, %1582 : vector<16x128xf32>
    %1584 = arith.addf %1560, %1583 : vector<16x128xf32>
    %1585 = vector.broadcast %496 : f32 to vector<16x128xf32>
    %1586 = arith.mulf %1530, %1585 : vector<16x128xf32>
    %1587 = arith.addf %1563, %1586 : vector<16x128xf32>
    %1588 = vector.broadcast %500 : f32 to vector<16x128xf32>
    %1589 = arith.mulf %1530, %1588 : vector<16x128xf32>
    %1590 = arith.addf %1566, %1589 : vector<16x128xf32>
    %1591 = vector.broadcast %504 : f32 to vector<16x128xf32>
    %1592 = arith.mulf %1530, %1591 : vector<16x128xf32>
    %1593 = arith.addf %1569, %1592 : vector<16x128xf32>
    %1594 = vector.broadcast %508 : f32 to vector<16x128xf32>
    %1595 = arith.mulf %1530, %1594 : vector<16x128xf32>
    %1596 = arith.addf %1572, %1595 : vector<16x128xf32>
    %1597 = vector.broadcast %512 : f32 to vector<16x128xf32>
    %1598 = arith.mulf %1530, %1597 : vector<16x128xf32>
    %1599 = arith.addf %1575, %1598 : vector<16x128xf32>
    %1600 = vector.broadcast %516 : f32 to vector<16x128xf32>
    %1601 = arith.mulf %1530, %1600 : vector<16x128xf32>
    %1602 = arith.addf %1578, %1601 : vector<16x128xf32>
    %c1_i32_475 = arith.constant 1 : i32
    %1603 = tpu.dynamic_rotate %1450 by %c1_i32_475 dim 0 : vector<16x128xf32>, i32 -> vector<16x128xf32>
    %1604 = arith.mulf %1603, %1216 : vector<16x128xf32>
    %c15_i32_476 = arith.constant 15 : i32
    %1605 = tpu.dynamic_rotate %1450 by %c15_i32_476 dim 0 : vector<16x128xf32>, i32 -> vector<16x128xf32>
    %1606 = arith.mulf %1605, %1220 : vector<16x128xf32>
    %1607 = vector.broadcast %168 : f32 to vector<16x128xf32>
    %1608 = arith.mulf %1604, %1607 : vector<16x128xf32>
    %1609 = arith.addf %1581, %1608 : vector<16x128xf32>
    %1610 = vector.broadcast %172 : f32 to vector<16x128xf32>
    %1611 = arith.mulf %1604, %1610 : vector<16x128xf32>
    %1612 = arith.addf %1584, %1611 : vector<16x128xf32>
    %1613 = vector.broadcast %176 : f32 to vector<16x128xf32>
    %1614 = arith.mulf %1604, %1613 : vector<16x128xf32>
    %1615 = arith.addf %1587, %1614 : vector<16x128xf32>
    %1616 = vector.broadcast %180 : f32 to vector<16x128xf32>
    %1617 = arith.mulf %1604, %1616 : vector<16x128xf32>
    %1618 = arith.addf %1590, %1617 : vector<16x128xf32>
    %1619 = vector.broadcast %184 : f32 to vector<16x128xf32>
    %1620 = arith.mulf %1604, %1619 : vector<16x128xf32>
    %1621 = arith.addf %1593, %1620 : vector<16x128xf32>
    %1622 = vector.broadcast %188 : f32 to vector<16x128xf32>
    %1623 = arith.mulf %1604, %1622 : vector<16x128xf32>
    %1624 = arith.addf %1596, %1623 : vector<16x128xf32>
    %1625 = vector.broadcast %192 : f32 to vector<16x128xf32>
    %1626 = arith.mulf %1604, %1625 : vector<16x128xf32>
    %1627 = arith.addf %1599, %1626 : vector<16x128xf32>
    %1628 = vector.broadcast %196 : f32 to vector<16x128xf32>
    %1629 = arith.mulf %1604, %1628 : vector<16x128xf32>
    %1630 = arith.addf %1602, %1629 : vector<16x128xf32>
    %1631 = vector.broadcast %360 : f32 to vector<16x128xf32>
    %1632 = arith.mulf %1450, %1631 : vector<16x128xf32>
    %1633 = arith.addf %1609, %1632 : vector<16x128xf32>
    %1634 = vector.broadcast %364 : f32 to vector<16x128xf32>
    %1635 = arith.mulf %1450, %1634 : vector<16x128xf32>
    %1636 = arith.addf %1612, %1635 : vector<16x128xf32>
    %1637 = vector.broadcast %368 : f32 to vector<16x128xf32>
    %1638 = arith.mulf %1450, %1637 : vector<16x128xf32>
    %1639 = arith.addf %1615, %1638 : vector<16x128xf32>
    %1640 = vector.broadcast %372 : f32 to vector<16x128xf32>
    %1641 = arith.mulf %1450, %1640 : vector<16x128xf32>
    %1642 = arith.addf %1618, %1641 : vector<16x128xf32>
    %1643 = vector.broadcast %376 : f32 to vector<16x128xf32>
    %1644 = arith.mulf %1450, %1643 : vector<16x128xf32>
    %1645 = arith.addf %1621, %1644 : vector<16x128xf32>
    %1646 = vector.broadcast %380 : f32 to vector<16x128xf32>
    %1647 = arith.mulf %1450, %1646 : vector<16x128xf32>
    %1648 = arith.addf %1624, %1647 : vector<16x128xf32>
    %1649 = vector.broadcast %384 : f32 to vector<16x128xf32>
    %1650 = arith.mulf %1450, %1649 : vector<16x128xf32>
    %1651 = arith.addf %1627, %1650 : vector<16x128xf32>
    %1652 = vector.broadcast %388 : f32 to vector<16x128xf32>
    %1653 = arith.mulf %1450, %1652 : vector<16x128xf32>
    %1654 = arith.addf %1630, %1653 : vector<16x128xf32>
    %1655 = vector.broadcast %552 : f32 to vector<16x128xf32>
    %1656 = arith.mulf %1606, %1655 : vector<16x128xf32>
    %1657 = arith.addf %1633, %1656 : vector<16x128xf32>
    %1658 = vector.broadcast %556 : f32 to vector<16x128xf32>
    %1659 = arith.mulf %1606, %1658 : vector<16x128xf32>
    %1660 = arith.addf %1636, %1659 : vector<16x128xf32>
    %1661 = vector.broadcast %560 : f32 to vector<16x128xf32>
    %1662 = arith.mulf %1606, %1661 : vector<16x128xf32>
    %1663 = arith.addf %1639, %1662 : vector<16x128xf32>
    %1664 = vector.broadcast %564 : f32 to vector<16x128xf32>
    %1665 = arith.mulf %1606, %1664 : vector<16x128xf32>
    %1666 = arith.addf %1642, %1665 : vector<16x128xf32>
    %1667 = vector.broadcast %568 : f32 to vector<16x128xf32>
    %1668 = arith.mulf %1606, %1667 : vector<16x128xf32>
    %1669 = arith.addf %1645, %1668 : vector<16x128xf32>
    %1670 = vector.broadcast %572 : f32 to vector<16x128xf32>
    %1671 = arith.mulf %1606, %1670 : vector<16x128xf32>
    %1672 = arith.addf %1648, %1671 : vector<16x128xf32>
    %1673 = vector.broadcast %576 : f32 to vector<16x128xf32>
    %1674 = arith.mulf %1606, %1673 : vector<16x128xf32>
    %1675 = arith.addf %1651, %1674 : vector<16x128xf32>
    %1676 = vector.broadcast %580 : f32 to vector<16x128xf32>
    %1677 = arith.mulf %1606, %1676 : vector<16x128xf32>
    %1678 = arith.addf %1654, %1677 : vector<16x128xf32>
    %1679 = vector.broadcast %584 : f32 to vector<16x128xf32>
    %1680 = arith.addf %1657, %1679 : vector<16x128xf32>
    %cst = arith.constant 0.000000e+00 : f32
    %1681 = vector.broadcast %cst : f32 to vector<16x128xf32>
    %1682 = arith.maximumf %1680, %1681 : vector<16x128xf32>
    %1683 = vector.broadcast %588 : f32 to vector<16x128xf32>
    %1684 = arith.addf %1660, %1683 : vector<16x128xf32>
    %cst_477 = arith.constant 0.000000e+00 : f32
    %1685 = vector.broadcast %cst_477 : f32 to vector<16x128xf32>
    %1686 = arith.maximumf %1684, %1685 : vector<16x128xf32>
    %1687 = vector.broadcast %592 : f32 to vector<16x128xf32>
    %1688 = arith.addf %1663, %1687 : vector<16x128xf32>
    %cst_478 = arith.constant 0.000000e+00 : f32
    %1689 = vector.broadcast %cst_478 : f32 to vector<16x128xf32>
    %1690 = arith.maximumf %1688, %1689 : vector<16x128xf32>
    %1691 = vector.broadcast %596 : f32 to vector<16x128xf32>
    %1692 = arith.addf %1666, %1691 : vector<16x128xf32>
    %cst_479 = arith.constant 0.000000e+00 : f32
    %1693 = vector.broadcast %cst_479 : f32 to vector<16x128xf32>
    %1694 = arith.maximumf %1692, %1693 : vector<16x128xf32>
    %1695 = vector.broadcast %600 : f32 to vector<16x128xf32>
    %1696 = arith.addf %1669, %1695 : vector<16x128xf32>
    %cst_480 = arith.constant 0.000000e+00 : f32
    %1697 = vector.broadcast %cst_480 : f32 to vector<16x128xf32>
    %1698 = arith.maximumf %1696, %1697 : vector<16x128xf32>
    %1699 = vector.broadcast %604 : f32 to vector<16x128xf32>
    %1700 = arith.addf %1672, %1699 : vector<16x128xf32>
    %cst_481 = arith.constant 0.000000e+00 : f32
    %1701 = vector.broadcast %cst_481 : f32 to vector<16x128xf32>
    %1702 = arith.maximumf %1700, %1701 : vector<16x128xf32>
    %1703 = vector.broadcast %608 : f32 to vector<16x128xf32>
    %1704 = arith.addf %1675, %1703 : vector<16x128xf32>
    %cst_482 = arith.constant 0.000000e+00 : f32
    %1705 = vector.broadcast %cst_482 : f32 to vector<16x128xf32>
    %1706 = arith.maximumf %1704, %1705 : vector<16x128xf32>
    %1707 = vector.broadcast %612 : f32 to vector<16x128xf32>
    %1708 = arith.addf %1678, %1707 : vector<16x128xf32>
    %cst_483 = arith.constant 0.000000e+00 : f32
    %1709 = vector.broadcast %cst_483 : f32 to vector<16x128xf32>
    %1710 = arith.maximumf %1708, %1709 : vector<16x128xf32>
    %c1_i32_484 = arith.constant 1 : i32
    %1711 = tpu.dynamic_rotate %1682 by %c1_i32_484 dim 1 : vector<16x128xf32>, i32 -> vector<16x128xf32>
    %1712 = arith.mulf %1711, %1210 : vector<16x128xf32>
    %c127_i32_485 = arith.constant 127 : i32
    %1713 = tpu.dynamic_rotate %1682 by %c127_i32_485 dim 1 : vector<16x128xf32>, i32 -> vector<16x128xf32>
    %1714 = arith.mulf %1713, %1212 : vector<16x128xf32>
    %c1_i32_486 = arith.constant 1 : i32
    %1715 = tpu.dynamic_rotate %1712 by %c1_i32_486 dim 0 : vector<16x128xf32>, i32 -> vector<16x128xf32>
    %1716 = arith.mulf %1715, %1216 : vector<16x128xf32>
    %c15_i32_487 = arith.constant 15 : i32
    %1717 = tpu.dynamic_rotate %1712 by %c15_i32_487 dim 0 : vector<16x128xf32>, i32 -> vector<16x128xf32>
    %1718 = arith.mulf %1717, %1220 : vector<16x128xf32>
    %1719 = vector.broadcast %616 : f32 to vector<16x128xf32>
    %1720 = arith.mulf %1716, %1719 : vector<16x128xf32>
    %1721 = vector.broadcast %620 : f32 to vector<16x128xf32>
    %1722 = arith.mulf %1716, %1721 : vector<16x128xf32>
    %1723 = vector.broadcast %808 : f32 to vector<16x128xf32>
    %1724 = arith.mulf %1712, %1723 : vector<16x128xf32>
    %1725 = arith.addf %1720, %1724 : vector<16x128xf32>
    %1726 = vector.broadcast %812 : f32 to vector<16x128xf32>
    %1727 = arith.mulf %1712, %1726 : vector<16x128xf32>
    %1728 = arith.addf %1722, %1727 : vector<16x128xf32>
    %1729 = vector.broadcast %1000 : f32 to vector<16x128xf32>
    %1730 = arith.mulf %1718, %1729 : vector<16x128xf32>
    %1731 = arith.addf %1725, %1730 : vector<16x128xf32>
    %1732 = vector.broadcast %1004 : f32 to vector<16x128xf32>
    %1733 = arith.mulf %1718, %1732 : vector<16x128xf32>
    %1734 = arith.addf %1728, %1733 : vector<16x128xf32>
    %c1_i32_488 = arith.constant 1 : i32
    %1735 = tpu.dynamic_rotate %1682 by %c1_i32_488 dim 0 : vector<16x128xf32>, i32 -> vector<16x128xf32>
    %1736 = arith.mulf %1735, %1216 : vector<16x128xf32>
    %c15_i32_489 = arith.constant 15 : i32
    %1737 = tpu.dynamic_rotate %1682 by %c15_i32_489 dim 0 : vector<16x128xf32>, i32 -> vector<16x128xf32>
    %1738 = arith.mulf %1737, %1220 : vector<16x128xf32>
    %1739 = vector.broadcast %680 : f32 to vector<16x128xf32>
    %1740 = arith.mulf %1736, %1739 : vector<16x128xf32>
    %1741 = arith.addf %1731, %1740 : vector<16x128xf32>
    %1742 = vector.broadcast %684 : f32 to vector<16x128xf32>
    %1743 = arith.mulf %1736, %1742 : vector<16x128xf32>
    %1744 = arith.addf %1734, %1743 : vector<16x128xf32>
    %1745 = vector.broadcast %872 : f32 to vector<16x128xf32>
    %1746 = arith.mulf %1682, %1745 : vector<16x128xf32>
    %1747 = arith.addf %1741, %1746 : vector<16x128xf32>
    %1748 = vector.broadcast %876 : f32 to vector<16x128xf32>
    %1749 = arith.mulf %1682, %1748 : vector<16x128xf32>
    %1750 = arith.addf %1744, %1749 : vector<16x128xf32>
    %1751 = vector.broadcast %1064 : f32 to vector<16x128xf32>
    %1752 = arith.mulf %1738, %1751 : vector<16x128xf32>
    %1753 = arith.addf %1747, %1752 : vector<16x128xf32>
    %1754 = vector.broadcast %1068 : f32 to vector<16x128xf32>
    %1755 = arith.mulf %1738, %1754 : vector<16x128xf32>
    %1756 = arith.addf %1750, %1755 : vector<16x128xf32>
    %c1_i32_490 = arith.constant 1 : i32
    %1757 = tpu.dynamic_rotate %1714 by %c1_i32_490 dim 0 : vector<16x128xf32>, i32 -> vector<16x128xf32>
    %1758 = arith.mulf %1757, %1216 : vector<16x128xf32>
    %c15_i32_491 = arith.constant 15 : i32
    %1759 = tpu.dynamic_rotate %1714 by %c15_i32_491 dim 0 : vector<16x128xf32>, i32 -> vector<16x128xf32>
    %1760 = arith.mulf %1759, %1220 : vector<16x128xf32>
    %1761 = vector.broadcast %744 : f32 to vector<16x128xf32>
    %1762 = arith.mulf %1758, %1761 : vector<16x128xf32>
    %1763 = arith.addf %1753, %1762 : vector<16x128xf32>
    %1764 = vector.broadcast %748 : f32 to vector<16x128xf32>
    %1765 = arith.mulf %1758, %1764 : vector<16x128xf32>
    %1766 = arith.addf %1756, %1765 : vector<16x128xf32>
    %1767 = vector.broadcast %936 : f32 to vector<16x128xf32>
    %1768 = arith.mulf %1714, %1767 : vector<16x128xf32>
    %1769 = arith.addf %1763, %1768 : vector<16x128xf32>
    %1770 = vector.broadcast %940 : f32 to vector<16x128xf32>
    %1771 = arith.mulf %1714, %1770 : vector<16x128xf32>
    %1772 = arith.addf %1766, %1771 : vector<16x128xf32>
    %1773 = vector.broadcast %1128 : f32 to vector<16x128xf32>
    %1774 = arith.mulf %1760, %1773 : vector<16x128xf32>
    %1775 = arith.addf %1769, %1774 : vector<16x128xf32>
    %1776 = vector.broadcast %1132 : f32 to vector<16x128xf32>
    %1777 = arith.mulf %1760, %1776 : vector<16x128xf32>
    %1778 = arith.addf %1772, %1777 : vector<16x128xf32>
    %c1_i32_492 = arith.constant 1 : i32
    %1779 = tpu.dynamic_rotate %1686 by %c1_i32_492 dim 1 : vector<16x128xf32>, i32 -> vector<16x128xf32>
    %1780 = arith.mulf %1779, %1210 : vector<16x128xf32>
    %c127_i32_493 = arith.constant 127 : i32
    %1781 = tpu.dynamic_rotate %1686 by %c127_i32_493 dim 1 : vector<16x128xf32>, i32 -> vector<16x128xf32>
    %1782 = arith.mulf %1781, %1212 : vector<16x128xf32>
    %c1_i32_494 = arith.constant 1 : i32
    %1783 = tpu.dynamic_rotate %1780 by %c1_i32_494 dim 0 : vector<16x128xf32>, i32 -> vector<16x128xf32>
    %1784 = arith.mulf %1783, %1216 : vector<16x128xf32>
    %c15_i32_495 = arith.constant 15 : i32
    %1785 = tpu.dynamic_rotate %1780 by %c15_i32_495 dim 0 : vector<16x128xf32>, i32 -> vector<16x128xf32>
    %1786 = arith.mulf %1785, %1220 : vector<16x128xf32>
    %1787 = vector.broadcast %624 : f32 to vector<16x128xf32>
    %1788 = arith.mulf %1784, %1787 : vector<16x128xf32>
    %1789 = arith.addf %1775, %1788 : vector<16x128xf32>
    %1790 = vector.broadcast %628 : f32 to vector<16x128xf32>
    %1791 = arith.mulf %1784, %1790 : vector<16x128xf32>
    %1792 = arith.addf %1778, %1791 : vector<16x128xf32>
    %1793 = vector.broadcast %816 : f32 to vector<16x128xf32>
    %1794 = arith.mulf %1780, %1793 : vector<16x128xf32>
    %1795 = arith.addf %1789, %1794 : vector<16x128xf32>
    %1796 = vector.broadcast %820 : f32 to vector<16x128xf32>
    %1797 = arith.mulf %1780, %1796 : vector<16x128xf32>
    %1798 = arith.addf %1792, %1797 : vector<16x128xf32>
    %1799 = vector.broadcast %1008 : f32 to vector<16x128xf32>
    %1800 = arith.mulf %1786, %1799 : vector<16x128xf32>
    %1801 = arith.addf %1795, %1800 : vector<16x128xf32>
    %1802 = vector.broadcast %1012 : f32 to vector<16x128xf32>
    %1803 = arith.mulf %1786, %1802 : vector<16x128xf32>
    %1804 = arith.addf %1798, %1803 : vector<16x128xf32>
    %c1_i32_496 = arith.constant 1 : i32
    %1805 = tpu.dynamic_rotate %1686 by %c1_i32_496 dim 0 : vector<16x128xf32>, i32 -> vector<16x128xf32>
    %1806 = arith.mulf %1805, %1216 : vector<16x128xf32>
    %c15_i32_497 = arith.constant 15 : i32
    %1807 = tpu.dynamic_rotate %1686 by %c15_i32_497 dim 0 : vector<16x128xf32>, i32 -> vector<16x128xf32>
    %1808 = arith.mulf %1807, %1220 : vector<16x128xf32>
    %1809 = vector.broadcast %688 : f32 to vector<16x128xf32>
    %1810 = arith.mulf %1806, %1809 : vector<16x128xf32>
    %1811 = arith.addf %1801, %1810 : vector<16x128xf32>
    %1812 = vector.broadcast %692 : f32 to vector<16x128xf32>
    %1813 = arith.mulf %1806, %1812 : vector<16x128xf32>
    %1814 = arith.addf %1804, %1813 : vector<16x128xf32>
    %1815 = vector.broadcast %880 : f32 to vector<16x128xf32>
    %1816 = arith.mulf %1686, %1815 : vector<16x128xf32>
    %1817 = arith.addf %1811, %1816 : vector<16x128xf32>
    %1818 = vector.broadcast %884 : f32 to vector<16x128xf32>
    %1819 = arith.mulf %1686, %1818 : vector<16x128xf32>
    %1820 = arith.addf %1814, %1819 : vector<16x128xf32>
    %1821 = vector.broadcast %1072 : f32 to vector<16x128xf32>
    %1822 = arith.mulf %1808, %1821 : vector<16x128xf32>
    %1823 = arith.addf %1817, %1822 : vector<16x128xf32>
    %1824 = vector.broadcast %1076 : f32 to vector<16x128xf32>
    %1825 = arith.mulf %1808, %1824 : vector<16x128xf32>
    %1826 = arith.addf %1820, %1825 : vector<16x128xf32>
    %c1_i32_498 = arith.constant 1 : i32
    %1827 = tpu.dynamic_rotate %1782 by %c1_i32_498 dim 0 : vector<16x128xf32>, i32 -> vector<16x128xf32>
    %1828 = arith.mulf %1827, %1216 : vector<16x128xf32>
    %c15_i32_499 = arith.constant 15 : i32
    %1829 = tpu.dynamic_rotate %1782 by %c15_i32_499 dim 0 : vector<16x128xf32>, i32 -> vector<16x128xf32>
    %1830 = arith.mulf %1829, %1220 : vector<16x128xf32>
    %1831 = vector.broadcast %752 : f32 to vector<16x128xf32>
    %1832 = arith.mulf %1828, %1831 : vector<16x128xf32>
    %1833 = arith.addf %1823, %1832 : vector<16x128xf32>
    %1834 = vector.broadcast %756 : f32 to vector<16x128xf32>
    %1835 = arith.mulf %1828, %1834 : vector<16x128xf32>
    %1836 = arith.addf %1826, %1835 : vector<16x128xf32>
    %1837 = vector.broadcast %944 : f32 to vector<16x128xf32>
    %1838 = arith.mulf %1782, %1837 : vector<16x128xf32>
    %1839 = arith.addf %1833, %1838 : vector<16x128xf32>
    %1840 = vector.broadcast %948 : f32 to vector<16x128xf32>
    %1841 = arith.mulf %1782, %1840 : vector<16x128xf32>
    %1842 = arith.addf %1836, %1841 : vector<16x128xf32>
    %1843 = vector.broadcast %1136 : f32 to vector<16x128xf32>
    %1844 = arith.mulf %1830, %1843 : vector<16x128xf32>
    %1845 = arith.addf %1839, %1844 : vector<16x128xf32>
    %1846 = vector.broadcast %1140 : f32 to vector<16x128xf32>
    %1847 = arith.mulf %1830, %1846 : vector<16x128xf32>
    %1848 = arith.addf %1842, %1847 : vector<16x128xf32>
    %c1_i32_500 = arith.constant 1 : i32
    %1849 = tpu.dynamic_rotate %1690 by %c1_i32_500 dim 1 : vector<16x128xf32>, i32 -> vector<16x128xf32>
    %1850 = arith.mulf %1849, %1210 : vector<16x128xf32>
    %c127_i32_501 = arith.constant 127 : i32
    %1851 = tpu.dynamic_rotate %1690 by %c127_i32_501 dim 1 : vector<16x128xf32>, i32 -> vector<16x128xf32>
    %1852 = arith.mulf %1851, %1212 : vector<16x128xf32>
    %c1_i32_502 = arith.constant 1 : i32
    %1853 = tpu.dynamic_rotate %1850 by %c1_i32_502 dim 0 : vector<16x128xf32>, i32 -> vector<16x128xf32>
    %1854 = arith.mulf %1853, %1216 : vector<16x128xf32>
    %c15_i32_503 = arith.constant 15 : i32
    %1855 = tpu.dynamic_rotate %1850 by %c15_i32_503 dim 0 : vector<16x128xf32>, i32 -> vector<16x128xf32>
    %1856 = arith.mulf %1855, %1220 : vector<16x128xf32>
    %1857 = vector.broadcast %632 : f32 to vector<16x128xf32>
    %1858 = arith.mulf %1854, %1857 : vector<16x128xf32>
    %1859 = arith.addf %1845, %1858 : vector<16x128xf32>
    %1860 = vector.broadcast %636 : f32 to vector<16x128xf32>
    %1861 = arith.mulf %1854, %1860 : vector<16x128xf32>
    %1862 = arith.addf %1848, %1861 : vector<16x128xf32>
    %1863 = vector.broadcast %824 : f32 to vector<16x128xf32>
    %1864 = arith.mulf %1850, %1863 : vector<16x128xf32>
    %1865 = arith.addf %1859, %1864 : vector<16x128xf32>
    %1866 = vector.broadcast %828 : f32 to vector<16x128xf32>
    %1867 = arith.mulf %1850, %1866 : vector<16x128xf32>
    %1868 = arith.addf %1862, %1867 : vector<16x128xf32>
    %1869 = vector.broadcast %1016 : f32 to vector<16x128xf32>
    %1870 = arith.mulf %1856, %1869 : vector<16x128xf32>
    %1871 = arith.addf %1865, %1870 : vector<16x128xf32>
    %1872 = vector.broadcast %1020 : f32 to vector<16x128xf32>
    %1873 = arith.mulf %1856, %1872 : vector<16x128xf32>
    %1874 = arith.addf %1868, %1873 : vector<16x128xf32>
    %c1_i32_504 = arith.constant 1 : i32
    %1875 = tpu.dynamic_rotate %1690 by %c1_i32_504 dim 0 : vector<16x128xf32>, i32 -> vector<16x128xf32>
    %1876 = arith.mulf %1875, %1216 : vector<16x128xf32>
    %c15_i32_505 = arith.constant 15 : i32
    %1877 = tpu.dynamic_rotate %1690 by %c15_i32_505 dim 0 : vector<16x128xf32>, i32 -> vector<16x128xf32>
    %1878 = arith.mulf %1877, %1220 : vector<16x128xf32>
    %1879 = vector.broadcast %696 : f32 to vector<16x128xf32>
    %1880 = arith.mulf %1876, %1879 : vector<16x128xf32>
    %1881 = arith.addf %1871, %1880 : vector<16x128xf32>
    %1882 = vector.broadcast %700 : f32 to vector<16x128xf32>
    %1883 = arith.mulf %1876, %1882 : vector<16x128xf32>
    %1884 = arith.addf %1874, %1883 : vector<16x128xf32>
    %1885 = vector.broadcast %888 : f32 to vector<16x128xf32>
    %1886 = arith.mulf %1690, %1885 : vector<16x128xf32>
    %1887 = arith.addf %1881, %1886 : vector<16x128xf32>
    %1888 = vector.broadcast %892 : f32 to vector<16x128xf32>
    %1889 = arith.mulf %1690, %1888 : vector<16x128xf32>
    %1890 = arith.addf %1884, %1889 : vector<16x128xf32>
    %1891 = vector.broadcast %1080 : f32 to vector<16x128xf32>
    %1892 = arith.mulf %1878, %1891 : vector<16x128xf32>
    %1893 = arith.addf %1887, %1892 : vector<16x128xf32>
    %1894 = vector.broadcast %1084 : f32 to vector<16x128xf32>
    %1895 = arith.mulf %1878, %1894 : vector<16x128xf32>
    %1896 = arith.addf %1890, %1895 : vector<16x128xf32>
    %c1_i32_506 = arith.constant 1 : i32
    %1897 = tpu.dynamic_rotate %1852 by %c1_i32_506 dim 0 : vector<16x128xf32>, i32 -> vector<16x128xf32>
    %1898 = arith.mulf %1897, %1216 : vector<16x128xf32>
    %c15_i32_507 = arith.constant 15 : i32
    %1899 = tpu.dynamic_rotate %1852 by %c15_i32_507 dim 0 : vector<16x128xf32>, i32 -> vector<16x128xf32>
    %1900 = arith.mulf %1899, %1220 : vector<16x128xf32>
    %1901 = vector.broadcast %760 : f32 to vector<16x128xf32>
    %1902 = arith.mulf %1898, %1901 : vector<16x128xf32>
    %1903 = arith.addf %1893, %1902 : vector<16x128xf32>
    %1904 = vector.broadcast %764 : f32 to vector<16x128xf32>
    %1905 = arith.mulf %1898, %1904 : vector<16x128xf32>
    %1906 = arith.addf %1896, %1905 : vector<16x128xf32>
    %1907 = vector.broadcast %952 : f32 to vector<16x128xf32>
    %1908 = arith.mulf %1852, %1907 : vector<16x128xf32>
    %1909 = arith.addf %1903, %1908 : vector<16x128xf32>
    %1910 = vector.broadcast %956 : f32 to vector<16x128xf32>
    %1911 = arith.mulf %1852, %1910 : vector<16x128xf32>
    %1912 = arith.addf %1906, %1911 : vector<16x128xf32>
    %1913 = vector.broadcast %1144 : f32 to vector<16x128xf32>
    %1914 = arith.mulf %1900, %1913 : vector<16x128xf32>
    %1915 = arith.addf %1909, %1914 : vector<16x128xf32>
    %1916 = vector.broadcast %1148 : f32 to vector<16x128xf32>
    %1917 = arith.mulf %1900, %1916 : vector<16x128xf32>
    %1918 = arith.addf %1912, %1917 : vector<16x128xf32>
    %c1_i32_508 = arith.constant 1 : i32
    %1919 = tpu.dynamic_rotate %1694 by %c1_i32_508 dim 1 : vector<16x128xf32>, i32 -> vector<16x128xf32>
    %1920 = arith.mulf %1919, %1210 : vector<16x128xf32>
    %c127_i32_509 = arith.constant 127 : i32
    %1921 = tpu.dynamic_rotate %1694 by %c127_i32_509 dim 1 : vector<16x128xf32>, i32 -> vector<16x128xf32>
    %1922 = arith.mulf %1921, %1212 : vector<16x128xf32>
    %c1_i32_510 = arith.constant 1 : i32
    %1923 = tpu.dynamic_rotate %1920 by %c1_i32_510 dim 0 : vector<16x128xf32>, i32 -> vector<16x128xf32>
    %1924 = arith.mulf %1923, %1216 : vector<16x128xf32>
    %c15_i32_511 = arith.constant 15 : i32
    %1925 = tpu.dynamic_rotate %1920 by %c15_i32_511 dim 0 : vector<16x128xf32>, i32 -> vector<16x128xf32>
    %1926 = arith.mulf %1925, %1220 : vector<16x128xf32>
    %1927 = vector.broadcast %640 : f32 to vector<16x128xf32>
    %1928 = arith.mulf %1924, %1927 : vector<16x128xf32>
    %1929 = arith.addf %1915, %1928 : vector<16x128xf32>
    %1930 = vector.broadcast %644 : f32 to vector<16x128xf32>
    %1931 = arith.mulf %1924, %1930 : vector<16x128xf32>
    %1932 = arith.addf %1918, %1931 : vector<16x128xf32>
    %1933 = vector.broadcast %832 : f32 to vector<16x128xf32>
    %1934 = arith.mulf %1920, %1933 : vector<16x128xf32>
    %1935 = arith.addf %1929, %1934 : vector<16x128xf32>
    %1936 = vector.broadcast %836 : f32 to vector<16x128xf32>
    %1937 = arith.mulf %1920, %1936 : vector<16x128xf32>
    %1938 = arith.addf %1932, %1937 : vector<16x128xf32>
    %1939 = vector.broadcast %1024 : f32 to vector<16x128xf32>
    %1940 = arith.mulf %1926, %1939 : vector<16x128xf32>
    %1941 = arith.addf %1935, %1940 : vector<16x128xf32>
    %1942 = vector.broadcast %1028 : f32 to vector<16x128xf32>
    %1943 = arith.mulf %1926, %1942 : vector<16x128xf32>
    %1944 = arith.addf %1938, %1943 : vector<16x128xf32>
    %c1_i32_512 = arith.constant 1 : i32
    %1945 = tpu.dynamic_rotate %1694 by %c1_i32_512 dim 0 : vector<16x128xf32>, i32 -> vector<16x128xf32>
    %1946 = arith.mulf %1945, %1216 : vector<16x128xf32>
    %c15_i32_513 = arith.constant 15 : i32
    %1947 = tpu.dynamic_rotate %1694 by %c15_i32_513 dim 0 : vector<16x128xf32>, i32 -> vector<16x128xf32>
    %1948 = arith.mulf %1947, %1220 : vector<16x128xf32>
    %1949 = vector.broadcast %704 : f32 to vector<16x128xf32>
    %1950 = arith.mulf %1946, %1949 : vector<16x128xf32>
    %1951 = arith.addf %1941, %1950 : vector<16x128xf32>
    %1952 = vector.broadcast %708 : f32 to vector<16x128xf32>
    %1953 = arith.mulf %1946, %1952 : vector<16x128xf32>
    %1954 = arith.addf %1944, %1953 : vector<16x128xf32>
    %1955 = vector.broadcast %896 : f32 to vector<16x128xf32>
    %1956 = arith.mulf %1694, %1955 : vector<16x128xf32>
    %1957 = arith.addf %1951, %1956 : vector<16x128xf32>
    %1958 = vector.broadcast %900 : f32 to vector<16x128xf32>
    %1959 = arith.mulf %1694, %1958 : vector<16x128xf32>
    %1960 = arith.addf %1954, %1959 : vector<16x128xf32>
    %1961 = vector.broadcast %1088 : f32 to vector<16x128xf32>
    %1962 = arith.mulf %1948, %1961 : vector<16x128xf32>
    %1963 = arith.addf %1957, %1962 : vector<16x128xf32>
    %1964 = vector.broadcast %1092 : f32 to vector<16x128xf32>
    %1965 = arith.mulf %1948, %1964 : vector<16x128xf32>
    %1966 = arith.addf %1960, %1965 : vector<16x128xf32>
    %c1_i32_514 = arith.constant 1 : i32
    %1967 = tpu.dynamic_rotate %1922 by %c1_i32_514 dim 0 : vector<16x128xf32>, i32 -> vector<16x128xf32>
    %1968 = arith.mulf %1967, %1216 : vector<16x128xf32>
    %c15_i32_515 = arith.constant 15 : i32
    %1969 = tpu.dynamic_rotate %1922 by %c15_i32_515 dim 0 : vector<16x128xf32>, i32 -> vector<16x128xf32>
    %1970 = arith.mulf %1969, %1220 : vector<16x128xf32>
    %1971 = vector.broadcast %768 : f32 to vector<16x128xf32>
    %1972 = arith.mulf %1968, %1971 : vector<16x128xf32>
    %1973 = arith.addf %1963, %1972 : vector<16x128xf32>
    %1974 = vector.broadcast %772 : f32 to vector<16x128xf32>
    %1975 = arith.mulf %1968, %1974 : vector<16x128xf32>
    %1976 = arith.addf %1966, %1975 : vector<16x128xf32>
    %1977 = vector.broadcast %960 : f32 to vector<16x128xf32>
    %1978 = arith.mulf %1922, %1977 : vector<16x128xf32>
    %1979 = arith.addf %1973, %1978 : vector<16x128xf32>
    %1980 = vector.broadcast %964 : f32 to vector<16x128xf32>
    %1981 = arith.mulf %1922, %1980 : vector<16x128xf32>
    %1982 = arith.addf %1976, %1981 : vector<16x128xf32>
    %1983 = vector.broadcast %1152 : f32 to vector<16x128xf32>
    %1984 = arith.mulf %1970, %1983 : vector<16x128xf32>
    %1985 = arith.addf %1979, %1984 : vector<16x128xf32>
    %1986 = vector.broadcast %1156 : f32 to vector<16x128xf32>
    %1987 = arith.mulf %1970, %1986 : vector<16x128xf32>
    %1988 = arith.addf %1982, %1987 : vector<16x128xf32>
    %c1_i32_516 = arith.constant 1 : i32
    %1989 = tpu.dynamic_rotate %1698 by %c1_i32_516 dim 1 : vector<16x128xf32>, i32 -> vector<16x128xf32>
    %1990 = arith.mulf %1989, %1210 : vector<16x128xf32>
    %c127_i32_517 = arith.constant 127 : i32
    %1991 = tpu.dynamic_rotate %1698 by %c127_i32_517 dim 1 : vector<16x128xf32>, i32 -> vector<16x128xf32>
    %1992 = arith.mulf %1991, %1212 : vector<16x128xf32>
    %c1_i32_518 = arith.constant 1 : i32
    %1993 = tpu.dynamic_rotate %1990 by %c1_i32_518 dim 0 : vector<16x128xf32>, i32 -> vector<16x128xf32>
    %1994 = arith.mulf %1993, %1216 : vector<16x128xf32>
    %c15_i32_519 = arith.constant 15 : i32
    %1995 = tpu.dynamic_rotate %1990 by %c15_i32_519 dim 0 : vector<16x128xf32>, i32 -> vector<16x128xf32>
    %1996 = arith.mulf %1995, %1220 : vector<16x128xf32>
    %1997 = vector.broadcast %648 : f32 to vector<16x128xf32>
    %1998 = arith.mulf %1994, %1997 : vector<16x128xf32>
    %1999 = arith.addf %1985, %1998 : vector<16x128xf32>
    %2000 = vector.broadcast %652 : f32 to vector<16x128xf32>
    %2001 = arith.mulf %1994, %2000 : vector<16x128xf32>
    %2002 = arith.addf %1988, %2001 : vector<16x128xf32>
    %2003 = vector.broadcast %840 : f32 to vector<16x128xf32>
    %2004 = arith.mulf %1990, %2003 : vector<16x128xf32>
    %2005 = arith.addf %1999, %2004 : vector<16x128xf32>
    %2006 = vector.broadcast %844 : f32 to vector<16x128xf32>
    %2007 = arith.mulf %1990, %2006 : vector<16x128xf32>
    %2008 = arith.addf %2002, %2007 : vector<16x128xf32>
    %2009 = vector.broadcast %1032 : f32 to vector<16x128xf32>
    %2010 = arith.mulf %1996, %2009 : vector<16x128xf32>
    %2011 = arith.addf %2005, %2010 : vector<16x128xf32>
    %2012 = vector.broadcast %1036 : f32 to vector<16x128xf32>
    %2013 = arith.mulf %1996, %2012 : vector<16x128xf32>
    %2014 = arith.addf %2008, %2013 : vector<16x128xf32>
    %c1_i32_520 = arith.constant 1 : i32
    %2015 = tpu.dynamic_rotate %1698 by %c1_i32_520 dim 0 : vector<16x128xf32>, i32 -> vector<16x128xf32>
    %2016 = arith.mulf %2015, %1216 : vector<16x128xf32>
    %c15_i32_521 = arith.constant 15 : i32
    %2017 = tpu.dynamic_rotate %1698 by %c15_i32_521 dim 0 : vector<16x128xf32>, i32 -> vector<16x128xf32>
    %2018 = arith.mulf %2017, %1220 : vector<16x128xf32>
    %2019 = vector.broadcast %712 : f32 to vector<16x128xf32>
    %2020 = arith.mulf %2016, %2019 : vector<16x128xf32>
    %2021 = arith.addf %2011, %2020 : vector<16x128xf32>
    %2022 = vector.broadcast %716 : f32 to vector<16x128xf32>
    %2023 = arith.mulf %2016, %2022 : vector<16x128xf32>
    %2024 = arith.addf %2014, %2023 : vector<16x128xf32>
    %2025 = vector.broadcast %904 : f32 to vector<16x128xf32>
    %2026 = arith.mulf %1698, %2025 : vector<16x128xf32>
    %2027 = arith.addf %2021, %2026 : vector<16x128xf32>
    %2028 = vector.broadcast %908 : f32 to vector<16x128xf32>
    %2029 = arith.mulf %1698, %2028 : vector<16x128xf32>
    %2030 = arith.addf %2024, %2029 : vector<16x128xf32>
    %2031 = vector.broadcast %1096 : f32 to vector<16x128xf32>
    %2032 = arith.mulf %2018, %2031 : vector<16x128xf32>
    %2033 = arith.addf %2027, %2032 : vector<16x128xf32>
    %2034 = vector.broadcast %1100 : f32 to vector<16x128xf32>
    %2035 = arith.mulf %2018, %2034 : vector<16x128xf32>
    %2036 = arith.addf %2030, %2035 : vector<16x128xf32>
    %c1_i32_522 = arith.constant 1 : i32
    %2037 = tpu.dynamic_rotate %1992 by %c1_i32_522 dim 0 : vector<16x128xf32>, i32 -> vector<16x128xf32>
    %2038 = arith.mulf %2037, %1216 : vector<16x128xf32>
    %c15_i32_523 = arith.constant 15 : i32
    %2039 = tpu.dynamic_rotate %1992 by %c15_i32_523 dim 0 : vector<16x128xf32>, i32 -> vector<16x128xf32>
    %2040 = arith.mulf %2039, %1220 : vector<16x128xf32>
    %2041 = vector.broadcast %776 : f32 to vector<16x128xf32>
    %2042 = arith.mulf %2038, %2041 : vector<16x128xf32>
    %2043 = arith.addf %2033, %2042 : vector<16x128xf32>
    %2044 = vector.broadcast %780 : f32 to vector<16x128xf32>
    %2045 = arith.mulf %2038, %2044 : vector<16x128xf32>
    %2046 = arith.addf %2036, %2045 : vector<16x128xf32>
    %2047 = vector.broadcast %968 : f32 to vector<16x128xf32>
    %2048 = arith.mulf %1992, %2047 : vector<16x128xf32>
    %2049 = arith.addf %2043, %2048 : vector<16x128xf32>
    %2050 = vector.broadcast %972 : f32 to vector<16x128xf32>
    %2051 = arith.mulf %1992, %2050 : vector<16x128xf32>
    %2052 = arith.addf %2046, %2051 : vector<16x128xf32>
    %2053 = vector.broadcast %1160 : f32 to vector<16x128xf32>
    %2054 = arith.mulf %2040, %2053 : vector<16x128xf32>
    %2055 = arith.addf %2049, %2054 : vector<16x128xf32>
    %2056 = vector.broadcast %1164 : f32 to vector<16x128xf32>
    %2057 = arith.mulf %2040, %2056 : vector<16x128xf32>
    %2058 = arith.addf %2052, %2057 : vector<16x128xf32>
    %c1_i32_524 = arith.constant 1 : i32
    %2059 = tpu.dynamic_rotate %1702 by %c1_i32_524 dim 1 : vector<16x128xf32>, i32 -> vector<16x128xf32>
    %2060 = arith.mulf %2059, %1210 : vector<16x128xf32>
    %c127_i32_525 = arith.constant 127 : i32
    %2061 = tpu.dynamic_rotate %1702 by %c127_i32_525 dim 1 : vector<16x128xf32>, i32 -> vector<16x128xf32>
    %2062 = arith.mulf %2061, %1212 : vector<16x128xf32>
    %c1_i32_526 = arith.constant 1 : i32
    %2063 = tpu.dynamic_rotate %2060 by %c1_i32_526 dim 0 : vector<16x128xf32>, i32 -> vector<16x128xf32>
    %2064 = arith.mulf %2063, %1216 : vector<16x128xf32>
    %c15_i32_527 = arith.constant 15 : i32
    %2065 = tpu.dynamic_rotate %2060 by %c15_i32_527 dim 0 : vector<16x128xf32>, i32 -> vector<16x128xf32>
    %2066 = arith.mulf %2065, %1220 : vector<16x128xf32>
    %2067 = vector.broadcast %656 : f32 to vector<16x128xf32>
    %2068 = arith.mulf %2064, %2067 : vector<16x128xf32>
    %2069 = arith.addf %2055, %2068 : vector<16x128xf32>
    %2070 = vector.broadcast %660 : f32 to vector<16x128xf32>
    %2071 = arith.mulf %2064, %2070 : vector<16x128xf32>
    %2072 = arith.addf %2058, %2071 : vector<16x128xf32>
    %2073 = vector.broadcast %848 : f32 to vector<16x128xf32>
    %2074 = arith.mulf %2060, %2073 : vector<16x128xf32>
    %2075 = arith.addf %2069, %2074 : vector<16x128xf32>
    %2076 = vector.broadcast %852 : f32 to vector<16x128xf32>
    %2077 = arith.mulf %2060, %2076 : vector<16x128xf32>
    %2078 = arith.addf %2072, %2077 : vector<16x128xf32>
    %2079 = vector.broadcast %1040 : f32 to vector<16x128xf32>
    %2080 = arith.mulf %2066, %2079 : vector<16x128xf32>
    %2081 = arith.addf %2075, %2080 : vector<16x128xf32>
    %2082 = vector.broadcast %1044 : f32 to vector<16x128xf32>
    %2083 = arith.mulf %2066, %2082 : vector<16x128xf32>
    %2084 = arith.addf %2078, %2083 : vector<16x128xf32>
    %c1_i32_528 = arith.constant 1 : i32
    %2085 = tpu.dynamic_rotate %1702 by %c1_i32_528 dim 0 : vector<16x128xf32>, i32 -> vector<16x128xf32>
    %2086 = arith.mulf %2085, %1216 : vector<16x128xf32>
    %c15_i32_529 = arith.constant 15 : i32
    %2087 = tpu.dynamic_rotate %1702 by %c15_i32_529 dim 0 : vector<16x128xf32>, i32 -> vector<16x128xf32>
    %2088 = arith.mulf %2087, %1220 : vector<16x128xf32>
    %2089 = vector.broadcast %720 : f32 to vector<16x128xf32>
    %2090 = arith.mulf %2086, %2089 : vector<16x128xf32>
    %2091 = arith.addf %2081, %2090 : vector<16x128xf32>
    %2092 = vector.broadcast %724 : f32 to vector<16x128xf32>
    %2093 = arith.mulf %2086, %2092 : vector<16x128xf32>
    %2094 = arith.addf %2084, %2093 : vector<16x128xf32>
    %2095 = vector.broadcast %912 : f32 to vector<16x128xf32>
    %2096 = arith.mulf %1702, %2095 : vector<16x128xf32>
    %2097 = arith.addf %2091, %2096 : vector<16x128xf32>
    %2098 = vector.broadcast %916 : f32 to vector<16x128xf32>
    %2099 = arith.mulf %1702, %2098 : vector<16x128xf32>
    %2100 = arith.addf %2094, %2099 : vector<16x128xf32>
    %2101 = vector.broadcast %1104 : f32 to vector<16x128xf32>
    %2102 = arith.mulf %2088, %2101 : vector<16x128xf32>
    %2103 = arith.addf %2097, %2102 : vector<16x128xf32>
    %2104 = vector.broadcast %1108 : f32 to vector<16x128xf32>
    %2105 = arith.mulf %2088, %2104 : vector<16x128xf32>
    %2106 = arith.addf %2100, %2105 : vector<16x128xf32>
    %c1_i32_530 = arith.constant 1 : i32
    %2107 = tpu.dynamic_rotate %2062 by %c1_i32_530 dim 0 : vector<16x128xf32>, i32 -> vector<16x128xf32>
    %2108 = arith.mulf %2107, %1216 : vector<16x128xf32>
    %c15_i32_531 = arith.constant 15 : i32
    %2109 = tpu.dynamic_rotate %2062 by %c15_i32_531 dim 0 : vector<16x128xf32>, i32 -> vector<16x128xf32>
    %2110 = arith.mulf %2109, %1220 : vector<16x128xf32>
    %2111 = vector.broadcast %784 : f32 to vector<16x128xf32>
    %2112 = arith.mulf %2108, %2111 : vector<16x128xf32>
    %2113 = arith.addf %2103, %2112 : vector<16x128xf32>
    %2114 = vector.broadcast %788 : f32 to vector<16x128xf32>
    %2115 = arith.mulf %2108, %2114 : vector<16x128xf32>
    %2116 = arith.addf %2106, %2115 : vector<16x128xf32>
    %2117 = vector.broadcast %976 : f32 to vector<16x128xf32>
    %2118 = arith.mulf %2062, %2117 : vector<16x128xf32>
    %2119 = arith.addf %2113, %2118 : vector<16x128xf32>
    %2120 = vector.broadcast %980 : f32 to vector<16x128xf32>
    %2121 = arith.mulf %2062, %2120 : vector<16x128xf32>
    %2122 = arith.addf %2116, %2121 : vector<16x128xf32>
    %2123 = vector.broadcast %1168 : f32 to vector<16x128xf32>
    %2124 = arith.mulf %2110, %2123 : vector<16x128xf32>
    %2125 = arith.addf %2119, %2124 : vector<16x128xf32>
    %2126 = vector.broadcast %1172 : f32 to vector<16x128xf32>
    %2127 = arith.mulf %2110, %2126 : vector<16x128xf32>
    %2128 = arith.addf %2122, %2127 : vector<16x128xf32>
    %c1_i32_532 = arith.constant 1 : i32
    %2129 = tpu.dynamic_rotate %1706 by %c1_i32_532 dim 1 : vector<16x128xf32>, i32 -> vector<16x128xf32>
    %2130 = arith.mulf %2129, %1210 : vector<16x128xf32>
    %c127_i32_533 = arith.constant 127 : i32
    %2131 = tpu.dynamic_rotate %1706 by %c127_i32_533 dim 1 : vector<16x128xf32>, i32 -> vector<16x128xf32>
    %2132 = arith.mulf %2131, %1212 : vector<16x128xf32>
    %c1_i32_534 = arith.constant 1 : i32
    %2133 = tpu.dynamic_rotate %2130 by %c1_i32_534 dim 0 : vector<16x128xf32>, i32 -> vector<16x128xf32>
    %2134 = arith.mulf %2133, %1216 : vector<16x128xf32>
    %c15_i32_535 = arith.constant 15 : i32
    %2135 = tpu.dynamic_rotate %2130 by %c15_i32_535 dim 0 : vector<16x128xf32>, i32 -> vector<16x128xf32>
    %2136 = arith.mulf %2135, %1220 : vector<16x128xf32>
    %2137 = vector.broadcast %664 : f32 to vector<16x128xf32>
    %2138 = arith.mulf %2134, %2137 : vector<16x128xf32>
    %2139 = arith.addf %2125, %2138 : vector<16x128xf32>
    %2140 = vector.broadcast %668 : f32 to vector<16x128xf32>
    %2141 = arith.mulf %2134, %2140 : vector<16x128xf32>
    %2142 = arith.addf %2128, %2141 : vector<16x128xf32>
    %2143 = vector.broadcast %856 : f32 to vector<16x128xf32>
    %2144 = arith.mulf %2130, %2143 : vector<16x128xf32>
    %2145 = arith.addf %2139, %2144 : vector<16x128xf32>
    %2146 = vector.broadcast %860 : f32 to vector<16x128xf32>
    %2147 = arith.mulf %2130, %2146 : vector<16x128xf32>
    %2148 = arith.addf %2142, %2147 : vector<16x128xf32>
    %2149 = vector.broadcast %1048 : f32 to vector<16x128xf32>
    %2150 = arith.mulf %2136, %2149 : vector<16x128xf32>
    %2151 = arith.addf %2145, %2150 : vector<16x128xf32>
    %2152 = vector.broadcast %1052 : f32 to vector<16x128xf32>
    %2153 = arith.mulf %2136, %2152 : vector<16x128xf32>
    %2154 = arith.addf %2148, %2153 : vector<16x128xf32>
    %c1_i32_536 = arith.constant 1 : i32
    %2155 = tpu.dynamic_rotate %1706 by %c1_i32_536 dim 0 : vector<16x128xf32>, i32 -> vector<16x128xf32>
    %2156 = arith.mulf %2155, %1216 : vector<16x128xf32>
    %c15_i32_537 = arith.constant 15 : i32
    %2157 = tpu.dynamic_rotate %1706 by %c15_i32_537 dim 0 : vector<16x128xf32>, i32 -> vector<16x128xf32>
    %2158 = arith.mulf %2157, %1220 : vector<16x128xf32>
    %2159 = vector.broadcast %728 : f32 to vector<16x128xf32>
    %2160 = arith.mulf %2156, %2159 : vector<16x128xf32>
    %2161 = arith.addf %2151, %2160 : vector<16x128xf32>
    %2162 = vector.broadcast %732 : f32 to vector<16x128xf32>
    %2163 = arith.mulf %2156, %2162 : vector<16x128xf32>
    %2164 = arith.addf %2154, %2163 : vector<16x128xf32>
    %2165 = vector.broadcast %920 : f32 to vector<16x128xf32>
    %2166 = arith.mulf %1706, %2165 : vector<16x128xf32>
    %2167 = arith.addf %2161, %2166 : vector<16x128xf32>
    %2168 = vector.broadcast %924 : f32 to vector<16x128xf32>
    %2169 = arith.mulf %1706, %2168 : vector<16x128xf32>
    %2170 = arith.addf %2164, %2169 : vector<16x128xf32>
    %2171 = vector.broadcast %1112 : f32 to vector<16x128xf32>
    %2172 = arith.mulf %2158, %2171 : vector<16x128xf32>
    %2173 = arith.addf %2167, %2172 : vector<16x128xf32>
    %2174 = vector.broadcast %1116 : f32 to vector<16x128xf32>
    %2175 = arith.mulf %2158, %2174 : vector<16x128xf32>
    %2176 = arith.addf %2170, %2175 : vector<16x128xf32>
    %c1_i32_538 = arith.constant 1 : i32
    %2177 = tpu.dynamic_rotate %2132 by %c1_i32_538 dim 0 : vector<16x128xf32>, i32 -> vector<16x128xf32>
    %2178 = arith.mulf %2177, %1216 : vector<16x128xf32>
    %c15_i32_539 = arith.constant 15 : i32
    %2179 = tpu.dynamic_rotate %2132 by %c15_i32_539 dim 0 : vector<16x128xf32>, i32 -> vector<16x128xf32>
    %2180 = arith.mulf %2179, %1220 : vector<16x128xf32>
    %2181 = vector.broadcast %792 : f32 to vector<16x128xf32>
    %2182 = arith.mulf %2178, %2181 : vector<16x128xf32>
    %2183 = arith.addf %2173, %2182 : vector<16x128xf32>
    %2184 = vector.broadcast %796 : f32 to vector<16x128xf32>
    %2185 = arith.mulf %2178, %2184 : vector<16x128xf32>
    %2186 = arith.addf %2176, %2185 : vector<16x128xf32>
    %2187 = vector.broadcast %984 : f32 to vector<16x128xf32>
    %2188 = arith.mulf %2132, %2187 : vector<16x128xf32>
    %2189 = arith.addf %2183, %2188 : vector<16x128xf32>
    %2190 = vector.broadcast %988 : f32 to vector<16x128xf32>
    %2191 = arith.mulf %2132, %2190 : vector<16x128xf32>
    %2192 = arith.addf %2186, %2191 : vector<16x128xf32>
    %2193 = vector.broadcast %1176 : f32 to vector<16x128xf32>
    %2194 = arith.mulf %2180, %2193 : vector<16x128xf32>
    %2195 = arith.addf %2189, %2194 : vector<16x128xf32>
    %2196 = vector.broadcast %1180 : f32 to vector<16x128xf32>
    %2197 = arith.mulf %2180, %2196 : vector<16x128xf32>
    %2198 = arith.addf %2192, %2197 : vector<16x128xf32>
    %c1_i32_540 = arith.constant 1 : i32
    %2199 = tpu.dynamic_rotate %1710 by %c1_i32_540 dim 1 : vector<16x128xf32>, i32 -> vector<16x128xf32>
    %2200 = arith.mulf %2199, %1210 : vector<16x128xf32>
    %c127_i32_541 = arith.constant 127 : i32
    %2201 = tpu.dynamic_rotate %1710 by %c127_i32_541 dim 1 : vector<16x128xf32>, i32 -> vector<16x128xf32>
    %2202 = arith.mulf %2201, %1212 : vector<16x128xf32>
    %c1_i32_542 = arith.constant 1 : i32
    %2203 = tpu.dynamic_rotate %2200 by %c1_i32_542 dim 0 : vector<16x128xf32>, i32 -> vector<16x128xf32>
    %2204 = arith.mulf %2203, %1216 : vector<16x128xf32>
    %c15_i32_543 = arith.constant 15 : i32
    %2205 = tpu.dynamic_rotate %2200 by %c15_i32_543 dim 0 : vector<16x128xf32>, i32 -> vector<16x128xf32>
    %2206 = arith.mulf %2205, %1220 : vector<16x128xf32>
    %2207 = vector.broadcast %672 : f32 to vector<16x128xf32>
    %2208 = arith.mulf %2204, %2207 : vector<16x128xf32>
    %2209 = arith.addf %2195, %2208 : vector<16x128xf32>
    %2210 = vector.broadcast %676 : f32 to vector<16x128xf32>
    %2211 = arith.mulf %2204, %2210 : vector<16x128xf32>
    %2212 = arith.addf %2198, %2211 : vector<16x128xf32>
    %2213 = vector.broadcast %864 : f32 to vector<16x128xf32>
    %2214 = arith.mulf %2200, %2213 : vector<16x128xf32>
    %2215 = arith.addf %2209, %2214 : vector<16x128xf32>
    %2216 = vector.broadcast %868 : f32 to vector<16x128xf32>
    %2217 = arith.mulf %2200, %2216 : vector<16x128xf32>
    %2218 = arith.addf %2212, %2217 : vector<16x128xf32>
    %2219 = vector.broadcast %1056 : f32 to vector<16x128xf32>
    %2220 = arith.mulf %2206, %2219 : vector<16x128xf32>
    %2221 = arith.addf %2215, %2220 : vector<16x128xf32>
    %2222 = vector.broadcast %1060 : f32 to vector<16x128xf32>
    %2223 = arith.mulf %2206, %2222 : vector<16x128xf32>
    %2224 = arith.addf %2218, %2223 : vector<16x128xf32>
    %c1_i32_544 = arith.constant 1 : i32
    %2225 = tpu.dynamic_rotate %1710 by %c1_i32_544 dim 0 : vector<16x128xf32>, i32 -> vector<16x128xf32>
    %2226 = arith.mulf %2225, %1216 : vector<16x128xf32>
    %c15_i32_545 = arith.constant 15 : i32
    %2227 = tpu.dynamic_rotate %1710 by %c15_i32_545 dim 0 : vector<16x128xf32>, i32 -> vector<16x128xf32>
    %2228 = arith.mulf %2227, %1220 : vector<16x128xf32>
    %2229 = vector.broadcast %736 : f32 to vector<16x128xf32>
    %2230 = arith.mulf %2226, %2229 : vector<16x128xf32>
    %2231 = arith.addf %2221, %2230 : vector<16x128xf32>
    %2232 = vector.broadcast %740 : f32 to vector<16x128xf32>
    %2233 = arith.mulf %2226, %2232 : vector<16x128xf32>
    %2234 = arith.addf %2224, %2233 : vector<16x128xf32>
    %2235 = vector.broadcast %928 : f32 to vector<16x128xf32>
    %2236 = arith.mulf %1710, %2235 : vector<16x128xf32>
    %2237 = arith.addf %2231, %2236 : vector<16x128xf32>
    %2238 = vector.broadcast %932 : f32 to vector<16x128xf32>
    %2239 = arith.mulf %1710, %2238 : vector<16x128xf32>
    %2240 = arith.addf %2234, %2239 : vector<16x128xf32>
    %2241 = vector.broadcast %1120 : f32 to vector<16x128xf32>
    %2242 = arith.mulf %2228, %2241 : vector<16x128xf32>
    %2243 = arith.addf %2237, %2242 : vector<16x128xf32>
    %2244 = vector.broadcast %1124 : f32 to vector<16x128xf32>
    %2245 = arith.mulf %2228, %2244 : vector<16x128xf32>
    %2246 = arith.addf %2240, %2245 : vector<16x128xf32>
    %c1_i32_546 = arith.constant 1 : i32
    %2247 = tpu.dynamic_rotate %2202 by %c1_i32_546 dim 0 : vector<16x128xf32>, i32 -> vector<16x128xf32>
    %2248 = arith.mulf %2247, %1216 : vector<16x128xf32>
    %c15_i32_547 = arith.constant 15 : i32
    %2249 = tpu.dynamic_rotate %2202 by %c15_i32_547 dim 0 : vector<16x128xf32>, i32 -> vector<16x128xf32>
    %2250 = arith.mulf %2249, %1220 : vector<16x128xf32>
    %2251 = vector.broadcast %800 : f32 to vector<16x128xf32>
    %2252 = arith.mulf %2248, %2251 : vector<16x128xf32>
    %2253 = arith.addf %2243, %2252 : vector<16x128xf32>
    %2254 = vector.broadcast %804 : f32 to vector<16x128xf32>
    %2255 = arith.mulf %2248, %2254 : vector<16x128xf32>
    %2256 = arith.addf %2246, %2255 : vector<16x128xf32>
    %2257 = vector.broadcast %992 : f32 to vector<16x128xf32>
    %2258 = arith.mulf %2202, %2257 : vector<16x128xf32>
    %2259 = arith.addf %2253, %2258 : vector<16x128xf32>
    %2260 = vector.broadcast %996 : f32 to vector<16x128xf32>
    %2261 = arith.mulf %2202, %2260 : vector<16x128xf32>
    %2262 = arith.addf %2256, %2261 : vector<16x128xf32>
    %2263 = vector.broadcast %1184 : f32 to vector<16x128xf32>
    %2264 = arith.mulf %2250, %2263 : vector<16x128xf32>
    %2265 = arith.addf %2259, %2264 : vector<16x128xf32>
    %2266 = vector.broadcast %1188 : f32 to vector<16x128xf32>
    %2267 = arith.mulf %2250, %2266 : vector<16x128xf32>
    %2268 = arith.addf %2262, %2267 : vector<16x128xf32>
    %2269 = vector.broadcast %1192 : f32 to vector<16x128xf32>
    %2270 = arith.addf %2265, %2269 : vector<16x128xf32>
    %2271 = vector.broadcast %1196 : f32 to vector<16x128xf32>
    %2272 = arith.addf %2268, %2271 : vector<16x128xf32>
    %2273 = arith.addf %1221, %2270 : vector<16x128xf32>
    %c0_548 = arith.constant 0 : index
    %c0_549 = arith.constant 0 : index
    %2274 = vector.load %arg13[%c0_548, %c0_549] : memref<32x128xf32, #tpu.memory_space<vmem>>, vector<16x128xf32>
    tpu.vector_store %arg13[%c0_548, %c0_549], %2273 {strides = array<i32>} : memref<32x128xf32, #tpu.memory_space<vmem>>, vector<16x128xf32>,
    %2275 = arith.addf %1222, %2272 : vector<16x128xf32>
    %c16_550 = arith.constant 16 : index
    %c0_551 = arith.constant 0 : index
    %2276 = vector.load %arg13[%c16_550, %c0_551] : memref<32x128xf32, #tpu.memory_space<vmem>>, vector<16x128xf32>
    tpu.vector_store %arg13[%c16_550, %c0_551], %2275 {strides = array<i32>} : memref<32x128xf32, #tpu.memory_space<vmem>>, vector<16x128xf32>,
    %c0_552 = arith.constant 0 : index
    %c0_553 = arith.constant 0 : index
    %2277 = vector.load %arg5[%c0_552, %c0_553] : memref<32x32xf32, #tpu.memory_space<vmem>>, vector<32x32xf32>
    %c0_554 = arith.constant 0 : index
    %c0_555 = arith.constant 0 : index
    %2278 = vector.load %arg13[%c0_554, %c0_555] : memref<32x128xf32, #tpu.memory_space<vmem>>, vector<32x128xf32>
    %cst_556 = arith.constant dense<0.000000e+00> : vector<32x128xf32>
    %2279 = tpu.matmul %2277, %2278, %cst_556 {dimension_numbers = #tpu.dot_dimension_numbers<[1], [0], [0], [1], [0, 0, 1, 1], [], []>} : vector<32x32xf32>, vector<32x128xf32>, vector<32x128xf32> -> vector<32x128xf32>
    %2280 = vector.extract_strided_slice %2279 {offsets = [0, 0], sizes = [16, 64], strides = [1, 1]} : vector<32x128xf32> to vector<16x64xf32>
    %c0_557 = arith.constant 0 : index
    %c0_558 = arith.constant 0 : index
    %2281 = vector.load %arg14[%c0_557, %c0_558] : memref<32x128xf32, #tpu.memory_space<vmem>>, vector<16x64xf32>
    tpu.vector_store %arg14[%c0_557, %c0_558], %2280 {strides = array<i32>} : memref<32x128xf32, #tpu.memory_space<vmem>>, vector<16x64xf32>,
    %2282 = vector.extract_strided_slice %2279 {offsets = [16, 0], sizes = [16, 64], strides = [1, 1]} : vector<32x128xf32> to vector<16x64xf32>
    %c0_559 = arith.constant 0 : index
    %c64 = arith.constant 64 : index
    %2283 = vector.load %arg14[%c0_559, %c64] : memref<32x128xf32, #tpu.memory_space<vmem>>, vector<16x64xf32>
    tpu.vector_store %arg14[%c0_559, %c64], %2282 {strides = array<i32>} : memref<32x128xf32, #tpu.memory_space<vmem>>, vector<16x64xf32>,
    %2284 = vector.extract_strided_slice %2279 {offsets = [0, 64], sizes = [16, 64], strides = [1, 1]} : vector<32x128xf32> to vector<16x64xf32>
    %c16_560 = arith.constant 16 : index
    %c0_561 = arith.constant 0 : index
    %2285 = vector.load %arg14[%c16_560, %c0_561] : memref<32x128xf32, #tpu.memory_space<vmem>>, vector<16x64xf32>
    tpu.vector_store %arg14[%c16_560, %c0_561], %2284 {strides = array<i32>} : memref<32x128xf32, #tpu.memory_space<vmem>>, vector<16x64xf32>,
    %2286 = vector.extract_strided_slice %2279 {offsets = [16, 64], sizes = [16, 64], strides = [1, 1]} : vector<32x128xf32> to vector<16x64xf32>
    %c16_562 = arith.constant 16 : index
    %c64_563 = arith.constant 64 : index
    %2287 = vector.load %arg14[%c16_562, %c64_563] : memref<32x128xf32, #tpu.memory_space<vmem>>, vector<16x64xf32>
    tpu.vector_store %arg14[%c16_562, %c64_563], %2286 {strides = array<i32>} : memref<32x128xf32, #tpu.memory_space<vmem>>, vector<16x64xf32>,
    %c0_564 = arith.constant 0 : index
    %c0_565 = arith.constant 0 : index
    %2288 = vector.load %arg14[%c0_564, %c0_565] : memref<32x128xf32, #tpu.memory_space<vmem>>, vector<32x128xf32>
    %c0_566 = arith.constant 0 : index
    %c0_567 = arith.constant 0 : index
    %2289 = vector.load %arg6[%c0_566, %c0_567] : memref<128x128xf32, #tpu.memory_space<vmem>>, vector<128x128xf32>
    %cst_568 = arith.constant dense<0.000000e+00> : vector<32x128xf32>
    %2290 = tpu.matmul %2288, %2289, %cst_568 {dimension_numbers = #tpu.dot_dimension_numbers<[1], [0], [0], [1], [0, 0, 1, 1], [], []>} : vector<32x128xf32>, vector<128x128xf32>, vector<32x128xf32> -> vector<32x128xf32>
    %c0_569 = arith.constant 0 : index
    %c0_570 = arith.constant 0 : index
    %2291 = vector.load %arg4[%c0_569, %c0_570] : memref<32x128xf32, #tpu.memory_space<vmem>>, vector<32x128xf32>
    %cst_571 = arith.constant 0.000000e+00 : f32
    %2292 = vector.broadcast %cst_571 : f32 to vector<32x128xf32>
    %2293 = arith.cmpf one, %2291, %2292 : vector<32x128xf32>
    %c0_572 = arith.constant 0 : index
    %c0_573 = arith.constant 0 : index
    %2294 = vector.load %arg3[%c0_572, %c0_573] : memref<32x128xf32, #tpu.memory_space<vmem>>, vector<32x128xf32>
    %2295 = arith.select %2293, %2294, %2290 : vector<32x128xi1>, vector<32x128xf32>
    %c0_574 = arith.constant 0 : index
    %c0_575 = arith.constant 0 : index
    %2296 = vector.load %arg7[%c0_574, %c0_575] : memref<128x128xf32, #tpu.memory_space<vmem>>, vector<128x128xf32>
    %cst_576 = arith.constant dense<0.000000e+00> : vector<32x128xf32>
    %2297 = tpu.matmul %2295, %2296, %cst_576 {dimension_numbers = #tpu.dot_dimension_numbers<[1], [0], [0], [1], [0, 0, 1, 1], [], []>} : vector<32x128xf32>, vector<128x128xf32>, vector<32x128xf32> -> vector<32x128xf32>
    %2298 = vector.extract_strided_slice %2297 {offsets = [0, 0], sizes = [16, 64], strides = [1, 1]} : vector<32x128xf32> to vector<16x64xf32>
    %c0_577 = arith.constant 0 : index
    %c0_578 = arith.constant 0 : index
    %2299 = vector.load %arg13[%c0_577, %c0_578] : memref<32x128xf32, #tpu.memory_space<vmem>>, vector<16x64xf32>
    tpu.vector_store %arg13[%c0_577, %c0_578], %2298 {strides = array<i32>} : memref<32x128xf32, #tpu.memory_space<vmem>>, vector<16x64xf32>,
    %2300 = vector.extract_strided_slice %2297 {offsets = [0, 64], sizes = [16, 64], strides = [1, 1]} : vector<32x128xf32> to vector<16x64xf32>
    %c16_579 = arith.constant 16 : index
    %c0_580 = arith.constant 0 : index
    %2301 = vector.load %arg13[%c16_579, %c0_580] : memref<32x128xf32, #tpu.memory_space<vmem>>, vector<16x64xf32>
    tpu.vector_store %arg13[%c16_579, %c0_580], %2300 {strides = array<i32>} : memref<32x128xf32, #tpu.memory_space<vmem>>, vector<16x64xf32>,
    %2302 = vector.extract_strided_slice %2297 {offsets = [16, 0], sizes = [16, 64], strides = [1, 1]} : vector<32x128xf32> to vector<16x64xf32>
    %c0_581 = arith.constant 0 : index
    %c64_582 = arith.constant 64 : index
    %2303 = vector.load %arg13[%c0_581, %c64_582] : memref<32x128xf32, #tpu.memory_space<vmem>>, vector<16x64xf32>
    tpu.vector_store %arg13[%c0_581, %c64_582], %2302 {strides = array<i32>} : memref<32x128xf32, #tpu.memory_space<vmem>>, vector<16x64xf32>,
    %2304 = vector.extract_strided_slice %2297 {offsets = [16, 64], sizes = [16, 64], strides = [1, 1]} : vector<32x128xf32> to vector<16x64xf32>
    %c16_583 = arith.constant 16 : index
    %c64_584 = arith.constant 64 : index
    %2305 = vector.load %arg13[%c16_583, %c64_584] : memref<32x128xf32, #tpu.memory_space<vmem>>, vector<16x64xf32>
    tpu.vector_store %arg13[%c16_583, %c64_584], %2304 {strides = array<i32>} : memref<32x128xf32, #tpu.memory_space<vmem>>, vector<16x64xf32>,
    %c0_585 = arith.constant 0 : index
    %c0_586 = arith.constant 0 : index
    %2306 = vector.load %arg8[%c0_585, %c0_586] : memref<32x32xf32, #tpu.memory_space<vmem>>, vector<32x32xf32>
    %c0_587 = arith.constant 0 : index
    %c0_588 = arith.constant 0 : index
    %2307 = vector.load %arg13[%c0_587, %c0_588] : memref<32x128xf32, #tpu.memory_space<vmem>>, vector<32x128xf32>
    %cst_589 = arith.constant dense<0.000000e+00> : vector<32x128xf32>
    %2308 = tpu.matmul %2306, %2307, %cst_589 {dimension_numbers = #tpu.dot_dimension_numbers<[1], [0], [0], [1], [0, 0, 1, 1], [], []>} : vector<32x32xf32>, vector<32x128xf32>, vector<32x128xf32> -> vector<32x128xf32>
    %c0_590 = arith.constant 0 : index
    %c0_591 = arith.constant 0 : index
    %2309 = vector.load %arg13[%c0_590, %c0_591] : memref<32x128xf32, #tpu.memory_space<vmem>>, vector<32x128xf32>
    tpu.vector_store %arg13[%c0_590, %c0_591], %2308 {strides = array<i32>} : memref<32x128xf32, #tpu.memory_space<vmem>>, vector<32x128xf32>,
    return
  }
  func.func @transform_0(%arg0: i32) -> i32 {
    %c0_i32 = arith.constant 0 : i32
    %c0_i32_0 = arith.constant 0 : i32
    return %c0_i32 : i32
  }
  func.func @transform_1(%arg0: i32) -> (i32, i32) {
    %c0_i32 = arith.constant 0 : i32
    %c0_i32_0 = arith.constant 0 : i32
    %c0_i32_1 = arith.constant 0 : i32
    return %c0_i32, %c0_i32_0 : i32, i32
  }
  func.func @transform_2(%arg0: i32) -> (i32, i32) {
    %c0_i32 = arith.constant 0 : i32
    %c0_i32_0 = arith.constant 0 : i32
    %c0_i32_1 = arith.constant 0 : i32
    return %c0_i32, %c0_i32_0 : i32, i32
  }
  func.func @transform_3(%arg0: i32) -> (i32, i32) {
    %c0_i32 = arith.constant 0 : i32
    %c0_i32_0 = arith.constant 0 : i32
    %c0_i32_1 = arith.constant 0 : i32
    return %c0_i32, %c0_i32_0 : i32, i32
  }
  func.func @transform_4(%arg0: i32) -> (i32, i32) {
    %c0_i32 = arith.constant 0 : i32
    %c0_i32_0 = arith.constant 0 : i32
    %c0_i32_1 = arith.constant 0 : i32
    return %c0_i32, %c0_i32_0 : i32, i32
  }
  func.func @transform_5(%arg0: i32) -> (i32, i32) {
    %c0_i32 = arith.constant 0 : i32
    %c0_i32_0 = arith.constant 0 : i32
    %c0_i32_1 = arith.constant 0 : i32
    return %c0_i32, %c0_i32_0 : i32, i32
  }
  func.func @transform_6(%arg0: i32) -> (i32, i32) {
    %c0_i32 = arith.constant 0 : i32
    %c0_i32_0 = arith.constant 0 : i32
    %c0_i32_1 = arith.constant 0 : i32
    return %c0_i32, %c0_i32_0 : i32, i32
  }
  func.func @transform_7(%arg0: i32) -> (i32, i32) {
    %c0_i32 = arith.constant 0 : i32
    %c0_i32_0 = arith.constant 0 : i32
    %c0_i32_1 = arith.constant 0 : i32
    return %c0_i32, %c0_i32_0 : i32, i32
  }
  func.func @transform_8(%arg0: i32) -> i32 {
    %c0_i32 = arith.constant 0 : i32
    %c0_i32_0 = arith.constant 0 : i32
    return %c0_i32 : i32
  }
  func.func @transform_9(%arg0: i32) -> i32 {
    %c0_i32 = arith.constant 0 : i32
    %c0_i32_0 = arith.constant 0 : i32
    return %c0_i32 : i32
  }
  func.func @transform_10(%arg0: i32) -> i32 {
    %c0_i32 = arith.constant 0 : i32
    %c0_i32_0 = arith.constant 0 : i32
    return %c0_i32 : i32
  }
  func.func @transform_11(%arg0: i32) -> i32 {
    %c0_i32 = arith.constant 0 : i32
    %c0_i32_0 = arith.constant 0 : i32
    return %c0_i32 : i32
  }
  func.func @transform_12(%arg0: i32) -> (i32, i32) {
    %c0_i32 = arith.constant 0 : i32
    %c0_i32_0 = arith.constant 0 : i32
    %c0_i32_1 = arith.constant 0 : i32
    return %c0_i32, %c0_i32_0 : i32, i32
  }
}

</mosaic_0001>

<llo_original>
// kernel: tpu_custom_call.1
$region0: #{tpu_custom_call.1}
  #allocation0 [shape = 'u32[]', space=smem, size = 0x4, offset = 0x4, fixed_abs, tag = 'smem constant byte address 0x4 - core index']
  #allocation1 [shape = 'u32[144,128]{1,0:T(1,128)}', space=vmem, size = 0x12000, scoped, tag = 'internal scratch']
  #allocation2 [shape = 'f32[32,128]{1,0:T(8,128)}', space=vmem, size = 0x4000, scoped, tag = 'scratch operand']
  %s0 = inlined_call_operand.hbm [shape: s32[4], index: 0, kind: input, shape index: {}]
  %s1 = inlined_call_operand.hbm [shape: f32[32,128], index: 1, kind: input, shape index: {}]
  %s2 = inlined_call_operand.hbm [shape: f32[32,128], index: 2, kind: input, shape index: {}]
  %s3 = inlined_call_operand.hbm [shape: f32[32,128], index: 3, kind: input, shape index: {}]
  %s4 = inlined_call_operand.hbm [shape: f32[32,32], index: 4, kind: input, shape index: {}]
  %s5 = inlined_call_operand.hbm [shape: f32[128,128], index: 5, kind: input, shape index: {}]
  %s6 = inlined_call_operand.hbm [shape: f32[128,128], index: 6, kind: input, shape index: {}]
  %s7 = inlined_call_operand.hbm [shape: f32[32,32], index: 7, kind: input, shape index: {}]
  %s8 = inlined_call_operand.vmem [shape: f32[288], index: 8, kind: input, shape index: {}]
  %s9 = inlined_call_operand.vmem [shape: f32[16], index: 9, kind: input, shape index: {}]
  %s10 = inlined_call_operand.vmem [shape: f32[288], index: 10, kind: input, shape index: {}]
  %s11 = inlined_call_operand.vmem [shape: f32[4], index: 11, kind: input, shape index: {}]
  %s12 = inlined_call_operand.hbm [shape: f32[32,128], index: 12, kind: output, shape index: {}]
  %s13 = sld [smem:[#allocation0]]
  $region133: #{tpu_custom_call.1} parent=0
    _
  %s15 = ssub.s32 1, %s13
  %s16 = scalar_select 0, %s15, %s13
  $region1: #{tpu_custom_call.1} parent=0
    #allocation3 [shape = 'u8[512]{0}', space=smem, size = 0x200, scoped, tag = 'input window, operand 0, single buffered']
    #allocation4 [shape = 's32[2]{0}', space=sflag, size = 0x8, scoped, tag = 'scoped memory for tpu_custom_call.1']
    #allocation5 [shape = 's32[2]{0}', space=sflag, size = 0x8, scoped, tag = 'scoped memory for tpu_custom_call.1']
    #allocation6 [shape = 's32[2]{0}', space=sflag, size = 0x8, scoped, tag = 'scoped memory for tpu_custom_call.1']
    #allocation7 [shape = 's32[2]{0}', space=sflag, size = 0x8, scoped, tag = 'scoped memory for tpu_custom_call.1']
    #allocation8 [shape = 'u8[16384]{0}', space=vmem, size = 0x4000, scoped, tag = 'input window, operand 1, single buffered']
    #allocation9 [shape = 'u8[16384]{0}', space=vmem, size = 0x4000, scoped, tag = 'input window, operand 2, single buffered']
    #allocation10 [shape = 's32[1]{0}', space=sflag, size = 0x4, scoped, tag = 'scoped memory for tpu_custom_call.1']
    #allocation11 [shape = 'u8[16384]{0}', space=vmem, size = 0x4000, scoped, tag = 'input window, operand 3, single buffered']
    #allocation12 [shape = 'u8[16384]{0}', space=vmem, size = 0x4000, scoped, tag = 'input window, operand 4, single buffered']
    #allocation13 [shape = 's32[1]{0}', space=sflag, size = 0x4, scoped, tag = 'scoped memory for tpu_custom_call.1']
    #allocation14 [shape = 'u8[65536]{0}', space=vmem, size = 0x10000, scoped, tag = 'input window, operand 5, single buffered']
    #allocation15 [shape = 'u8[65536]{0}', space=vmem, size = 0x10000, scoped, tag = 'input window, operand 6, single buffered']
    #allocation16 [shape = 's32[1]{0}', space=sflag, size = 0x4, scoped, tag = 'scoped memory for tpu_custom_call.1']
    #allocation17 [shape = 'u8[16384]{0}', space=vmem, size = 0x4000, scoped, tag = 'input window, operand 7, single buffered']
    #allocation18 [shape = 'u8[1536]{0}', space=smem, size = 0x600, scoped, tag = 'input window, operand 8, single buffered']
    #allocation19 [shape = 'u8[512]{0}', space=smem, size = 0x200, scoped, tag = 'input window, operand 9, single buffered']
    #allocation20 [shape = 's32[1]{0}', space=sflag, size = 0x4, scoped, tag = 'scoped memory for tpu_custom_call.1']
    #allocation21 [shape = 'u8[1536]{0}', space=smem, size = 0x600, scoped, tag = 'input window, operand 10, single buffered']
    #allocation22 [shape = 'u8[512]{0}', space=smem, size = 0x200, scoped, tag = 'input window, operand 11, single buffered']
    #allocation23 [shape = 's32[1]{0}', space=sflag, size = 0x4, scoped, tag = 'scoped memory for tpu_custom_call.1']
    #allocation24 [shape = 'u8[16384]{0}', space=vmem, size = 0x4000, scoped, tag = 'output window, operand 0, single buffered']
    %17 = vsyncpa [#allocation6], 0
    %18 = vsyncpa [#allocation4], 0
    %19 = vsyncpa [#allocation10], 0
    %20 = vsyncpa [#allocation13], 0
    %21 = vsyncpa [#allocation16], 0
    %22 = vsyncpa [#allocation7], 0
    %23 = vsyncpa [#allocation20], 0
    %24 = vsyncpa [#allocation23], 0
    %25 = vsyncpa [#allocation5], 0
    loop: start=0, step=1, limit=6
    $region2: #{tpu_custom_call.1} parent=1 // loop_pre_header
      _
    $region3: #{tpu_custom_call.1} parent=1 // loop_header
      %s27 = sphi 0, %s31
      %p28 = scmp.ge.s32.totalorder %s27, 6
      %s35 = sphi 0, %s35
      %s37 = sphi 0, %s35
      %s38 = sphi 0, %s37
      %s52 = sphi 0, %s38
      %s56 = sphi 0, %s56
      %s58 = sphi 0, %s56
      %s59 = sphi 0, %s58
      %s73 = sphi 0, %s59
      %s77 = sphi 0, %s77
      %s79 = sphi 0, %s77
      %s80 = sphi 0, %s79
      %s94 = sphi 0, %s80
      %s98 = sphi 0, %s98
      %s100 = sphi 0, %s98
      %s101 = sphi 0, %s100
      %s115 = sphi 0, %s101
      %s119 = sphi 0, %s119
      %s121 = sphi 0, %s119
      %s122 = sphi 0, %s121
      %s136 = sphi 0, %s122
      %s140 = sphi 0, %s140
      %s142 = sphi 0, %s140
      %s143 = sphi 0, %s142
      %s157 = sphi 0, %s143
      %s161 = sphi 0, %s161
      %s163 = sphi 0, %s161
      %s164 = sphi 0, %s163
      %s178 = sphi 0, %s164
      %s182 = sphi 0, %s182
      %s184 = sphi 0, %s182
      %s185 = sphi 0, %s184
      %s199 = sphi 0, %s185
      %s203 = sphi 0, %s203
      %s205 = sphi 0, %s203
      %s206 = sphi 0, %s205
      %s220 = sphi 0, %s206
      %s224 = sphi 0, %s224
      %s226 = sphi 0, %s224
      %s227 = sphi 0, %s226
      %s241 = sphi 0, %s227
      %s245 = sphi 0, %s245
      %s247 = sphi 0, %s245
      %s248 = sphi 0, %s247
      %s262 = sphi 0, %s248
      %s266 = sphi 0, %s266
      %s268 = sphi 0, %s266
      %s269 = sphi 0, %s268
      %s283 = sphi 0, %s269
      %s287 = sphi 0, %s287
      %s289 = sphi 0, %s287
      %s290 = sphi 0, %s289
      %s304 = sphi 0, %s290
    $region4: #{tpu_custom_call.1} parent=1 // loop_header_branch
      %30 = sbr.rel (%p28) target = $region8
    $region5: #{tpu_custom_call.1} parent=1 // loop_body
      %s32 = ssub.s32 %s27, 1
      %s33 = ssub.s32 %s27, 2
      %s34 = sadd.s32 %s27, 1
      %s36 = sadd.s32 %s35, 1
      %p39 = scmp.eq.s32.totalorder %s27, 3
      %p40 = scmp.ne.s32.totalorder %s35, %s37
      %p41 = scmp.eq.s32.totalorder %s27, 0
      %p42 = por %p40, %p41
      %p43 = scmp.ne.s32.totalorder %s35, %s37
      %p44 = scmp.eq.s32.totalorder %s32, 3
      %p45 = por %p43, %p44
      %p46 = scmp.ne.s32.totalorder %s37, %s38
      %p47 = scmp.eq.s32.totalorder %s32, 0
      %p48 = por %p46, %p47
      %p49 = scmp.ne.s32.totalorder %s37, %s38
      %p50 = scmp.eq.s32.totalorder %s33, 3
      %p51 = por %p49, %p50
      %p53 = scmp.ne.s32.totalorder %s38, %s52
      %p54 = scmp.eq.s32.totalorder %s33, 0
      %p55 = por %p53, %p54
      %s57 = sadd.s32 %s56, 1
      %p60 = scmp.eq.s32.totalorder %s27, 3
      %p61 = scmp.ne.s32.totalorder %s56, %s58
      %p62 = scmp.eq.s32.totalorder %s27, 0
      %p63 = por %p61, %p62
      %p64 = scmp.ne.s32.totalorder %s56, %s58
      %p65 = scmp.eq.s32.totalorder %s32, 3
      %p66 = por %p64, %p65
      %p67 = scmp.ne.s32.totalorder %s58, %s59
      %p68 = scmp.eq.s32.totalorder %s32, 0
      %p69 = por %p67, %p68
      %p70 = scmp.ne.s32.totalorder %s58, %s59
      %p71 = scmp.eq.s32.totalorder %s33, 3
      %p72 = por %p70, %p71
      %p74 = scmp.ne.s32.totalorder %s59, %s73
      %p75 = scmp.eq.s32.totalorder %s33, 0
      %p76 = por %p74, %p75
      %s78 = sadd.s32 %s77, 1
      %p81 = scmp.eq.s32.totalorder %s27, 3
      %p82 = scmp.ne.s32.totalorder %s77, %s79
      %p83 = scmp.eq.s32.totalorder %s27, 0
      %p84 = por %p82, %p83
      %p85 = scmp.ne.s32.totalorder %s77, %s79
      %p86 = scmp.eq.s32.totalorder %s32, 3
      %p87 = por %p85, %p86
      %p88 = scmp.ne.s32.totalorder %s79, %s80
      %p89 = scmp.eq.s32.totalorder %s32, 0
      %p90 = por %p88, %p89
      %p91 = scmp.ne.s32.totalorder %s79, %s80
      %p92 = scmp.eq.s32.totalorder %s33, 3
      %p93 = por %p91, %p92
      %p95 = scmp.ne.s32.totalorder %s80, %s94
      %p96 = scmp.eq.s32.totalorder %s33, 0
      %p97 = por %p95, %p96
      %s99 = sadd.s32 %s98, 1
      %p102 = scmp.eq.s32.totalorder %s27, 3
      %p103 = scmp.ne.s32.totalorder %s98, %s100
      %p104 = scmp.eq.s32.totalorder %s27, 0
      %p105 = por %p103, %p104
      %p106 = scmp.ne.s32.totalorder %s98, %s100
      %p107 = scmp.eq.s32.totalorder %s32, 3
      %p108 = por %p106, %p107
      %p109 = scmp.ne.s32.totalorder %s100, %s101
      %p110 = scmp.eq.s32.totalorder %s32, 0
      %p111 = por %p109, %p110
      %p112 = scmp.ne.s32.totalorder %s100, %s101
      %p113 = scmp.eq.s32.totalorder %s33, 3
      %p114 = por %p112, %p113
      %p116 = scmp.ne.s32.totalorder %s101, %s115
      %p117 = scmp.eq.s32.totalorder %s33, 0
      %p118 = por %p116, %p117
      %s120 = sadd.s32 %s119, 1
      %p123 = scmp.eq.s32.totalorder %s27, 3
      %p124 = scmp.ne.s32.totalorder %s119, %s121
      %p125 = scmp.eq.s32.totalorder %s27, 0
      %p126 = por %p124, %p125
      %p127 = scmp.ne.s32.totalorder %s119, %s121
      %p128 = scmp.eq.s32.totalorder %s32, 3
      %p129 = por %p127, %p128
      %p130 = scmp.ne.s32.totalorder %s121, %s122
      %p131 = scmp.eq.s32.totalorder %s32, 0
      %p132 = por %p130, %p131
      %p133 = scmp.ne.s32.totalorder %s121, %s122
      %p134 = scmp.eq.s32.totalorder %s33, 3
      %p135 = por %p133, %p134
      %p137 = scmp.ne.s32.totalorder %s122, %s136
      %p138 = scmp.eq.s32.totalorder %s33, 0
      %p139 = por %p137, %p138
      %s141 = sadd.s32 %s140, 1
      %p144 = scmp.eq.s32.totalorder %s27, 3
      %p145 = scmp.ne.s32.totalorder %s140, %s142
      %p146 = scmp.eq.s32.totalorder %s27, 0
      %p147 = por %p145, %p146
      %p148 = scmp.ne.s32.totalorder %s140, %s142
      %p149 = scmp.eq.s32.totalorder %s32, 3
      %p150 = por %p148, %p149
      %p151 = scmp.ne.s32.totalorder %s142, %s143
      %p152 = scmp.eq.s32.totalorder %s32, 0
      %p153 = por %p151, %p152
      %p154 = scmp.ne.s32.totalorder %s142, %s143
      %p155 = scmp.eq.s32.totalorder %s33, 3
      %p156 = por %p154, %p155
      %p158 = scmp.ne.s32.totalorder %s143, %s157
      %p159 = scmp.eq.s32.totalorder %s33, 0
      %p160 = por %p158, %p159
      %s162 = sadd.s32 %s161, 1
      %p165 = scmp.eq.s32.totalorder %s27, 3
      %p166 = scmp.ne.s32.totalorder %s161, %s163
      %p167 = scmp.eq.s32.totalorder %s27, 0
      %p168 = por %p166, %p167
      %p169 = scmp.ne.s32.totalorder %s161, %s163
      %p170 = scmp.eq.s32.totalorder %s32, 3
      %p171 = por %p169, %p170
      %p172 = scmp.ne.s32.totalorder %s163, %s164
      %p173 = scmp.eq.s32.totalorder %s32, 0
      %p174 = por %p172, %p173
      %p175 = scmp.ne.s32.totalorder %s163, %s164
      %p176 = scmp.eq.s32.totalorder %s33, 3
      %p177 = por %p175, %p176
      %p179 = scmp.ne.s32.totalorder %s164, %s178
      %p180 = scmp.eq.s32.totalorder %s33, 0
      %p181 = por %p179, %p180
      %s183 = sadd.s32 %s182, 1
      %p186 = scmp.eq.s32.totalorder %s27, 3
      %p187 = scmp.ne.s32.totalorder %s182, %s184
      %p188 = scmp.eq.s32.totalorder %s27, 0
      %p189 = por %p187, %p188
      %p190 = scmp.ne.s32.totalorder %s182, %s184
      %p191 = scmp.eq.s32.totalorder %s32, 3
      %p192 = por %p190, %p191
      %p193 = scmp.ne.s32.totalorder %s184, %s185
      %p194 = scmp.eq.s32.totalorder %s32, 0
      %p195 = por %p193, %p194
      %p196 = scmp.ne.s32.totalorder %s184, %s185
      %p197 = scmp.eq.s32.totalorder %s33, 3
      %p198 = por %p196, %p197
      %p200 = scmp.ne.s32.totalorder %s185, %s199
      %p201 = scmp.eq.s32.totalorder %s33, 0
      %p202 = por %p200, %p201
      %s204 = sadd.s32 %s203, 1
      %p207 = scmp.eq.s32.totalorder %s27, 3
      %p208 = scmp.ne.s32.totalorder %s203, %s205
      %p209 = scmp.eq.s32.totalorder %s27, 0
      %p210 = por %p208, %p209
      %p211 = scmp.ne.s32.totalorder %s203, %s205
      %p212 = scmp.eq.s32.totalorder %s32, 3
      %p213 = por %p211, %p212
      %p214 = scmp.ne.s32.totalorder %s205, %s206
      %p215 = scmp.eq.s32.totalorder %s32, 0
      %p216 = por %p214, %p215
      %p217 = scmp.ne.s32.totalorder %s205, %s206
      %p218 = scmp.eq.s32.totalorder %s33, 3
      %p219 = por %p217, %p218
      %p221 = scmp.ne.s32.totalorder %s206, %s220
      %p222 = scmp.eq.s32.totalorder %s33, 0
      %p223 = por %p221, %p222
      %s225 = sadd.s32 %s224, 1
      %p228 = scmp.eq.s32.totalorder %s27, 3
      %p229 = scmp.ne.s32.totalorder %s224, %s226
      %p230 = scmp.eq.s32.totalorder %s27, 0
      %p231 = por %p229, %p230
      %p232 = scmp.ne.s32.totalorder %s224, %s226
      %p233 = scmp.eq.s32.totalorder %s32, 3
      %p234 = por %p232, %p233
      %p235 = scmp.ne.s32.totalorder %s226, %s227
      %p236 = scmp.eq.s32.totalorder %s32, 0
      %p237 = por %p235, %p236
      %p238 = scmp.ne.s32.totalorder %s226, %s227
      %p239 = scmp.eq.s32.totalorder %s33, 3
      %p240 = por %p238, %p239
      %p242 = scmp.ne.s32.totalorder %s227, %s241
      %p243 = scmp.eq.s32.totalorder %s33, 0
      %p244 = por %p242, %p243
      %s246 = sadd.s32 %s245, 1
      %p249 = scmp.eq.s32.totalorder %s27, 3
      %p250 = scmp.ne.s32.totalorder %s245, %s247
      %p251 = scmp.eq.s32.totalorder %s27, 0
      %p252 = por %p250, %p251
      %p253 = scmp.ne.s32.totalorder %s245, %s247
      %p254 = scmp.eq.s32.totalorder %s32, 3
      %p255 = por %p253, %p254
      %p256 = scmp.ne.s32.totalorder %s247, %s248
      %p257 = scmp.eq.s32.totalorder %s32, 0
      %p258 = por %p256, %p257
      %p259 = scmp.ne.s32.totalorder %s247, %s248
      %p260 = scmp.eq.s32.totalorder %s33, 3
      %p261 = por %p259, %p260
      %p263 = scmp.ne.s32.totalorder %s248, %s262
      %p264 = scmp.eq.s32.totalorder %s33, 0
      %p265 = por %p263, %p264
      %s267 = sadd.s32 %s266, 1
      %p270 = scmp.eq.s32.totalorder %s27, 3
      %p271 = scmp.ne.s32.totalorder %s266, %s268
      %p272 = scmp.eq.s32.totalorder %s27, 0
      %p273 = por %p271, %p272
      %p274 = scmp.ne.s32.totalorder %s266, %s268
      %p275 = scmp.eq.s32.totalorder %s32, 3
      %p276 = por %p274, %p275
      %p277 = scmp.ne.s32.totalorder %s268, %s269
      %p278 = scmp.eq.s32.totalorder %s32, 0
      %p279 = por %p277, %p278
      %p280 = scmp.ne.s32.totalorder %s268, %s269
      %p281 = scmp.eq.s32.totalorder %s33, 3
      %p282 = por %p280, %p281
      %p284 = scmp.ne.s32.totalorder %s269, %s283
      %p285 = scmp.eq.s32.totalorder %s33, 0
      %p286 = por %p284, %p285
      %s288 = sadd.s32 %s287, 1
      %p291 = scmp.eq.s32.totalorder %s27, 3
      %p292 = scmp.ne.s32.totalorder %s287, %s289
      %p293 = scmp.eq.s32.totalorder %s27, 0
      %p294 = por %p292, %p293
      %p295 = scmp.ne.s32.totalorder %s287, %s289
      %p296 = scmp.eq.s32.totalorder %s32, 3
      %p297 = por %p295, %p296
      %p298 = scmp.ne.s32.totalorder %s289, %s290
      %p299 = scmp.eq.s32.totalorder %s32, 0
      %p300 = por %p298, %p299
      %p301 = scmp.ne.s32.totalorder %s289, %s290
      %p302 = scmp.eq.s32.totalorder %s33, 3
      %p303 = por %p301, %p302
      %p305 = scmp.ne.s32.totalorder %s290, %s304
      %p306 = scmp.eq.s32.totalorder %s33, 0
      %p307 = por %p305, %p306
      %p308 = scmp.le.s32.totalorder 1, %s27
      %p309 = scmp.lt.s32.totalorder %s27, 5
      %p310 = pnand %p308, %p309
      %p311 = pneg %p310
      // Predicated region
      $region9: #{tpu_custom_call.1} parent=5 // pred_check
        _
      $region10: #{tpu_custom_call.1} parent=5 // pred_check_branch
        %313 = sbr.rel (%p310) target = $region12
      $region11: #{tpu_custom_call.1} parent=5 // pred_region
        %s314 = ssub.s32 %s27, 1
        // Predicated region
        $region13: #{tpu_custom_call.1} parent=11 // pred_check
          %p315 = pneg %p48
        $region14: #{tpu_custom_call.1} parent=11 // pred_check_branch
          %317 = sbr.rel (%p315) target = $region16
        $region15: #{tpu_custom_call.1} parent=11 // pred_region
          %s319 = ssub.s32 16, 16
          %320 = vsyncadd [#allocation6], %s319
          %323 = dma.hbm_to_smem %s0, 16, [#allocation3], [#allocation6]
        $region16: #{tpu_custom_call.1} parent=11 // pred_fallthru
          _
        // Predicated region
        $region17: #{tpu_custom_call.1} parent=11 // pred_check
          %p324 = pneg %p69
        $region18: #{tpu_custom_call.1} parent=11 // pred_check_branch
          %326 = sbr.rel (%p324) target = $region20
        $region19: #{tpu_custom_call.1} parent=11 // pred_region
          %s328 = ssub.s32 512, 512
          %329 = vsyncadd [#allocation4], %s328
          %s330 = sshll.u32 [#allocation8], 4
          %s331 = int_to_ptr.vmem [resolvable:$true] %s330
          %336 = dma.hbm_to_vmem [thread:$0]  %s1, 512, %s331, [#allocation4], 128, 128, 8
        $region20: #{tpu_custom_call.1} parent=11 // pred_fallthru
          _
        // Predicated region
        $region21: #{tpu_custom_call.1} parent=11 // pred_check
          %p337 = pneg %p90
        $region22: #{tpu_custom_call.1} parent=11 // pred_check_branch
          %339 = sbr.rel (%p337) target = $region24
        $region23: #{tpu_custom_call.1} parent=11 // pred_region
          %s341 = ssub.s32 512, 512
          %342 = vsyncadd [#allocation10], %s341
          %s343 = sshll.u32 [#allocation9], 4
          %s344 = int_to_ptr.vmem [resolvable:$true] %s343
          %349 = dma.hbm_to_vmem [thread:$0]  %s2, 512, %s344, [#allocation10], 128, 128, 8
        $region24: #{tpu_custom_call.1} parent=11 // pred_fallthru
          _
        // Predicated region
        $region25: #{tpu_custom_call.1} parent=11 // pred_check
          %p350 = pneg %p111
        $region26: #{tpu_custom_call.1} parent=11 // pred_check_branch
          %352 = sbr.rel (%p350) target = $region28
        $region27: #{tpu_custom_call.1} parent=11 // pred_region
          %s354 = ssub.s32 512, 512
          %355 = vsyncadd [#allocation10], %s354
          %s356 = sshll.u32 [#allocation11], 4
          %s357 = int_to_ptr.vmem [resolvable:$true] %s356
          %362 = dma.hbm_to_vmem [thread:$0]  %s3, 512, %s357, [#allocation10], 128, 128, 8
        $region28: #{tpu_custom_call.1} parent=11 // pred_fallthru
          _
        // Predicated region
        $region29: #{tpu_custom_call.1} parent=11 // pred_check
          %p363 = pneg %p132
        $region30: #{tpu_custom_call.1} parent=11 // pred_check_branch
          %365 = sbr.rel (%p363) target = $region32
        $region31: #{tpu_custom_call.1} parent=11 // pred_region
          %s367 = ssub.s32 512, 512
          %368 = vsyncadd [#allocation13], %s367
          %s369 = sshll.u32 [#allocation12], 4
          %s370 = int_to_ptr.vmem [resolvable:$true] %s369
          %375 = dma.hbm_to_vmem [thread:$0]  %s4, 512, %s370, [#allocation13], 128, 128, 8
        $region32: #{tpu_custom_call.1} parent=11 // pred_fallthru
          _
        // Predicated region
        $region33: #{tpu_custom_call.1} parent=11 // pred_check
          %p376 = pneg %p153
        $region34: #{tpu_custom_call.1} parent=11 // pred_check_branch
          %378 = sbr.rel (%p376) target = $region36
        $region35: #{tpu_custom_call.1} parent=11 // pred_region
          %s380 = ssub.s32 2048, 2048
          %381 = vsyncadd [#allocation13], %s380
          %s382 = sshll.u32 [#allocation14], 4
          %s383 = int_to_ptr.vmem [resolvable:$true] %s382
          %388 = dma.hbm_to_vmem [thread:$0]  %s5, 2048, %s383, [#allocation13], 128, 128, 8
        $region36: #{tpu_custom_call.1} parent=11 // pred_fallthru
          _
        // Predicated region
        $region37: #{tpu_custom_call.1} parent=11 // pred_check
          %p389 = pneg %p174
        $region38: #{tpu_custom_call.1} parent=11 // pred_check_branch
          %391 = sbr.rel (%p389) target = $region40
        $region39: #{tpu_custom_call.1} parent=11 // pred_region
          %s393 = ssub.s32 2048, 2048
          %394 = vsyncadd [#allocation16], %s393
          %s395 = sshll.u32 [#allocation15], 4
          %s396 = int_to_ptr.vmem [resolvable:$true] %s395
          %401 = dma.hbm_to_vmem [thread:$0]  %s6, 2048, %s396, [#allocation16], 128, 128, 8
        $region40: #{tpu_custom_call.1} parent=11 // pred_fallthru
          _
        // Predicated region
        $region41: #{tpu_custom_call.1} parent=11 // pred_check
          %p402 = pneg %p195
        $region42: #{tpu_custom_call.1} parent=11 // pred_check_branch
          %404 = sbr.rel (%p402) target = $region44
        $region43: #{tpu_custom_call.1} parent=11 // pred_region
          %s406 = ssub.s32 512, 512
          %407 = vsyncadd [#allocation16], %s406
          %s408 = sshll.u32 [#allocation17], 4
          %s409 = int_to_ptr.vmem [resolvable:$true] %s408
          %414 = dma.hbm_to_vmem [thread:$0]  %s7, 512, %s409, [#allocation16], 128, 128, 8
        $region44: #{tpu_custom_call.1} parent=11 // pred_fallthru
          _
        // Predicated region
        $region45: #{tpu_custom_call.1} parent=11 // pred_check
          %p415 = pneg %p216
        $region46: #{tpu_custom_call.1} parent=11 // pred_check_branch
          %417 = sbr.rel (%p415) target = $region48
        $region47: #{tpu_custom_call.1} parent=11 // pred_region
          %s419 = ssub.s32 48, 48
          %420 = vsyncadd [#allocation7], %s419
          %s422 = sshll.u32 %s8, 4
          %s423 = int_to_ptr.vmem [resolvable:$true] %s422
          %425 = dma.vmem_to_smem %s423, 48, [#allocation18], [#allocation7]
        $region48: #{tpu_custom_call.1} parent=11 // pred_fallthru
          _
        // Predicated region
        $region49: #{tpu_custom_call.1} parent=11 // pred_check
          %p426 = pneg %p237
        $region50: #{tpu_custom_call.1} parent=11 // pred_check_branch
          %428 = sbr.rel (%p426) target = $region52
        $region51: #{tpu_custom_call.1} parent=11 // pred_region
          %s430 = ssub.s32 16, 16
          %431 = vsyncadd [#allocation20], %s430
          %s433 = sshll.u32 %s9, 4
          %s434 = int_to_ptr.vmem [resolvable:$true] %s433
          %436 = dma.vmem_to_smem %s434, 16, [#allocation19], [#allocation20]
        $region52: #{tpu_custom_call.1} parent=11 // pred_fallthru
          _
        // Predicated region
        $region53: #{tpu_custom_call.1} parent=11 // pred_check
          %p437 = pneg %p258
        $region54: #{tpu_custom_call.1} parent=11 // pred_check_branch
          %439 = sbr.rel (%p437) target = $region56
        $region55: #{tpu_custom_call.1} parent=11 // pred_region
          %s441 = ssub.s32 48, 48
          %442 = vsyncadd [#allocation20], %s441
          %s444 = sshll.u32 %s10, 4
          %s445 = int_to_ptr.vmem [resolvable:$true] %s444
          %447 = dma.vmem_to_smem %s445, 48, [#allocation21], [#allocation20]
        $region56: #{tpu_custom_call.1} parent=11 // pred_fallthru
          _
        // Predicated region
        $region57: #{tpu_custom_call.1} parent=11 // pred_check
          %p448 = pneg %p279
        $region58: #{tpu_custom_call.1} parent=11 // pred_check_branch
          %450 = sbr.rel (%p448) target = $region60
        $region59: #{tpu_custom_call.1} parent=11 // pred_region
          %s452 = ssub.s32 16, 16
          %453 = vsyncadd [#allocation23], %s452
          %s455 = sshll.u32 %s11, 4
          %s456 = int_to_ptr.vmem [resolvable:$true] %s455
          %458 = dma.vmem_to_smem %s456, 16, [#allocation22], [#allocation23]
        $region60: #{tpu_custom_call.1} parent=11 // pred_fallthru
          _
      $region12: #{tpu_custom_call.1} parent=5 // pred_fallthru
        _
      %p459 = scmp.lt.s32.totalorder %s27, 4
      // Predicated region
      $region61: #{tpu_custom_call.1} parent=5 // pred_check
        %p460 = pneg %p459
      $region62: #{tpu_custom_call.1} parent=5 // pred_check_branch
        %462 = sbr.rel (%p460) target = $region64
      $region63: #{tpu_custom_call.1} parent=5 // pred_region
        _
      $region64: #{tpu_custom_call.1} parent=5 // pred_fallthru
        _
      %p463 = scmp.le.s32.totalorder 1, %s27
      %p464 = scmp.lt.s32.totalorder %s27, 5
      %p465 = pnand %p463, %p464
      %p466 = pneg %p465
      // Predicated region
      $region65: #{tpu_custom_call.1} parent=5 // pred_check
        _
      $region66: #{tpu_custom_call.1} parent=5 // pred_check_branch
        %468 = sbr.rel (%p465) target = $region68
      $region67: #{tpu_custom_call.1} parent=5 // pred_region
        %s469 = ssub.s32 %s27, 1
        // Predicated region
        $region69: #{tpu_custom_call.1} parent=67 // pred_check
          %p470 = pneg %p48
        $region70: #{tpu_custom_call.1} parent=67 // pred_check_branch
          %472 = sbr.rel (%p470) target = $region72
        $region71: #{tpu_custom_call.1} parent=67 // pred_region
          %473 = dma.done [#allocation6], 16
        $region72: #{tpu_custom_call.1} parent=67 // pred_fallthru
          _
        // Predicated region
        $region73: #{tpu_custom_call.1} parent=67 // pred_check
          %p474 = pneg %p69
        $region74: #{tpu_custom_call.1} parent=67 // pred_check_branch
          %476 = sbr.rel (%p474) target = $region76
        $region75: #{tpu_custom_call.1} parent=67 // pred_region
          %477 = dma.done [#allocation4], 512
        $region76: #{tpu_custom_call.1} parent=67 // pred_fallthru
          _
        // Predicated region
        $region77: #{tpu_custom_call.1} parent=67 // pred_check
          %p478 = pneg %p90
        $region78: #{tpu_custom_call.1} parent=67 // pred_check_branch
          %480 = sbr.rel (%p478) target = $region80
        $region79: #{tpu_custom_call.1} parent=67 // pred_region
          %481 = dma.done [#allocation10], 512
        $region80: #{tpu_custom_call.1} parent=67 // pred_fallthru
          _
        // Predicated region
        $region81: #{tpu_custom_call.1} parent=67 // pred_check
          %p482 = pneg %p111
        $region82: #{tpu_custom_call.1} parent=67 // pred_check_branch
          %484 = sbr.rel (%p482) target = $region84
        $region83: #{tpu_custom_call.1} parent=67 // pred_region
          %485 = dma.done [#allocation10], 512
        $region84: #{tpu_custom_call.1} parent=67 // pred_fallthru
          _
        // Predicated region
        $region85: #{tpu_custom_call.1} parent=67 // pred_check
          %p486 = pneg %p132
        $region86: #{tpu_custom_call.1} parent=67 // pred_check_branch
          %488 = sbr.rel (%p486) target = $region88
        $region87: #{tpu_custom_call.1} parent=67 // pred_region
          %489 = dma.done [#allocation13], 512
        $region88: #{tpu_custom_call.1} parent=67 // pred_fallthru
          _
        // Predicated region
        $region89: #{tpu_custom_call.1} parent=67 // pred_check
          %p490 = pneg %p153
        $region90: #{tpu_custom_call.1} parent=67 // pred_check_branch
          %492 = sbr.rel (%p490) target = $region92
        $region91: #{tpu_custom_call.1} parent=67 // pred_region
          %493 = dma.done [#allocation13], 2048
        $region92: #{tpu_custom_call.1} parent=67 // pred_fallthru
          _
        // Predicated region
        $region93: #{tpu_custom_call.1} parent=67 // pred_check
          %p494 = pneg %p174
        $region94: #{tpu_custom_call.1} parent=67 // pred_check_branch
          %496 = sbr.rel (%p494) target = $region96
        $region95: #{tpu_custom_call.1} parent=67 // pred_region
          %497 = dma.done [#allocation16], 2048
        $region96: #{tpu_custom_call.1} parent=67 // pred_fallthru
          _
        // Predicated region
        $region97: #{tpu_custom_call.1} parent=67 // pred_check
          %p498 = pneg %p195
        $region98: #{tpu_custom_call.1} parent=67 // pred_check_branch
          %500 = sbr.rel (%p498) target = $region100
        $region99: #{tpu_custom_call.1} parent=67 // pred_region
          %501 = dma.done [#allocation16], 512
        $region100: #{tpu_custom_call.1} parent=67 // pred_fallthru
          _
        // Predicated region
        $region101: #{tpu_custom_call.1} parent=67 // pred_check
          %p502 = pneg %p216
        $region102: #{tpu_custom_call.1} parent=67 // pred_check_branch
          %504 = sbr.rel (%p502) target = $region104
        $region103: #{tpu_custom_call.1} parent=67 // pred_region
          %505 = dma.done [#allocation7], 48
        $region104: #{tpu_custom_call.1} parent=67 // pred_fallthru
          _
        // Predicated region
        $region105: #{tpu_custom_call.1} parent=67 // pred_check
          %p506 = pneg %p237
        $region106: #{tpu_custom_call.1} parent=67 // pred_check_branch
          %508 = sbr.rel (%p506) target = $region108
        $region107: #{tpu_custom_call.1} parent=67 // pred_region
          %509 = dma.done [#allocation20], 16
        $region108: #{tpu_custom_call.1} parent=67 // pred_fallthru
          _
        // Predicated region
        $region109: #{tpu_custom_call.1} parent=67 // pred_check
          %p510 = pneg %p258
        $region110: #{tpu_custom_call.1} parent=67 // pred_check_branch
          %512 = sbr.rel (%p510) target = $region112
        $region111: #{tpu_custom_call.1} parent=67 // pred_region
          %513 = dma.done [#allocation20], 48
        $region112: #{tpu_custom_call.1} parent=67 // pred_fallthru
          _
        // Predicated region
        $region113: #{tpu_custom_call.1} parent=67 // pred_check
          %p514 = pneg %p279
        $region114: #{tpu_custom_call.1} parent=67 // pred_check_branch
          %516 = sbr.rel (%p514) target = $region116
        $region115: #{tpu_custom_call.1} parent=67 // pred_region
          %517 = dma.done [#allocation23], 16
        $region116: #{tpu_custom_call.1} parent=67 // pred_fallthru
          _
        %518 = sfence
        %p519 = pneg %p48
        %p520 = pneg %p45
        %p521 = pneg %p69
        %p522 = pneg %p66
        %p523 = pneg %p90
        %p524 = pneg %p87
        %p525 = pneg %p111
        %p526 = pneg %p108
        %p527 = pneg %p132
        %p528 = pneg %p129
        %p529 = pneg %p153
        %p530 = pneg %p150
        %p531 = pneg %p174
        %p532 = pneg %p171
        %p533 = pneg %p195
        %p534 = pneg %p192
        %p535 = pneg %p216
        %p536 = pneg %p213
        %p537 = pneg %p237
        %p538 = pneg %p234
        %p539 = pneg %p258
        %p540 = pneg %p255
        %p541 = pneg %p279
        %p542 = pneg %p276
        %p543 = pneg %p300
        %p544 = pneg %p297
        %p545 = scmp.eq.s32.totalorder %s32, 0
        // Predicated region
        $region117: #{tpu_custom_call.1} parent=67 // pred_check
          %p546 = pneg %p545
        $region118: #{tpu_custom_call.1} parent=67 // pred_check_branch
          %548 = sbr.rel (%p546) target = $region120
        $region119: #{tpu_custom_call.1} parent=67 // pred_region
          %v549 = vld [vmem:[#allocation8] sm:$0xff]
          %v550 = vld [vmem:[#allocation8 + $0x8] sm:$0xff]
          %v551 = vld [vmem:[#allocation8 + $0x10] sm:$0xff]
          %v552 = vld [vmem:[#allocation8 + $0x18] sm:$0xff]
          %553 = vst [vmem:[#allocation24] sm:$0xff] %v549
          %554 = vst [vmem:[#allocation24 + $0x8] sm:$0xff] %v550
          %555 = vst [vmem:[#allocation24 + $0x10] sm:$0xff] %v551
          %556 = vst [vmem:[#allocation24 + $0x18] sm:$0xff] %v552
        $region120: #{tpu_custom_call.1} parent=67 // pred_fallthru
          _
        %s557 = sld [smem:[#allocation3 + %s32]]
        %s558 = smul.u32 %s557, 144
        %s559 = sld [smem:[#allocation18 + %s558]]
        %s560 = sadd.s32 %s558, 1
        %s561 = sld [smem:[#allocation18 + %s560]]
        %s562 = sadd.s32 %s558, 2
        %s563 = sld [smem:[#allocation18 + %s562]]
        %s564 = sadd.s32 %s558, 3
        %s565 = sld [smem:[#allocation18 + %s564]]
        %s566 = sadd.s32 %s558, 4
        %s567 = sld [smem:[#allocation18 + %s566]]
        %s568 = sadd.s32 %s558, 5
        %s569 = sld [smem:[#allocation18 + %s568]]
        %s570 = sadd.s32 %s558, 6
        %s571 = sld [smem:[#allocation18 + %s570]]
        %s572 = sadd.s32 %s558, 7
        %s573 = sld [smem:[#allocation18 + %s572]]
        %s574 = sadd.s32 %s558, 8
        %s575 = sld [smem:[#allocation18 + %s574]]
        %s576 = sadd.s32 %s558, 9
        %s577 = sld [smem:[#allocation18 + %s576]]
        %s578 = sadd.s32 %s558, 10
        %s579 = sld [smem:[#allocation18 + %s578]]
        %s580 = sadd.s32 %s558, 11
        %s581 = sld [smem:[#allocation18 + %s580]]
        %s582 = sadd.s32 %s558, 12
        %s583 = sld [smem:[#allocation18 + %s582]]
        %s584 = sadd.s32 %s558, 13
        %s585 = sld [smem:[#allocation18 + %s584]]
        %s586 = sadd.s32 %s558, 14
        %s587 = sld [smem:[#allocation18 + %s586]]
        %s588 = sadd.s32 %s558, 15
        %s589 = sld [smem:[#allocation18 + %s588]]
        %s590 = sadd.s32 %s558, 16
        %s591 = sld [smem:[#allocation18 + %s590]]
        %s592 = sadd.s32 %s558, 17
        %s593 = sld [smem:[#allocation18 + %s592]]
        %s594 = sadd.s32 %s558, 18
        %s595 = sld [smem:[#allocation18 + %s594]]
        %s596 = sadd.s32 %s558, 19
        %s597 = sld [smem:[#allocation18 + %s596]]
        %s598 = sadd.s32 %s558, 20
        %s599 = sld [smem:[#allocation18 + %s598]]
        %s600 = sadd.s32 %s558, 21
        %s601 = sld [smem:[#allocation18 + %s600]]
        %s602 = sadd.s32 %s558, 22
        %s603 = sld [smem:[#allocation18 + %s602]]
        %s604 = sadd.s32 %s558, 23
        %s605 = sld [smem:[#allocation18 + %s604]]
        %s606 = sadd.s32 %s558, 24
        %s607 = sld [smem:[#allocation18 + %s606]]
        %s608 = sadd.s32 %s558, 25
        %s609 = sld [smem:[#allocation18 + %s608]]
        %s610 = sadd.s32 %s558, 26
        %s611 = sld [smem:[#allocation18 + %s610]]
        %s612 = sadd.s32 %s558, 27
        %s613 = sld [smem:[#allocation18 + %s612]]
        %s614 = sadd.s32 %s558, 28
        %s615 = sld [smem:[#allocation18 + %s614]]
        %s616 = sadd.s32 %s558, 29
        %s617 = sld [smem:[#allocation18 + %s616]]
        %s618 = sadd.s32 %s558, 30
        %s619 = sld [smem:[#allocation18 + %s618]]
        %s620 = sadd.s32 %s558, 31
        %s621 = sld [smem:[#allocation18 + %s620]]
        %s622 = sadd.s32 %s558, 32
        %s623 = sld [smem:[#allocation18 + %s622]]
        %s624 = sadd.s32 %s558, 33
        %s625 = sld [smem:[#allocation18 + %s624]]
        %s626 = sadd.s32 %s558, 34
        %s627 = sld [smem:[#allocation18 + %s626]]
        %s628 = sadd.s32 %s558, 35
        %s629 = sld [smem:[#allocation18 + %s628]]
        %s630 = sadd.s32 %s558, 36
        %s631 = sld [smem:[#allocation18 + %s630]]
        %s632 = sadd.s32 %s558, 37
        %s633 = sld [smem:[#allocation18 + %s632]]
        %s634 = sadd.s32 %s558, 38
        %s635 = sld [smem:[#allocation18 + %s634]]
        %s636 = sadd.s32 %s558, 39
        %s637 = sld [smem:[#allocation18 + %s636]]
        %s638 = sadd.s32 %s558, 40
        %s639 = sld [smem:[#allocation18 + %s638]]
        %s640 = sadd.s32 %s558, 41
        %s641 = sld [smem:[#allocation18 + %s640]]
        %s642 = sadd.s32 %s558, 42
        %s643 = sld [smem:[#allocation18 + %s642]]
        %s644 = sadd.s32 %s558, 43
        %s645 = sld [smem:[#allocation18 + %s644]]
        %s646 = sadd.s32 %s558, 44
        %s647 = sld [smem:[#allocation18 + %s646]]
        %s648 = sadd.s32 %s558, 45
        %s649 = sld [smem:[#allocation18 + %s648]]
        %s650 = sadd.s32 %s558, 46
        %s651 = sld [smem:[#allocation18 + %s650]]
        %s652 = sadd.s32 %s558, 47
        %s653 = sld [smem:[#allocation18 + %s652]]
        %s654 = sadd.s32 %s558, 48
        %s655 = sld [smem:[#allocation18 + %s654]]
        %s656 = sadd.s32 %s558, 49
        %s657 = sld [smem:[#allocation18 + %s656]]
        %s658 = sadd.s32 %s558, 50
        %s659 = sld [smem:[#allocation18 + %s658]]
        %s660 = sadd.s32 %s558, 51
        %s661 = sld [smem:[#allocation18 + %s660]]
        %s662 = sadd.s32 %s558, 52
        %s663 = sld [smem:[#allocation18 + %s662]]
        %s664 = sadd.s32 %s558, 53
        %s665 = sld [smem:[#allocation18 + %s664]]
        %s666 = sadd.s32 %s558, 54
        %s667 = sld [smem:[#allocation18 + %s666]]
        %s668 = sadd.s32 %s558, 55
        %s669 = sld [smem:[#allocation18 + %s668]]
        %s670 = sadd.s32 %s558, 56
        %s671 = sld [smem:[#allocation18 + %s670]]
        %s672 = sadd.s32 %s558, 57
        %s673 = sld [smem:[#allocation18 + %s672]]
        %s674 = sadd.s32 %s558, 58
        %s675 = sld [smem:[#allocation18 + %s674]]
        %s676 = sadd.s32 %s558, 59
        %s677 = sld [smem:[#allocation18 + %s676]]
        %s678 = sadd.s32 %s558, 60
        %s679 = sld [smem:[#allocation18 + %s678]]
        %s680 = sadd.s32 %s558, 61
        %s681 = sld [smem:[#allocation18 + %s680]]
        %s682 = sadd.s32 %s558, 62
        %s683 = sld [smem:[#allocation18 + %s682]]
        %s684 = sadd.s32 %s558, 63
        %s685 = sld [smem:[#allocation18 + %s684]]
        %s686 = sadd.s32 %s558, 64
        %s687 = sld [smem:[#allocation18 + %s686]]
        %s688 = sadd.s32 %s558, 65
        %s689 = sld [smem:[#allocation18 + %s688]]
        %s690 = sadd.s32 %s558, 66
        %s691 = sld [smem:[#allocation18 + %s690]]
        %s692 = sadd.s32 %s558, 67
        %s693 = sld [smem:[#allocation18 + %s692]]
        %s694 = sadd.s32 %s558, 68
        %s695 = sld [smem:[#allocation18 + %s694]]
        %s696 = sadd.s32 %s558, 69
        %s697 = sld [smem:[#allocation18 + %s696]]
        %s698 = sadd.s32 %s558, 70
        %s699 = sld [smem:[#allocation18 + %s698]]
        %s700 = sadd.s32 %s558, 71
        %s701 = sld [smem:[#allocation18 + %s700]]
        %s702 = sadd.s32 %s558, 72
        %s703 = sld [smem:[#allocation18 + %s702]]
        %s704 = sadd.s32 %s558, 73
        %s705 = sld [smem:[#allocation18 + %s704]]
        %s706 = sadd.s32 %s558, 74
        %s707 = sld [smem:[#allocation18 + %s706]]
        %s708 = sadd.s32 %s558, 75
        %s709 = sld [smem:[#allocation18 + %s708]]
        %s710 = sadd.s32 %s558, 76
        %s711 = sld [smem:[#allocation18 + %s710]]
        %s712 = sadd.s32 %s558, 77
        %s713 = sld [smem:[#allocation18 + %s712]]
        %s714 = sadd.s32 %s558, 78
        %s715 = sld [smem:[#allocation18 + %s714]]
        %s716 = sadd.s32 %s558, 79
        %s717 = sld [smem:[#allocation18 + %s716]]
        %s718 = sadd.s32 %s558, 80
        %s719 = sld [smem:[#allocation18 + %s718]]
        %s720 = sadd.s32 %s558, 81
        %s721 = sld [smem:[#allocation18 + %s720]]
        %s722 = sadd.s32 %s558, 82
        %s723 = sld [smem:[#allocation18 + %s722]]
        %s724 = sadd.s32 %s558, 83
        %s725 = sld [smem:[#allocation18 + %s724]]
        %s726 = sadd.s32 %s558, 84
        %s727 = sld [smem:[#allocation18 + %s726]]
        %s728 = sadd.s32 %s558, 85
        %s729 = sld [smem:[#allocation18 + %s728]]
        %s730 = sadd.s32 %s558, 86
        %s731 = sld [smem:[#allocation18 + %s730]]
        %s732 = sadd.s32 %s558, 87
        %s733 = sld [smem:[#allocation18 + %s732]]
        %s734 = sadd.s32 %s558, 88
        %s735 = sld [smem:[#allocation18 + %s734]]
        %s736 = sadd.s32 %s558, 89
        %s737 = sld [smem:[#allocation18 + %s736]]
        %s738 = sadd.s32 %s558, 90
        %s739 = sld [smem:[#allocation18 + %s738]]
        %s740 = sadd.s32 %s558, 91
        %s741 = sld [smem:[#allocation18 + %s740]]
        %s742 = sadd.s32 %s558, 92
        %s743 = sld [smem:[#allocation18 + %s742]]
        %s744 = sadd.s32 %s558, 93
        %s745 = sld [smem:[#allocation18 + %s744]]
        %s746 = sadd.s32 %s558, 94
        %s747 = sld [smem:[#allocation18 + %s746]]
        %s748 = sadd.s32 %s558, 95
        %s749 = sld [smem:[#allocation18 + %s748]]
        %s750 = sadd.s32 %s558, 96
        %s751 = sld [smem:[#allocation18 + %s750]]
        %s752 = sadd.s32 %s558, 97
        %s753 = sld [smem:[#allocation18 + %s752]]
        %s754 = sadd.s32 %s558, 98
        %s755 = sld [smem:[#allocation18 + %s754]]
        %s756 = sadd.s32 %s558, 99
        %s757 = sld [smem:[#allocation18 + %s756]]
        %s758 = sadd.s32 %s558, 100
        %s759 = sld [smem:[#allocation18 + %s758]]
        %s760 = sadd.s32 %s558, 101
        %s761 = sld [smem:[#allocation18 + %s760]]
        %s762 = sadd.s32 %s558, 102
        %s763 = sld [smem:[#allocation18 + %s762]]
        %s764 = sadd.s32 %s558, 103
        %s765 = sld [smem:[#allocation18 + %s764]]
        %s766 = sadd.s32 %s558, 104
        %s767 = sld [smem:[#allocation18 + %s766]]
        %s768 = sadd.s32 %s558, 105
        %s769 = sld [smem:[#allocation18 + %s768]]
        %s770 = sadd.s32 %s558, 106
        %s771 = sld [smem:[#allocation18 + %s770]]
        %s772 = sadd.s32 %s558, 107
        %s773 = sld [smem:[#allocation18 + %s772]]
        %s774 = sadd.s32 %s558, 108
        %s775 = sld [smem:[#allocation18 + %s774]]
        %s776 = sadd.s32 %s558, 109
        %s777 = sld [smem:[#allocation18 + %s776]]
        %s778 = sadd.s32 %s558, 110
        %s779 = sld [smem:[#allocation18 + %s778]]
        %s780 = sadd.s32 %s558, 111
        %s781 = sld [smem:[#allocation18 + %s780]]
        %s782 = sadd.s32 %s558, 112
        %s783 = sld [smem:[#allocation18 + %s782]]
        %s784 = sadd.s32 %s558, 113
        %s785 = sld [smem:[#allocation18 + %s784]]
        %s786 = sadd.s32 %s558, 114
        %s787 = sld [smem:[#allocation18 + %s786]]
        %s788 = sadd.s32 %s558, 115
        %s789 = sld [smem:[#allocation18 + %s788]]
        %s790 = sadd.s32 %s558, 116
        %s791 = sld [smem:[#allocation18 + %s790]]
        %s792 = sadd.s32 %s558, 117
        %s793 = sld [smem:[#allocation18 + %s792]]
        %s794 = sadd.s32 %s558, 118
        %s795 = sld [smem:[#allocation18 + %s794]]
        %s796 = sadd.s32 %s558, 119
        %s797 = sld [smem:[#allocation18 + %s796]]
        %s798 = sadd.s32 %s558, 120
        %s799 = sld [smem:[#allocation18 + %s798]]
        %s800 = sadd.s32 %s558, 121
        %s801 = sld [smem:[#allocation18 + %s800]]
        %s802 = sadd.s32 %s558, 122
        %s803 = sld [smem:[#allocation18 + %s802]]
        %s804 = sadd.s32 %s558, 123
        %s805 = sld [smem:[#allocation18 + %s804]]
        %s806 = sadd.s32 %s558, 124
        %s807 = sld [smem:[#allocation18 + %s806]]
        %s808 = sadd.s32 %s558, 125
        %s809 = sld [smem:[#allocation18 + %s808]]
        %s810 = sadd.s32 %s558, 126
        %s811 = sld [smem:[#allocation18 + %s810]]
        %s812 = sadd.s32 %s558, 127
        %s813 = sld [smem:[#allocation18 + %s812]]
        %s814 = sadd.s32 %s558, 128
        %s815 = sld [smem:[#allocation18 + %s814]]
        %s816 = sadd.s32 %s558, 129
        %s817 = sld [smem:[#allocation18 + %s816]]
        %s818 = sadd.s32 %s558, 130
        %s819 = sld [smem:[#allocation18 + %s818]]
        %s820 = sadd.s32 %s558, 131
        %s821 = sld [smem:[#allocation18 + %s820]]
        %s822 = sadd.s32 %s558, 132
        %s823 = sld [smem:[#allocation18 + %s822]]
        %s824 = sadd.s32 %s558, 133
        %s825 = sld [smem:[#allocation18 + %s824]]
        %s826 = sadd.s32 %s558, 134
        %s827 = sld [smem:[#allocation18 + %s826]]
        %s828 = sadd.s32 %s558, 135
        %s829 = sld [smem:[#allocation18 + %s828]]
        %s830 = sadd.s32 %s558, 136
        %s831 = sld [smem:[#allocation18 + %s830]]
        %s832 = sadd.s32 %s558, 137
        %s833 = sld [smem:[#allocation18 + %s832]]
        %s834 = sadd.s32 %s558, 138
        %s835 = sld [smem:[#allocation18 + %s834]]
        %s836 = sadd.s32 %s558, 139
        %s837 = sld [smem:[#allocation18 + %s836]]
        %s838 = sadd.s32 %s558, 140
        %s839 = sld [smem:[#allocation18 + %s838]]
        %s840 = sadd.s32 %s558, 141
        %s841 = sld [smem:[#allocation18 + %s840]]
        %s842 = sadd.s32 %s558, 142
        %s843 = sld [smem:[#allocation18 + %s842]]
        %s844 = sadd.s32 %s558, 143
        %s845 = sld [smem:[#allocation18 + %s844]]
        %s846 = smul.u32 %s557, 8
        %s847 = sld [smem:[#allocation19 + %s846]]
        %s848 = sadd.s32 %s846, 1
        %s849 = sld [smem:[#allocation19 + %s848]]
        %s850 = sadd.s32 %s846, 2
        %s851 = sld [smem:[#allocation19 + %s850]]
        %s852 = sadd.s32 %s846, 3
        %s853 = sld [smem:[#allocation19 + %s852]]
        %s854 = sadd.s32 %s846, 4
        %s855 = sld [smem:[#allocation19 + %s854]]
        %s856 = sadd.s32 %s846, 5
        %s857 = sld [smem:[#allocation19 + %s856]]
        %s858 = sadd.s32 %s846, 6
        %s859 = sld [smem:[#allocation19 + %s858]]
        %s860 = sadd.s32 %s846, 7
        %s861 = sld [smem:[#allocation19 + %s860]]
        %s862 = sld [smem:[#allocation21 + %s558]]
        %s863 = sld [smem:[#allocation21 + %s560]]
        %s864 = sld [smem:[#allocation21 + %s562]]
        %s865 = sld [smem:[#allocation21 + %s564]]
        %s866 = sld [smem:[#allocation21 + %s566]]
        %s867 = sld [smem:[#allocation21 + %s568]]
        %s868 = sld [smem:[#allocation21 + %s570]]
        %s869 = sld [smem:[#allocation21 + %s572]]
        %s870 = sld [smem:[#allocation21 + %s574]]
        %s871 = sld [smem:[#allocation21 + %s576]]
        %s872 = sld [smem:[#allocation21 + %s578]]
        %s873 = sld [smem:[#allocation21 + %s580]]
        %s874 = sld [smem:[#allocation21 + %s582]]
        %s875 = sld [smem:[#allocation21 + %s584]]
        %s876 = sld [smem:[#allocation21 + %s586]]
        %s877 = sld [smem:[#allocation21 + %s588]]
        %s878 = sld [smem:[#allocation21 + %s590]]
        %s879 = sld [smem:[#allocation21 + %s592]]
        %s880 = sld [smem:[#allocation21 + %s594]]
        %s881 = sld [smem:[#allocation21 + %s596]]
        %s882 = sld [smem:[#allocation21 + %s598]]
        %s883 = sld [smem:[#allocation21 + %s600]]
        %s884 = sld [smem:[#allocation21 + %s602]]
        %s885 = sld [smem:[#allocation21 + %s604]]
        %s886 = sld [smem:[#allocation21 + %s606]]
        %s887 = sld [smem:[#allocation21 + %s608]]
        %s888 = sld [smem:[#allocation21 + %s610]]
        %s889 = sld [smem:[#allocation21 + %s612]]
        %s890 = sld [smem:[#allocation21 + %s614]]
        %s891 = sld [smem:[#allocation21 + %s616]]
        %s892 = sld [smem:[#allocation21 + %s618]]
        %s893 = sld [smem:[#allocation21 + %s620]]
        %s894 = sld [smem:[#allocation21 + %s622]]
        %s895 = sld [smem:[#allocation21 + %s624]]
        %s896 = sld [smem:[#allocation21 + %s626]]
        %s897 = sld [smem:[#allocation21 + %s628]]
        %s898 = sld [smem:[#allocation21 + %s630]]
        %s899 = sld [smem:[#allocation21 + %s632]]
        %s900 = sld [smem:[#allocation21 + %s634]]
        %s901 = sld [smem:[#allocation21 + %s636]]
        %s902 = sld [smem:[#allocation21 + %s638]]
        %s903 = sld [smem:[#allocation21 + %s640]]
        %s904 = sld [smem:[#allocation21 + %s642]]
        %s905 = sld [smem:[#allocation21 + %s644]]
        %s906 = sld [smem:[#allocation21 + %s646]]
        %s907 = sld [smem:[#allocation21 + %s648]]
        %s908 = sld [smem:[#allocation21 + %s650]]
        %s909 = sld [smem:[#allocation21 + %s652]]
        %s910 = sld [smem:[#allocation21 + %s654]]
        %s911 = sld [smem:[#allocation21 + %s656]]
        %s912 = sld [smem:[#allocation21 + %s658]]
        %s913 = sld [smem:[#allocation21 + %s660]]
        %s914 = sld [smem:[#allocation21 + %s662]]
        %s915 = sld [smem:[#allocation21 + %s664]]
        %s916 = sld [smem:[#allocation21 + %s666]]
        %s917 = sld [smem:[#allocation21 + %s668]]
        %s918 = sld [smem:[#allocation21 + %s670]]
        %s919 = sld [smem:[#allocation21 + %s672]]
        %s920 = sld [smem:[#allocation21 + %s674]]
        %s921 = sld [smem:[#allocation21 + %s676]]
        %s922 = sld [smem:[#allocation21 + %s678]]
        %s923 = sld [smem:[#allocation21 + %s680]]
        %s924 = sld [smem:[#allocation21 + %s682]]
        %s925 = sld [smem:[#allocation21 + %s684]]
        %s926 = sld [smem:[#allocation21 + %s686]]
        %s927 = sld [smem:[#allocation21 + %s688]]
        %s928 = sld [smem:[#allocation21 + %s690]]
        %s929 = sld [smem:[#allocation21 + %s692]]
        %s930 = sld [smem:[#allocation21 + %s694]]
        %s931 = sld [smem:[#allocation21 + %s696]]
        %s932 = sld [smem:[#allocation21 + %s698]]
        %s933 = sld [smem:[#allocation21 + %s700]]
        %s934 = sld [smem:[#allocation21 + %s702]]
        %s935 = sld [smem:[#allocation21 + %s704]]
        %s936 = sld [smem:[#allocation21 + %s706]]
        %s937 = sld [smem:[#allocation21 + %s708]]
        %s938 = sld [smem:[#allocation21 + %s710]]
        %s939 = sld [smem:[#allocation21 + %s712]]
        %s940 = sld [smem:[#allocation21 + %s714]]
        %s941 = sld [smem:[#allocation21 + %s716]]
        %s942 = sld [smem:[#allocation21 + %s718]]
        %s943 = sld [smem:[#allocation21 + %s720]]
        %s944 = sld [smem:[#allocation21 + %s722]]
        %s945 = sld [smem:[#allocation21 + %s724]]
        %s946 = sld [smem:[#allocation21 + %s726]]
        %s947 = sld [smem:[#allocation21 + %s728]]
        %s948 = sld [smem:[#allocation21 + %s730]]
        %s949 = sld [smem:[#allocation21 + %s732]]
        %s950 = sld [smem:[#allocation21 + %s734]]
        %s951 = sld [smem:[#allocation21 + %s736]]
        %s952 = sld [smem:[#allocation21 + %s738]]
        %s953 = sld [smem:[#allocation21 + %s740]]
        %s954 = sld [smem:[#allocation21 + %s742]]
        %s955 = sld [smem:[#allocation21 + %s744]]
        %s956 = sld [smem:[#allocation21 + %s746]]
        %s957 = sld [smem:[#allocation21 + %s748]]
        %s958 = sld [smem:[#allocation21 + %s750]]
        %s959 = sld [smem:[#allocation21 + %s752]]
        %s960 = sld [smem:[#allocation21 + %s754]]
        %s961 = sld [smem:[#allocation21 + %s756]]
        %s962 = sld [smem:[#allocation21 + %s758]]
        %s963 = sld [smem:[#allocation21 + %s760]]
        %s964 = sld [smem:[#allocation21 + %s762]]
        %s965 = sld [smem:[#allocation21 + %s764]]
        %s966 = sld [smem:[#allocation21 + %s766]]
        %s967 = sld [smem:[#allocation21 + %s768]]
        %s968 = sld [smem:[#allocation21 + %s770]]
        %s969 = sld [smem:[#allocation21 + %s772]]
        %s970 = sld [smem:[#allocation21 + %s774]]
        %s971 = sld [smem:[#allocation21 + %s776]]
        %s972 = sld [smem:[#allocation21 + %s778]]
        %s973 = sld [smem:[#allocation21 + %s780]]
        %s974 = sld [smem:[#allocation21 + %s782]]
        %s975 = sld [smem:[#allocation21 + %s784]]
        %s976 = sld [smem:[#allocation21 + %s786]]
        %s977 = sld [smem:[#allocation21 + %s788]]
        %s978 = sld [smem:[#allocation21 + %s790]]
        %s979 = sld [smem:[#allocation21 + %s792]]
        %s980 = sld [smem:[#allocation21 + %s794]]
        %s981 = sld [smem:[#allocation21 + %s796]]
        %s982 = sld [smem:[#allocation21 + %s798]]
        %s983 = sld [smem:[#allocation21 + %s800]]
        %s984 = sld [smem:[#allocation21 + %s802]]
        %s985 = sld [smem:[#allocation21 + %s804]]
        %s986 = sld [smem:[#allocation21 + %s806]]
        %s987 = sld [smem:[#allocation21 + %s808]]
        %s988 = sld [smem:[#allocation21 + %s810]]
        %s989 = sld [smem:[#allocation21 + %s812]]
        %s990 = sld [smem:[#allocation21 + %s814]]
        %s991 = sld [smem:[#allocation21 + %s816]]
        %s992 = sld [smem:[#allocation21 + %s818]]
        %s993 = sld [smem:[#allocation21 + %s820]]
        %s994 = sld [smem:[#allocation21 + %s822]]
        %s995 = sld [smem:[#allocation21 + %s824]]
        %s996 = sld [smem:[#allocation21 + %s826]]
        %s997 = sld [smem:[#allocation21 + %s828]]
        %s998 = sld [smem:[#allocation21 + %s830]]
        %s999 = sld [smem:[#allocation21 + %s832]]
        %s1000 = sld [smem:[#allocation21 + %s834]]
        %s1001 = sld [smem:[#allocation21 + %s836]]
        %s1002 = sld [smem:[#allocation21 + %s838]]
        %s1003 = sld [smem:[#allocation21 + %s840]]
        %s1004 = sld [smem:[#allocation21 + %s842]]
        %s1005 = sld [smem:[#allocation21 + %s844]]
        %s1006 = smul.u32 %s557, 2
        %s1007 = sld [smem:[#allocation22 + %s1006]]
        %s1008 = sadd.s32 %s1006, 1
        %s1009 = sld [smem:[#allocation22 + %s1008]]
        %v1010 = vlaneseq
        %v1011 = vand.u32 %v1010, 127
        %v1012 = vlaneseq
        %v1013 = vshrl.u32 %v1012, 7
        %v1014 = vadd.s32 %v1013, 8
        %vm1015 = vcmp.ne.s32.totalorder %v1011, 0
        %vm1016 = vcmp.ne.s32.totalorder %v1011, 63
        %vm1017 = vcmp.ne.s32.totalorder %v1011, 64
        %vm1018 = vmand %vm1015, %vm1017
        %vm1019 = vcmp.ne.s32.totalorder %v1011, 127
        %vm1020 = vmand %vm1016, %vm1019
        %v1021 = vsel %vm1018, 1, 0
        %v1022 = vcvt.s32.f32 %v1021
        %v1023 = vsel %vm1020, 1, 0
        %v1024 = vcvt.s32.f32 %v1023
        %vm1025 = vcmp.ne.s32.totalorder %v1013, 0
        %vm1026 = vcmp.ne.s32.totalorder %v1014, 0
        %v1027 = vsel %vm1025, 1, 0
        %v1028 = vsel %vm1026, 1, 0
        %v1029 = vcvt.s32.f32 %v1027
        %v1030 = vcvt.s32.f32 %v1028
        %vm1031 = vcmp.ne.s32.totalorder %v1013, 15
        %vm1032 = vcmp.ne.s32.totalorder %v1014, 15
        %v1033 = vsel %vm1031, 1, 0
        %v1034 = vsel %vm1032, 1, 0
        %v1035 = vcvt.s32.f32 %v1033
        %v1036 = vcvt.s32.f32 %v1034
        %v1037 = vld [vmem:[#allocation24] sm:$0xff]
        %v1038 = vld [vmem:[#allocation24 + $0x8] sm:$0xff]
        %v1039 = vld [vmem:[#allocation24 + $0x10] sm:$0xff]
        %v1040 = vld [vmem:[#allocation24 + $0x18] sm:$0xff]
        %1041 = vrot.lane.b32.xlu0 %v1037, 1
        %v1042 = vpop.permute.xlu0 %1041
        %1043 = vrot.lane.b32.xlu0 %v1038, 1
        %v1044 = vpop.permute.xlu0 %1043
        %v1045 = vmul.f32 %v1042, %v1022
        %v1046 = vmul.f32 %v1044, %v1022
        %1047 = vrot.lane.b32.xlu0 %v1037, 127
        %v1048 = vpop.permute.xlu0 %1047
        %1049 = vrot.lane.b32.xlu0 %v1038, 127
        %v1050 = vpop.permute.xlu0 %1049
        %v1051 = vmul.f32 %v1048, %v1024
        %v1052 = vmul.f32 %v1050, %v1024
        %v1053 = vrot.slane %v1045, 7
        %v1054 = vrot.slane %v1046, 7
        %vm1055 = vcmp.lt.s32.totalorder %v1013, 1
        %v1056 = vsel %vm1055, %v1053, %v1054
        %v1057 = vsel %vm1055, %v1054, %v1053
        %v1058 = vmul.f32 %v1057, %v1029
        %v1059 = vmul.f32 %v1056, %v1030
        %v1060 = vrot.slane %v1045, 1
        %v1061 = vrot.slane %v1046, 1
        %vm1062 = vcmp.lt.s32.totalorder %v1013, 7
        %v1063 = vsel %vm1062, %v1060, %v1061
        %v1064 = vsel %vm1062, %v1061, %v1060
        %v1065 = vmul.f32 %v1063, %v1035
        %v1066 = vmul.f32 %v1064, %v1036
        %v1067 = vstv %s559
        %v1068 = vmul.f32 %v1058, %v1067
        %v1069 = vmul.f32 %v1059, %v1067
        %v1070 = vstv %s561
        %v1071 = vmul.f32 %v1058, %v1070
        %v1072 = vmul.f32 %v1059, %v1070
        %v1073 = vstv %s563
        %v1074 = vmul.f32 %v1058, %v1073
        %v1075 = vmul.f32 %v1059, %v1073
        %v1076 = vstv %s565
        %v1077 = vmul.f32 %v1058, %v1076
        %v1078 = vmul.f32 %v1059, %v1076
        %v1079 = vstv %s567
        %v1080 = vmul.f32 %v1058, %v1079
        %v1081 = vmul.f32 %v1059, %v1079
        %v1082 = vstv %s569
        %v1083 = vmul.f32 %v1058, %v1082
        %v1084 = vmul.f32 %v1059, %v1082
        %v1085 = vstv %s571
        %v1086 = vmul.f32 %v1058, %v1085
        %v1087 = vmul.f32 %v1059, %v1085
        %v1088 = vstv %s573
        %v1089 = vmul.f32 %v1058, %v1088
        %v1090 = vmul.f32 %v1059, %v1088
        %v1091 = vstv %s655
        %v1092 = vmul.f32 %v1045, %v1091
        %v1093 = vmul.f32 %v1046, %v1091
        %v1094 = vadd.f32 %v1068, %v1092
        %v1095 = vadd.f32 %v1069, %v1093
        %v1096 = vstv %s657
        %v1097 = vmul.f32 %v1045, %v1096
        %v1098 = vmul.f32 %v1046, %v1096
        %v1099 = vadd.f32 %v1071, %v1097
        %v1100 = vadd.f32 %v1072, %v1098
        %v1101 = vstv %s659
        %v1102 = vmul.f32 %v1045, %v1101
        %v1103 = vmul.f32 %v1046, %v1101
        %v1104 = vadd.f32 %v1074, %v1102
        %v1105 = vadd.f32 %v1075, %v1103
        %v1106 = vstv %s661
        %v1107 = vmul.f32 %v1045, %v1106
        %v1108 = vmul.f32 %v1046, %v1106
        %v1109 = vadd.f32 %v1077, %v1107
        %v1110 = vadd.f32 %v1078, %v1108
        %v1111 = vstv %s663
        %v1112 = vmul.f32 %v1045, %v1111
        %v1113 = vmul.f32 %v1046, %v1111
        %v1114 = vadd.f32 %v1080, %v1112
        %v1115 = vadd.f32 %v1081, %v1113
        %v1116 = vstv %s665
        %v1117 = vmul.f32 %v1045, %v1116
        %v1118 = vmul.f32 %v1046, %v1116
        %v1119 = vadd.f32 %v1083, %v1117
        %v1120 = vadd.f32 %v1084, %v1118
        %v1121 = vstv %s667
        %v1122 = vmul.f32 %v1045, %v1121
        %v1123 = vmul.f32 %v1046, %v1121
        %v1124 = vadd.f32 %v1086, %v1122
        %v1125 = vadd.f32 %v1087, %v1123
        %v1126 = vstv %s669
        %v1127 = vmul.f32 %v1045, %v1126
        %v1128 = vmul.f32 %v1046, %v1126
        %v1129 = vadd.f32 %v1089, %v1127
        %v1130 = vadd.f32 %v1090, %v1128
        %v1131 = vstv %s751
        %v1132 = vmul.f32 %v1065, %v1131
        %v1133 = vmul.f32 %v1066, %v1131
        %v1134 = vadd.f32 %v1094, %v1132
        %v1135 = vadd.f32 %v1095, %v1133
        %v1136 = vstv %s753
        %v1137 = vmul.f32 %v1065, %v1136
        %v1138 = vmul.f32 %v1066, %v1136
        %v1139 = vadd.f32 %v1099, %v1137
        %v1140 = vadd.f32 %v1100, %v1138
        %v1141 = vstv %s755
        %v1142 = vmul.f32 %v1065, %v1141
        %v1143 = vmul.f32 %v1066, %v1141
        %v1144 = vadd.f32 %v1104, %v1142
        %v1145 = vadd.f32 %v1105, %v1143
        %v1146 = vstv %s757
        %v1147 = vmul.f32 %v1065, %v1146
        %v1148 = vmul.f32 %v1066, %v1146
        %v1149 = vadd.f32 %v1109, %v1147
        %v1150 = vadd.f32 %v1110, %v1148
        %v1151 = vstv %s759
        %v1152 = vmul.f32 %v1065, %v1151
        %v1153 = vmul.f32 %v1066, %v1151
        %v1154 = vadd.f32 %v1114, %v1152
        %v1155 = vadd.f32 %v1115, %v1153
        %v1156 = vstv %s761
        %v1157 = vmul.f32 %v1065, %v1156
        %v1158 = vmul.f32 %v1066, %v1156
        %v1159 = vadd.f32 %v1119, %v1157
        %v1160 = vadd.f32 %v1120, %v1158
        %v1161 = vstv %s763
        %v1162 = vmul.f32 %v1065, %v1161
        %v1163 = vmul.f32 %v1066, %v1161
        %v1164 = vadd.f32 %v1124, %v1162
        %v1165 = vadd.f32 %v1125, %v1163
        %v1166 = vstv %s765
        %v1167 = vmul.f32 %v1065, %v1166
        %v1168 = vmul.f32 %v1066, %v1166
        %v1169 = vadd.f32 %v1129, %v1167
        %v1170 = vadd.f32 %v1130, %v1168
        %v1171 = vrot.slane %v1037, 7
        %v1172 = vrot.slane %v1038, 7
        %v1173 = vsel %vm1055, %v1171, %v1172
        %v1174 = vsel %vm1055, %v1172, %v1171
        %v1175 = vmul.f32 %v1174, %v1029
        %v1176 = vmul.f32 %v1173, %v1030
        %v1177 = vrot.slane %v1037, 1
        %v1178 = vrot.slane %v1038, 1
        %v1179 = vsel %vm1062, %v1177, %v1178
        %v1180 = vsel %vm1062, %v1178, %v1177
        %v1181 = vmul.f32 %v1179, %v1035
        %v1182 = vmul.f32 %v1180, %v1036
        %v1183 = vstv %s591
        %v1184 = vmul.f32 %v1175, %v1183
        %v1185 = vmul.f32 %v1176, %v1183
        %v1186 = vadd.f32 %v1134, %v1184
        %v1187 = vadd.f32 %v1135, %v1185
        %v1188 = vstv %s593
        %v1189 = vmul.f32 %v1175, %v1188
        %v1190 = vmul.f32 %v1176, %v1188
        %v1191 = vadd.f32 %v1139, %v1189
        %v1192 = vadd.f32 %v1140, %v1190
        %v1193 = vstv %s595
        %v1194 = vmul.f32 %v1175, %v1193
        %v1195 = vmul.f32 %v1176, %v1193
        %v1196 = vadd.f32 %v1144, %v1194
        %v1197 = vadd.f32 %v1145, %v1195
        %v1198 = vstv %s597
        %v1199 = vmul.f32 %v1175, %v1198
        %v1200 = vmul.f32 %v1176, %v1198
        %v1201 = vadd.f32 %v1149, %v1199
        %v1202 = vadd.f32 %v1150, %v1200
        %v1203 = vstv %s599
        %v1204 = vmul.f32 %v1175, %v1203
        %v1205 = vmul.f32 %v1176, %v1203
        %v1206 = vadd.f32 %v1154, %v1204
        %v1207 = vadd.f32 %v1155, %v1205
        %v1208 = vstv %s601
        %v1209 = vmul.f32 %v1175, %v1208
        %v1210 = vmul.f32 %v1176, %v1208
        %v1211 = vadd.f32 %v1159, %v1209
        %v1212 = vadd.f32 %v1160, %v1210
        %v1213 = vstv %s603
        %v1214 = vmul.f32 %v1175, %v1213
        %v1215 = vmul.f32 %v1176, %v1213
        %v1216 = vadd.f32 %v1164, %v1214
        %v1217 = vadd.f32 %v1165, %v1215
        %v1218 = vstv %s605
        %v1219 = vmul.f32 %v1175, %v1218
        %v1220 = vmul.f32 %v1176, %v1218
        %v1221 = vadd.f32 %v1169, %v1219
        %v1222 = vadd.f32 %v1170, %v1220
        %v1223 = vstv %s687
        %v1224 = vmul.f32 %v1037, %v1223
        %v1225 = vmul.f32 %v1038, %v1223
        %v1226 = vadd.f32 %v1186, %v1224
        %v1227 = vadd.f32 %v1187, %v1225
        %v1228 = vstv %s689
        %v1229 = vmul.f32 %v1037, %v1228
        %v1230 = vmul.f32 %v1038, %v1228
        %v1231 = vadd.f32 %v1191, %v1229
        %v1232 = vadd.f32 %v1192, %v1230
        %v1233 = vstv %s691
        %v1234 = vmul.f32 %v1037, %v1233
        %v1235 = vmul.f32 %v1038, %v1233
        %v1236 = vadd.f32 %v1196, %v1234
        %v1237 = vadd.f32 %v1197, %v1235
        %v1238 = vstv %s693
        %v1239 = vmul.f32 %v1037, %v1238
        %v1240 = vmul.f32 %v1038, %v1238
        %v1241 = vadd.f32 %v1201, %v1239
        %v1242 = vadd.f32 %v1202, %v1240
        %v1243 = vstv %s695
        %v1244 = vmul.f32 %v1037, %v1243
        %v1245 = vmul.f32 %v1038, %v1243
        %v1246 = vadd.f32 %v1206, %v1244
        %v1247 = vadd.f32 %v1207, %v1245
        %v1248 = vstv %s697
        %v1249 = vmul.f32 %v1037, %v1248
        %v1250 = vmul.f32 %v1038, %v1248
        %v1251 = vadd.f32 %v1211, %v1249
        %v1252 = vadd.f32 %v1212, %v1250
        %v1253 = vstv %s699
        %v1254 = vmul.f32 %v1037, %v1253
        %v1255 = vmul.f32 %v1038, %v1253
        %v1256 = vadd.f32 %v1216, %v1254
        %v1257 = vadd.f32 %v1217, %v1255
        %v1258 = vstv %s701
        %v1259 = vmul.f32 %v1037, %v1258
        %v1260 = vmul.f32 %v1038, %v1258
        %v1261 = vadd.f32 %v1221, %v1259
        %v1262 = vadd.f32 %v1222, %v1260
        %v1263 = vstv %s783
        %v1264 = vmul.f32 %v1181, %v1263
        %v1265 = vmul.f32 %v1182, %v1263
        %v1266 = vadd.f32 %v1226, %v1264
        %v1267 = vadd.f32 %v1227, %v1265
        %v1268 = vstv %s785
        %v1269 = vmul.f32 %v1181, %v1268
        %v1270 = vmul.f32 %v1182, %v1268
        %v1271 = vadd.f32 %v1231, %v1269
        %v1272 = vadd.f32 %v1232, %v1270
        %v1273 = vstv %s787
        %v1274 = vmul.f32 %v1181, %v1273
        %v1275 = vmul.f32 %v1182, %v1273
        %v1276 = vadd.f32 %v1236, %v1274
        %v1277 = vadd.f32 %v1237, %v1275
        %v1278 = vstv %s789
        %v1279 = vmul.f32 %v1181, %v1278
        %v1280 = vmul.f32 %v1182, %v1278
        %v1281 = vadd.f32 %v1241, %v1279
        %v1282 = vadd.f32 %v1242, %v1280
        %v1283 = vstv %s791
        %v1284 = vmul.f32 %v1181, %v1283
        %v1285 = vmul.f32 %v1182, %v1283
        %v1286 = vadd.f32 %v1246, %v1284
        %v1287 = vadd.f32 %v1247, %v1285
        %v1288 = vstv %s793
        %v1289 = vmul.f32 %v1181, %v1288
        %v1290 = vmul.f32 %v1182, %v1288
        %v1291 = vadd.f32 %v1251, %v1289
        %v1292 = vadd.f32 %v1252, %v1290
        %v1293 = vstv %s795
        %v1294 = vmul.f32 %v1181, %v1293
        %v1295 = vmul.f32 %v1182, %v1293
        %v1296 = vadd.f32 %v1256, %v1294
        %v1297 = vadd.f32 %v1257, %v1295
        %v1298 = vstv %s797
        %v1299 = vmul.f32 %v1181, %v1298
        %v1300 = vmul.f32 %v1182, %v1298
        %v1301 = vadd.f32 %v1261, %v1299
        %v1302 = vadd.f32 %v1262, %v1300
        %v1303 = vrot.slane %v1051, 7
        %v1304 = vrot.slane %v1052, 7
        %v1305 = vsel %vm1055, %v1303, %v1304
        %v1306 = vsel %vm1055, %v1304, %v1303
        %v1307 = vmul.f32 %v1306, %v1029
        %v1308 = vmul.f32 %v1305, %v1030
        %v1309 = vrot.slane %v1051, 1
        %v1310 = vrot.slane %v1052, 1
        %v1311 = vsel %vm1062, %v1309, %v1310
        %v1312 = vsel %vm1062, %v1310, %v1309
        %v1313 = vmul.f32 %v1311, %v1035
        %v1314 = vmul.f32 %v1312, %v1036
        %v1315 = vstv %s623
        %v1316 = vmul.f32 %v1307, %v1315
        %v1317 = vmul.f32 %v1308, %v1315
        %v1318 = vadd.f32 %v1266, %v1316
        %v1319 = vadd.f32 %v1267, %v1317
        %v1320 = vstv %s625
        %v1321 = vmul.f32 %v1307, %v1320
        %v1322 = vmul.f32 %v1308, %v1320
        %v1323 = vadd.f32 %v1271, %v1321
        %v1324 = vadd.f32 %v1272, %v1322
        %v1325 = vstv %s627
        %v1326 = vmul.f32 %v1307, %v1325
        %v1327 = vmul.f32 %v1308, %v1325
        %v1328 = vadd.f32 %v1276, %v1326
        %v1329 = vadd.f32 %v1277, %v1327
        %v1330 = vstv %s629
        %v1331 = vmul.f32 %v1307, %v1330
        %v1332 = vmul.f32 %v1308, %v1330
        %v1333 = vadd.f32 %v1281, %v1331
        %v1334 = vadd.f32 %v1282, %v1332
        %v1335 = vstv %s631
        %v1336 = vmul.f32 %v1307, %v1335
        %v1337 = vmul.f32 %v1308, %v1335
        %v1338 = vadd.f32 %v1286, %v1336
        %v1339 = vadd.f32 %v1287, %v1337
        %v1340 = vstv %s633
        %v1341 = vmul.f32 %v1307, %v1340
        %v1342 = vmul.f32 %v1308, %v1340
        %v1343 = vadd.f32 %v1291, %v1341
        %v1344 = vadd.f32 %v1292, %v1342
        %v1345 = vstv %s635
        %v1346 = vmul.f32 %v1307, %v1345
        %v1347 = vmul.f32 %v1308, %v1345
        %v1348 = vadd.f32 %v1296, %v1346
        %v1349 = vadd.f32 %v1297, %v1347
        %v1350 = vstv %s637
        %v1351 = vmul.f32 %v1307, %v1350
        %v1352 = vmul.f32 %v1308, %v1350
        %v1353 = vadd.f32 %v1301, %v1351
        %v1354 = vadd.f32 %v1302, %v1352
        %v1355 = vstv %s719
        %v1356 = vmul.f32 %v1051, %v1355
        %v1357 = vmul.f32 %v1052, %v1355
        %v1358 = vadd.f32 %v1318, %v1356
        %v1359 = vadd.f32 %v1319, %v1357
        %v1360 = vstv %s721
        %v1361 = vmul.f32 %v1051, %v1360
        %v1362 = vmul.f32 %v1052, %v1360
        %v1363 = vadd.f32 %v1323, %v1361
        %v1364 = vadd.f32 %v1324, %v1362
        %v1365 = vstv %s723
        %v1366 = vmul.f32 %v1051, %v1365
        %v1367 = vmul.f32 %v1052, %v1365
        %v1368 = vadd.f32 %v1328, %v1366
        %v1369 = vadd.f32 %v1329, %v1367
        %v1370 = vstv %s725
        %v1371 = vmul.f32 %v1051, %v1370
        %v1372 = vmul.f32 %v1052, %v1370
        %v1373 = vadd.f32 %v1333, %v1371
        %v1374 = vadd.f32 %v1334, %v1372
        %v1375 = vstv %s727
        %v1376 = vmul.f32 %v1051, %v1375
        %v1377 = vmul.f32 %v1052, %v1375
        %v1378 = vadd.f32 %v1338, %v1376
        %v1379 = vadd.f32 %v1339, %v1377
        %v1380 = vstv %s729
        %v1381 = vmul.f32 %v1051, %v1380
        %v1382 = vmul.f32 %v1052, %v1380
        %v1383 = vadd.f32 %v1343, %v1381
        %v1384 = vadd.f32 %v1344, %v1382
        %v1385 = vstv %s731
        %v1386 = vmul.f32 %v1051, %v1385
        %v1387 = vmul.f32 %v1052, %v1385
        %v1388 = vadd.f32 %v1348, %v1386
        %v1389 = vadd.f32 %v1349, %v1387
        %v1390 = vstv %s733
        %v1391 = vmul.f32 %v1051, %v1390
        %v1392 = vmul.f32 %v1052, %v1390
        %v1393 = vadd.f32 %v1353, %v1391
        %v1394 = vadd.f32 %v1354, %v1392
        %v1395 = vstv %s815
        %v1396 = vmul.f32 %v1313, %v1395
        %v1397 = vmul.f32 %v1314, %v1395
        %v1398 = vadd.f32 %v1358, %v1396
        %v1399 = vadd.f32 %v1359, %v1397
        %v1400 = vstv %s817
        %v1401 = vmul.f32 %v1313, %v1400
        %v1402 = vmul.f32 %v1314, %v1400
        %v1403 = vadd.f32 %v1363, %v1401
        %v1404 = vadd.f32 %v1364, %v1402
        %v1405 = vstv %s819
        %v1406 = vmul.f32 %v1313, %v1405
        %v1407 = vmul.f32 %v1314, %v1405
        %v1408 = vadd.f32 %v1368, %v1406
        %v1409 = vadd.f32 %v1369, %v1407
        %v1410 = vstv %s821
        %v1411 = vmul.f32 %v1313, %v1410
        %v1412 = vmul.f32 %v1314, %v1410
        %v1413 = vadd.f32 %v1373, %v1411
        %v1414 = vadd.f32 %v1374, %v1412
        %v1415 = vstv %s823
        %v1416 = vmul.f32 %v1313, %v1415
        %v1417 = vmul.f32 %v1314, %v1415
        %v1418 = vadd.f32 %v1378, %v1416
        %v1419 = vadd.f32 %v1379, %v1417
        %v1420 = vstv %s825
        %v1421 = vmul.f32 %v1313, %v1420
        %v1422 = vmul.f32 %v1314, %v1420
        %v1423 = vadd.f32 %v1383, %v1421
        %v1424 = vadd.f32 %v1384, %v1422
        %v1425 = vstv %s827
        %v1426 = vmul.f32 %v1313, %v1425
        %v1427 = vmul.f32 %v1314, %v1425
        %v1428 = vadd.f32 %v1388, %v1426
        %v1429 = vadd.f32 %v1389, %v1427
        %v1430 = vstv %s829
        %v1431 = vmul.f32 %v1313, %v1430
        %v1432 = vmul.f32 %v1314, %v1430
        %v1433 = vadd.f32 %v1393, %v1431
        %v1434 = vadd.f32 %v1394, %v1432
        %1435 = vrot.lane.b32.xlu0 %v1039, 1
        %v1436 = vpop.permute.xlu0 %1435
        %1437 = vrot.lane.b32.xlu0 %v1040, 1
        %v1438 = vpop.permute.xlu0 %1437
        %v1439 = vmul.f32 %v1436, %v1022
        %v1440 = vmul.f32 %v1438, %v1022
        %1441 = vrot.lane.b32.xlu0 %v1039, 127
        %v1442 = vpop.permute.xlu0 %1441
        %1443 = vrot.lane.b32.xlu0 %v1040, 127
        %v1444 = vpop.permute.xlu0 %1443
        %v1445 = vmul.f32 %v1442, %v1024
        %v1446 = vmul.f32 %v1444, %v1024
        %v1447 = vrot.slane %v1439, 7
        %v1448 = vrot.slane %v1440, 7
        %v1449 = vsel %vm1055, %v1447, %v1448
        %v1450 = vsel %vm1055, %v1448, %v1447
        %v1451 = vmul.f32 %v1450, %v1029
        %v1452 = vmul.f32 %v1449, %v1030
        %v1453 = vrot.slane %v1439, 1
        %v1454 = vrot.slane %v1440, 1
        %v1455 = vsel %vm1062, %v1453, %v1454
        %v1456 = vsel %vm1062, %v1454, %v1453
        %v1457 = vmul.f32 %v1455, %v1035
        %v1458 = vmul.f32 %v1456, %v1036
        %v1459 = vstv %s575
        %v1460 = vmul.f32 %v1451, %v1459
        %v1461 = vmul.f32 %v1452, %v1459
        %v1462 = vadd.f32 %v1398, %v1460
        %v1463 = vadd.f32 %v1399, %v1461
        %v1464 = vstv %s577
        %v1465 = vmul.f32 %v1451, %v1464
        %v1466 = vmul.f32 %v1452, %v1464
        %v1467 = vadd.f32 %v1403, %v1465
        %v1468 = vadd.f32 %v1404, %v1466
        %v1469 = vstv %s579
        %v1470 = vmul.f32 %v1451, %v1469
        %v1471 = vmul.f32 %v1452, %v1469
        %v1472 = vadd.f32 %v1408, %v1470
        %v1473 = vadd.f32 %v1409, %v1471
        %v1474 = vstv %s581
        %v1475 = vmul.f32 %v1451, %v1474
        %v1476 = vmul.f32 %v1452, %v1474
        %v1477 = vadd.f32 %v1413, %v1475
        %v1478 = vadd.f32 %v1414, %v1476
        %v1479 = vstv %s583
        %v1480 = vmul.f32 %v1451, %v1479
        %v1481 = vmul.f32 %v1452, %v1479
        %v1482 = vadd.f32 %v1418, %v1480
        %v1483 = vadd.f32 %v1419, %v1481
        %v1484 = vstv %s585
        %v1485 = vmul.f32 %v1451, %v1484
        %v1486 = vmul.f32 %v1452, %v1484
        %v1487 = vadd.f32 %v1423, %v1485
        %v1488 = vadd.f32 %v1424, %v1486
        %v1489 = vstv %s587
        %v1490 = vmul.f32 %v1451, %v1489
        %v1491 = vmul.f32 %v1452, %v1489
        %v1492 = vadd.f32 %v1428, %v1490
        %v1493 = vadd.f32 %v1429, %v1491
        %v1494 = vstv %s589
        %v1495 = vmul.f32 %v1451, %v1494
        %v1496 = vmul.f32 %v1452, %v1494
        %v1497 = vadd.f32 %v1433, %v1495
        %v1498 = vadd.f32 %v1434, %v1496
        %v1499 = vstv %s671
        %v1500 = vmul.f32 %v1439, %v1499
        %v1501 = vmul.f32 %v1440, %v1499
        %v1502 = vadd.f32 %v1462, %v1500
        %v1503 = vadd.f32 %v1463, %v1501
        %v1504 = vstv %s673
        %v1505 = vmul.f32 %v1439, %v1504
        %v1506 = vmul.f32 %v1440, %v1504
        %v1507 = vadd.f32 %v1467, %v1505
        %v1508 = vadd.f32 %v1468, %v1506
        %v1509 = vstv %s675
        %v1510 = vmul.f32 %v1439, %v1509
        %v1511 = vmul.f32 %v1440, %v1509
        %v1512 = vadd.f32 %v1472, %v1510
        %v1513 = vadd.f32 %v1473, %v1511
        %v1514 = vstv %s677
        %v1515 = vmul.f32 %v1439, %v1514
        %v1516 = vmul.f32 %v1440, %v1514
        %v1517 = vadd.f32 %v1477, %v1515
        %v1518 = vadd.f32 %v1478, %v1516
        %v1519 = vstv %s679
        %v1520 = vmul.f32 %v1439, %v1519
        %v1521 = vmul.f32 %v1440, %v1519
        %v1522 = vadd.f32 %v1482, %v1520
        %v1523 = vadd.f32 %v1483, %v1521
        %v1524 = vstv %s681
        %v1525 = vmul.f32 %v1439, %v1524
        %v1526 = vmul.f32 %v1440, %v1524
        %v1527 = vadd.f32 %v1487, %v1525
        %v1528 = vadd.f32 %v1488, %v1526
        %v1529 = vstv %s683
        %v1530 = vmul.f32 %v1439, %v1529
        %v1531 = vmul.f32 %v1440, %v1529
        %v1532 = vadd.f32 %v1492, %v1530
        %v1533 = vadd.f32 %v1493, %v1531
        %v1534 = vstv %s685
        %v1535 = vmul.f32 %v1439, %v1534
        %v1536 = vmul.f32 %v1440, %v1534
        %v1537 = vadd.f32 %v1497, %v1535
        %v1538 = vadd.f32 %v1498, %v1536
        %v1539 = vstv %s767
        %v1540 = vmul.f32 %v1457, %v1539
        %v1541 = vmul.f32 %v1458, %v1539
        %v1542 = vadd.f32 %v1502, %v1540
        %v1543 = vadd.f32 %v1503, %v1541
        %v1544 = vstv %s769
        %v1545 = vmul.f32 %v1457, %v1544
        %v1546 = vmul.f32 %v1458, %v1544
        %v1547 = vadd.f32 %v1507, %v1545
        %v1548 = vadd.f32 %v1508, %v1546
        %v1549 = vstv %s771
        %v1550 = vmul.f32 %v1457, %v1549
        %v1551 = vmul.f32 %v1458, %v1549
        %v1552 = vadd.f32 %v1512, %v1550
        %v1553 = vadd.f32 %v1513, %v1551
        %v1554 = vstv %s773
        %v1555 = vmul.f32 %v1457, %v1554
        %v1556 = vmul.f32 %v1458, %v1554
        %v1557 = vadd.f32 %v1517, %v1555
        %v1558 = vadd.f32 %v1518, %v1556
        %v1559 = vstv %s775
        %v1560 = vmul.f32 %v1457, %v1559
        %v1561 = vmul.f32 %v1458, %v1559
        %v1562 = vadd.f32 %v1522, %v1560
        %v1563 = vadd.f32 %v1523, %v1561
        %v1564 = vstv %s777
        %v1565 = vmul.f32 %v1457, %v1564
        %v1566 = vmul.f32 %v1458, %v1564
        %v1567 = vadd.f32 %v1527, %v1565
        %v1568 = vadd.f32 %v1528, %v1566
        %v1569 = vstv %s779
        %v1570 = vmul.f32 %v1457, %v1569
        %v1571 = vmul.f32 %v1458, %v1569
        %v1572 = vadd.f32 %v1532, %v1570
        %v1573 = vadd.f32 %v1533, %v1571
        %v1574 = vstv %s781
        %v1575 = vmul.f32 %v1457, %v1574
        %v1576 = vmul.f32 %v1458, %v1574
        %v1577 = vadd.f32 %v1537, %v1575
        %v1578 = vadd.f32 %v1538, %v1576
        %v1579 = vrot.slane %v1039, 7
        %v1580 = vrot.slane %v1040, 7
        %v1581 = vsel %vm1055, %v1579, %v1580
        %v1582 = vsel %vm1055, %v1580, %v1579
        %v1583 = vmul.f32 %v1582, %v1029
        %v1584 = vmul.f32 %v1581, %v1030
        %v1585 = vrot.slane %v1039, 1
        %v1586 = vrot.slane %v1040, 1
        %v1587 = vsel %vm1062, %v1585, %v1586
        %v1588 = vsel %vm1062, %v1586, %v1585
        %v1589 = vmul.f32 %v1587, %v1035
        %v1590 = vmul.f32 %v1588, %v1036
        %v1591 = vstv %s607
        %v1592 = vmul.f32 %v1583, %v1591
        %v1593 = vmul.f32 %v1584, %v1591
        %v1594 = vadd.f32 %v1542, %v1592
        %v1595 = vadd.f32 %v1543, %v1593
        %v1596 = vstv %s609
        %v1597 = vmul.f32 %v1583, %v1596
        %v1598 = vmul.f32 %v1584, %v1596
        %v1599 = vadd.f32 %v1547, %v1597
        %v1600 = vadd.f32 %v1548, %v1598
        %v1601 = vstv %s611
        %v1602 = vmul.f32 %v1583, %v1601
        %v1603 = vmul.f32 %v1584, %v1601
        %v1604 = vadd.f32 %v1552, %v1602
        %v1605 = vadd.f32 %v1553, %v1603
        %v1606 = vstv %s613
        %v1607 = vmul.f32 %v1583, %v1606
        %v1608 = vmul.f32 %v1584, %v1606
        %v1609 = vadd.f32 %v1557, %v1607
        %v1610 = vadd.f32 %v1558, %v1608
        %v1611 = vstv %s615
        %v1612 = vmul.f32 %v1583, %v1611
        %v1613 = vmul.f32 %v1584, %v1611
        %v1614 = vadd.f32 %v1562, %v1612
        %v1615 = vadd.f32 %v1563, %v1613
        %v1616 = vstv %s617
        %v1617 = vmul.f32 %v1583, %v1616
        %v1618 = vmul.f32 %v1584, %v1616
        %v1619 = vadd.f32 %v1567, %v1617
        %v1620 = vadd.f32 %v1568, %v1618
        %v1621 = vstv %s619
        %v1622 = vmul.f32 %v1583, %v1621
        %v1623 = vmul.f32 %v1584, %v1621
        %v1624 = vadd.f32 %v1572, %v1622
        %v1625 = vadd.f32 %v1573, %v1623
        %v1626 = vstv %s621
        %v1627 = vmul.f32 %v1583, %v1626
        %v1628 = vmul.f32 %v1584, %v1626
        %v1629 = vadd.f32 %v1577, %v1627
        %v1630 = vadd.f32 %v1578, %v1628
        %v1631 = vstv %s703
        %v1632 = vmul.f32 %v1039, %v1631
        %v1633 = vmul.f32 %v1040, %v1631
        %v1634 = vadd.f32 %v1594, %v1632
        %v1635 = vadd.f32 %v1595, %v1633
        %v1636 = vstv %s705
        %v1637 = vmul.f32 %v1039, %v1636
        %v1638 = vmul.f32 %v1040, %v1636
        %v1639 = vadd.f32 %v1599, %v1637
        %v1640 = vadd.f32 %v1600, %v1638
        %v1641 = vstv %s707
        %v1642 = vmul.f32 %v1039, %v1641
        %v1643 = vmul.f32 %v1040, %v1641
        %v1644 = vadd.f32 %v1604, %v1642
        %v1645 = vadd.f32 %v1605, %v1643
        %v1646 = vstv %s709
        %v1647 = vmul.f32 %v1039, %v1646
        %v1648 = vmul.f32 %v1040, %v1646
        %v1649 = vadd.f32 %v1609, %v1647
        %v1650 = vadd.f32 %v1610, %v1648
        %v1651 = vstv %s711
        %v1652 = vmul.f32 %v1039, %v1651
        %v1653 = vmul.f32 %v1040, %v1651
        %v1654 = vadd.f32 %v1614, %v1652
        %v1655 = vadd.f32 %v1615, %v1653
        %v1656 = vstv %s713
        %v1657 = vmul.f32 %v1039, %v1656
        %v1658 = vmul.f32 %v1040, %v1656
        %v1659 = vadd.f32 %v1619, %v1657
        %v1660 = vadd.f32 %v1620, %v1658
        %v1661 = vstv %s715
        %v1662 = vmul.f32 %v1039, %v1661
        %v1663 = vmul.f32 %v1040, %v1661
        %v1664 = vadd.f32 %v1624, %v1662
        %v1665 = vadd.f32 %v1625, %v1663
        %v1666 = vstv %s717
        %v1667 = vmul.f32 %v1039, %v1666
        %v1668 = vmul.f32 %v1040, %v1666
        %v1669 = vadd.f32 %v1629, %v1667
        %v1670 = vadd.f32 %v1630, %v1668
        %v1671 = vstv %s799
        %v1672 = vmul.f32 %v1589, %v1671
        %v1673 = vmul.f32 %v1590, %v1671
        %v1674 = vadd.f32 %v1634, %v1672
        %v1675 = vadd.f32 %v1635, %v1673
        %v1676 = vstv %s801
        %v1677 = vmul.f32 %v1589, %v1676
        %v1678 = vmul.f32 %v1590, %v1676
        %v1679 = vadd.f32 %v1639, %v1677
        %v1680 = vadd.f32 %v1640, %v1678
        %v1681 = vstv %s803
        %v1682 = vmul.f32 %v1589, %v1681
        %v1683 = vmul.f32 %v1590, %v1681
        %v1684 = vadd.f32 %v1644, %v1682
        %v1685 = vadd.f32 %v1645, %v1683
        %v1686 = vstv %s805
        %v1687 = vmul.f32 %v1589, %v1686
        %v1688 = vmul.f32 %v1590, %v1686
        %v1689 = vadd.f32 %v1649, %v1687
        %v1690 = vadd.f32 %v1650, %v1688
        %v1691 = vstv %s807
        %v1692 = vmul.f32 %v1589, %v1691
        %v1693 = vmul.f32 %v1590, %v1691
        %v1694 = vadd.f32 %v1654, %v1692
        %v1695 = vadd.f32 %v1655, %v1693
        %v1696 = vstv %s809
        %v1697 = vmul.f32 %v1589, %v1696
        %v1698 = vmul.f32 %v1590, %v1696
        %v1699 = vadd.f32 %v1659, %v1697
        %v1700 = vadd.f32 %v1660, %v1698
        %v1701 = vstv %s811
        %v1702 = vmul.f32 %v1589, %v1701
        %v1703 = vmul.f32 %v1590, %v1701
        %v1704 = vadd.f32 %v1664, %v1702
        %v1705 = vadd.f32 %v1665, %v1703
        %v1706 = vstv %s813
        %v1707 = vmul.f32 %v1589, %v1706
        %v1708 = vmul.f32 %v1590, %v1706
        %v1709 = vadd.f32 %v1669, %v1707
        %v1710 = vadd.f32 %v1670, %v1708
        %v1711 = vrot.slane %v1445, 7
        %v1712 = vrot.slane %v1446, 7
        %v1713 = vsel %vm1055, %v1711, %v1712
        %v1714 = vsel %vm1055, %v1712, %v1711
        %v1715 = vmul.f32 %v1714, %v1029
        %v1716 = vmul.f32 %v1713, %v1030
        %v1717 = vrot.slane %v1445, 1
        %v1718 = vrot.slane %v1446, 1
        %v1719 = vsel %vm1062, %v1717, %v1718
        %v1720 = vsel %vm1062, %v1718, %v1717
        %v1721 = vmul.f32 %v1719, %v1035
        %v1722 = vmul.f32 %v1720, %v1036
        %v1723 = vstv %s639
        %v1724 = vmul.f32 %v1715, %v1723
        %v1725 = vmul.f32 %v1716, %v1723
        %v1726 = vadd.f32 %v1674, %v1724
        %v1727 = vadd.f32 %v1675, %v1725
        %v1728 = vstv %s641
        %v1729 = vmul.f32 %v1715, %v1728
        %v1730 = vmul.f32 %v1716, %v1728
        %v1731 = vadd.f32 %v1679, %v1729
        %v1732 = vadd.f32 %v1680, %v1730
        %v1733 = vstv %s643
        %v1734 = vmul.f32 %v1715, %v1733
        %v1735 = vmul.f32 %v1716, %v1733
        %v1736 = vadd.f32 %v1684, %v1734
        %v1737 = vadd.f32 %v1685, %v1735
        %v1738 = vstv %s645
        %v1739 = vmul.f32 %v1715, %v1738
        %v1740 = vmul.f32 %v1716, %v1738
        %v1741 = vadd.f32 %v1689, %v1739
        %v1742 = vadd.f32 %v1690, %v1740
        %v1743 = vstv %s647
        %v1744 = vmul.f32 %v1715, %v1743
        %v1745 = vmul.f32 %v1716, %v1743
        %v1746 = vadd.f32 %v1694, %v1744
        %v1747 = vadd.f32 %v1695, %v1745
        %v1748 = vstv %s649
        %v1749 = vmul.f32 %v1715, %v1748
        %v1750 = vmul.f32 %v1716, %v1748
        %v1751 = vadd.f32 %v1699, %v1749
        %v1752 = vadd.f32 %v1700, %v1750
        %v1753 = vstv %s651
        %v1754 = vmul.f32 %v1715, %v1753
        %v1755 = vmul.f32 %v1716, %v1753
        %v1756 = vadd.f32 %v1704, %v1754
        %v1757 = vadd.f32 %v1705, %v1755
        %v1758 = vstv %s653
        %v1759 = vmul.f32 %v1715, %v1758
        %v1760 = vmul.f32 %v1716, %v1758
        %v1761 = vadd.f32 %v1709, %v1759
        %v1762 = vadd.f32 %v1710, %v1760
        %v1763 = vstv %s735
        %v1764 = vmul.f32 %v1445, %v1763
        %v1765 = vmul.f32 %v1446, %v1763
        %v1766 = vadd.f32 %v1726, %v1764
        %v1767 = vadd.f32 %v1727, %v1765
        %v1768 = vstv %s737
        %v1769 = vmul.f32 %v1445, %v1768
        %v1770 = vmul.f32 %v1446, %v1768
        %v1771 = vadd.f32 %v1731, %v1769
        %v1772 = vadd.f32 %v1732, %v1770
        %v1773 = vstv %s739
        %v1774 = vmul.f32 %v1445, %v1773
        %v1775 = vmul.f32 %v1446, %v1773
        %v1776 = vadd.f32 %v1736, %v1774
        %v1777 = vadd.f32 %v1737, %v1775
        %v1778 = vstv %s741
        %v1779 = vmul.f32 %v1445, %v1778
        %v1780 = vmul.f32 %v1446, %v1778
        %v1781 = vadd.f32 %v1741, %v1779
        %v1782 = vadd.f32 %v1742, %v1780
        %v1783 = vstv %s743
        %v1784 = vmul.f32 %v1445, %v1783
        %v1785 = vmul.f32 %v1446, %v1783
        %v1786 = vadd.f32 %v1746, %v1784
        %v1787 = vadd.f32 %v1747, %v1785
        %v1788 = vstv %s745
        %v1789 = vmul.f32 %v1445, %v1788
        %v1790 = vmul.f32 %v1446, %v1788
        %v1791 = vadd.f32 %v1751, %v1789
        %v1792 = vadd.f32 %v1752, %v1790
        %v1793 = vstv %s747
        %v1794 = vmul.f32 %v1445, %v1793
        %v1795 = vmul.f32 %v1446, %v1793
        %v1796 = vadd.f32 %v1756, %v1794
        %v1797 = vadd.f32 %v1757, %v1795
        %v1798 = vstv %s749
        %v1799 = vmul.f32 %v1445, %v1798
        %v1800 = vmul.f32 %v1446, %v1798
        %v1801 = vadd.f32 %v1761, %v1799
        %v1802 = vadd.f32 %v1762, %v1800
        %v1803 = vstv %s831
        %v1804 = vmul.f32 %v1721, %v1803
        %v1805 = vmul.f32 %v1722, %v1803
        %v1806 = vadd.f32 %v1766, %v1804
        %v1807 = vadd.f32 %v1767, %v1805
        %v1808 = vstv %s833
        %v1809 = vmul.f32 %v1721, %v1808
        %v1810 = vmul.f32 %v1722, %v1808
        %v1811 = vadd.f32 %v1771, %v1809
        %v1812 = vadd.f32 %v1772, %v1810
        %v1813 = vstv %s835
        %v1814 = vmul.f32 %v1721, %v1813
        %v1815 = vmul.f32 %v1722, %v1813
        %v1816 = vadd.f32 %v1776, %v1814
        %v1817 = vadd.f32 %v1777, %v1815
        %v1818 = vstv %s837
        %v1819 = vmul.f32 %v1721, %v1818
        %v1820 = vmul.f32 %v1722, %v1818
        %v1821 = vadd.f32 %v1781, %v1819
        %v1822 = vadd.f32 %v1782, %v1820
        %v1823 = vstv %s839
        %v1824 = vmul.f32 %v1721, %v1823
        %v1825 = vmul.f32 %v1722, %v1823
        %v1826 = vadd.f32 %v1786, %v1824
        %v1827 = vadd.f32 %v1787, %v1825
        %v1828 = vstv %s841
        %v1829 = vmul.f32 %v1721, %v1828
        %v1830 = vmul.f32 %v1722, %v1828
        %v1831 = vadd.f32 %v1791, %v1829
        %v1832 = vadd.f32 %v1792, %v1830
        %v1833 = vstv %s843
        %v1834 = vmul.f32 %v1721, %v1833
        %v1835 = vmul.f32 %v1722, %v1833
        %v1836 = vadd.f32 %v1796, %v1834
        %v1837 = vadd.f32 %v1797, %v1835
        %v1838 = vstv %s845
        %v1839 = vmul.f32 %v1721, %v1838
        %v1840 = vmul.f32 %v1722, %v1838
        %v1841 = vadd.f32 %v1801, %v1839
        %v1842 = vadd.f32 %v1802, %v1840
        %v1843 = vstv %s847
        %v1844 = vadd.f32 %v1806, %v1843
        %v1845 = vadd.f32 %v1807, %v1843
        %v1846 = vmax.f32 %v1844, 0.0
        %v1847 = vmax.f32 %v1845, 0.0
        %v1848 = vstv %s849
        %v1849 = vadd.f32 %v1811, %v1848
        %v1850 = vadd.f32 %v1812, %v1848
        %v1851 = vmax.f32 %v1849, 0.0
        %v1852 = vmax.f32 %v1850, 0.0
        %v1853 = vstv %s851
        %v1854 = vadd.f32 %v1816, %v1853
        %v1855 = vadd.f32 %v1817, %v1853
        %v1856 = vmax.f32 %v1854, 0.0
        %v1857 = vmax.f32 %v1855, 0.0
        %v1858 = vstv %s853
        %v1859 = vadd.f32 %v1821, %v1858
        %v1860 = vadd.f32 %v1822, %v1858
        %v1861 = vmax.f32 %v1859, 0.0
        %v1862 = vmax.f32 %v1860, 0.0
        %v1863 = vstv %s855
        %v1864 = vadd.f32 %v1826, %v1863
        %v1865 = vadd.f32 %v1827, %v1863
        %v1866 = vmax.f32 %v1864, 0.0
        %v1867 = vmax.f32 %v1865, 0.0
        %v1868 = vstv %s857
        %v1869 = vadd.f32 %v1831, %v1868
        %v1870 = vadd.f32 %v1832, %v1868
        %v1871 = vmax.f32 %v1869, 0.0
        %v1872 = vmax.f32 %v1870, 0.0
        %v1873 = vstv %s859
        %v1874 = vadd.f32 %v1836, %v1873
        %v1875 = vadd.f32 %v1837, %v1873
        %v1876 = vmax.f32 %v1874, 0.0
        %v1877 = vmax.f32 %v1875, 0.0
        %v1878 = vstv %s861
        %v1879 = vadd.f32 %v1841, %v1878
        %v1880 = vadd.f32 %v1842, %v1878
        %v1881 = vmax.f32 %v1879, 0.0
        %v1882 = vmax.f32 %v1880, 0.0
        %1883 = vrot.lane.b32.xlu0 %v1846, 1
        %v1884 = vpop.permute.xlu0 %1883
        %1885 = vrot.lane.b32.xlu0 %v1847, 1
        %v1886 = vpop.permute.xlu0 %1885
        %v1887 = vmul.f32 %v1884, %v1022
        %v1888 = vmul.f32 %v1886, %v1022
        %1889 = vrot.lane.b32.xlu0 %v1846, 127
        %v1890 = vpop.permute.xlu0 %1889
        %1891 = vrot.lane.b32.xlu0 %v1847, 127
        %v1892 = vpop.permute.xlu0 %1891
        %v1893 = vmul.f32 %v1890, %v1024
        %v1894 = vmul.f32 %v1892, %v1024
        %v1895 = vrot.slane %v1887, 7
        %v1896 = vrot.slane %v1888, 7
        %v1897 = vsel %vm1055, %v1895, %v1896
        %v1898 = vsel %vm1055, %v1896, %v1895
        %v1899 = vmul.f32 %v1898, %v1029
        %v1900 = vmul.f32 %v1897, %v1030
        %v1901 = vrot.slane %v1887, 1
        %v1902 = vrot.slane %v1888, 1
        %v1903 = vsel %vm1062, %v1901, %v1902
        %v1904 = vsel %vm1062, %v1902, %v1901
        %v1905 = vmul.f32 %v1903, %v1035
        %v1906 = vmul.f32 %v1904, %v1036
        %v1907 = vstv %s862
        %v1908 = vmul.f32 %v1899, %v1907
        %v1909 = vmul.f32 %v1900, %v1907
        %v1910 = vstv %s863
        %v1911 = vmul.f32 %v1899, %v1910
        %v1912 = vmul.f32 %v1900, %v1910
        %v1913 = vstv %s910
        %v1914 = vmul.f32 %v1887, %v1913
        %v1915 = vmul.f32 %v1888, %v1913
        %v1916 = vadd.f32 %v1908, %v1914
        %v1917 = vadd.f32 %v1909, %v1915
        %v1918 = vstv %s911
        %v1919 = vmul.f32 %v1887, %v1918
        %v1920 = vmul.f32 %v1888, %v1918
        %v1921 = vadd.f32 %v1911, %v1919
        %v1922 = vadd.f32 %v1912, %v1920
        %v1923 = vstv %s958
        %v1924 = vmul.f32 %v1905, %v1923
        %v1925 = vmul.f32 %v1906, %v1923
        %v1926 = vadd.f32 %v1916, %v1924
        %v1927 = vadd.f32 %v1917, %v1925
        %v1928 = vstv %s959
        %v1929 = vmul.f32 %v1905, %v1928
        %v1930 = vmul.f32 %v1906, %v1928
        %v1931 = vadd.f32 %v1921, %v1929
        %v1932 = vadd.f32 %v1922, %v1930
        %v1933 = vrot.slane %v1846, 7
        %v1934 = vrot.slane %v1847, 7
        %v1935 = vsel %vm1055, %v1933, %v1934
        %v1936 = vsel %vm1055, %v1934, %v1933
        %v1937 = vmul.f32 %v1936, %v1029
        %v1938 = vmul.f32 %v1935, %v1030
        %v1939 = vrot.slane %v1846, 1
        %v1940 = vrot.slane %v1847, 1
        %v1941 = vsel %vm1062, %v1939, %v1940
        %v1942 = vsel %vm1062, %v1940, %v1939
        %v1943 = vmul.f32 %v1941, %v1035
        %v1944 = vmul.f32 %v1942, %v1036
        %v1945 = vstv %s878
        %v1946 = vmul.f32 %v1937, %v1945
        %v1947 = vmul.f32 %v1938, %v1945
        %v1948 = vadd.f32 %v1926, %v1946
        %v1949 = vadd.f32 %v1927, %v1947
        %v1950 = vstv %s879
        %v1951 = vmul.f32 %v1937, %v1950
        %v1952 = vmul.f32 %v1938, %v1950
        %v1953 = vadd.f32 %v1931, %v1951
        %v1954 = vadd.f32 %v1932, %v1952
        %v1955 = vstv %s926
        %v1956 = vmul.f32 %v1846, %v1955
        %v1957 = vmul.f32 %v1847, %v1955
        %v1958 = vadd.f32 %v1948, %v1956
        %v1959 = vadd.f32 %v1949, %v1957
        %v1960 = vstv %s927
        %v1961 = vmul.f32 %v1846, %v1960
        %v1962 = vmul.f32 %v1847, %v1960
        %v1963 = vadd.f32 %v1953, %v1961
        %v1964 = vadd.f32 %v1954, %v1962
        %v1965 = vstv %s974
        %v1966 = vmul.f32 %v1943, %v1965
        %v1967 = vmul.f32 %v1944, %v1965
        %v1968 = vadd.f32 %v1958, %v1966
        %v1969 = vadd.f32 %v1959, %v1967
        %v1970 = vstv %s975
        %v1971 = vmul.f32 %v1943, %v1970
        %v1972 = vmul.f32 %v1944, %v1970
        %v1973 = vadd.f32 %v1963, %v1971
        %v1974 = vadd.f32 %v1964, %v1972
        %v1975 = vrot.slane %v1893, 7
        %v1976 = vrot.slane %v1894, 7
        %v1977 = vsel %vm1055, %v1975, %v1976
        %v1978 = vsel %vm1055, %v1976, %v1975
        %v1979 = vmul.f32 %v1978, %v1029
        %v1980 = vmul.f32 %v1977, %v1030
        %v1981 = vrot.slane %v1893, 1
        %v1982 = vrot.slane %v1894, 1
        %v1983 = vsel %vm1062, %v1981, %v1982
        %v1984 = vsel %vm1062, %v1982, %v1981
        %v1985 = vmul.f32 %v1983, %v1035
        %v1986 = vmul.f32 %v1984, %v1036
        %v1987 = vstv %s894
        %v1988 = vmul.f32 %v1979, %v1987
        %v1989 = vmul.f32 %v1980, %v1987
        %v1990 = vadd.f32 %v1968, %v1988
        %v1991 = vadd.f32 %v1969, %v1989
        %v1992 = vstv %s895
        %v1993 = vmul.f32 %v1979, %v1992
        %v1994 = vmul.f32 %v1980, %v1992
        %v1995 = vadd.f32 %v1973, %v1993
        %v1996 = vadd.f32 %v1974, %v1994
        %v1997 = vstv %s942
        %v1998 = vmul.f32 %v1893, %v1997
        %v1999 = vmul.f32 %v1894, %v1997
        %v2000 = vadd.f32 %v1990, %v1998
        %v2001 = vadd.f32 %v1991, %v1999
        %v2002 = vstv %s943
        %v2003 = vmul.f32 %v1893, %v2002
        %v2004 = vmul.f32 %v1894, %v2002
        %v2005 = vadd.f32 %v1995, %v2003
        %v2006 = vadd.f32 %v1996, %v2004
        %v2007 = vstv %s990
        %v2008 = vmul.f32 %v1985, %v2007
        %v2009 = vmul.f32 %v1986, %v2007
        %v2010 = vadd.f32 %v2000, %v2008
        %v2011 = vadd.f32 %v2001, %v2009
        %v2012 = vstv %s991
        %v2013 = vmul.f32 %v1985, %v2012
        %v2014 = vmul.f32 %v1986, %v2012
        %v2015 = vadd.f32 %v2005, %v2013
        %v2016 = vadd.f32 %v2006, %v2014
        %2017 = vrot.lane.b32.xlu0 %v1851, 1
        %v2018 = vpop.permute.xlu0 %2017
        %2019 = vrot.lane.b32.xlu0 %v1852, 1
        %v2020 = vpop.permute.xlu0 %2019
        %v2021 = vmul.f32 %v2018, %v1022
        %v2022 = vmul.f32 %v2020, %v1022
        %2023 = vrot.lane.b32.xlu0 %v1851, 127
        %v2024 = vpop.permute.xlu0 %2023
        %2025 = vrot.lane.b32.xlu0 %v1852, 127
        %v2026 = vpop.permute.xlu0 %2025
        %v2027 = vmul.f32 %v2024, %v1024
        %v2028 = vmul.f32 %v2026, %v1024
        %v2029 = vrot.slane %v2021, 7
        %v2030 = vrot.slane %v2022, 7
        %v2031 = vsel %vm1055, %v2029, %v2030
        %v2032 = vsel %vm1055, %v2030, %v2029
        %v2033 = vmul.f32 %v2032, %v1029
        %v2034 = vmul.f32 %v2031, %v1030
        %v2035 = vrot.slane %v2021, 1
        %v2036 = vrot.slane %v2022, 1
        %v2037 = vsel %vm1062, %v2035, %v2036
        %v2038 = vsel %vm1062, %v2036, %v2035
        %v2039 = vmul.f32 %v2037, %v1035
        %v2040 = vmul.f32 %v2038, %v1036
        %v2041 = vstv %s864
        %v2042 = vmul.f32 %v2033, %v2041
        %v2043 = vmul.f32 %v2034, %v2041
        %v2044 = vadd.f32 %v2010, %v2042
        %v2045 = vadd.f32 %v2011, %v2043
        %v2046 = vstv %s865
        %v2047 = vmul.f32 %v2033, %v2046
        %v2048 = vmul.f32 %v2034, %v2046
        %v2049 = vadd.f32 %v2015, %v2047
        %v2050 = vadd.f32 %v2016, %v2048
        %v2051 = vstv %s912
        %v2052 = vmul.f32 %v2021, %v2051
        %v2053 = vmul.f32 %v2022, %v2051
        %v2054 = vadd.f32 %v2044, %v2052
        %v2055 = vadd.f32 %v2045, %v2053
        %v2056 = vstv %s913
        %v2057 = vmul.f32 %v2021, %v2056
        %v2058 = vmul.f32 %v2022, %v2056
        %v2059 = vadd.f32 %v2049, %v2057
        %v2060 = vadd.f32 %v2050, %v2058
        %v2061 = vstv %s960
        %v2062 = vmul.f32 %v2039, %v2061
        %v2063 = vmul.f32 %v2040, %v2061
        %v2064 = vadd.f32 %v2054, %v2062
        %v2065 = vadd.f32 %v2055, %v2063
        %v2066 = vstv %s961
        %v2067 = vmul.f32 %v2039, %v2066
        %v2068 = vmul.f32 %v2040, %v2066
        %v2069 = vadd.f32 %v2059, %v2067
        %v2070 = vadd.f32 %v2060, %v2068
        %v2071 = vrot.slane %v1851, 7
        %v2072 = vrot.slane %v1852, 7
        %v2073 = vsel %vm1055, %v2071, %v2072
        %v2074 = vsel %vm1055, %v2072, %v2071
        %v2075 = vmul.f32 %v2074, %v1029
        %v2076 = vmul.f32 %v2073, %v1030
        %v2077 = vrot.slane %v1851, 1
        %v2078 = vrot.slane %v1852, 1
        %v2079 = vsel %vm1062, %v2077, %v2078
        %v2080 = vsel %vm1062, %v2078, %v2077
        %v2081 = vmul.f32 %v2079, %v1035
        %v2082 = vmul.f32 %v2080, %v1036
        %v2083 = vstv %s880
        %v2084 = vmul.f32 %v2075, %v2083
        %v2085 = vmul.f32 %v2076, %v2083
        %v2086 = vadd.f32 %v2064, %v2084
        %v2087 = vadd.f32 %v2065, %v2085
        %v2088 = vstv %s881
        %v2089 = vmul.f32 %v2075, %v2088
        %v2090 = vmul.f32 %v2076, %v2088
        %v2091 = vadd.f32 %v2069, %v2089
        %v2092 = vadd.f32 %v2070, %v2090
        %v2093 = vstv %s928
        %v2094 = vmul.f32 %v1851, %v2093
        %v2095 = vmul.f32 %v1852, %v2093
        %v2096 = vadd.f32 %v2086, %v2094
        %v2097 = vadd.f32 %v2087, %v2095
        %v2098 = vstv %s929
        %v2099 = vmul.f32 %v1851, %v2098
        %v2100 = vmul.f32 %v1852, %v2098
        %v2101 = vadd.f32 %v2091, %v2099
        %v2102 = vadd.f32 %v2092, %v2100
        %v2103 = vstv %s976
        %v2104 = vmul.f32 %v2081, %v2103
        %v2105 = vmul.f32 %v2082, %v2103
        %v2106 = vadd.f32 %v2096, %v2104
        %v2107 = vadd.f32 %v2097, %v2105
        %v2108 = vstv %s977
        %v2109 = vmul.f32 %v2081, %v2108
        %v2110 = vmul.f32 %v2082, %v2108
        %v2111 = vadd.f32 %v2101, %v2109
        %v2112 = vadd.f32 %v2102, %v2110
        %v2113 = vrot.slane %v2027, 7
        %v2114 = vrot.slane %v2028, 7
        %v2115 = vsel %vm1055, %v2113, %v2114
        %v2116 = vsel %vm1055, %v2114, %v2113
        %v2117 = vmul.f32 %v2116, %v1029
        %v2118 = vmul.f32 %v2115, %v1030
        %v2119 = vrot.slane %v2027, 1
        %v2120 = vrot.slane %v2028, 1
        %v2121 = vsel %vm1062, %v2119, %v2120
        %v2122 = vsel %vm1062, %v2120, %v2119
        %v2123 = vmul.f32 %v2121, %v1035
        %v2124 = vmul.f32 %v2122, %v1036
        %v2125 = vstv %s896
        %v2126 = vmul.f32 %v2117, %v2125
        %v2127 = vmul.f32 %v2118, %v2125
        %v2128 = vadd.f32 %v2106, %v2126
        %v2129 = vadd.f32 %v2107, %v2127
        %v2130 = vstv %s897
        %v2131 = vmul.f32 %v2117, %v2130
        %v2132 = vmul.f32 %v2118, %v2130
        %v2133 = vadd.f32 %v2111, %v2131
        %v2134 = vadd.f32 %v2112, %v2132
        %v2135 = vstv %s944
        %v2136 = vmul.f32 %v2027, %v2135
        %v2137 = vmul.f32 %v2028, %v2135
        %v2138 = vadd.f32 %v2128, %v2136
        %v2139 = vadd.f32 %v2129, %v2137
        %v2140 = vstv %s945
        %v2141 = vmul.f32 %v2027, %v2140
        %v2142 = vmul.f32 %v2028, %v2140
        %v2143 = vadd.f32 %v2133, %v2141
        %v2144 = vadd.f32 %v2134, %v2142
        %v2145 = vstv %s992
        %v2146 = vmul.f32 %v2123, %v2145
        %v2147 = vmul.f32 %v2124, %v2145
        %v2148 = vadd.f32 %v2138, %v2146
        %v2149 = vadd.f32 %v2139, %v2147
        %v2150 = vstv %s993
        %v2151 = vmul.f32 %v2123, %v2150
        %v2152 = vmul.f32 %v2124, %v2150
        %v2153 = vadd.f32 %v2143, %v2151
        %v2154 = vadd.f32 %v2144, %v2152
        %2155 = vrot.lane.b32.xlu0 %v1856, 1
        %v2156 = vpop.permute.xlu0 %2155
        %2157 = vrot.lane.b32.xlu0 %v1857, 1
        %v2158 = vpop.permute.xlu0 %2157
        %v2159 = vmul.f32 %v2156, %v1022
        %v2160 = vmul.f32 %v2158, %v1022
        %2161 = vrot.lane.b32.xlu0 %v1856, 127
        %v2162 = vpop.permute.xlu0 %2161
        %2163 = vrot.lane.b32.xlu0 %v1857, 127
        %v2164 = vpop.permute.xlu0 %2163
        %v2165 = vmul.f32 %v2162, %v1024
        %v2166 = vmul.f32 %v2164, %v1024
        %v2167 = vrot.slane %v2159, 7
        %v2168 = vrot.slane %v2160, 7
        %v2169 = vsel %vm1055, %v2167, %v2168
        %v2170 = vsel %vm1055, %v2168, %v2167
        %v2171 = vmul.f32 %v2170, %v1029
        %v2172 = vmul.f32 %v2169, %v1030
        %v2173 = vrot.slane %v2159, 1
        %v2174 = vrot.slane %v2160, 1
        %v2175 = vsel %vm1062, %v2173, %v2174
        %v2176 = vsel %vm1062, %v2174, %v2173
        %v2177 = vmul.f32 %v2175, %v1035
        %v2178 = vmul.f32 %v2176, %v1036
        %v2179 = vstv %s866
        %v2180 = vmul.f32 %v2171, %v2179
        %v2181 = vmul.f32 %v2172, %v2179
        %v2182 = vadd.f32 %v2148, %v2180
        %v2183 = vadd.f32 %v2149, %v2181
        %v2184 = vstv %s867
        %v2185 = vmul.f32 %v2171, %v2184
        %v2186 = vmul.f32 %v2172, %v2184
        %v2187 = vadd.f32 %v2153, %v2185
        %v2188 = vadd.f32 %v2154, %v2186
        %v2189 = vstv %s914
        %v2190 = vmul.f32 %v2159, %v2189
        %v2191 = vmul.f32 %v2160, %v2189
        %v2192 = vadd.f32 %v2182, %v2190
        %v2193 = vadd.f32 %v2183, %v2191
        %v2194 = vstv %s915
        %v2195 = vmul.f32 %v2159, %v2194
        %v2196 = vmul.f32 %v2160, %v2194
        %v2197 = vadd.f32 %v2187, %v2195
        %v2198 = vadd.f32 %v2188, %v2196
        %v2199 = vstv %s962
        %v2200 = vmul.f32 %v2177, %v2199
        %v2201 = vmul.f32 %v2178, %v2199
        %v2202 = vadd.f32 %v2192, %v2200
        %v2203 = vadd.f32 %v2193, %v2201
        %v2204 = vstv %s963
        %v2205 = vmul.f32 %v2177, %v2204
        %v2206 = vmul.f32 %v2178, %v2204
        %v2207 = vadd.f32 %v2197, %v2205
        %v2208 = vadd.f32 %v2198, %v2206
        %v2209 = vrot.slane %v1856, 7
        %v2210 = vrot.slane %v1857, 7
        %v2211 = vsel %vm1055, %v2209, %v2210
        %v2212 = vsel %vm1055, %v2210, %v2209
        %v2213 = vmul.f32 %v2212, %v1029
        %v2214 = vmul.f32 %v2211, %v1030
        %v2215 = vrot.slane %v1856, 1
        %v2216 = vrot.slane %v1857, 1
        %v2217 = vsel %vm1062, %v2215, %v2216
        %v2218 = vsel %vm1062, %v2216, %v2215
        %v2219 = vmul.f32 %v2217, %v1035
        %v2220 = vmul.f32 %v2218, %v1036
        %v2221 = vstv %s882
        %v2222 = vmul.f32 %v2213, %v2221
        %v2223 = vmul.f32 %v2214, %v2221
        %v2224 = vadd.f32 %v2202, %v2222
        %v2225 = vadd.f32 %v2203, %v2223
        %v2226 = vstv %s883
        %v2227 = vmul.f32 %v2213, %v2226
        %v2228 = vmul.f32 %v2214, %v2226
        %v2229 = vadd.f32 %v2207, %v2227
        %v2230 = vadd.f32 %v2208, %v2228
        %v2231 = vstv %s930
        %v2232 = vmul.f32 %v1856, %v2231
        %v2233 = vmul.f32 %v1857, %v2231
        %v2234 = vadd.f32 %v2224, %v2232
        %v2235 = vadd.f32 %v2225, %v2233
        %v2236 = vstv %s931
        %v2237 = vmul.f32 %v1856, %v2236
        %v2238 = vmul.f32 %v1857, %v2236
        %v2239 = vadd.f32 %v2229, %v2237
        %v2240 = vadd.f32 %v2230, %v2238
        %v2241 = vstv %s978
        %v2242 = vmul.f32 %v2219, %v2241
        %v2243 = vmul.f32 %v2220, %v2241
        %v2244 = vadd.f32 %v2234, %v2242
        %v2245 = vadd.f32 %v2235, %v2243
        %v2246 = vstv %s979
        %v2247 = vmul.f32 %v2219, %v2246
        %v2248 = vmul.f32 %v2220, %v2246
        %v2249 = vadd.f32 %v2239, %v2247
        %v2250 = vadd.f32 %v2240, %v2248
        %v2251 = vrot.slane %v2165, 7
        %v2252 = vrot.slane %v2166, 7
        %v2253 = vsel %vm1055, %v2251, %v2252
        %v2254 = vsel %vm1055, %v2252, %v2251
        %v2255 = vmul.f32 %v2254, %v1029
        %v2256 = vmul.f32 %v2253, %v1030
        %v2257 = vrot.slane %v2165, 1
        %v2258 = vrot.slane %v2166, 1
        %v2259 = vsel %vm1062, %v2257, %v2258
        %v2260 = vsel %vm1062, %v2258, %v2257
        %v2261 = vmul.f32 %v2259, %v1035
        %v2262 = vmul.f32 %v2260, %v1036
        %v2263 = vstv %s898
        %v2264 = vmul.f32 %v2255, %v2263
        %v2265 = vmul.f32 %v2256, %v2263
        %v2266 = vadd.f32 %v2244, %v2264
        %v2267 = vadd.f32 %v2245, %v2265
        %v2268 = vstv %s899
        %v2269 = vmul.f32 %v2255, %v2268
        %v2270 = vmul.f32 %v2256, %v2268
        %v2271 = vadd.f32 %v2249, %v2269
        %v2272 = vadd.f32 %v2250, %v2270
        %v2273 = vstv %s946
        %v2274 = vmul.f32 %v2165, %v2273
        %v2275 = vmul.f32 %v2166, %v2273
        %v2276 = vadd.f32 %v2266, %v2274
        %v2277 = vadd.f32 %v2267, %v2275
        %v2278 = vstv %s947
        %v2279 = vmul.f32 %v2165, %v2278
        %v2280 = vmul.f32 %v2166, %v2278
        %v2281 = vadd.f32 %v2271, %v2279
        %v2282 = vadd.f32 %v2272, %v2280
        %v2283 = vstv %s994
        %v2284 = vmul.f32 %v2261, %v2283
        %v2285 = vmul.f32 %v2262, %v2283
        %v2286 = vadd.f32 %v2276, %v2284
        %v2287 = vadd.f32 %v2277, %v2285
        %v2288 = vstv %s995
        %v2289 = vmul.f32 %v2261, %v2288
        %v2290 = vmul.f32 %v2262, %v2288
        %v2291 = vadd.f32 %v2281, %v2289
        %v2292 = vadd.f32 %v2282, %v2290
        %2293 = vrot.lane.b32.xlu0 %v1861, 1
        %v2294 = vpop.permute.xlu0 %2293
        %2295 = vrot.lane.b32.xlu0 %v1862, 1
        %v2296 = vpop.permute.xlu0 %2295
        %v2297 = vmul.f32 %v2294, %v1022
        %v2298 = vmul.f32 %v2296, %v1022
        %2299 = vrot.lane.b32.xlu0 %v1861, 127
        %v2300 = vpop.permute.xlu0 %2299
        %2301 = vrot.lane.b32.xlu0 %v1862, 127
        %v2302 = vpop.permute.xlu0 %2301
        %v2303 = vmul.f32 %v2300, %v1024
        %v2304 = vmul.f32 %v2302, %v1024
        %v2305 = vrot.slane %v2297, 7
        %v2306 = vrot.slane %v2298, 7
        %v2307 = vsel %vm1055, %v2305, %v2306
        %v2308 = vsel %vm1055, %v2306, %v2305
        %v2309 = vmul.f32 %v2308, %v1029
        %v2310 = vmul.f32 %v2307, %v1030
        %v2311 = vrot.slane %v2297, 1
        %v2312 = vrot.slane %v2298, 1
        %v2313 = vsel %vm1062, %v2311, %v2312
        %v2314 = vsel %vm1062, %v2312, %v2311
        %v2315 = vmul.f32 %v2313, %v1035
        %v2316 = vmul.f32 %v2314, %v1036
        %v2317 = vstv %s868
        %v2318 = vmul.f32 %v2309, %v2317
        %v2319 = vmul.f32 %v2310, %v2317
        %v2320 = vadd.f32 %v2286, %v2318
        %v2321 = vadd.f32 %v2287, %v2319
        %v2322 = vstv %s869
        %v2323 = vmul.f32 %v2309, %v2322
        %v2324 = vmul.f32 %v2310, %v2322
        %v2325 = vadd.f32 %v2291, %v2323
        %v2326 = vadd.f32 %v2292, %v2324
        %v2327 = vstv %s916
        %v2328 = vmul.f32 %v2297, %v2327
        %v2329 = vmul.f32 %v2298, %v2327
        %v2330 = vadd.f32 %v2320, %v2328
        %v2331 = vadd.f32 %v2321, %v2329
        %v2332 = vstv %s917
        %v2333 = vmul.f32 %v2297, %v2332
        %v2334 = vmul.f32 %v2298, %v2332
        %v2335 = vadd.f32 %v2325, %v2333
        %v2336 = vadd.f32 %v2326, %v2334
        %v2337 = vstv %s964
        %v2338 = vmul.f32 %v2315, %v2337
        %v2339 = vmul.f32 %v2316, %v2337
        %v2340 = vadd.f32 %v2330, %v2338
        %v2341 = vadd.f32 %v2331, %v2339
        %v2342 = vstv %s965
        %v2343 = vmul.f32 %v2315, %v2342
        %v2344 = vmul.f32 %v2316, %v2342
        %v2345 = vadd.f32 %v2335, %v2343
        %v2346 = vadd.f32 %v2336, %v2344
        %v2347 = vrot.slane %v1861, 7
        %v2348 = vrot.slane %v1862, 7
        %v2349 = vsel %vm1055, %v2347, %v2348
        %v2350 = vsel %vm1055, %v2348, %v2347
        %v2351 = vmul.f32 %v2350, %v1029
        %v2352 = vmul.f32 %v2349, %v1030
        %v2353 = vrot.slane %v1861, 1
        %v2354 = vrot.slane %v1862, 1
        %v2355 = vsel %vm1062, %v2353, %v2354
        %v2356 = vsel %vm1062, %v2354, %v2353
        %v2357 = vmul.f32 %v2355, %v1035
        %v2358 = vmul.f32 %v2356, %v1036
        %v2359 = vstv %s884
        %v2360 = vmul.f32 %v2351, %v2359
        %v2361 = vmul.f32 %v2352, %v2359
        %v2362 = vadd.f32 %v2340, %v2360
        %v2363 = vadd.f32 %v2341, %v2361
        %v2364 = vstv %s885
        %v2365 = vmul.f32 %v2351, %v2364
        %v2366 = vmul.f32 %v2352, %v2364
        %v2367 = vadd.f32 %v2345, %v2365
        %v2368 = vadd.f32 %v2346, %v2366
        %v2369 = vstv %s932
        %v2370 = vmul.f32 %v1861, %v2369
        %v2371 = vmul.f32 %v1862, %v2369
        %v2372 = vadd.f32 %v2362, %v2370
        %v2373 = vadd.f32 %v2363, %v2371
        %v2374 = vstv %s933
        %v2375 = vmul.f32 %v1861, %v2374
        %v2376 = vmul.f32 %v1862, %v2374
        %v2377 = vadd.f32 %v2367, %v2375
        %v2378 = vadd.f32 %v2368, %v2376
        %v2379 = vstv %s980
        %v2380 = vmul.f32 %v2357, %v2379
        %v2381 = vmul.f32 %v2358, %v2379
        %v2382 = vadd.f32 %v2372, %v2380
        %v2383 = vadd.f32 %v2373, %v2381
        %v2384 = vstv %s981
        %v2385 = vmul.f32 %v2357, %v2384
        %v2386 = vmul.f32 %v2358, %v2384
        %v2387 = vadd.f32 %v2377, %v2385
        %v2388 = vadd.f32 %v2378, %v2386
        %v2389 = vrot.slane %v2303, 7
        %v2390 = vrot.slane %v2304, 7
        %v2391 = vsel %vm1055, %v2389, %v2390
        %v2392 = vsel %vm1055, %v2390, %v2389
        %v2393 = vmul.f32 %v2392, %v1029
        %v2394 = vmul.f32 %v2391, %v1030
        %v2395 = vrot.slane %v2303, 1
        %v2396 = vrot.slane %v2304, 1
        %v2397 = vsel %vm1062, %v2395, %v2396
        %v2398 = vsel %vm1062, %v2396, %v2395
        %v2399 = vmul.f32 %v2397, %v1035
        %v2400 = vmul.f32 %v2398, %v1036
        %v2401 = vstv %s900
        %v2402 = vmul.f32 %v2393, %v2401
        %v2403 = vmul.f32 %v2394, %v2401
        %v2404 = vadd.f32 %v2382, %v2402
        %v2405 = vadd.f32 %v2383, %v2403
        %v2406 = vstv %s901
        %v2407 = vmul.f32 %v2393, %v2406
        %v2408 = vmul.f32 %v2394, %v2406
        %v2409 = vadd.f32 %v2387, %v2407
        %v2410 = vadd.f32 %v2388, %v2408
        %v2411 = vstv %s948
        %v2412 = vmul.f32 %v2303, %v2411
        %v2413 = vmul.f32 %v2304, %v2411
        %v2414 = vadd.f32 %v2404, %v2412
        %v2415 = vadd.f32 %v2405, %v2413
        %v2416 = vstv %s949
        %v2417 = vmul.f32 %v2303, %v2416
        %v2418 = vmul.f32 %v2304, %v2416
        %v2419 = vadd.f32 %v2409, %v2417
        %v2420 = vadd.f32 %v2410, %v2418
        %v2421 = vstv %s996
        %v2422 = vmul.f32 %v2399, %v2421
        %v2423 = vmul.f32 %v2400, %v2421
        %v2424 = vadd.f32 %v2414, %v2422
        %v2425 = vadd.f32 %v2415, %v2423
        %v2426 = vstv %s997
        %v2427 = vmul.f32 %v2399, %v2426
        %v2428 = vmul.f32 %v2400, %v2426
        %v2429 = vadd.f32 %v2419, %v2427
        %v2430 = vadd.f32 %v2420, %v2428
        %2431 = vrot.lane.b32.xlu0 %v1866, 1
        %v2432 = vpop.permute.xlu0 %2431
        %2433 = vrot.lane.b32.xlu0 %v1867, 1
        %v2434 = vpop.permute.xlu0 %2433
        %v2435 = vmul.f32 %v2432, %v1022
        %v2436 = vmul.f32 %v2434, %v1022
        %2437 = vrot.lane.b32.xlu0 %v1866, 127
        %v2438 = vpop.permute.xlu0 %2437
        %2439 = vrot.lane.b32.xlu0 %v1867, 127
        %v2440 = vpop.permute.xlu0 %2439
        %v2441 = vmul.f32 %v2438, %v1024
        %v2442 = vmul.f32 %v2440, %v1024
        %v2443 = vrot.slane %v2435, 7
        %v2444 = vrot.slane %v2436, 7
        %v2445 = vsel %vm1055, %v2443, %v2444
        %v2446 = vsel %vm1055, %v2444, %v2443
        %v2447 = vmul.f32 %v2446, %v1029
        %v2448 = vmul.f32 %v2445, %v1030
        %v2449 = vrot.slane %v2435, 1
        %v2450 = vrot.slane %v2436, 1
        %v2451 = vsel %vm1062, %v2449, %v2450
        %v2452 = vsel %vm1062, %v2450, %v2449
        %v2453 = vmul.f32 %v2451, %v1035
        %v2454 = vmul.f32 %v2452, %v1036
        %v2455 = vstv %s870
        %v2456 = vmul.f32 %v2447, %v2455
        %v2457 = vmul.f32 %v2448, %v2455
        %v2458 = vadd.f32 %v2424, %v2456
        %v2459 = vadd.f32 %v2425, %v2457
        %v2460 = vstv %s871
        %v2461 = vmul.f32 %v2447, %v2460
        %v2462 = vmul.f32 %v2448, %v2460
        %v2463 = vadd.f32 %v2429, %v2461
        %v2464 = vadd.f32 %v2430, %v2462
        %v2465 = vstv %s918
        %v2466 = vmul.f32 %v2435, %v2465
        %v2467 = vmul.f32 %v2436, %v2465
        %v2468 = vadd.f32 %v2458, %v2466
        %v2469 = vadd.f32 %v2459, %v2467
        %v2470 = vstv %s919
        %v2471 = vmul.f32 %v2435, %v2470
        %v2472 = vmul.f32 %v2436, %v2470
        %v2473 = vadd.f32 %v2463, %v2471
        %v2474 = vadd.f32 %v2464, %v2472
        %v2475 = vstv %s966
        %v2476 = vmul.f32 %v2453, %v2475
        %v2477 = vmul.f32 %v2454, %v2475
        %v2478 = vadd.f32 %v2468, %v2476
        %v2479 = vadd.f32 %v2469, %v2477
        %v2480 = vstv %s967
        %v2481 = vmul.f32 %v2453, %v2480
        %v2482 = vmul.f32 %v2454, %v2480
        %v2483 = vadd.f32 %v2473, %v2481
        %v2484 = vadd.f32 %v2474, %v2482
        %v2485 = vrot.slane %v1866, 7
        %v2486 = vrot.slane %v1867, 7
        %v2487 = vsel %vm1055, %v2485, %v2486
        %v2488 = vsel %vm1055, %v2486, %v2485
        %v2489 = vmul.f32 %v2488, %v1029
        %v2490 = vmul.f32 %v2487, %v1030
        %v2491 = vrot.slane %v1866, 1
        %v2492 = vrot.slane %v1867, 1
        %v2493 = vsel %vm1062, %v2491, %v2492
        %v2494 = vsel %vm1062, %v2492, %v2491
        %v2495 = vmul.f32 %v2493, %v1035
        %v2496 = vmul.f32 %v2494, %v1036
        %v2497 = vstv %s886
        %v2498 = vmul.f32 %v2489, %v2497
        %v2499 = vmul.f32 %v2490, %v2497
        %v2500 = vadd.f32 %v2478, %v2498
        %v2501 = vadd.f32 %v2479, %v2499
        %v2502 = vstv %s887
        %v2503 = vmul.f32 %v2489, %v2502
        %v2504 = vmul.f32 %v2490, %v2502
        %v2505 = vadd.f32 %v2483, %v2503
        %v2506 = vadd.f32 %v2484, %v2504
        %v2507 = vstv %s934
        %v2508 = vmul.f32 %v1866, %v2507
        %v2509 = vmul.f32 %v1867, %v2507
        %v2510 = vadd.f32 %v2500, %v2508
        %v2511 = vadd.f32 %v2501, %v2509
        %v2512 = vstv %s935
        %v2513 = vmul.f32 %v1866, %v2512
        %v2514 = vmul.f32 %v1867, %v2512
        %v2515 = vadd.f32 %v2505, %v2513
        %v2516 = vadd.f32 %v2506, %v2514
        %v2517 = vstv %s982
        %v2518 = vmul.f32 %v2495, %v2517
        %v2519 = vmul.f32 %v2496, %v2517
        %v2520 = vadd.f32 %v2510, %v2518
        %v2521 = vadd.f32 %v2511, %v2519
        %v2522 = vstv %s983
        %v2523 = vmul.f32 %v2495, %v2522
        %v2524 = vmul.f32 %v2496, %v2522
        %v2525 = vadd.f32 %v2515, %v2523
        %v2526 = vadd.f32 %v2516, %v2524
        %v2527 = vrot.slane %v2441, 7
        %v2528 = vrot.slane %v2442, 7
        %v2529 = vsel %vm1055, %v2527, %v2528
        %v2530 = vsel %vm1055, %v2528, %v2527
        %v2531 = vmul.f32 %v2530, %v1029
        %v2532 = vmul.f32 %v2529, %v1030
        %v2533 = vrot.slane %v2441, 1
        %v2534 = vrot.slane %v2442, 1
        %v2535 = vsel %vm1062, %v2533, %v2534
        %v2536 = vsel %vm1062, %v2534, %v2533
        %v2537 = vmul.f32 %v2535, %v1035
        %v2538 = vmul.f32 %v2536, %v1036
        %v2539 = vstv %s902
        %v2540 = vmul.f32 %v2531, %v2539
        %v2541 = vmul.f32 %v2532, %v2539
        %v2542 = vadd.f32 %v2520, %v2540
        %v2543 = vadd.f32 %v2521, %v2541
        %v2544 = vstv %s903
        %v2545 = vmul.f32 %v2531, %v2544
        %v2546 = vmul.f32 %v2532, %v2544
        %v2547 = vadd.f32 %v2525, %v2545
        %v2548 = vadd.f32 %v2526, %v2546
        %v2549 = vstv %s950
        %v2550 = vmul.f32 %v2441, %v2549
        %v2551 = vmul.f32 %v2442, %v2549
        %v2552 = vadd.f32 %v2542, %v2550
        %v2553 = vadd.f32 %v2543, %v2551
        %v2554 = vstv %s951
        %v2555 = vmul.f32 %v2441, %v2554
        %v2556 = vmul.f32 %v2442, %v2554
        %v2557 = vadd.f32 %v2547, %v2555
        %v2558 = vadd.f32 %v2548, %v2556
        %v2559 = vstv %s998
        %v2560 = vmul.f32 %v2537, %v2559
        %v2561 = vmul.f32 %v2538, %v2559
        %v2562 = vadd.f32 %v2552, %v2560
        %v2563 = vadd.f32 %v2553, %v2561
        %v2564 = vstv %s999
        %v2565 = vmul.f32 %v2537, %v2564
        %v2566 = vmul.f32 %v2538, %v2564
        %v2567 = vadd.f32 %v2557, %v2565
        %v2568 = vadd.f32 %v2558, %v2566
        %2569 = vrot.lane.b32.xlu0 %v1871, 1
        %v2570 = vpop.permute.xlu0 %2569
        %2571 = vrot.lane.b32.xlu0 %v1872, 1
        %v2572 = vpop.permute.xlu0 %2571
        %v2573 = vmul.f32 %v2570, %v1022
        %v2574 = vmul.f32 %v2572, %v1022
        %2575 = vrot.lane.b32.xlu0 %v1871, 127
        %v2576 = vpop.permute.xlu0 %2575
        %2577 = vrot.lane.b32.xlu0 %v1872, 127
        %v2578 = vpop.permute.xlu0 %2577
        %v2579 = vmul.f32 %v2576, %v1024
        %v2580 = vmul.f32 %v2578, %v1024
        %v2581 = vrot.slane %v2573, 7
        %v2582 = vrot.slane %v2574, 7
        %v2583 = vsel %vm1055, %v2581, %v2582
        %v2584 = vsel %vm1055, %v2582, %v2581
        %v2585 = vmul.f32 %v2584, %v1029
        %v2586 = vmul.f32 %v2583, %v1030
        %v2587 = vrot.slane %v2573, 1
        %v2588 = vrot.slane %v2574, 1
        %v2589 = vsel %vm1062, %v2587, %v2588
        %v2590 = vsel %vm1062, %v2588, %v2587
        %v2591 = vmul.f32 %v2589, %v1035
        %v2592 = vmul.f32 %v2590, %v1036
        %v2593 = vstv %s872
        %v2594 = vmul.f32 %v2585, %v2593
        %v2595 = vmul.f32 %v2586, %v2593
        %v2596 = vadd.f32 %v2562, %v2594
        %v2597 = vadd.f32 %v2563, %v2595
        %v2598 = vstv %s873
        %v2599 = vmul.f32 %v2585, %v2598
        %v2600 = vmul.f32 %v2586, %v2598
        %v2601 = vadd.f32 %v2567, %v2599
        %v2602 = vadd.f32 %v2568, %v2600
        %v2603 = vstv %s920
        %v2604 = vmul.f32 %v2573, %v2603
        %v2605 = vmul.f32 %v2574, %v2603
        %v2606 = vadd.f32 %v2596, %v2604
        %v2607 = vadd.f32 %v2597, %v2605
        %v2608 = vstv %s921
        %v2609 = vmul.f32 %v2573, %v2608
        %v2610 = vmul.f32 %v2574, %v2608
        %v2611 = vadd.f32 %v2601, %v2609
        %v2612 = vadd.f32 %v2602, %v2610
        %v2613 = vstv %s968
        %v2614 = vmul.f32 %v2591, %v2613
        %v2615 = vmul.f32 %v2592, %v2613
        %v2616 = vadd.f32 %v2606, %v2614
        %v2617 = vadd.f32 %v2607, %v2615
        %v2618 = vstv %s969
        %v2619 = vmul.f32 %v2591, %v2618
        %v2620 = vmul.f32 %v2592, %v2618
        %v2621 = vadd.f32 %v2611, %v2619
        %v2622 = vadd.f32 %v2612, %v2620
        %v2623 = vrot.slane %v1871, 7
        %v2624 = vrot.slane %v1872, 7
        %v2625 = vsel %vm1055, %v2623, %v2624
        %v2626 = vsel %vm1055, %v2624, %v2623
        %v2627 = vmul.f32 %v2626, %v1029
        %v2628 = vmul.f32 %v2625, %v1030
        %v2629 = vrot.slane %v1871, 1
        %v2630 = vrot.slane %v1872, 1
        %v2631 = vsel %vm1062, %v2629, %v2630
        %v2632 = vsel %vm1062, %v2630, %v2629
        %v2633 = vmul.f32 %v2631, %v1035
        %v2634 = vmul.f32 %v2632, %v1036
        %v2635 = vstv %s888
        %v2636 = vmul.f32 %v2627, %v2635
        %v2637 = vmul.f32 %v2628, %v2635
        %v2638 = vadd.f32 %v2616, %v2636
        %v2639 = vadd.f32 %v2617, %v2637
        %v2640 = vstv %s889
        %v2641 = vmul.f32 %v2627, %v2640
        %v2642 = vmul.f32 %v2628, %v2640
        %v2643 = vadd.f32 %v2621, %v2641
        %v2644 = vadd.f32 %v2622, %v2642
        %v2645 = vstv %s936
        %v2646 = vmul.f32 %v1871, %v2645
        %v2647 = vmul.f32 %v1872, %v2645
        %v2648 = vadd.f32 %v2638, %v2646
        %v2649 = vadd.f32 %v2639, %v2647
        %v2650 = vstv %s937
        %v2651 = vmul.f32 %v1871, %v2650
        %v2652 = vmul.f32 %v1872, %v2650
        %v2653 = vadd.f32 %v2643, %v2651
        %v2654 = vadd.f32 %v2644, %v2652
        %v2655 = vstv %s984
        %v2656 = vmul.f32 %v2633, %v2655
        %v2657 = vmul.f32 %v2634, %v2655
        %v2658 = vadd.f32 %v2648, %v2656
        %v2659 = vadd.f32 %v2649, %v2657
        %v2660 = vstv %s985
        %v2661 = vmul.f32 %v2633, %v2660
        %v2662 = vmul.f32 %v2634, %v2660
        %v2663 = vadd.f32 %v2653, %v2661
        %v2664 = vadd.f32 %v2654, %v2662
        %v2665 = vrot.slane %v2579, 7
        %v2666 = vrot.slane %v2580, 7
        %v2667 = vsel %vm1055, %v2665, %v2666
        %v2668 = vsel %vm1055, %v2666, %v2665
        %v2669 = vmul.f32 %v2668, %v1029
        %v2670 = vmul.f32 %v2667, %v1030
        %v2671 = vrot.slane %v2579, 1
        %v2672 = vrot.slane %v2580, 1
        %v2673 = vsel %vm1062, %v2671, %v2672
        %v2674 = vsel %vm1062, %v2672, %v2671
        %v2675 = vmul.f32 %v2673, %v1035
        %v2676 = vmul.f32 %v2674, %v1036
        %v2677 = vstv %s904
        %v2678 = vmul.f32 %v2669, %v2677
        %v2679 = vmul.f32 %v2670, %v2677
        %v2680 = vadd.f32 %v2658, %v2678
        %v2681 = vadd.f32 %v2659, %v2679
        %v2682 = vstv %s905
        %v2683 = vmul.f32 %v2669, %v2682
        %v2684 = vmul.f32 %v2670, %v2682
        %v2685 = vadd.f32 %v2663, %v2683
        %v2686 = vadd.f32 %v2664, %v2684
        %v2687 = vstv %s952
        %v2688 = vmul.f32 %v2579, %v2687
        %v2689 = vmul.f32 %v2580, %v2687
        %v2690 = vadd.f32 %v2680, %v2688
        %v2691 = vadd.f32 %v2681, %v2689
        %v2692 = vstv %s953
        %v2693 = vmul.f32 %v2579, %v2692
        %v2694 = vmul.f32 %v2580, %v2692
        %v2695 = vadd.f32 %v2685, %v2693
        %v2696 = vadd.f32 %v2686, %v2694
        %v2697 = vstv %s1000
        %v2698 = vmul.f32 %v2675, %v2697
        %v2699 = vmul.f32 %v2676, %v2697
        %v2700 = vadd.f32 %v2690, %v2698
        %v2701 = vadd.f32 %v2691, %v2699
        %v2702 = vstv %s1001
        %v2703 = vmul.f32 %v2675, %v2702
        %v2704 = vmul.f32 %v2676, %v2702
        %v2705 = vadd.f32 %v2695, %v2703
        %v2706 = vadd.f32 %v2696, %v2704
        %2707 = vrot.lane.b32.xlu0 %v1876, 1
        %v2708 = vpop.permute.xlu0 %2707
        %2709 = vrot.lane.b32.xlu0 %v1877, 1
        %v2710 = vpop.permute.xlu0 %2709
        %v2711 = vmul.f32 %v2708, %v1022
        %v2712 = vmul.f32 %v2710, %v1022
        %2713 = vrot.lane.b32.xlu0 %v1876, 127
        %v2714 = vpop.permute.xlu0 %2713
        %2715 = vrot.lane.b32.xlu0 %v1877, 127
        %v2716 = vpop.permute.xlu0 %2715
        %v2717 = vmul.f32 %v2714, %v1024
        %v2718 = vmul.f32 %v2716, %v1024
        %v2719 = vrot.slane %v2711, 7
        %v2720 = vrot.slane %v2712, 7
        %v2721 = vsel %vm1055, %v2719, %v2720
        %v2722 = vsel %vm1055, %v2720, %v2719
        %v2723 = vmul.f32 %v2722, %v1029
        %v2724 = vmul.f32 %v2721, %v1030
        %v2725 = vrot.slane %v2711, 1
        %v2726 = vrot.slane %v2712, 1
        %v2727 = vsel %vm1062, %v2725, %v2726
        %v2728 = vsel %vm1062, %v2726, %v2725
        %v2729 = vmul.f32 %v2727, %v1035
        %v2730 = vmul.f32 %v2728, %v1036
        %v2731 = vstv %s874
        %v2732 = vmul.f32 %v2723, %v2731
        %v2733 = vmul.f32 %v2724, %v2731
        %v2734 = vadd.f32 %v2700, %v2732
        %v2735 = vadd.f32 %v2701, %v2733
        %v2736 = vstv %s875
        %v2737 = vmul.f32 %v2723, %v2736
        %v2738 = vmul.f32 %v2724, %v2736
        %v2739 = vadd.f32 %v2705, %v2737
        %v2740 = vadd.f32 %v2706, %v2738
        %v2741 = vstv %s922
        %v2742 = vmul.f32 %v2711, %v2741
        %v2743 = vmul.f32 %v2712, %v2741
        %v2744 = vadd.f32 %v2734, %v2742
        %v2745 = vadd.f32 %v2735, %v2743
        %v2746 = vstv %s923
        %v2747 = vmul.f32 %v2711, %v2746
        %v2748 = vmul.f32 %v2712, %v2746
        %v2749 = vadd.f32 %v2739, %v2747
        %v2750 = vadd.f32 %v2740, %v2748
        %v2751 = vstv %s970
        %v2752 = vmul.f32 %v2729, %v2751
        %v2753 = vmul.f32 %v2730, %v2751
        %v2754 = vadd.f32 %v2744, %v2752
        %v2755 = vadd.f32 %v2745, %v2753
        %v2756 = vstv %s971
        %v2757 = vmul.f32 %v2729, %v2756
        %v2758 = vmul.f32 %v2730, %v2756
        %v2759 = vadd.f32 %v2749, %v2757
        %v2760 = vadd.f32 %v2750, %v2758
        %v2761 = vrot.slane %v1876, 7
        %v2762 = vrot.slane %v1877, 7
        %v2763 = vsel %vm1055, %v2761, %v2762
        %v2764 = vsel %vm1055, %v2762, %v2761
        %v2765 = vmul.f32 %v2764, %v1029
        %v2766 = vmul.f32 %v2763, %v1030
        %v2767 = vrot.slane %v1876, 1
        %v2768 = vrot.slane %v1877, 1
        %v2769 = vsel %vm1062, %v2767, %v2768
        %v2770 = vsel %vm1062, %v2768, %v2767
        %v2771 = vmul.f32 %v2769, %v1035
        %v2772 = vmul.f32 %v2770, %v1036
        %v2773 = vstv %s890
        %v2774 = vmul.f32 %v2765, %v2773
        %v2775 = vmul.f32 %v2766, %v2773
        %v2776 = vadd.f32 %v2754, %v2774
        %v2777 = vadd.f32 %v2755, %v2775
        %v2778 = vstv %s891
        %v2779 = vmul.f32 %v2765, %v2778
        %v2780 = vmul.f32 %v2766, %v2778
        %v2781 = vadd.f32 %v2759, %v2779
        %v2782 = vadd.f32 %v2760, %v2780
        %v2783 = vstv %s938
        %v2784 = vmul.f32 %v1876, %v2783
        %v2785 = vmul.f32 %v1877, %v2783
        %v2786 = vadd.f32 %v2776, %v2784
        %v2787 = vadd.f32 %v2777, %v2785
        %v2788 = vstv %s939
        %v2789 = vmul.f32 %v1876, %v2788
        %v2790 = vmul.f32 %v1877, %v2788
        %v2791 = vadd.f32 %v2781, %v2789
        %v2792 = vadd.f32 %v2782, %v2790
        %v2793 = vstv %s986
        %v2794 = vmul.f32 %v2771, %v2793
        %v2795 = vmul.f32 %v2772, %v2793
        %v2796 = vadd.f32 %v2786, %v2794
        %v2797 = vadd.f32 %v2787, %v2795
        %v2798 = vstv %s987
        %v2799 = vmul.f32 %v2771, %v2798
        %v2800 = vmul.f32 %v2772, %v2798
        %v2801 = vadd.f32 %v2791, %v2799
        %v2802 = vadd.f32 %v2792, %v2800
        %v2803 = vrot.slane %v2717, 7
        %v2804 = vrot.slane %v2718, 7
        %v2805 = vsel %vm1055, %v2803, %v2804
        %v2806 = vsel %vm1055, %v2804, %v2803
        %v2807 = vmul.f32 %v2806, %v1029
        %v2808 = vmul.f32 %v2805, %v1030
        %v2809 = vrot.slane %v2717, 1
        %v2810 = vrot.slane %v2718, 1
        %v2811 = vsel %vm1062, %v2809, %v2810
        %v2812 = vsel %vm1062, %v2810, %v2809
        %v2813 = vmul.f32 %v2811, %v1035
        %v2814 = vmul.f32 %v2812, %v1036
        %v2815 = vstv %s906
        %v2816 = vmul.f32 %v2807, %v2815
        %v2817 = vmul.f32 %v2808, %v2815
        %v2818 = vadd.f32 %v2796, %v2816
        %v2819 = vadd.f32 %v2797, %v2817
        %v2820 = vstv %s907
        %v2821 = vmul.f32 %v2807, %v2820
        %v2822 = vmul.f32 %v2808, %v2820
        %v2823 = vadd.f32 %v2801, %v2821
        %v2824 = vadd.f32 %v2802, %v2822
        %v2825 = vstv %s954
        %v2826 = vmul.f32 %v2717, %v2825
        %v2827 = vmul.f32 %v2718, %v2825
        %v2828 = vadd.f32 %v2818, %v2826
        %v2829 = vadd.f32 %v2819, %v2827
        %v2830 = vstv %s955
        %v2831 = vmul.f32 %v2717, %v2830
        %v2832 = vmul.f32 %v2718, %v2830
        %v2833 = vadd.f32 %v2823, %v2831
        %v2834 = vadd.f32 %v2824, %v2832
        %v2835 = vstv %s1002
        %v2836 = vmul.f32 %v2813, %v2835
        %v2837 = vmul.f32 %v2814, %v2835
        %v2838 = vadd.f32 %v2828, %v2836
        %v2839 = vadd.f32 %v2829, %v2837
        %v2840 = vstv %s1003
        %v2841 = vmul.f32 %v2813, %v2840
        %v2842 = vmul.f32 %v2814, %v2840
        %v2843 = vadd.f32 %v2833, %v2841
        %v2844 = vadd.f32 %v2834, %v2842
        %2845 = vrot.lane.b32.xlu0 %v1881, 1
        %v2846 = vpop.permute.xlu0 %2845
        %2847 = vrot.lane.b32.xlu0 %v1882, 1
        %v2848 = vpop.permute.xlu0 %2847
        %v2849 = vmul.f32 %v2846, %v1022
        %v2850 = vmul.f32 %v2848, %v1022
        %2851 = vrot.lane.b32.xlu0 %v1881, 127
        %v2852 = vpop.permute.xlu0 %2851
        %2853 = vrot.lane.b32.xlu0 %v1882, 127
        %v2854 = vpop.permute.xlu0 %2853
        %v2855 = vmul.f32 %v2852, %v1024
        %v2856 = vmul.f32 %v2854, %v1024
        %v2857 = vrot.slane %v2849, 7
        %v2858 = vrot.slane %v2850, 7
        %v2859 = vsel %vm1055, %v2857, %v2858
        %v2860 = vsel %vm1055, %v2858, %v2857
        %v2861 = vmul.f32 %v2860, %v1029
        %v2862 = vmul.f32 %v2859, %v1030
        %v2863 = vrot.slane %v2849, 1
        %v2864 = vrot.slane %v2850, 1
        %v2865 = vsel %vm1062, %v2863, %v2864
        %v2866 = vsel %vm1062, %v2864, %v2863
        %v2867 = vmul.f32 %v2865, %v1035
        %v2868 = vmul.f32 %v2866, %v1036
        %v2869 = vstv %s876
        %v2870 = vmul.f32 %v2861, %v2869
        %v2871 = vmul.f32 %v2862, %v2869
        %v2872 = vadd.f32 %v2838, %v2870
        %v2873 = vadd.f32 %v2839, %v2871
        %v2874 = vstv %s877
        %v2875 = vmul.f32 %v2861, %v2874
        %v2876 = vmul.f32 %v2862, %v2874
        %v2877 = vadd.f32 %v2843, %v2875
        %v2878 = vadd.f32 %v2844, %v2876
        %v2879 = vstv %s924
        %v2880 = vmul.f32 %v2849, %v2879
        %v2881 = vmul.f32 %v2850, %v2879
        %v2882 = vadd.f32 %v2872, %v2880
        %v2883 = vadd.f32 %v2873, %v2881
        %v2884 = vstv %s925
        %v2885 = vmul.f32 %v2849, %v2884
        %v2886 = vmul.f32 %v2850, %v2884
        %v2887 = vadd.f32 %v2877, %v2885
        %v2888 = vadd.f32 %v2878, %v2886
        %v2889 = vstv %s972
        %v2890 = vmul.f32 %v2867, %v2889
        %v2891 = vmul.f32 %v2868, %v2889
        %v2892 = vadd.f32 %v2882, %v2890
        %v2893 = vadd.f32 %v2883, %v2891
        %v2894 = vstv %s973
        %v2895 = vmul.f32 %v2867, %v2894
        %v2896 = vmul.f32 %v2868, %v2894
        %v2897 = vadd.f32 %v2887, %v2895
        %v2898 = vadd.f32 %v2888, %v2896
        %v2899 = vrot.slane %v1881, 7
        %v2900 = vrot.slane %v1882, 7
        %v2901 = vsel %vm1055, %v2899, %v2900
        %v2902 = vsel %vm1055, %v2900, %v2899
        %v2903 = vmul.f32 %v2902, %v1029
        %v2904 = vmul.f32 %v2901, %v1030
        %v2905 = vrot.slane %v1881, 1
        %v2906 = vrot.slane %v1882, 1
        %v2907 = vsel %vm1062, %v2905, %v2906
        %v2908 = vsel %vm1062, %v2906, %v2905
        %v2909 = vmul.f32 %v2907, %v1035
        %v2910 = vmul.f32 %v2908, %v1036
        %v2911 = vstv %s892
        %v2912 = vmul.f32 %v2903, %v2911
        %v2913 = vmul.f32 %v2904, %v2911
        %v2914 = vadd.f32 %v2892, %v2912
        %v2915 = vadd.f32 %v2893, %v2913
        %v2916 = vstv %s893
        %v2917 = vmul.f32 %v2903, %v2916
        %v2918 = vmul.f32 %v2904, %v2916
        %v2919 = vadd.f32 %v2897, %v2917
        %v2920 = vadd.f32 %v2898, %v2918
        %v2921 = vstv %s940
        %v2922 = vmul.f32 %v1881, %v2921
        %v2923 = vmul.f32 %v1882, %v2921
        %v2924 = vadd.f32 %v2914, %v2922
        %v2925 = vadd.f32 %v2915, %v2923
        %v2926 = vstv %s941
        %v2927 = vmul.f32 %v1881, %v2926
        %v2928 = vmul.f32 %v1882, %v2926
        %v2929 = vadd.f32 %v2919, %v2927
        %v2930 = vadd.f32 %v2920, %v2928
        %v2931 = vstv %s988
        %v2932 = vmul.f32 %v2909, %v2931
        %v2933 = vmul.f32 %v2910, %v2931
        %v2934 = vadd.f32 %v2924, %v2932
        %v2935 = vadd.f32 %v2925, %v2933
        %v2936 = vstv %s989
        %v2937 = vmul.f32 %v2909, %v2936
        %v2938 = vmul.f32 %v2910, %v2936
        %v2939 = vadd.f32 %v2929, %v2937
        %v2940 = vadd.f32 %v2930, %v2938
        %v2941 = vrot.slane %v2855, 7
        %v2942 = vrot.slane %v2856, 7
        %v2943 = vsel %vm1055, %v2941, %v2942
        %v2944 = vsel %vm1055, %v2942, %v2941
        %v2945 = vmul.f32 %v2944, %v1029
        %v2946 = vmul.f32 %v2943, %v1030
        %v2947 = vrot.slane %v2855, 1
        %v2948 = vrot.slane %v2856, 1
        %v2949 = vsel %vm1062, %v2947, %v2948
        %v2950 = vsel %vm1062, %v2948, %v2947
        %v2951 = vmul.f32 %v2949, %v1035
        %v2952 = vmul.f32 %v2950, %v1036
        %v2953 = vstv %s908
        %v2954 = vmul.f32 %v2945, %v2953
        %v2955 = vmul.f32 %v2946, %v2953
        %v2956 = vadd.f32 %v2934, %v2954
        %v2957 = vadd.f32 %v2935, %v2955
        %v2958 = vstv %s909
        %v2959 = vmul.f32 %v2945, %v2958
        %v2960 = vmul.f32 %v2946, %v2958
        %v2961 = vadd.f32 %v2939, %v2959
        %v2962 = vadd.f32 %v2940, %v2960
        %v2963 = vstv %s956
        %v2964 = vmul.f32 %v2855, %v2963
        %v2965 = vmul.f32 %v2856, %v2963
        %v2966 = vadd.f32 %v2956, %v2964
        %v2967 = vadd.f32 %v2957, %v2965
        %v2968 = vstv %s957
        %v2969 = vmul.f32 %v2855, %v2968
        %v2970 = vmul.f32 %v2856, %v2968
        %v2971 = vadd.f32 %v2961, %v2969
        %v2972 = vadd.f32 %v2962, %v2970
        %v2973 = vstv %s1004
        %v2974 = vmul.f32 %v2951, %v2973
        %v2975 = vmul.f32 %v2952, %v2973
        %v2976 = vadd.f32 %v2966, %v2974
        %v2977 = vadd.f32 %v2967, %v2975
        %v2978 = vstv %s1005
        %v2979 = vmul.f32 %v2951, %v2978
        %v2980 = vmul.f32 %v2952, %v2978
        %v2981 = vadd.f32 %v2971, %v2979
        %v2982 = vadd.f32 %v2972, %v2980
        %v2983 = vstv %s1007
        %v2984 = vadd.f32 %v2976, %v2983
        %v2985 = vadd.f32 %v2977, %v2983
        %v2986 = vstv %s1009
        %v2987 = vadd.f32 %v2981, %v2986
        %v2988 = vadd.f32 %v2982, %v2986
        %v2989 = vadd.f32 %v1037, %v2984
        %v2990 = vadd.f32 %v1038, %v2985
        %2991 = vst [vmem:[#allocation24] sm:$0xff] %v2989
        %2992 = vst [vmem:[#allocation24 + $0x8] sm:$0xff] %v2990
        %v2993 = vadd.f32 %v1039, %v2987
        %v2994 = vadd.f32 %v1040, %v2988
        %2995 = vst [vmem:[#allocation24 + $0x10] sm:$0xff] %v2993
        %2996 = vst [vmem:[#allocation24 + $0x18] sm:$0xff] %v2994
        %v2997 = vld [vmem:[#allocation12] sm:$0xff]
        %v2998 = vld [vmem:[#allocation12 + $0x8] sm:$0xff]
        %v2999 = vld [vmem:[#allocation12 + $0x10] sm:$0xff]
        %v3000 = vld [vmem:[#allocation12 + $0x18] sm:$0xff]
        %v3001 = vld [vmem:[#allocation24] sm:$0xff]
        %v3002 = vld [vmem:[#allocation24 + $0x8] sm:$0xff]
        %v3003 = vld [vmem:[#allocation24 + $0x10] sm:$0xff]
        %v3004 = vld [vmem:[#allocation24 + $0x18] sm:$0xff]
        %vm3005 = vcmask 261120
        %v3007 = vsel %vm3005, %v2997, 0
        %v3010 = vsel %vm3005, %v2998, 0
        %v3013 = vsel %vm3005, %v2999, 0
        %v3016 = vsel %vm3005, %v3000, 0
        %3018 = vmatprep.subr.mxu0 0.0
        %3019 = vmatpush1.msra.mxu0 0.0
        %3020 = vmatprep.subr.mxu0 0.0
        %3021 = vmatpush1.msra.mxu0 0.0
        %3022 = vmatprep.subr.mxu0 0.0
        %3023 = vmatpush1.msra.mxu0 0.0
        %3024 = vmatprep.subr.mxu0 0.0
        %3025 = vmatpush1.msra.mxu0 0.0
        %3026 = vmatprep.subr.mxu0 0.0
        %3027 = vmatpush1.msra.mxu0 0.0
        %3028 = vmatprep.subr.mxu0 0.0
        %3029 = vmatpush1.msra.mxu0 0.0
        %3030 = vmatprep.subr.mxu0 0.0
        %3031 = vmatpush1.msra.mxu0 0.0
        %3032 = vmatprep.subr.mxu0 0.0
        %3033 = vmatpush1.msra.mxu0 0.0
        %3034 = vmatprep.subr.mxu0 0.0
        %3035 = vmatpush1.msra.mxu0 0.0
        %3036 = vmatprep.subr.mxu0 0.0
        %3037 = vmatpush1.msra.mxu0 0.0
        %3038 = vmatprep.subr.mxu0 0.0
        %3039 = vmatpush1.msra.mxu0 0.0
        %3040 = vmatprep.subr.mxu0 0.0
        %3041 = vmatpush1.msra.mxu0 0.0
        %3042 = vmatprep.subr.mxu0 0.0
        %3043 = vmatpush1.msra.mxu0 %v3004
        %3044 = vmatprep.subr.mxu0 0.0
        %3045 = vmatpush1.msra.mxu0 %v3003
        %3046 = vmatprep.subr.mxu0 0.0
        %3047 = vmatpush1.msra.mxu0 %v3002
        %3048 = vmatprep.subr.mxu0 0.0
        %3049 = vmatpush1.msra.mxu0 %v3001
        %3050 = vmatprep.subr.mxu0 0.0
        %3051 = vmatpush2.msra.mxu0 0.0
        %3052 = vmatprep.subr.mxu0 0.0
        %3053 = vmatpush2.msra.mxu0 0.0
        %3054 = vmatprep.subr.mxu0 0.0
        %3055 = vmatpush2.msra.mxu0 0.0
        %3056 = vmatprep.subr.mxu0 0.0
        %3057 = vmatpush2.msra.mxu0 0.0
        %3058 = vmatprep.subr.mxu0 0.0
        %3059 = vmatpush2.msra.mxu0 0.0
        %3060 = vmatprep.subr.mxu0 0.0
        %3061 = vmatpush2.msra.mxu0 0.0
        %3062 = vmatprep.subr.mxu0 0.0
        %3063 = vmatpush2.msra.mxu0 0.0
        %3064 = vmatprep.subr.mxu0 0.0
        %3065 = vmatpush2.msra.mxu0 0.0
        %3066 = vmatprep.subr.mxu0 0.0
        %3067 = vmatpush2.msra.mxu0 0.0
        %3068 = vmatprep.subr.mxu0 0.0
        %3069 = vmatpush2.msra.mxu0 0.0
        %3070 = vmatprep.subr.mxu0 0.0
        %3071 = vmatpush2.msra.mxu0 0.0
        %3072 = vmatprep.subr.mxu0 0.0
        %3073 = vmatpush2.msra.mxu0 0.0
        %3074 = vmatprep.subr.mxu0 0.0
        %3075 = vmatpush2.msra.mxu0 0.0
        %3076 = vmatprep.subr.mxu0 0.0
        %3077 = vmatpush2.msra.mxu0 0.0
        %3078 = vmatprep.subr.mxu0 0.0
        %3079 = vmatpush2.msra.mxu0 0.0
        %3080 = vmatprep.subr.mxu0 0.0
        %3081 = vmatpush2.msra.mxu0 0.0
        %3082 = vmatprep.mubr.f32.mxu0 0.0
        %3083 = vmatmul.mubr.f32.gmra.mxu0 %v3007
        %v3084 = vpop.f32.mrf.mxu0
        %v3085 = vadd.f32 0.0, %v3084
        %v3086 = vpop.f32.mrf.mxu0
        %3087 = vmatprep.mubr.f32.mxu0 0.0
        %3088 = vmatmul.mubr.f32.gmra.mxu0 %v3010
        %v3089 = vpop.f32.mrf.mxu0
        %v3090 = vadd.f32 0.0, %v3089
        %v3091 = vpop.f32.mrf.mxu0
        %3092 = vmatprep.mubr.f32.mxu0 0.0
        %3093 = vmatmul.mubr.f32.gmra.mxu0 %v3013
        %v3094 = vpop.f32.mrf.mxu0
        %v3095 = vadd.f32 0.0, %v3094
        %v3096 = vpop.f32.mrf.mxu0
        %3097 = vmatprep.mubr.f32.mxu0 0.0
        %3098 = vmatmul.mubr.f32.gmra.mxu0 %v3016
        %v3099 = vpop.f32.mrf.mxu0
        %v3100 = vadd.f32 0.0, %v3099
        %v3101 = vpop.f32.mrf.mxu0
        %3102 = vdwg.mxu0
        %vm3103 = vcmask 523264
        %3104 = vst.msk [vmem:[#allocation2] sm:$0xff] %vm3103, %v3085
        %3105 = vst.msk [vmem:[#allocation2 + $0x8] sm:$0xff] %vm3103, %v3090
        %3108 = vrot.lane.b32.xlu0 %v3095, 64
        %v3109 = vpop.permute.xlu0 %3108
        %3110 = vrot.lane.b32.xlu0 %v3100, 64
        %v3111 = vpop.permute.xlu0 %3110
        %vm3114 = vcmask 1048064
        %3115 = vst.msk [vmem:[#allocation2] sm:$0xff] %vm3114, %v3109
        %3116 = vst.msk [vmem:[#allocation2 + $0x8] sm:$0xff] %vm3114, %v3111
        %3119 = vrot.lane.b32.xlu0 %v3085, 64
        %v3120 = vpop.permute.xlu0 %3119
        %3121 = vrot.lane.b32.xlu0 %v3090, 64
        %v3122 = vpop.permute.xlu0 %3121
        %3125 = vst.msk [vmem:[#allocation2 + $0x10] sm:$0xff] %vm3103, %v3120
        %3126 = vst.msk [vmem:[#allocation2 + $0x18] sm:$0xff] %vm3103, %v3122
        %3127 = vst.msk [vmem:[#allocation2 + $0x10] sm:$0xff] %vm3114, %v3095
        %3128 = vst.msk [vmem:[#allocation2 + $0x18] sm:$0xff] %vm3114, %v3100
        %v3129 = vld [vmem:[#allocation2] sm:$0xff]
        %v3130 = vld [vmem:[#allocation2 + $0x8] sm:$0xff]
        %v3131 = vld [vmem:[#allocation2 + $0x10] sm:$0xff]
        %v3132 = vld [vmem:[#allocation2 + $0x18] sm:$0xff]
        %v3133 = vld [vmem:[#allocation14] sm:$0xff]
        %v3134 = vld [vmem:[#allocation14 + $0x8] sm:$0xff]
        %v3135 = vld [vmem:[#allocation14 + $0x10] sm:$0xff]
        %v3136 = vld [vmem:[#allocation14 + $0x18] sm:$0xff]
        %v3137 = vld [vmem:[#allocation14 + $0x20] sm:$0xff]
        %v3138 = vld [vmem:[#allocation14 + $0x28] sm:$0xff]
        %v3139 = vld [vmem:[#allocation14 + $0x30] sm:$0xff]
        %v3140 = vld [vmem:[#allocation14 + $0x38] sm:$0xff]
        %v3141 = vld [vmem:[#allocation14 + $0x40] sm:$0xff]
        %v3142 = vld [vmem:[#allocation14 + $0x48] sm:$0xff]
        %v3143 = vld [vmem:[#allocation14 + $0x50] sm:$0xff]
        %v3144 = vld [vmem:[#allocation14 + $0x58] sm:$0xff]
        %v3145 = vld [vmem:[#allocation14 + $0x60] sm:$0xff]
        %v3146 = vld [vmem:[#allocation14 + $0x68] sm:$0xff]
        %v3147 = vld [vmem:[#allocation14 + $0x70] sm:$0xff]
        %v3148 = vld [vmem:[#allocation14 + $0x78] sm:$0xff]
        %3149 = vmatprep.subr.mxu0 0.0
        %3150 = vmatpush1.msra.mxu0 %v3148
        %3151 = vmatprep.subr.mxu0 0.0
        %3152 = vmatpush1.msra.mxu0 %v3147
        %3153 = vmatprep.subr.mxu0 0.0
        %3154 = vmatpush1.msra.mxu0 %v3146
        %3155 = vmatprep.subr.mxu0 0.0
        %3156 = vmatpush1.msra.mxu0 %v3145
        %3157 = vmatprep.subr.mxu0 0.0
        %3158 = vmatpush1.msra.mxu0 %v3144
        %3159 = vmatprep.subr.mxu0 0.0
        %3160 = vmatpush1.msra.mxu0 %v3143
        %3161 = vmatprep.subr.mxu0 0.0
        %3162 = vmatpush1.msra.mxu0 %v3142
        %3163 = vmatprep.subr.mxu0 0.0
        %3164 = vmatpush1.msra.mxu0 %v3141
        %3165 = vmatprep.subr.mxu0 0.0
        %3166 = vmatpush1.msra.mxu0 %v3140
        %3167 = vmatprep.subr.mxu0 0.0
        %3168 = vmatpush1.msra.mxu0 %v3139
        %3169 = vmatprep.subr.mxu0 0.0
        %3170 = vmatpush1.msra.mxu0 %v3138
        %3171 = vmatprep.subr.mxu0 0.0
        %3172 = vmatpush1.msra.mxu0 %v3137
        %3173 = vmatprep.subr.mxu0 0.0
        %3174 = vmatpush1.msra.mxu0 %v3136
        %3175 = vmatprep.subr.mxu0 0.0
        %3176 = vmatpush1.msra.mxu0 %v3135
        %3177 = vmatprep.subr.mxu0 0.0
        %3178 = vmatpush1.msra.mxu0 %v3134
        %3179 = vmatprep.subr.mxu0 0.0
        %3180 = vmatpush1.msra.mxu0 %v3133
        %3181 = vmatprep.subr.mxu0 0.0
        %3182 = vmatpush2.msra.mxu0 0.0
        %3183 = vmatprep.subr.mxu0 0.0
        %3184 = vmatpush2.msra.mxu0 0.0
        %3185 = vmatprep.subr.mxu0 0.0
        %3186 = vmatpush2.msra.mxu0 0.0
        %3187 = vmatprep.subr.mxu0 0.0
        %3188 = vmatpush2.msra.mxu0 0.0
        %3189 = vmatprep.subr.mxu0 0.0
        %3190 = vmatpush2.msra.mxu0 0.0
        %3191 = vmatprep.subr.mxu0 0.0
        %3192 = vmatpush2.msra.mxu0 0.0
        %3193 = vmatprep.subr.mxu0 0.0
        %3194 = vmatpush2.msra.mxu0 0.0
        %3195 = vmatprep.subr.mxu0 0.0
        %3196 = vmatpush2.msra.mxu0 0.0
        %3197 = vmatprep.subr.mxu0 0.0
        %3198 = vmatpush2.msra.mxu0 0.0
        %3199 = vmatprep.subr.mxu0 0.0
        %3200 = vmatpush2.msra.mxu0 0.0
        %3201 = vmatprep.subr.mxu0 0.0
        %3202 = vmatpush2.msra.mxu0 0.0
        %3203 = vmatprep.subr.mxu0 0.0
        %3204 = vmatpush2.msra.mxu0 0.0
        %3205 = vmatprep.subr.mxu0 0.0
        %3206 = vmatpush2.msra.mxu0 0.0
        %3207 = vmatprep.subr.mxu0 0.0
        %3208 = vmatpush2.msra.mxu0 0.0
        %3209 = vmatprep.subr.mxu0 0.0
        %3210 = vmatpush2.msra.mxu0 0.0
        %3211 = vmatprep.subr.mxu0 0.0
        %3212 = vmatpush2.msra.mxu0 0.0
        %3213 = vmatprep.mubr.f32.mxu0 0.0
        %3214 = vmatmul.mubr.f32.gmra.mxu0 %v3129
        %v3215 = vpop.f32.mrf.mxu0
        %v3216 = vadd.f32 0.0, %v3215
        %v3217 = vpop.f32.mrf.mxu0
        %3218 = vmatprep.mubr.f32.mxu0 0.0
        %3219 = vmatmul.mubr.f32.gmra.mxu0 %v3130
        %v3220 = vpop.f32.mrf.mxu0
        %v3221 = vadd.f32 0.0, %v3220
        %v3222 = vpop.f32.mrf.mxu0
        %3223 = vmatprep.mubr.f32.mxu0 0.0
        %3224 = vmatmul.mubr.f32.gmra.mxu0 %v3131
        %v3225 = vpop.f32.mrf.mxu0
        %v3226 = vadd.f32 0.0, %v3225
        %v3227 = vpop.f32.mrf.mxu0
        %3228 = vmatprep.mubr.f32.mxu0 0.0
        %3229 = vmatmul.mubr.f32.gmra.mxu0 %v3132
        %v3230 = vpop.f32.mrf.mxu0
        %v3231 = vadd.f32 0.0, %v3230
        %v3232 = vpop.f32.mrf.mxu0
        %3233 = vdwg.mxu0
        %v3234 = vld [vmem:[#allocation11] sm:$0xff]
        %v3235 = vld [vmem:[#allocation11 + $0x8] sm:$0xff]
        %v3236 = vld [vmem:[#allocation11 + $0x10] sm:$0xff]
        %v3237 = vld [vmem:[#allocation11 + $0x18] sm:$0xff]
        %vm3238 = vcmp.ne.f32.partialorder %v3234, 0.0
        %vm3239 = vcmp.ne.f32.partialorder %v3235, 0.0
        %vm3240 = vcmp.ne.f32.partialorder %v3236, 0.0
        %vm3241 = vcmp.ne.f32.partialorder %v3237, 0.0
        %v3242 = vld [vmem:[#allocation9] sm:$0xff]
        %v3243 = vld [vmem:[#allocation9 + $0x8] sm:$0xff]
        %v3244 = vld [vmem:[#allocation9 + $0x10] sm:$0xff]
        %v3245 = vld [vmem:[#allocation9 + $0x18] sm:$0xff]
        %v3246 = vsel %vm3238, %v3242, %v3216
        %v3247 = vsel %vm3239, %v3243, %v3221
        %v3248 = vsel %vm3240, %v3244, %v3226
        %v3249 = vsel %vm3241, %v3245, %v3231
        %v3250 = vld [vmem:[#allocation15] sm:$0xff]
        %v3251 = vld [vmem:[#allocation15 + $0x8] sm:$0xff]
        %v3252 = vld [vmem:[#allocation15 + $0x10] sm:$0xff]
        %v3253 = vld [vmem:[#allocation15 + $0x18] sm:$0xff]
        %v3254 = vld [vmem:[#allocation15 + $0x20] sm:$0xff]
        %v3255 = vld [vmem:[#allocation15 + $0x28] sm:$0xff]
        %v3256 = vld [vmem:[#allocation15 + $0x30] sm:$0xff]
        %v3257 = vld [vmem:[#allocation15 + $0x38] sm:$0xff]
        %v3258 = vld [vmem:[#allocation15 + $0x40] sm:$0xff]
        %v3259 = vld [vmem:[#allocation15 + $0x48] sm:$0xff]
        %v3260 = vld [vmem:[#allocation15 + $0x50] sm:$0xff]
        %v3261 = vld [vmem:[#allocation15 + $0x58] sm:$0xff]
        %v3262 = vld [vmem:[#allocation15 + $0x60] sm:$0xff]
        %v3263 = vld [vmem:[#allocation15 + $0x68] sm:$0xff]
        %v3264 = vld [vmem:[#allocation15 + $0x70] sm:$0xff]
        %v3265 = vld [vmem:[#allocation15 + $0x78] sm:$0xff]
        %3266 = vmatprep.subr.mxu0 0.0
        %3267 = vmatpush1.msra.mxu0 %v3265
        %3268 = vmatprep.subr.mxu0 0.0
        %3269 = vmatpush1.msra.mxu0 %v3264
        %3270 = vmatprep.subr.mxu0 0.0
        %3271 = vmatpush1.msra.mxu0 %v3263
        %3272 = vmatprep.subr.mxu0 0.0
        %3273 = vmatpush1.msra.mxu0 %v3262
        %3274 = vmatprep.subr.mxu0 0.0
        %3275 = vmatpush1.msra.mxu0 %v3261
        %3276 = vmatprep.subr.mxu0 0.0
        %3277 = vmatpush1.msra.mxu0 %v3260
        %3278 = vmatprep.subr.mxu0 0.0
        %3279 = vmatpush1.msra.mxu0 %v3259
        %3280 = vmatprep.subr.mxu0 0.0
        %3281 = vmatpush1.msra.mxu0 %v3258
        %3282 = vmatprep.subr.mxu0 0.0
        %3283 = vmatpush1.msra.mxu0 %v3257
        %3284 = vmatprep.subr.mxu0 0.0
        %3285 = vmatpush1.msra.mxu0 %v3256
        %3286 = vmatprep.subr.mxu0 0.0
        %3287 = vmatpush1.msra.mxu0 %v3255
        %3288 = vmatprep.subr.mxu0 0.0
        %3289 = vmatpush1.msra.mxu0 %v3254
        %3290 = vmatprep.subr.mxu0 0.0
        %3291 = vmatpush1.msra.mxu0 %v3253
        %3292 = vmatprep.subr.mxu0 0.0
        %3293 = vmatpush1.msra.mxu0 %v3252
        %3294 = vmatprep.subr.mxu0 0.0
        %3295 = vmatpush1.msra.mxu0 %v3251
        %3296 = vmatprep.subr.mxu0 0.0
        %3297 = vmatpush1.msra.mxu0 %v3250
        %3298 = vmatprep.subr.mxu0 0.0
        %3299 = vmatpush2.msra.mxu0 0.0
        %3300 = vmatprep.subr.mxu0 0.0
        %3301 = vmatpush2.msra.mxu0 0.0
        %3302 = vmatprep.subr.mxu0 0.0
        %3303 = vmatpush2.msra.mxu0 0.0
        %3304 = vmatprep.subr.mxu0 0.0
        %3305 = vmatpush2.msra.mxu0 0.0
        %3306 = vmatprep.subr.mxu0 0.0
        %3307 = vmatpush2.msra.mxu0 0.0
        %3308 = vmatprep.subr.mxu0 0.0
        %3309 = vmatpush2.msra.mxu0 0.0
        %3310 = vmatprep.subr.mxu0 0.0
        %3311 = vmatpush2.msra.mxu0 0.0
        %3312 = vmatprep.subr.mxu0 0.0
        %3313 = vmatpush2.msra.mxu0 0.0
        %3314 = vmatprep.subr.mxu0 0.0
        %3315 = vmatpush2.msra.mxu0 0.0
        %3316 = vmatprep.subr.mxu0 0.0
        %3317 = vmatpush2.msra.mxu0 0.0
        %3318 = vmatprep.subr.mxu0 0.0
        %3319 = vmatpush2.msra.mxu0 0.0
        %3320 = vmatprep.subr.mxu0 0.0
        %3321 = vmatpush2.msra.mxu0 0.0
        %3322 = vmatprep.subr.mxu0 0.0
        %3323 = vmatpush2.msra.mxu0 0.0
        %3324 = vmatprep.subr.mxu0 0.0
        %3325 = vmatpush2.msra.mxu0 0.0
        %3326 = vmatprep.subr.mxu0 0.0
        %3327 = vmatpush2.msra.mxu0 0.0
        %3328 = vmatprep.subr.mxu0 0.0
        %3329 = vmatpush2.msra.mxu0 0.0
        %3330 = vmatprep.mubr.f32.mxu0 0.0
        %3331 = vmatmul.mubr.f32.gmra.mxu0 %v3246
        %v3332 = vpop.f32.mrf.mxu0
        %v3333 = vadd.f32 0.0, %v3332
        %v3334 = vpop.f32.mrf.mxu0
        %3335 = vmatprep.mubr.f32.mxu0 0.0
        %3336 = vmatmul.mubr.f32.gmra.mxu0 %v3247
        %v3337 = vpop.f32.mrf.mxu0
        %v3338 = vadd.f32 0.0, %v3337
        %v3339 = vpop.f32.mrf.mxu0
        %3340 = vmatprep.mubr.f32.mxu0 0.0
        %3341 = vmatmul.mubr.f32.gmra.mxu0 %v3248
        %v3342 = vpop.f32.mrf.mxu0
        %v3343 = vadd.f32 0.0, %v3342
        %v3344 = vpop.f32.mrf.mxu0
        %3345 = vmatprep.mubr.f32.mxu0 0.0
        %3346 = vmatmul.mubr.f32.gmra.mxu0 %v3249
        %v3347 = vpop.f32.mrf.mxu0
        %v3348 = vadd.f32 0.0, %v3347
        %v3349 = vpop.f32.mrf.mxu0
        %3350 = vdwg.mxu0
        %3351 = vst.msk [vmem:[#allocation24] sm:$0xff] %vm3103, %v3333
        %3352 = vst.msk [vmem:[#allocation24 + $0x8] sm:$0xff] %vm3103, %v3338
        %3355 = vrot.lane.b32.xlu0 %v3333, 64
        %v3356 = vpop.permute.xlu0 %3355
        %3357 = vrot.lane.b32.xlu0 %v3338, 64
        %v3358 = vpop.permute.xlu0 %3357
        %3361 = vst.msk [vmem:[#allocation24 + $0x10] sm:$0xff] %vm3103, %v3356
        %3362 = vst.msk [vmem:[#allocation24 + $0x18] sm:$0xff] %vm3103, %v3358
        %3365 = vrot.lane.b32.xlu0 %v3343, 64
        %v3366 = vpop.permute.xlu0 %3365
        %3367 = vrot.lane.b32.xlu0 %v3348, 64
        %v3368 = vpop.permute.xlu0 %3367
        %3371 = vst.msk [vmem:[#allocation24] sm:$0xff] %vm3114, %v3366
        %3372 = vst.msk [vmem:[#allocation24 + $0x8] sm:$0xff] %vm3114, %v3368
        %3373 = vst.msk [vmem:[#allocation24 + $0x10] sm:$0xff] %vm3114, %v3343
        %3374 = vst.msk [vmem:[#allocation24 + $0x18] sm:$0xff] %vm3114, %v3348
        %v3375 = vld [vmem:[#allocation17] sm:$0xff]
        %v3376 = vld [vmem:[#allocation17 + $0x8] sm:$0xff]
        %v3377 = vld [vmem:[#allocation17 + $0x10] sm:$0xff]
        %v3378 = vld [vmem:[#allocation17 + $0x18] sm:$0xff]
        %v3379 = vld [vmem:[#allocation24] sm:$0xff]
        %v3380 = vld [vmem:[#allocation24 + $0x8] sm:$0xff]
        %v3381 = vld [vmem:[#allocation24 + $0x10] sm:$0xff]
        %v3382 = vld [vmem:[#allocation24 + $0x18] sm:$0xff]
        %v3384 = vsel %vm3005, %v3375, 0
        %v3387 = vsel %vm3005, %v3376, 0
        %v3390 = vsel %vm3005, %v3377, 0
        %v3393 = vsel %vm3005, %v3378, 0
        %3395 = vmatprep.subr.mxu0 0.0
        %3396 = vmatpush1.msra.mxu0 0.0
        %3397 = vmatprep.subr.mxu0 0.0
        %3398 = vmatpush1.msra.mxu0 0.0
        %3399 = vmatprep.subr.mxu0 0.0
        %3400 = vmatpush1.msra.mxu0 0.0
        %3401 = vmatprep.subr.mxu0 0.0
        %3402 = vmatpush1.msra.mxu0 0.0
        %3403 = vmatprep.subr.mxu0 0.0
        %3404 = vmatpush1.msra.mxu0 0.0
        %3405 = vmatprep.subr.mxu0 0.0
        %3406 = vmatpush1.msra.mxu0 0.0
        %3407 = vmatprep.subr.mxu0 0.0
        %3408 = vmatpush1.msra.mxu0 0.0
        %3409 = vmatprep.subr.mxu0 0.0
        %3410 = vmatpush1.msra.mxu0 0.0
        %3411 = vmatprep.subr.mxu0 0.0
        %3412 = vmatpush1.msra.mxu0 0.0
        %3413 = vmatprep.subr.mxu0 0.0
        %3414 = vmatpush1.msra.mxu0 0.0
        %3415 = vmatprep.subr.mxu0 0.0
        %3416 = vmatpush1.msra.mxu0 0.0
        %3417 = vmatprep.subr.mxu0 0.0
        %3418 = vmatpush1.msra.mxu0 0.0
        %3419 = vmatprep.subr.mxu0 0.0
        %3420 = vmatpush1.msra.mxu0 %v3382
        %3421 = vmatprep.subr.mxu0 0.0
        %3422 = vmatpush1.msra.mxu0 %v3381
        %3423 = vmatprep.subr.mxu0 0.0
        %3424 = vmatpush1.msra.mxu0 %v3380
        %3425 = vmatprep.subr.mxu0 0.0
        %3426 = vmatpush1.msra.mxu0 %v3379
        %3427 = vmatprep.subr.mxu0 0.0
        %3428 = vmatpush2.msra.mxu0 0.0
        %3429 = vmatprep.subr.mxu0 0.0
        %3430 = vmatpush2.msra.mxu0 0.0
        %3431 = vmatprep.subr.mxu0 0.0
        %3432 = vmatpush2.msra.mxu0 0.0
        %3433 = vmatprep.subr.mxu0 0.0
        %3434 = vmatpush2.msra.mxu0 0.0
        %3435 = vmatprep.subr.mxu0 0.0
        %3436 = vmatpush2.msra.mxu0 0.0
        %3437 = vmatprep.subr.mxu0 0.0
        %3438 = vmatpush2.msra.mxu0 0.0
        %3439 = vmatprep.subr.mxu0 0.0
        %3440 = vmatpush2.msra.mxu0 0.0
        %3441 = vmatprep.subr.mxu0 0.0
        %3442 = vmatpush2.msra.mxu0 0.0
        %3443 = vmatprep.subr.mxu0 0.0
        %3444 = vmatpush2.msra.mxu0 0.0
        %3445 = vmatprep.subr.mxu0 0.0
        %3446 = vmatpush2.msra.mxu0 0.0
        %3447 = vmatprep.subr.mxu0 0.0
        %3448 = vmatpush2.msra.mxu0 0.0
        %3449 = vmatprep.subr.mxu0 0.0
        %3450 = vmatpush2.msra.mxu0 0.0
        %3451 = vmatprep.subr.mxu0 0.0
        %3452 = vmatpush2.msra.mxu0 0.0
        %3453 = vmatprep.subr.mxu0 0.0
        %3454 = vmatpush2.msra.mxu0 0.0
        %3455 = vmatprep.subr.mxu0 0.0
        %3456 = vmatpush2.msra.mxu0 0.0
        %3457 = vmatprep.subr.mxu0 0.0
        %3458 = vmatpush2.msra.mxu0 0.0
        %3459 = vmatprep.mubr.f32.mxu0 0.0
        %3460 = vmatmul.mubr.f32.gmra.mxu0 %v3384
        %v3461 = vpop.f32.mrf.mxu0
        %v3462 = vadd.f32 0.0, %v3461
        %v3463 = vpop.f32.mrf.mxu0
        %3464 = vmatprep.mubr.f32.mxu0 0.0
        %3465 = vmatmul.mubr.f32.gmra.mxu0 %v3387
        %v3466 = vpop.f32.mrf.mxu0
        %v3467 = vadd.f32 0.0, %v3466
        %v3468 = vpop.f32.mrf.mxu0
        %3469 = vmatprep.mubr.f32.mxu0 0.0
        %3470 = vmatmul.mubr.f32.gmra.mxu0 %v3390
        %v3471 = vpop.f32.mrf.mxu0
        %v3472 = vadd.f32 0.0, %v3471
        %v3473 = vpop.f32.mrf.mxu0
        %3474 = vmatprep.mubr.f32.mxu0 0.0
        %3475 = vmatmul.mubr.f32.gmra.mxu0 %v3393
        %v3476 = vpop.f32.mrf.mxu0
        %v3477 = vadd.f32 0.0, %v3476
        %v3478 = vpop.f32.mrf.mxu0
        %3479 = vdwg.mxu0
        %3480 = vst [vmem:[#allocation24] sm:$0xff] %v3462
        %3481 = vst [vmem:[#allocation24 + $0x8] sm:$0xff] %v3467
        %3482 = vst [vmem:[#allocation24 + $0x10] sm:$0xff] %v3472
        %3483 = vst [vmem:[#allocation24 + $0x18] sm:$0xff] %v3477
        // Predicated region
        $region121: #{tpu_custom_call.1} parent=67 // pred_check
          %p3484 = pneg %p297
        $region122: #{tpu_custom_call.1} parent=67 // pred_check_branch
          %3486 = sbr.rel (%p3484) target = $region124
        $region123: #{tpu_custom_call.1} parent=67 // pred_region
          %s3488 = ssub.s32 512, 512
          %3489 = vsyncadd [#allocation5], %s3488
          %s3490 = sshll.u32 [#allocation24], 4
          %s3491 = int_to_ptr.vmem [resolvable:$true] %s3490
          %3496 = dma.vmem_to_hbm [thread:$0]  %s3491, 512, %s12, [#allocation5], 128, 128, 8
        $region124: #{tpu_custom_call.1} parent=67 // pred_fallthru
          _
        // Predicated region
        $region125: #{tpu_custom_call.1} parent=67 // pred_check
          %p3497 = pneg %p297
        $region126: #{tpu_custom_call.1} parent=67 // pred_check_branch
          %3499 = sbr.rel (%p3497) target = $region128
        $region127: #{tpu_custom_call.1} parent=67 // pred_region
          %3500 = dma.done [#allocation5], 512
        $region128: #{tpu_custom_call.1} parent=67 // pred_fallthru
          _
      $region68: #{tpu_custom_call.1} parent=5 // pred_fallthru
        _
      %p3501 = scmp.le.s32.totalorder 2, %s27
      // Predicated region
      $region129: #{tpu_custom_call.1} parent=5 // pred_check
        %p3502 = pneg %p3501
      $region130: #{tpu_custom_call.1} parent=5 // pred_check_branch
        %3504 = sbr.rel (%p3502) target = $region132
      $region131: #{tpu_custom_call.1} parent=5 // pred_region
        %s3505 = ssub.s32 %s27, 2
      $region132: #{tpu_custom_call.1} parent=5 // pred_fallthru
        _
    $region6: #{tpu_custom_call.1} parent=1 // loop_footer
      %s31 = sadd.s32 1, %s27
    $region7: #{tpu_custom_call.1} parent=1 // loop_footer_branch
      %26 = sbr.rel target = $region3
    $region8: #{tpu_custom_call.1} parent=1 // loop_exit
      _
    %3506 = vsyncpa [#allocation4], 1
    %s3507 = scalar_lea.sflag [#allocation4], 1
    %3508 = vsyncpa %s3507, 1
    %3509 = vsyncpa [#allocation10], 1
    %3510 = vsyncpa [#allocation13], 1
    %3511 = vsyncpa [#allocation16], 1
    %3512 = vsyncpa [#allocation5], 1
    %s3513 = scalar_lea.sflag [#allocation5], 1
    %3514 = vsyncpa %s3513, 1
    %3515 = vsyncpa [#allocation6], 1
    %s3516 = scalar_lea.sflag [#allocation6], 1
    %3517 = vsyncpa %s3516, 1
    %3518 = vsyncpa [#allocation7], 1
    %s3519 = scalar_lea.sflag [#allocation7], 1
    %3520 = vsyncpa %s3519, 1
    %3521 = vsyncpa [#allocation20], 1
    %3522 = vsyncpa [#allocation23], 1

</llo_original>
